<compile_context>
chip_gen: v6e
topology: v6e:2x2x1
jax: 0.10.0
libtpu: 0.0.40
codegen_flags: <defaults>
</compile_context>

<pallas_src>
import functools

import jax
import jax.numpy as jnp
from jax import lax
from jax.experimental import pallas as pl
from jax.experimental.pallas import tpu as pltpu

LN_EPS = 1e-5

PARAM_KEYS = [
    "ln0_w", "ln0_b", "ln1_w", "ln1_b", "ln2_w", "ln2_b",
    "time_decay", "time_first",
    "att_mix_k", "att_mix_v", "att_mix_r",
    "att_wk", "att_wv", "att_wr", "att_wo",
    "ffn_mix_k", "ffn_mix_r",
    "ffn_wk", "ffn_wr", "ffn_wv",
]


def _round_up(v, m):
    return (v + m - 1) // m * m


def _largest_divisor_leq(n, target):
    target = max(1, min(n, target))
    for d in range(target, 0, -1):
        if n % d == 0:
            return d
    return 1


def block_kernel(
    # per-(batch-block, time-chunk) inputs (time-major)
    x_ref, att_lastx_ref, att_state_ref, ffn_lastx_ref,
    # parameters (grid-invariant)
    ln0_w_ref, ln0_b_ref, ln1_w_ref, ln1_b_ref, ln2_w_ref, ln2_b_ref,
    time_decay_ref, time_first_ref,
    att_mix_k_ref, att_mix_v_ref, att_mix_r_ref,
    att_wk_ref, att_wv_ref, att_wr_ref, att_wo_ref,
    ffn_mix_k_ref, ffn_mix_r_ref,
    ffn_wk_ref, ffn_wr_ref, ffn_wv_ref,
    # outputs
    y_ref, att_lastx_out_ref, att_state_out_ref, ffn_lastx_out_ref,
    # VMEM scratch (persists across grid steps; carried across the T-chunk axis)
    k_scr, v_scr, state_scr, att_lx_scr, ffn_lx_scr,
    *, d_real, unroll, d_chunks,
):
    TT, BB, Dp = x_ref.shape
    inv_d = 1.0 / float(d_real)
    mm_dtype = att_wk_ref.dtype
    t_blk = pl.program_id(1)

    # ---- chunk-0 init of the state carried across the T-chunk ("arbitrary") axis
    @pl.when(t_blk == 0)
    def _():
        state_scr[...] = att_state_ref[...]
        att_lx_scr[...] = att_lastx_ref[...]
        ffn_lx_scr[...] = ffn_lastx_ref[...]

    # channel mask only when lanes are padded; hoisted and pre-broadcast once
    if d_real < Dp:
        mask_row = (lax.broadcasted_iota(jnp.int32, (1, Dp), 1) < d_real
                    ).astype(jnp.float32)
        mask3 = jnp.broadcast_to(mask_row.reshape(1, 1, Dp), (TT, BB, Dp))
    else:
        mask_row = None
        mask3 = None

    def layernorm(h, w, b):
        mu = jnp.sum(h, axis=-1, keepdims=True) * inv_d
        diff = h - mu
        if mask3 is not None:
            diff = diff * mask3
        var = jnp.sum(diff * diff, axis=-1, keepdims=True) * inv_d
        return diff * lax.rsqrt(var + LN_EPS) * w + b

    def mm2(h2d, w_ref):
        # bf16 (or f32) MXU matmul with f32 accumulation
        return jnp.dot(h2d.astype(mm_dtype), w_ref[...],
                       preferred_element_type=jnp.float32)

    xb = x_ref[...]                                          # (TT, BB, Dp) f32

    # ln0 (pre_norm=True) then ln1 feeding attention
    x0 = layernorm(xb, ln0_w_ref[...], ln0_b_ref[...])
    xa = layernorm(x0, ln1_w_ref[...], ln1_b_ref[...])

    # --- Attention ----------------------------------------------------------
    last_att = att_lx_scr[...]                               # (1, BB, Dp)
    shifted = (jnp.concatenate([last_att, xa[:-1]], axis=0) if TT > 1
               else last_att)
    att_lx_scr[...] = xa[TT - 1:TT]                          # carry to next chunk

    mk = att_mix_k_ref[...]
    mv = att_mix_v_ref[...]
    mr = att_mix_r_ref[...]
    xk = (xa * mk + shifted * (1.0 - mk)).reshape(TT * BB, Dp)
    xv = (xa * mv + shifted * (1.0 - mv)).reshape(TT * BB, Dp)
    xr = (xa * mr + shifted * (1.0 - mr)).reshape(TT * BB, Dp)

    k = mm2(xk, att_wk_ref)                                  # (TT*BB, Dp) f32
    v = mm2(xv, att_wv_ref)
    r = mm2(xr, att_wr_ref)
    sr = jax.nn.sigmoid(r)

    # stash k/v time-major; k scratch is later overwritten with the wkv rows
    k_scr[...] = k.reshape(TT, BB, Dp)
    v_scr[...] = v.reshape(TT, BB, Dp)

    # hoist broadcasts out of the loop (no per-iteration broadcast_in_dim)
    w_dec = jnp.broadcast_to(jnp.exp(time_decay_ref[...]), (BB, Dp))
    u_first = jnp.broadcast_to(time_first_ref[...], (BB, Dp))

    # WKV recurrence: outer static loop over D-chunks keeps the (alpha,beta,eps)
    # carry in vregs; inner fori over the time tile.
    for (c0, c1) in d_chunks:
        whole = (c0 == 0 and c1 == Dp)
        k_c = k_scr if whole else k_scr.at[:, :, c0:c1]
        v_c = v_scr if whole else v_scr.at[:, :, c0:c1]
        s_c = state_scr if whole else state_scr.at[:, :, c0:c1]
        w_c = w_dec if whole else w_dec[:, c0:c1]
        u_c = u_first if whole else u_first[:, c0:c1]

        def wkv_step(t, carry):
            alpha, beta, eps = carry
            kt = k_c[t]                                      # (BB, dc)
            vt = v_c[t]
            # output for this step
            ukt = u_c + kt
            tau = jnp.maximum(ukt, eps)
            e1 = jnp.exp(eps - tau)
            e2 = jnp.exp(ukt - tau)
            wkv = (e1 * alpha + e2 * vt) * pl.reciprocal(e1 * beta + e2,
                                                         approx=True)
            # state update (last use of kt) before overwriting k with wkv
            w_eps = eps - w_c
            eps_n = jnp.maximum(w_eps, kt)
            e1n = jnp.exp(w_eps - eps_n)
            e2n = jnp.exp(kt - eps_n)
            alpha_n = e1n * alpha + e2n * vt
            beta_n = e1n * beta + e2n
            k_c[t] = wkv                                     # reuse k scratch
            return (alpha_n, beta_n, eps_n)

        alpha, beta, eps = lax.fori_loop(
            0, TT, wkv_step, (s_c[0], s_c[1], s_c[2]), unroll=unroll)
        s_c[0] = alpha
        s_c[1] = beta
        s_c[2] = eps

    rwkv = k_scr[...].reshape(TT * BB, Dp) * sr              # k_scr now holds wkv
    att_out = mm2(rwkv, att_wo_ref).reshape(TT, BB, Dp)
    x1 = x0 + att_out                                        # residual

    # --- FeedForward --------------------------------------------------------
    x2 = layernorm(x1, ln2_w_ref[...], ln2_b_ref[...])
    last_ffn = ffn_lx_scr[...]
    shifted_f = (jnp.concatenate([last_ffn, x2[:-1]], axis=0) if TT > 1
                 else last_ffn)
    ffn_lx_scr[...] = x2[TT - 1:TT]                          # carry to next chunk

    fmk = ffn_mix_k_ref[...]
    fmr = ffn_mix_r_ref[...]
    xkf = (x2 * fmk + shifted_f * (1.0 - fmk)).reshape(TT * BB, Dp)
    xrf = (x2 * fmr + shifted_f * (1.0 - fmr)).reshape(TT * BB, Dp)
    kf = mm2(xkf, ffn_wk_ref)                                # (TT*BB, Fp)
    rf = mm2(xrf, ffn_wr_ref)                                # (TT*BB, Dp)
    kf = jnp.maximum(kf, 0.0)
    kf = kf * kf                                             # relu(k)**2 in f32
    vk = mm2(kf, ffn_wv_ref)                                 # (TT*BB, Dp)
    ffn_out = jax.nn.sigmoid(rf) * vk
    y = x1 + ffn_out.reshape(TT, BB, Dp)                     # residual

    # --- Outputs (state outputs revisit the same block over the T axis) ------
    y_ref[...] = y.astype(y_ref.dtype)
    att_lastx_out_ref[...] = att_lx_scr[...]
    if mask_row is not None:
        # padding hygiene: padded lanes of the carried state are zeroed
        att_state_out_ref[...] = state_scr[...] * mask_row.reshape(1, 1, Dp)
    else:
        att_state_out_ref[...] = state_scr[...]
    ffn_lastx_out_ref[...] = ffn_lx_scr[...]


def rwkv_block(x, params, state=None, *, matmul_dtype=jnp.bfloat16,
               batch_block=None, time_block=None, d_chunk=None,
               out_dtype=jnp.float32):
    B, T, D = x.shape
    F = params["ffn_wk"].shape[1]
    Dp = _round_up(D, 128)
    Fp = _round_up(F, 128)

    # ---- tile selection ------------------------------------------------------
    bpad8 = _round_up(B, 8)
    if batch_block is None:
        BB = min(32, bpad8)
        # keep >= 2 parallel grid steps when the batch allows it (v7x: 2 TCs)
        if bpad8 // BB < 2 and BB > 8:
            BB = max(8, (bpad8 // 2) // 8 * 8)
    else:
        BB = batch_block
    assert BB % 8 == 0, "batch_block must be a multiple of 8 (sublane packing)"
    Bp = _round_up(B, BB)

    if time_block is None:
        tt_target = max(1, -(-256 // BB))                 # aim for M = TT*BB >= 256
        tt_vmem_cap = max(1, (24 * 2**20) // (10 * BB * Dp * 4))
        TT = _largest_divisor_leq(T, min(tt_target, tt_vmem_cap))
    else:
        TT = time_block
    assert T % TT == 0, "time_block must divide T"

    # recurrence D-chunking: keep the 3x(BB, dc) f32 carry within ~24 vregs
    dc_target = d_chunk if d_chunk is not None else max(128, (8192 // BB) // 128 * 128)
    dc = _largest_divisor_leq(Dp // 128, max(1, dc_target // 128)) * 128
    d_chunks = tuple((c, min(c + dc, Dp)) for c in range(0, Dp, dc))

    # re-derived unroll: larger BB*dc per iteration -> smaller unroll (vreg pressure)
    unroll_cap = min(8, max(2, 8192 // (BB * dc)))
    unroll = _largest_divisor_leq(TT, unroll_cap)

    if state is None:
        att_lastx = jnp.zeros((B, 1, D), jnp.float32)     # Attention.init_x
        att_state = jnp.zeros((B, 3, D), jnp.float32)     # WKV state (alpha, beta, eps)
        ffn_lastx = jnp.zeros((B, 1, D), jnp.float32)     # FeedForward.init_state
    else:
        (att_lastx, att_state), ffn_lastx = state

    # ---- layout plumbing: zero-pad + time-major (rows, Bp, Dp) ---------------
    def to_tm(a):
        a = jnp.asarray(a, jnp.float32)
        a = jnp.pad(a, ((0, Bp - B), (0, 0), (0, Dp - D)))
        return jnp.transpose(a, (1, 0, 2))

    def from_tm(a):
        return jnp.transpose(a, (1, 0, 2))[:B, :, :D]

    def pad_vec(a):
        a = jnp.asarray(a, jnp.float32)
        return jnp.pad(a, ((0, 0), (0, Dp - a.shape[1])))

    def pad_mat(a, rows, cols):
        a = jnp.asarray(a, jnp.float32)
        a = jnp.pad(a, ((0, rows - a.shape[0]), (0, cols - a.shape[1])))
        return a.astype(matmul_dtype)

    padded = {}
    for kname in ("ln0_w", "ln0_b", "ln1_w", "ln1_b", "ln2_w", "ln2_b",
                  "time_decay", "time_first",
                  "att_mix_k", "att_mix_v", "att_mix_r",
                  "ffn_mix_k", "ffn_mix_r"):
        padded[kname] = pad_vec(params[kname])
    for kname in ("att_wk", "att_wv", "att_wr", "att_wo", "ffn_wr"):
        padded[kname] = pad_mat(params[kname], Dp, Dp)
    padded["ffn_wk"] = pad_mat(params["ffn_wk"], Dp, Fp)
    padded["ffn_wv"] = pad_mat(params["ffn_wv"], Fp, Dp)
    plist = [padded[kname] for kname in PARAM_KEYS]

    x_tm = to_tm(x)                       # (T, Bp, Dp)
    att_lx_tm = to_tm(att_lastx)          # (1, Bp, Dp)
    att_st_tm = to_tm(att_state)          # (3, Bp, Dp)
    ffn_lx_tm = to_tm(ffn_lastx)          # (1, Bp, Dp)

    grid = (Bp // BB, T // TT)

    # ---- VMEM budget (generation-aware) + cost estimate ----------------------
    w_itemsize = jnp.dtype(matmul_dtype).itemsize
    w_bytes = (5 * Dp * Dp + 2 * Dp * Fp) * w_itemsize + 13 * Dp * 4
    act_blk = TT * BB * Dp * 4
    state_blk = 5 * BB * Dp * 4
    est = (2 * w_bytes                    # conservative: params double-buffered
           + 2 * 2 * act_blk              # x + y pipeline buffers
           + 2 * 2 * state_blk            # small state in/out pipeline buffers
           + 2 * act_blk + state_blk      # k/v scratch + carried-state scratch
           + 8 * act_blk)                 # headroom for live f32 temporaries
    try:
        kind = jax.devices()[0].device_kind.lower()
    except Exception:
        kind = ""
    cap = (48 * 2**20) if "v7" in kind else (100 * 2**20)
    vmem_limit = int(min(cap, max(32 * 2**20, 2 * est)))

    tokens = Bp * T
    cost = pl.CostEstimate(
        flops=int(2 * tokens * (5 * Dp * Dp + 2 * Dp * Fp)),
        transcendentals=int(tokens * Dp * 8),
        bytes_accessed=int(4 * (2 * Bp * T * Dp + 10 * Bp * Dp) + w_bytes),
    )

    kernel = functools.partial(block_kernel, d_real=D, unroll=unroll,
                               d_chunks=d_chunks)

    x_spec = pl.BlockSpec((TT, BB, Dp), lambda b, t: (t, b, 0))
    s1_spec = pl.BlockSpec((1, BB, Dp), lambda b, t: (0, b, 0))
    s3_spec = pl.BlockSpec((3, BB, Dp), lambda b, t: (0, b, 0))
    out_shape = (
        jax.ShapeDtypeStruct((T, Bp, Dp), out_dtype),
        jax.ShapeDtypeStruct((1, Bp, Dp), jnp.float32),
        jax.ShapeDtypeStruct((3, Bp, Dp), jnp.float32),
        jax.ShapeDtypeStruct((1, Bp, Dp), jnp.float32),
    )
    out_specs = (x_spec, s1_spec, s3_spec, s1_spec)
    scratch_shapes = [
        pltpu.VMEM((TT, BB, Dp), jnp.float32),   # k rows, reused for wkv rows
        pltpu.VMEM((TT, BB, Dp), jnp.float32),   # v rows
        pltpu.VMEM((3, BB, Dp), jnp.float32),    # (alpha, beta, eps) carry
        pltpu.VMEM((1, BB, Dp), jnp.float32),    # attention last-x carry
        pltpu.VMEM((1, BB, Dp), jnp.float32),    # ffn last-x carry
    ]

    def make_fn(single_buffer_params):
        if single_buffer_params:
            # grid-invariant parameter blocks: single-buffer them (halves their
            # VMEM residency; there is nothing to pipeline across grid steps).
            p_specs = [pl.BlockSpec(p.shape, lambda b, t: (0, 0),
                                    pipeline_mode=pl.Buffered(1)) for p in plist]
        else:
            p_specs = [pl.BlockSpec(p.shape, lambda b, t: (0, 0)) for p in plist]
        return pl.pallas_call(
            kernel,
            out_shape=out_shape,
            grid_spec=pltpu.PrefetchScalarGridSpec(
                num_scalar_prefetch=0,
                grid=grid,
                in_specs=[x_spec, s1_spec, s3_spec, s1_spec] + p_specs,
                out_specs=out_specs,
                scratch_shapes=scratch_shapes,
            ),
            compiler_params=pltpu.CompilerParams(
                dimension_semantics=("parallel", "arbitrary"),
                vmem_limit_bytes=vmem_limit,
            ),
            cost_estimate=cost,
        )

    args = (x_tm, att_lx_tm, att_st_tm, ffn_lx_tm, *plist)
    try:
        y_tm, alx_tm, ast_tm, flx_tm = make_fn(True)(*args)
    except Exception:
        # Compatibility guard: if pipeline_mode=pl.Buffered(1) is unsupported on
        # this JAX build, fall back to default double-buffered parameter blocks.
        y_tm, alx_tm, ast_tm, flx_tm = make_fn(False)(*args)

    y = from_tm(y_tm)
    att_lx = from_tm(alx_tm)
    att_st = from_tm(ast_tm)
    ffn_lx = from_tm(flx_tm)
    return y, ((att_lx, att_st), ffn_lx)


# ---------------- plain-JAX reference (for correctness check) ----------------
def rwkv_block_ref(x, p, state=None, matmul_dtype=jnp.float32):
    B, T, D = x.shape

    def ln(h, w, b):
        mu = jnp.mean(h, axis=-1, keepdims=True)
        var = jnp.mean((h - mu) ** 2, axis=-1, keepdims=True)
        return (h - mu) * lax.rsqrt(var + LN_EPS) * w + b

    def mm(h, w):
        return jnp.dot(h.astype(matmul_dtype), w.astype(matmul_dtype),
                       preferred_element_type=jnp.float32)

    if state is None:
        att_lastx = jnp.zeros((B, 1, D), jnp.float32)
        att_state = jnp.zeros((B, 3, D), jnp.float32)
        ffn_lastx = jnp.zeros((B, 1, D), jnp.float32)
    else:
        (att_lastx, att_state), ffn_lastx = state

    x0 = ln(x, p["ln0_w"], p["ln0_b"])
    xa = ln(x0, p["ln1_w"], p["ln1_b"])

    shifted = jnp.concatenate([att_lastx, xa[:, :-1, :]], axis=1)
    mk, mv, mr = p["att_mix_k"], p["att_mix_v"], p["att_mix_r"]
    k = mm(xa * mk + shifted * (1 - mk), p["att_wk"])
    v = mm(xa * mv + shifted * (1 - mv), p["att_wv"])
    r = mm(xa * mr + shifted * (1 - mr), p["att_wr"])
    sr = jax.nn.sigmoid(r)

    w = jnp.exp(p["time_decay"])
    u = p["time_first"]
    alpha = att_state[:, 0:1, :]
    beta = att_state[:, 1:2, :]
    eps = att_state[:, 2:3, :]
    outs = []
    for t in range(T):
        kt, vt = k[:, t:t + 1, :], v[:, t:t + 1, :]
        ukt = u + kt
        tau = jnp.maximum(ukt, eps)
        e1, e2 = jnp.exp(eps - tau), jnp.exp(ukt - tau)
        outs.append((e1 * alpha + e2 * vt) / (e1 * beta + e2))
        w_eps = eps - w
        eps = jnp.maximum(w_eps, kt)
        e1, e2 = jnp.exp(w_eps - eps), jnp.exp(kt - eps)
        alpha = e1 * alpha + e2 * vt
        beta = e1 * beta + e2
    wkv = jnp.concatenate(outs, axis=1)

    x1 = x0 + mm(wkv * sr, p["att_wo"])

    x2 = ln(x1, p["ln2_w"], p["ln2_b"])
    shifted_f = jnp.concatenate([ffn_lastx, x2[:, :-1, :]], axis=1)
    fmk, fmr = p["ffn_mix_k"], p["ffn_mix_r"]
    kf = mm(x2 * fmk + shifted_f * (1 - fmk), p["ffn_wk"])
    rf = mm(x2 * fmr + shifted_f * (1 - fmr), p["ffn_wr"])
    vk = mm(jnp.maximum(kf, 0.0) ** 2, p["ffn_wv"])
    y = x1 + jax.nn.sigmoid(rf) * vk

    att_state_out = jnp.concatenate([alpha, beta, eps], axis=1)   # (B, 3, D)
    return y, ((xa[:, -1:, :], att_state_out), x2[:, -1:, :])


def init_params(key, dim, ffn_dim):
    ks = iter(jax.random.split(key, 32))

    def nrm(shape, scale):
        return (scale * jax.random.normal(next(ks), shape)).astype(jnp.float32)

    def uni(shape):
        return jax.random.uniform(next(ks), shape, jnp.float32, 0.1, 0.9)

    inv_d = 1.0 / (dim ** 0.5)
    inv_f = 1.0 / (ffn_dim ** 0.5)
    return {
        "ln0_w": 1.0 + nrm((1, dim), 0.02), "ln0_b": nrm((1, dim), 0.02),
        "ln1_w": 1.0 + nrm((1, dim), 0.02), "ln1_b": nrm((1, dim), 0.02),
        "ln2_w": 1.0 + nrm((1, dim), 0.02), "ln2_b": nrm((1, dim), 0.02),
        "time_decay": nrm((1, dim), 0.5),
        "time_first": nrm((1, dim), 0.5),
        "att_mix_k": uni((1, dim)), "att_mix_v": uni((1, dim)), "att_mix_r": uni((1, dim)),
        "att_wk": nrm((dim, dim), inv_d), "att_wv": nrm((dim, dim), inv_d),
        "att_wr": nrm((dim, dim), inv_d), "att_wo": nrm((dim, dim), inv_d),
        "ffn_mix_k": uni((1, dim)), "ffn_mix_r": uni((1, dim)),
        "ffn_wk": nrm((dim, ffn_dim), inv_d),
        "ffn_wr": nrm((dim, dim), inv_d),
        "ffn_wv": nrm((ffn_dim, dim), inv_f),
    }


def _check(name, got, want, tol=1e-2):
    err = float(jnp.max(jnp.abs(got - want) / (1.0 + jnp.abs(want))))
    assert err < tol, f"{name}: relative-abs err {err:.3e} >= {tol}"


if __name__ == "__main__":
    B, T, D = 2, 8, 32
    key = jax.random.PRNGKey(0)
    kx, kx2, kp = jax.random.split(key, 3)
    x = jax.random.normal(kx, (B, T, D), jnp.float32)
    params = init_params(kp, D, 4 * D)

    # 1) fresh-state path (defaults: bf16 matmuls, auto tile selection)
    y, state = rwkv_block(x, params, state=None)
    jax.block_until_ready(y)
    y_bf, state_bf = rwkv_block_ref(x, params, state=None, matmul_dtype=jnp.bfloat16)
    y_f32, _ = rwkv_block_ref(x, params, state=None, matmul_dtype=jnp.float32)
    (att_lx, att_st), ffn_lx = state
    (att_lx_r, att_st_r), ffn_lx_r = state_bf
    _check("y (vs bf16 ref)", y, y_bf, tol=1e-2)
    _check("y (vs f32 ref, drift guard)", y, y_f32, tol=1e-1)
    _check("att_lastx", att_lx, att_lx_r)
    _check("att_state", att_st, att_st_r)
    _check("ffn_lastx", ffn_lx, ffn_lx_r)

    # 2) carried-state path
    x_next = jax.random.normal(kx2, (B, T, D), jnp.float32)
    y2, state2 = rwkv_block(x_next, params, state=state)
    jax.block_until_ready(y2)
    y2_r, state2_r = rwkv_block_ref(x_next, params, state=state,
                                    matmul_dtype=jnp.bfloat16)
    (att_lx2, att_st2), ffn_lx2 = state2
    (att_lx2_r, att_st2_r), ffn_lx2_r = state2_r
    _check("y2", y2, y2_r)
    _check("att_lastx2", att_lx2, att_lx2_r)
    _check("att_state2", att_st2, att_st2_r)
    _check("ffn_lastx2", ffn_lx2, ffn_lx2_r)

    # 3) T-chunked grid (state carried in VMEM scratch across the 'arbitrary'
    #    time axis), f32 matmuls vs. the f32 reference.
    y3, state3 = rwkv_block(x, params, state=None,
                            matmul_dtype=jnp.float32, time_block=2)
    jax.block_until_ready(y3)
    y3_r, state3_r = rwkv_block_ref(x, params, state=None,
                                    matmul_dtype=jnp.float32)
    (att_lx3, att_st3), ffn_lx3 = state3
    (att_lx3_r, att_st3_r), ffn_lx3_r = state3_r
    _check("y (T-chunked, f32)", y3, y3_r, tol=5e-3)
    _check("att_lastx (T-chunked)", att_lx3, att_lx3_r, tol=5e-3)
    _check("att_state (T-chunked)", att_st3, att_st3_r, tol=5e-3)
    _check("ffn_lastx (T-chunked)", ffn_lx3, ffn_lx3_r, tol=5e-3)

    print("KERNEL_OK")
</pallas_src>

<mosaic_0001>
module attributes {stable_mosaic.version = 11 : i64} {
  func.func @block_kernel(%arg0: i32, %arg1: i32, %arg2: memref<8x8x128xf32, #tpu.memory_space<vmem>>, %arg3: memref<1x8x128xf32, #tpu.memory_space<vmem>>, %arg4: memref<3x8x128xf32, #tpu.memory_space<vmem>>, %arg5: memref<1x8x128xf32, #tpu.memory_space<vmem>>, %arg6: memref<1x128xf32, #tpu.memory_space<vmem>>, %arg7: memref<1x128xf32, #tpu.memory_space<vmem>>, %arg8: memref<1x128xf32, #tpu.memory_space<vmem>>, %arg9: memref<1x128xf32, #tpu.memory_space<vmem>>, %arg10: memref<1x128xf32, #tpu.memory_space<vmem>>, %arg11: memref<1x128xf32, #tpu.memory_space<vmem>>, %arg12: memref<1x128xf32, #tpu.memory_space<vmem>>, %arg13: memref<1x128xf32, #tpu.memory_space<vmem>>, %arg14: memref<1x128xf32, #tpu.memory_space<vmem>>, %arg15: memref<1x128xf32, #tpu.memory_space<vmem>>, %arg16: memref<1x128xf32, #tpu.memory_space<vmem>>, %arg17: memref<128x128xbf16, #tpu.memory_space<vmem>>, %arg18: memref<128x128xbf16, #tpu.memory_space<vmem>>, %arg19: memref<128x128xbf16, #tpu.memory_space<vmem>>, %arg20: memref<128x128xbf16, #tpu.memory_space<vmem>>, %arg21: memref<1x128xf32, #tpu.memory_space<vmem>>, %arg22: memref<1x128xf32, #tpu.memory_space<vmem>>, %arg23: memref<128x128xbf16, #tpu.memory_space<vmem>>, %arg24: memref<128x128xbf16, #tpu.memory_space<vmem>>, %arg25: memref<128x128xbf16, #tpu.memory_space<vmem>>, %arg26: memref<8x8x128xf32, #tpu.memory_space<vmem>>, %arg27: memref<1x8x128xf32, #tpu.memory_space<vmem>>, %arg28: memref<3x8x128xf32, #tpu.memory_space<vmem>>, %arg29: memref<1x8x128xf32, #tpu.memory_space<vmem>>, %arg30: memref<8x8x128xf32, #tpu.memory_space<vmem>>, %arg31: memref<8x8x128xf32, #tpu.memory_space<vmem>>, %arg32: memref<3x8x128xf32, #tpu.memory_space<vmem>>, %arg33: memref<1x8x128xf32, #tpu.memory_space<vmem>>, %arg34: memref<1x8x128xf32, #tpu.memory_space<vmem>>) attributes {dimension_semantics = [#tpu.dimension_semantics<parallel>, #tpu.dimension_semantics<arbitrary>], iteration_bounds = array<i64: 1, 1>, scalar_prefetch = 0 : i64, scratch_operands = 5 : i64, tpu.core_type = #tpu.core_type<tc>, window_params = [{transform_indices = @transform_0, window_bounds = array<i64: 8, 8, 128>}, {transform_indices = @transform_1, window_bounds = array<i64: 1, 8, 128>}, {transform_indices = @transform_2, window_bounds = array<i64: 3, 8, 128>}, {transform_indices = @transform_3, window_bounds = array<i64: 1, 8, 128>}, {pipeline_mode = #tpu.pipeline_mode<synchronous>, transform_indices = @transform_4, window_bounds = array<i64: 1, 128>}, {pipeline_mode = #tpu.pipeline_mode<synchronous>, transform_indices = @transform_5, window_bounds = array<i64: 1, 128>}, {pipeline_mode = #tpu.pipeline_mode<synchronous>, transform_indices = @transform_6, window_bounds = array<i64: 1, 128>}, {pipeline_mode = #tpu.pipeline_mode<synchronous>, transform_indices = @transform_7, window_bounds = array<i64: 1, 128>}, {pipeline_mode = #tpu.pipeline_mode<synchronous>, transform_indices = @transform_8, window_bounds = array<i64: 1, 128>}, {pipeline_mode = #tpu.pipeline_mode<synchronous>, transform_indices = @transform_9, window_bounds = array<i64: 1, 128>}, {pipeline_mode = #tpu.pipeline_mode<synchronous>, transform_indices = @transform_10, window_bounds = array<i64: 1, 128>}, {pipeline_mode = #tpu.pipeline_mode<synchronous>, transform_indices = @transform_11, window_bounds = array<i64: 1, 128>}, {pipeline_mode = #tpu.pipeline_mode<synchronous>, transform_indices = @transform_12, window_bounds = array<i64: 1, 128>}, {pipeline_mode = #tpu.pipeline_mode<synchronous>, transform_indices = @transform_13, window_bounds = array<i64: 1, 128>}, {pipeline_mode = #tpu.pipeline_mode<synchronous>, transform_indices = @transform_14, window_bounds = array<i64: 1, 128>}, {pipeline_mode = #tpu.pipeline_mode<synchronous>, transform_indices = @transform_15, window_bounds = array<i64: 128, 128>}, {pipeline_mode = #tpu.pipeline_mode<synchronous>, transform_indices = @transform_16, window_bounds = array<i64: 128, 128>}, {pipeline_mode = #tpu.pipeline_mode<synchronous>, transform_indices = @transform_17, window_bounds = array<i64: 128, 128>}, {pipeline_mode = #tpu.pipeline_mode<synchronous>, transform_indices = @transform_18, window_bounds = array<i64: 128, 128>}, {pipeline_mode = #tpu.pipeline_mode<synchronous>, transform_indices = @transform_19, window_bounds = array<i64: 1, 128>}, {pipeline_mode = #tpu.pipeline_mode<synchronous>, transform_indices = @transform_20, window_bounds = array<i64: 1, 128>}, {pipeline_mode = #tpu.pipeline_mode<synchronous>, transform_indices = @transform_21, window_bounds = array<i64: 128, 128>}, {pipeline_mode = #tpu.pipeline_mode<synchronous>, transform_indices = @transform_22, window_bounds = array<i64: 128, 128>}, {pipeline_mode = #tpu.pipeline_mode<synchronous>, transform_indices = @transform_23, window_bounds = array<i64: 128, 128>}, {transform_indices = @transform_24, window_bounds = array<i64: 8, 8, 128>}, {transform_indices = @transform_25, window_bounds = array<i64: 1, 8, 128>}, {transform_indices = @transform_26, window_bounds = array<i64: 3, 8, 128>}, {transform_indices = @transform_27, window_bounds = array<i64: 1, 8, 128>}]} {
    %c0_i32 = arith.constant 0 : i32
    %0 = arith.cmpi eq, %arg1, %c0_i32 : i32
    %1 = arith.extui %0 : i1 to i32
    %c0_i32_0 = arith.constant 0 : i32
    %2 = arith.cmpi ne, %1, %c0_i32_0 : i32
    scf.if %2 {
      %c0_179 = arith.constant 0 : index
      %c0_180 = arith.constant 0 : index
      %c0_181 = arith.constant 0 : index
      %502 = vector.load %arg4[%c0_179, %c0_180, %c0_181] : memref<3x8x128xf32, #tpu.memory_space<vmem>>, vector<3x8x128xf32>
      %c0_182 = arith.constant 0 : index
      %c0_183 = arith.constant 0 : index
      %c0_184 = arith.constant 0 : index
      %503 = vector.load %arg32[%c0_182, %c0_183, %c0_184] : memref<3x8x128xf32, #tpu.memory_space<vmem>>, vector<3x8x128xf32>
      tpu.vector_store %arg32[%c0_182, %c0_183, %c0_184], %502 {strides = array<i32>} : memref<3x8x128xf32, #tpu.memory_space<vmem>>, vector<3x8x128xf32>,
      %c0_185 = arith.constant 0 : index
      %c0_186 = arith.constant 0 : index
      %c0_187 = arith.constant 0 : index
      %504 = vector.load %arg3[%c0_185, %c0_186, %c0_187] : memref<1x8x128xf32, #tpu.memory_space<vmem>>, vector<1x8x128xf32>
      %c0_188 = arith.constant 0 : index
      %c0_189 = arith.constant 0 : index
      %c0_190 = arith.constant 0 : index
      %505 = vector.load %arg33[%c0_188, %c0_189, %c0_190] : memref<1x8x128xf32, #tpu.memory_space<vmem>>, vector<1x8x128xf32>
      tpu.vector_store %arg33[%c0_188, %c0_189, %c0_190], %504 {strides = array<i32>} : memref<1x8x128xf32, #tpu.memory_space<vmem>>, vector<1x8x128xf32>,
      %c0_191 = arith.constant 0 : index
      %c0_192 = arith.constant 0 : index
      %c0_193 = arith.constant 0 : index
      %506 = vector.load %arg5[%c0_191, %c0_192, %c0_193] : memref<1x8x128xf32, #tpu.memory_space<vmem>>, vector<1x8x128xf32>
      %c0_194 = arith.constant 0 : index
      %c0_195 = arith.constant 0 : index
      %c0_196 = arith.constant 0 : index
      %507 = vector.load %arg34[%c0_194, %c0_195, %c0_196] : memref<1x8x128xf32, #tpu.memory_space<vmem>>, vector<1x8x128xf32>
      tpu.vector_store %arg34[%c0_194, %c0_195, %c0_196], %506 {strides = array<i32>} : memref<1x8x128xf32, #tpu.memory_space<vmem>>, vector<1x8x128xf32>,
    } else {
    }
    %3 = tpu.iota {dimensions = array<i32: 1>} : vector<1x128xi32>
    %c32_i32 = arith.constant 32 : i32
    %4 = vector.broadcast %c32_i32 : i32 to vector<1x128xi32>
    %5 = arith.cmpi slt, %3, %4 : vector<1x128xi32>
    %6 = arith.extui %5 : vector<1x128xi1> to vector<1x128xi32>
    %7 = arith.sitofp %6 : vector<1x128xi32> to vector<1x128xf32>
    %8 = vector.shape_cast %7 : vector<1x128xf32> to vector<1x1x128xf32>
    %9 = vector.shape_cast %8 : vector<1x1x128xf32> to vector<1x1x128xf32>
    %10 = vector.broadcast %9 : vector<1x1x128xf32> to vector<8x8x128xf32>
    %c0 = arith.constant 0 : index
    %c0_1 = arith.constant 0 : index
    %c0_2 = arith.constant 0 : index
    %11 = vector.load %arg2[%c0, %c0_1, %c0_2] : memref<8x8x128xf32, #tpu.memory_space<vmem>>, vector<8x8x128xf32>
    %c0_3 = arith.constant 0 : index
    %c0_4 = arith.constant 0 : index
    %12 = vector.load %arg6[%c0_3, %c0_4] : memref<1x128xf32, #tpu.memory_space<vmem>>, vector<1x128xf32>
    %c0_5 = arith.constant 0 : index
    %c0_6 = arith.constant 0 : index
    %13 = vector.load %arg7[%c0_5, %c0_6] : memref<1x128xf32, #tpu.memory_space<vmem>>, vector<1x128xf32>
    %cst = arith.constant dense<0.000000e+00> : vector<8x8xf32>
    %14 = vector.multi_reduction <add>, %11, %cst [2] : vector<8x8x128xf32> to vector<8x8xf32>
    %15 = vector.shape_cast %14 : vector<8x8xf32> to vector<8x8x1xf32>
    %cst_7 = arith.constant 3.125000e-02 : f32
    %16 = vector.broadcast %cst_7 : f32 to vector<8x8x1xf32>
    %17 = arith.mulf %15, %16 : vector<8x8x1xf32>
    %18 = vector.broadcast %17 : vector<8x8x1xf32> to vector<8x8x128xf32>
    %19 = arith.subf %11, %18 : vector<8x8x128xf32>
    %20 = arith.mulf %19, %10 : vector<8x8x128xf32>
    %21 = arith.mulf %20, %20 : vector<8x8x128xf32>
    %cst_8 = arith.constant dense<0.000000e+00> : vector<8x8xf32>
    %22 = vector.multi_reduction <add>, %21, %cst_8 [2] : vector<8x8x128xf32> to vector<8x8xf32>
    %23 = vector.shape_cast %22 : vector<8x8xf32> to vector<8x8x1xf32>
    %cst_9 = arith.constant 3.125000e-02 : f32
    %24 = vector.broadcast %cst_9 : f32 to vector<8x8x1xf32>
    %25 = arith.mulf %23, %24 : vector<8x8x1xf32>
    %cst_10 = arith.constant 9.99999974E-6 : f32
    %26 = vector.broadcast %cst_10 : f32 to vector<8x8x1xf32>
    %27 = arith.addf %25, %26 : vector<8x8x1xf32>
    %28 = math.rsqrt %27 : vector<8x8x1xf32>
    %29 = vector.broadcast %28 : vector<8x8x1xf32> to vector<8x8x128xf32>
    %30 = arith.mulf %20, %29 : vector<8x8x128xf32>
    %31 = vector.shape_cast %12 : vector<1x128xf32> to vector<1x1x128xf32>
    %32 = vector.broadcast %31 : vector<1x1x128xf32> to vector<8x8x128xf32>
    %33 = arith.mulf %30, %32 : vector<8x8x128xf32>
    %34 = vector.shape_cast %13 : vector<1x128xf32> to vector<1x1x128xf32>
    %35 = vector.broadcast %34 : vector<1x1x128xf32> to vector<8x8x128xf32>
    %36 = arith.addf %33, %35 : vector<8x8x128xf32>
    %c0_11 = arith.constant 0 : index
    %c0_12 = arith.constant 0 : index
    %37 = vector.load %arg8[%c0_11, %c0_12] : memref<1x128xf32, #tpu.memory_space<vmem>>, vector<1x128xf32>
    %c0_13 = arith.constant 0 : index
    %c0_14 = arith.constant 0 : index
    %38 = vector.load %arg9[%c0_13, %c0_14] : memref<1x128xf32, #tpu.memory_space<vmem>>, vector<1x128xf32>
    %cst_15 = arith.constant dense<0.000000e+00> : vector<8x8xf32>
    %39 = vector.multi_reduction <add>, %36, %cst_15 [2] : vector<8x8x128xf32> to vector<8x8xf32>
    %40 = vector.shape_cast %39 : vector<8x8xf32> to vector<8x8x1xf32>
    %cst_16 = arith.constant 3.125000e-02 : f32
    %41 = vector.broadcast %cst_16 : f32 to vector<8x8x1xf32>
    %42 = arith.mulf %40, %41 : vector<8x8x1xf32>
    %43 = vector.broadcast %42 : vector<8x8x1xf32> to vector<8x8x128xf32>
    %44 = arith.subf %36, %43 : vector<8x8x128xf32>
    %45 = arith.mulf %44, %10 : vector<8x8x128xf32>
    %46 = arith.mulf %45, %45 : vector<8x8x128xf32>
    %cst_17 = arith.constant dense<0.000000e+00> : vector<8x8xf32>
    %47 = vector.multi_reduction <add>, %46, %cst_17 [2] : vector<8x8x128xf32> to vector<8x8xf32>
    %48 = vector.shape_cast %47 : vector<8x8xf32> to vector<8x8x1xf32>
    %cst_18 = arith.constant 3.125000e-02 : f32
    %49 = vector.broadcast %cst_18 : f32 to vector<8x8x1xf32>
    %50 = arith.mulf %48, %49 : vector<8x8x1xf32>
    %cst_19 = arith.constant 9.99999974E-6 : f32
    %51 = vector.broadcast %cst_19 : f32 to vector<8x8x1xf32>
    %52 = arith.addf %50, %51 : vector<8x8x1xf32>
    %53 = math.rsqrt %52 : vector<8x8x1xf32>
    %54 = vector.broadcast %53 : vector<8x8x1xf32> to vector<8x8x128xf32>
    %55 = arith.mulf %45, %54 : vector<8x8x128xf32>
    %56 = vector.shape_cast %37 : vector<1x128xf32> to vector<1x1x128xf32>
    %57 = vector.broadcast %56 : vector<1x1x128xf32> to vector<8x8x128xf32>
    %58 = arith.mulf %55, %57 : vector<8x8x128xf32>
    %59 = vector.shape_cast %38 : vector<1x128xf32> to vector<1x1x128xf32>
    %60 = vector.broadcast %59 : vector<1x1x128xf32> to vector<8x8x128xf32>
    %61 = arith.addf %58, %60 : vector<8x8x128xf32>
    %c0_20 = arith.constant 0 : index
    %c0_21 = arith.constant 0 : index
    %c0_22 = arith.constant 0 : index
    %62 = vector.load %arg33[%c0_20, %c0_21, %c0_22] : memref<1x8x128xf32, #tpu.memory_space<vmem>>, vector<1x8x128xf32>
    %63 = vector.extract_strided_slice %61 {offsets = [0, 0, 0], sizes = [7, 8, 128], strides = [1, 1, 1]} : vector<8x8x128xf32> to vector<7x8x128xf32>
    %64 = tpu.concatenate %62, %63 in 0 : vector<1x8x128xf32>, vector<7x8x128xf32> -> vector<8x8x128xf32>
    %65 = vector.extract_strided_slice %61 {offsets = [7, 0, 0], sizes = [1, 8, 128], strides = [1, 1, 1]} : vector<8x8x128xf32> to vector<1x8x128xf32>
    %c0_23 = arith.constant 0 : index
    %c0_24 = arith.constant 0 : index
    %c0_25 = arith.constant 0 : index
    %66 = vector.load %arg33[%c0_23, %c0_24, %c0_25] : memref<1x8x128xf32, #tpu.memory_space<vmem>>, vector<1x8x128xf32>
    tpu.vector_store %arg33[%c0_23, %c0_24, %c0_25], %65 {strides = array<i32>} : memref<1x8x128xf32, #tpu.memory_space<vmem>>, vector<1x8x128xf32>,
    %c0_26 = arith.constant 0 : index
    %c0_27 = arith.constant 0 : index
    %67 = vector.load %arg14[%c0_26, %c0_27] : memref<1x128xf32, #tpu.memory_space<vmem>>, vector<1x128xf32>
    %c0_28 = arith.constant 0 : index
    %c0_29 = arith.constant 0 : index
    %68 = vector.load %arg15[%c0_28, %c0_29] : memref<1x128xf32, #tpu.memory_space<vmem>>, vector<1x128xf32>
    %c0_30 = arith.constant 0 : index
    %c0_31 = arith.constant 0 : index
    %69 = vector.load %arg16[%c0_30, %c0_31] : memref<1x128xf32, #tpu.memory_space<vmem>>, vector<1x128xf32>
    %70 = vector.shape_cast %67 : vector<1x128xf32> to vector<1x1x128xf32>
    %71 = vector.broadcast %70 : vector<1x1x128xf32> to vector<8x8x128xf32>
    %72 = arith.mulf %61, %71 : vector<8x8x128xf32>
    %cst_32 = arith.constant 1.000000e+00 : f32
    %73 = vector.broadcast %cst_32 : f32 to vector<1x128xf32>
    %74 = arith.subf %73, %67 : vector<1x128xf32>
    %75 = vector.shape_cast %74 : vector<1x128xf32> to vector<1x1x128xf32>
    %76 = vector.broadcast %75 : vector<1x1x128xf32> to vector<8x8x128xf32>
    %77 = arith.mulf %64, %76 : vector<8x8x128xf32>
    %78 = arith.addf %72, %77 : vector<8x8x128xf32>
    %79 = vector.shape_cast %78 : vector<8x8x128xf32> to vector<64x128xf32>
    %80 = vector.shape_cast %68 : vector<1x128xf32> to vector<1x1x128xf32>
    %81 = vector.broadcast %80 : vector<1x1x128xf32> to vector<8x8x128xf32>
    %82 = arith.mulf %61, %81 : vector<8x8x128xf32>
    %cst_33 = arith.constant 1.000000e+00 : f32
    %83 = vector.broadcast %cst_33 : f32 to vector<1x128xf32>
    %84 = arith.subf %83, %68 : vector<1x128xf32>
    %85 = vector.shape_cast %84 : vector<1x128xf32> to vector<1x1x128xf32>
    %86 = vector.broadcast %85 : vector<1x1x128xf32> to vector<8x8x128xf32>
    %87 = arith.mulf %64, %86 : vector<8x8x128xf32>
    %88 = arith.addf %82, %87 : vector<8x8x128xf32>
    %89 = vector.shape_cast %88 : vector<8x8x128xf32> to vector<64x128xf32>
    %90 = vector.shape_cast %69 : vector<1x128xf32> to vector<1x1x128xf32>
    %91 = vector.broadcast %90 : vector<1x1x128xf32> to vector<8x8x128xf32>
    %92 = arith.mulf %61, %91 : vector<8x8x128xf32>
    %cst_34 = arith.constant 1.000000e+00 : f32
    %93 = vector.broadcast %cst_34 : f32 to vector<1x128xf32>
    %94 = arith.subf %93, %69 : vector<1x128xf32>
    %95 = vector.shape_cast %94 : vector<1x128xf32> to vector<1x1x128xf32>
    %96 = vector.broadcast %95 : vector<1x1x128xf32> to vector<8x8x128xf32>
    %97 = arith.mulf %64, %96 : vector<8x8x128xf32>
    %98 = arith.addf %92, %97 : vector<8x8x128xf32>
    %99 = vector.shape_cast %98 : vector<8x8x128xf32> to vector<64x128xf32>
    %100 = arith.truncf %79 : vector<64x128xf32> to vector<64x128xbf16>
    %c0_35 = arith.constant 0 : index
    %c0_36 = arith.constant 0 : index
    %101 = vector.load %arg17[%c0_35, %c0_36] : memref<128x128xbf16, #tpu.memory_space<vmem>>, vector<128x128xbf16>
    %cst_37 = arith.constant dense<0.000000e+00> : vector<64x128xf32>
    %102 = tpu.matmul %100, %101, %cst_37 {dimension_numbers = #tpu.dot_dimension_numbers<[1], [0], [0], [1], [0, 0, 1, 1], [], []>} : vector<64x128xbf16>, vector<128x128xbf16>, vector<64x128xf32> -> vector<64x128xf32>
    %103 = arith.truncf %89 : vector<64x128xf32> to vector<64x128xbf16>
    %c0_38 = arith.constant 0 : index
    %c0_39 = arith.constant 0 : index
    %104 = vector.load %arg18[%c0_38, %c0_39] : memref<128x128xbf16, #tpu.memory_space<vmem>>, vector<128x128xbf16>
    %cst_40 = arith.constant dense<0.000000e+00> : vector<64x128xf32>
    %105 = tpu.matmul %103, %104, %cst_40 {dimension_numbers = #tpu.dot_dimension_numbers<[1], [0], [0], [1], [0, 0, 1, 1], [], []>} : vector<64x128xbf16>, vector<128x128xbf16>, vector<64x128xf32> -> vector<64x128xf32>
    %106 = arith.truncf %99 : vector<64x128xf32> to vector<64x128xbf16>
    %c0_41 = arith.constant 0 : index
    %c0_42 = arith.constant 0 : index
    %107 = vector.load %arg19[%c0_41, %c0_42] : memref<128x128xbf16, #tpu.memory_space<vmem>>, vector<128x128xbf16>
    %cst_43 = arith.constant dense<0.000000e+00> : vector<64x128xf32>
    %108 = tpu.matmul %106, %107, %cst_43 {dimension_numbers = #tpu.dot_dimension_numbers<[1], [0], [0], [1], [0, 0, 1, 1], [], []>} : vector<64x128xbf16>, vector<128x128xbf16>, vector<64x128xf32> -> vector<64x128xf32>
    %109 = arith.negf %108 : vector<64x128xf32>
    %110 = math.exp %109 : vector<64x128xf32>
    %cst_44 = arith.constant 1.000000e+00 : f32
    %111 = vector.broadcast %cst_44 : f32 to vector<64x128xf32>
    %112 = arith.addf %111, %110 : vector<64x128xf32>
    %113 = arith.divf %111, %112 : vector<64x128xf32>
    %114 = vector.shape_cast %102 : vector<64x128xf32> to vector<8x8x128xf32>
    %c0_45 = arith.constant 0 : index
    %c0_46 = arith.constant 0 : index
    %c0_47 = arith.constant 0 : index
    %115 = vector.load %arg30[%c0_45, %c0_46, %c0_47] : memref<8x8x128xf32, #tpu.memory_space<vmem>>, vector<8x8x128xf32>
    tpu.vector_store %arg30[%c0_45, %c0_46, %c0_47], %114 {strides = array<i32>} : memref<8x8x128xf32, #tpu.memory_space<vmem>>, vector<8x8x128xf32>,
    %116 = vector.shape_cast %105 : vector<64x128xf32> to vector<8x8x128xf32>
    %c0_48 = arith.constant 0 : index
    %c0_49 = arith.constant 0 : index
    %c0_50 = arith.constant 0 : index
    %117 = vector.load %arg31[%c0_48, %c0_49, %c0_50] : memref<8x8x128xf32, #tpu.memory_space<vmem>>, vector<8x8x128xf32>
    tpu.vector_store %arg31[%c0_48, %c0_49, %c0_50], %116 {strides = array<i32>} : memref<8x8x128xf32, #tpu.memory_space<vmem>>, vector<8x8x128xf32>,
    %c0_51 = arith.constant 0 : index
    %c0_52 = arith.constant 0 : index
    %118 = vector.load %arg12[%c0_51, %c0_52] : memref<1x128xf32, #tpu.memory_space<vmem>>, vector<1x128xf32>
    %119 = math.exp %118 : vector<1x128xf32>
    %120 = vector.shape_cast %119 : vector<1x128xf32> to vector<1x128xf32>
    %121 = vector.broadcast %120 : vector<1x128xf32> to vector<8x128xf32>
    %c0_53 = arith.constant 0 : index
    %c0_54 = arith.constant 0 : index
    %122 = vector.load %arg13[%c0_53, %c0_54] : memref<1x128xf32, #tpu.memory_space<vmem>>, vector<1x128xf32>
    %123 = vector.shape_cast %122 : vector<1x128xf32> to vector<1x128xf32>
    %124 = vector.broadcast %123 : vector<1x128xf32> to vector<8x128xf32>
    %c0_55 = arith.constant 0 : index
    %c0_56 = arith.constant 0 : index
    %c0_57 = arith.constant 0 : index
    %125 = vector.load %arg32[%c0_55, %c0_56, %c0_57] : memref<3x8x128xf32, #tpu.memory_space<vmem>>, vector<1x8x128xf32>
    %126 = vector.shape_cast %125 : vector<1x8x128xf32> to vector<8x128xf32>
    %c1 = arith.constant 1 : index
    %c0_58 = arith.constant 0 : index
    %c0_59 = arith.constant 0 : index
    %127 = vector.load %arg32[%c1, %c0_58, %c0_59] : memref<3x8x128xf32, #tpu.memory_space<vmem>>, vector<1x8x128xf32>
    %128 = vector.shape_cast %127 : vector<1x8x128xf32> to vector<8x128xf32>
    %c2 = arith.constant 2 : index
    %c0_60 = arith.constant 0 : index
    %c0_61 = arith.constant 0 : index
    %129 = vector.load %arg32[%c2, %c0_60, %c0_61] : memref<3x8x128xf32, #tpu.memory_space<vmem>>, vector<1x8x128xf32>
    %130 = vector.shape_cast %129 : vector<1x8x128xf32> to vector<8x128xf32>
    %c0_i32_62 = arith.constant 0 : i32
    %131 = arith.index_cast %c0_i32_62 : i32 to index
    %c0_63 = arith.constant 0 : index
    %c0_64 = arith.constant 0 : index
    %132 = vector.load %arg30[%131, %c0_63, %c0_64] : memref<8x8x128xf32, #tpu.memory_space<vmem>>, vector<1x8x128xf32>
    %133 = vector.shape_cast %132 : vector<1x8x128xf32> to vector<8x128xf32>
    %134 = arith.index_cast %c0_i32_62 : i32 to index
    %c0_65 = arith.constant 0 : index
    %c0_66 = arith.constant 0 : index
    %135 = vector.load %arg31[%134, %c0_65, %c0_66] : memref<8x8x128xf32, #tpu.memory_space<vmem>>, vector<1x8x128xf32>
    %136 = vector.shape_cast %135 : vector<1x8x128xf32> to vector<8x128xf32>
    %137 = arith.addf %124, %133 : vector<8x128xf32>
    %138 = arith.maximumf %137, %130 : vector<8x128xf32>
    %139 = arith.subf %130, %138 : vector<8x128xf32>
    %140 = math.exp %139 : vector<8x128xf32>
    %141 = arith.subf %137, %138 : vector<8x128xf32>
    %142 = math.exp %141 : vector<8x128xf32>
    %143 = arith.mulf %140, %126 : vector<8x128xf32>
    %144 = arith.mulf %142, %136 : vector<8x128xf32>
    %145 = arith.addf %143, %144 : vector<8x128xf32>
    %146 = arith.mulf %140, %128 : vector<8x128xf32>
    %147 = arith.addf %146, %142 : vector<8x128xf32>
    %148 = tpu.reciprocal %147 {approx = true} : vector<8x128xf32> -> vector<8x128xf32>
    %149 = arith.mulf %145, %148 : vector<8x128xf32>
    %150 = arith.subf %130, %121 : vector<8x128xf32>
    %151 = arith.maximumf %150, %133 : vector<8x128xf32>
    %152 = arith.subf %150, %151 : vector<8x128xf32>
    %153 = math.exp %152 : vector<8x128xf32>
    %154 = arith.subf %133, %151 : vector<8x128xf32>
    %155 = math.exp %154 : vector<8x128xf32>
    %156 = arith.mulf %153, %126 : vector<8x128xf32>
    %157 = arith.mulf %155, %136 : vector<8x128xf32>
    %158 = arith.addf %156, %157 : vector<8x128xf32>
    %159 = arith.mulf %153, %128 : vector<8x128xf32>
    %160 = arith.addf %159, %155 : vector<8x128xf32>
    %161 = arith.index_cast %c0_i32_62 : i32 to index
    %c0_67 = arith.constant 0 : index
    %c0_68 = arith.constant 0 : index
    %162 = vector.load %arg30[%161, %c0_67, %c0_68] : memref<8x8x128xf32, #tpu.memory_space<vmem>>, vector<1x8x128xf32>
    %163 = vector.shape_cast %162 : vector<1x8x128xf32> to vector<8x128xf32>
    %164 = vector.shape_cast %149 : vector<8x128xf32> to vector<1x8x128xf32>
    tpu.vector_store %arg30[%161, %c0_67, %c0_68], %164 {strides = array<i32>} : memref<8x8x128xf32, #tpu.memory_space<vmem>>, vector<1x8x128xf32>,
    %c1_i32 = arith.constant 1 : i32
    %165 = arith.index_cast %c1_i32 : i32 to index
    %c0_69 = arith.constant 0 : index
    %c0_70 = arith.constant 0 : index
    %166 = vector.load %arg30[%165, %c0_69, %c0_70] : memref<8x8x128xf32, #tpu.memory_space<vmem>>, vector<1x8x128xf32>
    %167 = vector.shape_cast %166 : vector<1x8x128xf32> to vector<8x128xf32>
    %168 = arith.index_cast %c1_i32 : i32 to index
    %c0_71 = arith.constant 0 : index
    %c0_72 = arith.constant 0 : index
    %169 = vector.load %arg31[%168, %c0_71, %c0_72] : memref<8x8x128xf32, #tpu.memory_space<vmem>>, vector<1x8x128xf32>
    %170 = vector.shape_cast %169 : vector<1x8x128xf32> to vector<8x128xf32>
    %171 = arith.addf %124, %167 : vector<8x128xf32>
    %172 = arith.maximumf %171, %151 : vector<8x128xf32>
    %173 = arith.subf %151, %172 : vector<8x128xf32>
    %174 = math.exp %173 : vector<8x128xf32>
    %175 = arith.subf %171, %172 : vector<8x128xf32>
    %176 = math.exp %175 : vector<8x128xf32>
    %177 = arith.mulf %174, %158 : vector<8x128xf32>
    %178 = arith.mulf %176, %170 : vector<8x128xf32>
    %179 = arith.addf %177, %178 : vector<8x128xf32>
    %180 = arith.mulf %174, %160 : vector<8x128xf32>
    %181 = arith.addf %180, %176 : vector<8x128xf32>
    %182 = tpu.reciprocal %181 {approx = true} : vector<8x128xf32> -> vector<8x128xf32>
    %183 = arith.mulf %179, %182 : vector<8x128xf32>
    %184 = arith.subf %151, %121 : vector<8x128xf32>
    %185 = arith.maximumf %184, %167 : vector<8x128xf32>
    %186 = arith.subf %184, %185 : vector<8x128xf32>
    %187 = math.exp %186 : vector<8x128xf32>
    %188 = arith.subf %167, %185 : vector<8x128xf32>
    %189 = math.exp %188 : vector<8x128xf32>
    %190 = arith.mulf %187, %158 : vector<8x128xf32>
    %191 = arith.mulf %189, %170 : vector<8x128xf32>
    %192 = arith.addf %190, %191 : vector<8x128xf32>
    %193 = arith.mulf %187, %160 : vector<8x128xf32>
    %194 = arith.addf %193, %189 : vector<8x128xf32>
    %195 = arith.index_cast %c1_i32 : i32 to index
    %c0_73 = arith.constant 0 : index
    %c0_74 = arith.constant 0 : index
    %196 = vector.load %arg30[%195, %c0_73, %c0_74] : memref<8x8x128xf32, #tpu.memory_space<vmem>>, vector<1x8x128xf32>
    %197 = vector.shape_cast %196 : vector<1x8x128xf32> to vector<8x128xf32>
    %198 = vector.shape_cast %183 : vector<8x128xf32> to vector<1x8x128xf32>
    tpu.vector_store %arg30[%195, %c0_73, %c0_74], %198 {strides = array<i32>} : memref<8x8x128xf32, #tpu.memory_space<vmem>>, vector<1x8x128xf32>,
    %c2_i32 = arith.constant 2 : i32
    %199 = arith.index_cast %c2_i32 : i32 to index
    %c0_75 = arith.constant 0 : index
    %c0_76 = arith.constant 0 : index
    %200 = vector.load %arg30[%199, %c0_75, %c0_76] : memref<8x8x128xf32, #tpu.memory_space<vmem>>, vector<1x8x128xf32>
    %201 = vector.shape_cast %200 : vector<1x8x128xf32> to vector<8x128xf32>
    %202 = arith.index_cast %c2_i32 : i32 to index
    %c0_77 = arith.constant 0 : index
    %c0_78 = arith.constant 0 : index
    %203 = vector.load %arg31[%202, %c0_77, %c0_78] : memref<8x8x128xf32, #tpu.memory_space<vmem>>, vector<1x8x128xf32>
    %204 = vector.shape_cast %203 : vector<1x8x128xf32> to vector<8x128xf32>
    %205 = arith.addf %124, %201 : vector<8x128xf32>
    %206 = arith.maximumf %205, %185 : vector<8x128xf32>
    %207 = arith.subf %185, %206 : vector<8x128xf32>
    %208 = math.exp %207 : vector<8x128xf32>
    %209 = arith.subf %205, %206 : vector<8x128xf32>
    %210 = math.exp %209 : vector<8x128xf32>
    %211 = arith.mulf %208, %192 : vector<8x128xf32>
    %212 = arith.mulf %210, %204 : vector<8x128xf32>
    %213 = arith.addf %211, %212 : vector<8x128xf32>
    %214 = arith.mulf %208, %194 : vector<8x128xf32>
    %215 = arith.addf %214, %210 : vector<8x128xf32>
    %216 = tpu.reciprocal %215 {approx = true} : vector<8x128xf32> -> vector<8x128xf32>
    %217 = arith.mulf %213, %216 : vector<8x128xf32>
    %218 = arith.subf %185, %121 : vector<8x128xf32>
    %219 = arith.maximumf %218, %201 : vector<8x128xf32>
    %220 = arith.subf %218, %219 : vector<8x128xf32>
    %221 = math.exp %220 : vector<8x128xf32>
    %222 = arith.subf %201, %219 : vector<8x128xf32>
    %223 = math.exp %222 : vector<8x128xf32>
    %224 = arith.mulf %221, %192 : vector<8x128xf32>
    %225 = arith.mulf %223, %204 : vector<8x128xf32>
    %226 = arith.addf %224, %225 : vector<8x128xf32>
    %227 = arith.mulf %221, %194 : vector<8x128xf32>
    %228 = arith.addf %227, %223 : vector<8x128xf32>
    %229 = arith.index_cast %c2_i32 : i32 to index
    %c0_79 = arith.constant 0 : index
    %c0_80 = arith.constant 0 : index
    %230 = vector.load %arg30[%229, %c0_79, %c0_80] : memref<8x8x128xf32, #tpu.memory_space<vmem>>, vector<1x8x128xf32>
    %231 = vector.shape_cast %230 : vector<1x8x128xf32> to vector<8x128xf32>
    %232 = vector.shape_cast %217 : vector<8x128xf32> to vector<1x8x128xf32>
    tpu.vector_store %arg30[%229, %c0_79, %c0_80], %232 {strides = array<i32>} : memref<8x8x128xf32, #tpu.memory_space<vmem>>, vector<1x8x128xf32>,
    %c3_i32 = arith.constant 3 : i32
    %233 = arith.index_cast %c3_i32 : i32 to index
    %c0_81 = arith.constant 0 : index
    %c0_82 = arith.constant 0 : index
    %234 = vector.load %arg30[%233, %c0_81, %c0_82] : memref<8x8x128xf32, #tpu.memory_space<vmem>>, vector<1x8x128xf32>
    %235 = vector.shape_cast %234 : vector<1x8x128xf32> to vector<8x128xf32>
    %236 = arith.index_cast %c3_i32 : i32 to index
    %c0_83 = arith.constant 0 : index
    %c0_84 = arith.constant 0 : index
    %237 = vector.load %arg31[%236, %c0_83, %c0_84] : memref<8x8x128xf32, #tpu.memory_space<vmem>>, vector<1x8x128xf32>
    %238 = vector.shape_cast %237 : vector<1x8x128xf32> to vector<8x128xf32>
    %239 = arith.addf %124, %235 : vector<8x128xf32>
    %240 = arith.maximumf %239, %219 : vector<8x128xf32>
    %241 = arith.subf %219, %240 : vector<8x128xf32>
    %242 = math.exp %241 : vector<8x128xf32>
    %243 = arith.subf %239, %240 : vector<8x128xf32>
    %244 = math.exp %243 : vector<8x128xf32>
    %245 = arith.mulf %242, %226 : vector<8x128xf32>
    %246 = arith.mulf %244, %238 : vector<8x128xf32>
    %247 = arith.addf %245, %246 : vector<8x128xf32>
    %248 = arith.mulf %242, %228 : vector<8x128xf32>
    %249 = arith.addf %248, %244 : vector<8x128xf32>
    %250 = tpu.reciprocal %249 {approx = true} : vector<8x128xf32> -> vector<8x128xf32>
    %251 = arith.mulf %247, %250 : vector<8x128xf32>
    %252 = arith.subf %219, %121 : vector<8x128xf32>
    %253 = arith.maximumf %252, %235 : vector<8x128xf32>
    %254 = arith.subf %252, %253 : vector<8x128xf32>
    %255 = math.exp %254 : vector<8x128xf32>
    %256 = arith.subf %235, %253 : vector<8x128xf32>
    %257 = math.exp %256 : vector<8x128xf32>
    %258 = arith.mulf %255, %226 : vector<8x128xf32>
    %259 = arith.mulf %257, %238 : vector<8x128xf32>
    %260 = arith.addf %258, %259 : vector<8x128xf32>
    %261 = arith.mulf %255, %228 : vector<8x128xf32>
    %262 = arith.addf %261, %257 : vector<8x128xf32>
    %263 = arith.index_cast %c3_i32 : i32 to index
    %c0_85 = arith.constant 0 : index
    %c0_86 = arith.constant 0 : index
    %264 = vector.load %arg30[%263, %c0_85, %c0_86] : memref<8x8x128xf32, #tpu.memory_space<vmem>>, vector<1x8x128xf32>
    %265 = vector.shape_cast %264 : vector<1x8x128xf32> to vector<8x128xf32>
    %266 = vector.shape_cast %251 : vector<8x128xf32> to vector<1x8x128xf32>
    tpu.vector_store %arg30[%263, %c0_85, %c0_86], %266 {strides = array<i32>} : memref<8x8x128xf32, #tpu.memory_space<vmem>>, vector<1x8x128xf32>,
    %c4_i32 = arith.constant 4 : i32
    %267 = arith.index_cast %c4_i32 : i32 to index
    %c0_87 = arith.constant 0 : index
    %c0_88 = arith.constant 0 : index
    %268 = vector.load %arg30[%267, %c0_87, %c0_88] : memref<8x8x128xf32, #tpu.memory_space<vmem>>, vector<1x8x128xf32>
    %269 = vector.shape_cast %268 : vector<1x8x128xf32> to vector<8x128xf32>
    %270 = arith.index_cast %c4_i32 : i32 to index
    %c0_89 = arith.constant 0 : index
    %c0_90 = arith.constant 0 : index
    %271 = vector.load %arg31[%270, %c0_89, %c0_90] : memref<8x8x128xf32, #tpu.memory_space<vmem>>, vector<1x8x128xf32>
    %272 = vector.shape_cast %271 : vector<1x8x128xf32> to vector<8x128xf32>
    %273 = arith.addf %124, %269 : vector<8x128xf32>
    %274 = arith.maximumf %273, %253 : vector<8x128xf32>
    %275 = arith.subf %253, %274 : vector<8x128xf32>
    %276 = math.exp %275 : vector<8x128xf32>
    %277 = arith.subf %273, %274 : vector<8x128xf32>
    %278 = math.exp %277 : vector<8x128xf32>
    %279 = arith.mulf %276, %260 : vector<8x128xf32>
    %280 = arith.mulf %278, %272 : vector<8x128xf32>
    %281 = arith.addf %279, %280 : vector<8x128xf32>
    %282 = arith.mulf %276, %262 : vector<8x128xf32>
    %283 = arith.addf %282, %278 : vector<8x128xf32>
    %284 = tpu.reciprocal %283 {approx = true} : vector<8x128xf32> -> vector<8x128xf32>
    %285 = arith.mulf %281, %284 : vector<8x128xf32>
    %286 = arith.subf %253, %121 : vector<8x128xf32>
    %287 = arith.maximumf %286, %269 : vector<8x128xf32>
    %288 = arith.subf %286, %287 : vector<8x128xf32>
    %289 = math.exp %288 : vector<8x128xf32>
    %290 = arith.subf %269, %287 : vector<8x128xf32>
    %291 = math.exp %290 : vector<8x128xf32>
    %292 = arith.mulf %289, %260 : vector<8x128xf32>
    %293 = arith.mulf %291, %272 : vector<8x128xf32>
    %294 = arith.addf %292, %293 : vector<8x128xf32>
    %295 = arith.mulf %289, %262 : vector<8x128xf32>
    %296 = arith.addf %295, %291 : vector<8x128xf32>
    %297 = arith.index_cast %c4_i32 : i32 to index
    %c0_91 = arith.constant 0 : index
    %c0_92 = arith.constant 0 : index
    %298 = vector.load %arg30[%297, %c0_91, %c0_92] : memref<8x8x128xf32, #tpu.memory_space<vmem>>, vector<1x8x128xf32>
    %299 = vector.shape_cast %298 : vector<1x8x128xf32> to vector<8x128xf32>
    %300 = vector.shape_cast %285 : vector<8x128xf32> to vector<1x8x128xf32>
    tpu.vector_store %arg30[%297, %c0_91, %c0_92], %300 {strides = array<i32>} : memref<8x8x128xf32, #tpu.memory_space<vmem>>, vector<1x8x128xf32>,
    %c5_i32 = arith.constant 5 : i32
    %301 = arith.index_cast %c5_i32 : i32 to index
    %c0_93 = arith.constant 0 : index
    %c0_94 = arith.constant 0 : index
    %302 = vector.load %arg30[%301, %c0_93, %c0_94] : memref<8x8x128xf32, #tpu.memory_space<vmem>>, vector<1x8x128xf32>
    %303 = vector.shape_cast %302 : vector<1x8x128xf32> to vector<8x128xf32>
    %304 = arith.index_cast %c5_i32 : i32 to index
    %c0_95 = arith.constant 0 : index
    %c0_96 = arith.constant 0 : index
    %305 = vector.load %arg31[%304, %c0_95, %c0_96] : memref<8x8x128xf32, #tpu.memory_space<vmem>>, vector<1x8x128xf32>
    %306 = vector.shape_cast %305 : vector<1x8x128xf32> to vector<8x128xf32>
    %307 = arith.addf %124, %303 : vector<8x128xf32>
    %308 = arith.maximumf %307, %287 : vector<8x128xf32>
    %309 = arith.subf %287, %308 : vector<8x128xf32>
    %310 = math.exp %309 : vector<8x128xf32>
    %311 = arith.subf %307, %308 : vector<8x128xf32>
    %312 = math.exp %311 : vector<8x128xf32>
    %313 = arith.mulf %310, %294 : vector<8x128xf32>
    %314 = arith.mulf %312, %306 : vector<8x128xf32>
    %315 = arith.addf %313, %314 : vector<8x128xf32>
    %316 = arith.mulf %310, %296 : vector<8x128xf32>
    %317 = arith.addf %316, %312 : vector<8x128xf32>
    %318 = tpu.reciprocal %317 {approx = true} : vector<8x128xf32> -> vector<8x128xf32>
    %319 = arith.mulf %315, %318 : vector<8x128xf32>
    %320 = arith.subf %287, %121 : vector<8x128xf32>
    %321 = arith.maximumf %320, %303 : vector<8x128xf32>
    %322 = arith.subf %320, %321 : vector<8x128xf32>
    %323 = math.exp %322 : vector<8x128xf32>
    %324 = arith.subf %303, %321 : vector<8x128xf32>
    %325 = math.exp %324 : vector<8x128xf32>
    %326 = arith.mulf %323, %294 : vector<8x128xf32>
    %327 = arith.mulf %325, %306 : vector<8x128xf32>
    %328 = arith.addf %326, %327 : vector<8x128xf32>
    %329 = arith.mulf %323, %296 : vector<8x128xf32>
    %330 = arith.addf %329, %325 : vector<8x128xf32>
    %331 = arith.index_cast %c5_i32 : i32 to index
    %c0_97 = arith.constant 0 : index
    %c0_98 = arith.constant 0 : index
    %332 = vector.load %arg30[%331, %c0_97, %c0_98] : memref<8x8x128xf32, #tpu.memory_space<vmem>>, vector<1x8x128xf32>
    %333 = vector.shape_cast %332 : vector<1x8x128xf32> to vector<8x128xf32>
    %334 = vector.shape_cast %319 : vector<8x128xf32> to vector<1x8x128xf32>
    tpu.vector_store %arg30[%331, %c0_97, %c0_98], %334 {strides = array<i32>} : memref<8x8x128xf32, #tpu.memory_space<vmem>>, vector<1x8x128xf32>,
    %c6_i32 = arith.constant 6 : i32
    %335 = arith.index_cast %c6_i32 : i32 to index
    %c0_99 = arith.constant 0 : index
    %c0_100 = arith.constant 0 : index
    %336 = vector.load %arg30[%335, %c0_99, %c0_100] : memref<8x8x128xf32, #tpu.memory_space<vmem>>, vector<1x8x128xf32>
    %337 = vector.shape_cast %336 : vector<1x8x128xf32> to vector<8x128xf32>
    %338 = arith.index_cast %c6_i32 : i32 to index
    %c0_101 = arith.constant 0 : index
    %c0_102 = arith.constant 0 : index
    %339 = vector.load %arg31[%338, %c0_101, %c0_102] : memref<8x8x128xf32, #tpu.memory_space<vmem>>, vector<1x8x128xf32>
    %340 = vector.shape_cast %339 : vector<1x8x128xf32> to vector<8x128xf32>
    %341 = arith.addf %124, %337 : vector<8x128xf32>
    %342 = arith.maximumf %341, %321 : vector<8x128xf32>
    %343 = arith.subf %321, %342 : vector<8x128xf32>
    %344 = math.exp %343 : vector<8x128xf32>
    %345 = arith.subf %341, %342 : vector<8x128xf32>
    %346 = math.exp %345 : vector<8x128xf32>
    %347 = arith.mulf %344, %328 : vector<8x128xf32>
    %348 = arith.mulf %346, %340 : vector<8x128xf32>
    %349 = arith.addf %347, %348 : vector<8x128xf32>
    %350 = arith.mulf %344, %330 : vector<8x128xf32>
    %351 = arith.addf %350, %346 : vector<8x128xf32>
    %352 = tpu.reciprocal %351 {approx = true} : vector<8x128xf32> -> vector<8x128xf32>
    %353 = arith.mulf %349, %352 : vector<8x128xf32>
    %354 = arith.subf %321, %121 : vector<8x128xf32>
    %355 = arith.maximumf %354, %337 : vector<8x128xf32>
    %356 = arith.subf %354, %355 : vector<8x128xf32>
    %357 = math.exp %356 : vector<8x128xf32>
    %358 = arith.subf %337, %355 : vector<8x128xf32>
    %359 = math.exp %358 : vector<8x128xf32>
    %360 = arith.mulf %357, %328 : vector<8x128xf32>
    %361 = arith.mulf %359, %340 : vector<8x128xf32>
    %362 = arith.addf %360, %361 : vector<8x128xf32>
    %363 = arith.mulf %357, %330 : vector<8x128xf32>
    %364 = arith.addf %363, %359 : vector<8x128xf32>
    %365 = arith.index_cast %c6_i32 : i32 to index
    %c0_103 = arith.constant 0 : index
    %c0_104 = arith.constant 0 : index
    %366 = vector.load %arg30[%365, %c0_103, %c0_104] : memref<8x8x128xf32, #tpu.memory_space<vmem>>, vector<1x8x128xf32>
    %367 = vector.shape_cast %366 : vector<1x8x128xf32> to vector<8x128xf32>
    %368 = vector.shape_cast %353 : vector<8x128xf32> to vector<1x8x128xf32>
    tpu.vector_store %arg30[%365, %c0_103, %c0_104], %368 {strides = array<i32>} : memref<8x8x128xf32, #tpu.memory_space<vmem>>, vector<1x8x128xf32>,
    %c7_i32 = arith.constant 7 : i32
    %369 = arith.index_cast %c7_i32 : i32 to index
    %c0_105 = arith.constant 0 : index
    %c0_106 = arith.constant 0 : index
    %370 = vector.load %arg30[%369, %c0_105, %c0_106] : memref<8x8x128xf32, #tpu.memory_space<vmem>>, vector<1x8x128xf32>
    %371 = vector.shape_cast %370 : vector<1x8x128xf32> to vector<8x128xf32>
    %372 = arith.index_cast %c7_i32 : i32 to index
    %c0_107 = arith.constant 0 : index
    %c0_108 = arith.constant 0 : index
    %373 = vector.load %arg31[%372, %c0_107, %c0_108] : memref<8x8x128xf32, #tpu.memory_space<vmem>>, vector<1x8x128xf32>
    %374 = vector.shape_cast %373 : vector<1x8x128xf32> to vector<8x128xf32>
    %375 = arith.addf %124, %371 : vector<8x128xf32>
    %376 = arith.maximumf %375, %355 : vector<8x128xf32>
    %377 = arith.subf %355, %376 : vector<8x128xf32>
    %378 = math.exp %377 : vector<8x128xf32>
    %379 = arith.subf %375, %376 : vector<8x128xf32>
    %380 = math.exp %379 : vector<8x128xf32>
    %381 = arith.mulf %378, %362 : vector<8x128xf32>
    %382 = arith.mulf %380, %374 : vector<8x128xf32>
    %383 = arith.addf %381, %382 : vector<8x128xf32>
    %384 = arith.mulf %378, %364 : vector<8x128xf32>
    %385 = arith.addf %384, %380 : vector<8x128xf32>
    %386 = tpu.reciprocal %385 {approx = true} : vector<8x128xf32> -> vector<8x128xf32>
    %387 = arith.mulf %383, %386 : vector<8x128xf32>
    %388 = arith.subf %355, %121 : vector<8x128xf32>
    %389 = arith.maximumf %388, %371 : vector<8x128xf32>
    %390 = arith.subf %388, %389 : vector<8x128xf32>
    %391 = math.exp %390 : vector<8x128xf32>
    %392 = arith.subf %371, %389 : vector<8x128xf32>
    %393 = math.exp %392 : vector<8x128xf32>
    %394 = arith.mulf %391, %362 : vector<8x128xf32>
    %395 = arith.mulf %393, %374 : vector<8x128xf32>
    %396 = arith.addf %394, %395 : vector<8x128xf32>
    %397 = arith.mulf %391, %364 : vector<8x128xf32>
    %398 = arith.addf %397, %393 : vector<8x128xf32>
    %399 = arith.index_cast %c7_i32 : i32 to index
    %c0_109 = arith.constant 0 : index
    %c0_110 = arith.constant 0 : index
    %400 = vector.load %arg30[%399, %c0_109, %c0_110] : memref<8x8x128xf32, #tpu.memory_space<vmem>>, vector<1x8x128xf32>
    %401 = vector.shape_cast %400 : vector<1x8x128xf32> to vector<8x128xf32>
    %402 = vector.shape_cast %387 : vector<8x128xf32> to vector<1x8x128xf32>
    tpu.vector_store %arg30[%399, %c0_109, %c0_110], %402 {strides = array<i32>} : memref<8x8x128xf32, #tpu.memory_space<vmem>>, vector<1x8x128xf32>,
    %c8_i32 = arith.constant 8 : i32
    %c0_111 = arith.constant 0 : index
    %c0_112 = arith.constant 0 : index
    %c0_113 = arith.constant 0 : index
    %403 = vector.load %arg32[%c0_111, %c0_112, %c0_113] : memref<3x8x128xf32, #tpu.memory_space<vmem>>, vector<1x8x128xf32>
    %404 = vector.shape_cast %403 : vector<1x8x128xf32> to vector<8x128xf32>
    %405 = vector.shape_cast %396 : vector<8x128xf32> to vector<1x8x128xf32>
    tpu.vector_store %arg32[%c0_111, %c0_112, %c0_113], %405 {strides = array<i32>} : memref<3x8x128xf32, #tpu.memory_space<vmem>>, vector<1x8x128xf32>,
    %c1_114 = arith.constant 1 : index
    %c0_115 = arith.constant 0 : index
    %c0_116 = arith.constant 0 : index
    %406 = vector.load %arg32[%c1_114, %c0_115, %c0_116] : memref<3x8x128xf32, #tpu.memory_space<vmem>>, vector<1x8x128xf32>
    %407 = vector.shape_cast %406 : vector<1x8x128xf32> to vector<8x128xf32>
    %408 = vector.shape_cast %398 : vector<8x128xf32> to vector<1x8x128xf32>
    tpu.vector_store %arg32[%c1_114, %c0_115, %c0_116], %408 {strides = array<i32>} : memref<3x8x128xf32, #tpu.memory_space<vmem>>, vector<1x8x128xf32>,
    %c2_117 = arith.constant 2 : index
    %c0_118 = arith.constant 0 : index
    %c0_119 = arith.constant 0 : index
    %409 = vector.load %arg32[%c2_117, %c0_118, %c0_119] : memref<3x8x128xf32, #tpu.memory_space<vmem>>, vector<1x8x128xf32>
    %410 = vector.shape_cast %409 : vector<1x8x128xf32> to vector<8x128xf32>
    %411 = vector.shape_cast %389 : vector<8x128xf32> to vector<1x8x128xf32>
    tpu.vector_store %arg32[%c2_117, %c0_118, %c0_119], %411 {strides = array<i32>} : memref<3x8x128xf32, #tpu.memory_space<vmem>>, vector<1x8x128xf32>,
    %c0_120 = arith.constant 0 : index
    %c0_121 = arith.constant 0 : index
    %c0_122 = arith.constant 0 : index
    %412 = vector.load %arg30[%c0_120, %c0_121, %c0_122] : memref<8x8x128xf32, #tpu.memory_space<vmem>>, vector<8x8x128xf32>
    %413 = vector.shape_cast %412 : vector<8x8x128xf32> to vector<64x128xf32>
    %414 = arith.mulf %413, %113 : vector<64x128xf32>
    %415 = arith.truncf %414 : vector<64x128xf32> to vector<64x128xbf16>
    %c0_123 = arith.constant 0 : index
    %c0_124 = arith.constant 0 : index
    %416 = vector.load %arg20[%c0_123, %c0_124] : memref<128x128xbf16, #tpu.memory_space<vmem>>, vector<128x128xbf16>
    %cst_125 = arith.constant dense<0.000000e+00> : vector<64x128xf32>
    %417 = tpu.matmul %415, %416, %cst_125 {dimension_numbers = #tpu.dot_dimension_numbers<[1], [0], [0], [1], [0, 0, 1, 1], [], []>} : vector<64x128xbf16>, vector<128x128xbf16>, vector<64x128xf32> -> vector<64x128xf32>
    %418 = vector.shape_cast %417 : vector<64x128xf32> to vector<8x8x128xf32>
    %419 = arith.addf %36, %418 : vector<8x8x128xf32>
    %c0_126 = arith.constant 0 : index
    %c0_127 = arith.constant 0 : index
    %420 = vector.load %arg10[%c0_126, %c0_127] : memref<1x128xf32, #tpu.memory_space<vmem>>, vector<1x128xf32>
    %c0_128 = arith.constant 0 : index
    %c0_129 = arith.constant 0 : index
    %421 = vector.load %arg11[%c0_128, %c0_129] : memref<1x128xf32, #tpu.memory_space<vmem>>, vector<1x128xf32>
    %cst_130 = arith.constant dense<0.000000e+00> : vector<8x8xf32>
    %422 = vector.multi_reduction <add>, %419, %cst_130 [2] : vector<8x8x128xf32> to vector<8x8xf32>
    %423 = vector.shape_cast %422 : vector<8x8xf32> to vector<8x8x1xf32>
    %cst_131 = arith.constant 3.125000e-02 : f32
    %424 = vector.broadcast %cst_131 : f32 to vector<8x8x1xf32>
    %425 = arith.mulf %423, %424 : vector<8x8x1xf32>
    %426 = vector.broadcast %425 : vector<8x8x1xf32> to vector<8x8x128xf32>
    %427 = arith.subf %419, %426 : vector<8x8x128xf32>
    %428 = arith.mulf %427, %10 : vector<8x8x128xf32>
    %429 = arith.mulf %428, %428 : vector<8x8x128xf32>
    %cst_132 = arith.constant dense<0.000000e+00> : vector<8x8xf32>
    %430 = vector.multi_reduction <add>, %429, %cst_132 [2] : vector<8x8x128xf32> to vector<8x8xf32>
    %431 = vector.shape_cast %430 : vector<8x8xf32> to vector<8x8x1xf32>
    %cst_133 = arith.constant 3.125000e-02 : f32
    %432 = vector.broadcast %cst_133 : f32 to vector<8x8x1xf32>
    %433 = arith.mulf %431, %432 : vector<8x8x1xf32>
    %cst_134 = arith.constant 9.99999974E-6 : f32
    %434 = vector.broadcast %cst_134 : f32 to vector<8x8x1xf32>
    %435 = arith.addf %433, %434 : vector<8x8x1xf32>
    %436 = math.rsqrt %435 : vector<8x8x1xf32>
    %437 = vector.broadcast %436 : vector<8x8x1xf32> to vector<8x8x128xf32>
    %438 = arith.mulf %428, %437 : vector<8x8x128xf32>
    %439 = vector.shape_cast %420 : vector<1x128xf32> to vector<1x1x128xf32>
    %440 = vector.broadcast %439 : vector<1x1x128xf32> to vector<8x8x128xf32>
    %441 = arith.mulf %438, %440 : vector<8x8x128xf32>
    %442 = vector.shape_cast %421 : vector<1x128xf32> to vector<1x1x128xf32>
    %443 = vector.broadcast %442 : vector<1x1x128xf32> to vector<8x8x128xf32>
    %444 = arith.addf %441, %443 : vector<8x8x128xf32>
    %c0_135 = arith.constant 0 : index
    %c0_136 = arith.constant 0 : index
    %c0_137 = arith.constant 0 : index
    %445 = vector.load %arg34[%c0_135, %c0_136, %c0_137] : memref<1x8x128xf32, #tpu.memory_space<vmem>>, vector<1x8x128xf32>
    %446 = vector.extract_strided_slice %444 {offsets = [0, 0, 0], sizes = [7, 8, 128], strides = [1, 1, 1]} : vector<8x8x128xf32> to vector<7x8x128xf32>
    %447 = tpu.concatenate %445, %446 in 0 : vector<1x8x128xf32>, vector<7x8x128xf32> -> vector<8x8x128xf32>
    %448 = vector.extract_strided_slice %444 {offsets = [7, 0, 0], sizes = [1, 8, 128], strides = [1, 1, 1]} : vector<8x8x128xf32> to vector<1x8x128xf32>
    %c0_138 = arith.constant 0 : index
    %c0_139 = arith.constant 0 : index
    %c0_140 = arith.constant 0 : index
    %449 = vector.load %arg34[%c0_138, %c0_139, %c0_140] : memref<1x8x128xf32, #tpu.memory_space<vmem>>, vector<1x8x128xf32>
    tpu.vector_store %arg34[%c0_138, %c0_139, %c0_140], %448 {strides = array<i32>} : memref<1x8x128xf32, #tpu.memory_space<vmem>>, vector<1x8x128xf32>,
    %c0_141 = arith.constant 0 : index
    %c0_142 = arith.constant 0 : index
    %450 = vector.load %arg21[%c0_141, %c0_142] : memref<1x128xf32, #tpu.memory_space<vmem>>, vector<1x128xf32>
    %c0_143 = arith.constant 0 : index
    %c0_144 = arith.constant 0 : index
    %451 = vector.load %arg22[%c0_143, %c0_144] : memref<1x128xf32, #tpu.memory_space<vmem>>, vector<1x128xf32>
    %452 = vector.shape_cast %450 : vector<1x128xf32> to vector<1x1x128xf32>
    %453 = vector.broadcast %452 : vector<1x1x128xf32> to vector<8x8x128xf32>
    %454 = arith.mulf %444, %453 : vector<8x8x128xf32>
    %cst_145 = arith.constant 1.000000e+00 : f32
    %455 = vector.broadcast %cst_145 : f32 to vector<1x128xf32>
    %456 = arith.subf %455, %450 : vector<1x128xf32>
    %457 = vector.shape_cast %456 : vector<1x128xf32> to vector<1x1x128xf32>
    %458 = vector.broadcast %457 : vector<1x1x128xf32> to vector<8x8x128xf32>
    %459 = arith.mulf %447, %458 : vector<8x8x128xf32>
    %460 = arith.addf %454, %459 : vector<8x8x128xf32>
    %461 = vector.shape_cast %460 : vector<8x8x128xf32> to vector<64x128xf32>
    %462 = vector.shape_cast %451 : vector<1x128xf32> to vector<1x1x128xf32>
    %463 = vector.broadcast %462 : vector<1x1x128xf32> to vector<8x8x128xf32>
    %464 = arith.mulf %444, %463 : vector<8x8x128xf32>
    %cst_146 = arith.constant 1.000000e+00 : f32
    %465 = vector.broadcast %cst_146 : f32 to vector<1x128xf32>
    %466 = arith.subf %465, %451 : vector<1x128xf32>
    %467 = vector.shape_cast %466 : vector<1x128xf32> to vector<1x1x128xf32>
    %468 = vector.broadcast %467 : vector<1x1x128xf32> to vector<8x8x128xf32>
    %469 = arith.mulf %447, %468 : vector<8x8x128xf32>
    %470 = arith.addf %464, %469 : vector<8x8x128xf32>
    %471 = vector.shape_cast %470 : vector<8x8x128xf32> to vector<64x128xf32>
    %472 = arith.truncf %461 : vector<64x128xf32> to vector<64x128xbf16>
    %c0_147 = arith.constant 0 : index
    %c0_148 = arith.constant 0 : index
    %473 = vector.load %arg23[%c0_147, %c0_148] : memref<128x128xbf16, #tpu.memory_space<vmem>>, vector<128x128xbf16>
    %cst_149 = arith.constant dense<0.000000e+00> : vector<64x128xf32>
    %474 = tpu.matmul %472, %473, %cst_149 {dimension_numbers = #tpu.dot_dimension_numbers<[1], [0], [0], [1], [0, 0, 1, 1], [], []>} : vector<64x128xbf16>, vector<128x128xbf16>, vector<64x128xf32> -> vector<64x128xf32>
    %475 = arith.truncf %471 : vector<64x128xf32> to vector<64x128xbf16>
    %c0_150 = arith.constant 0 : index
    %c0_151 = arith.constant 0 : index
    %476 = vector.load %arg24[%c0_150, %c0_151] : memref<128x128xbf16, #tpu.memory_space<vmem>>, vector<128x128xbf16>
    %cst_152 = arith.constant dense<0.000000e+00> : vector<64x128xf32>
    %477 = tpu.matmul %475, %476, %cst_152 {dimension_numbers = #tpu.dot_dimension_numbers<[1], [0], [0], [1], [0, 0, 1, 1], [], []>} : vector<64x128xbf16>, vector<128x128xbf16>, vector<64x128xf32> -> vector<64x128xf32>
    %cst_153 = arith.constant 0.000000e+00 : f32
    %478 = vector.broadcast %cst_153 : f32 to vector<64x128xf32>
    %479 = arith.maximumf %474, %478 : vector<64x128xf32>
    %480 = arith.mulf %479, %479 : vector<64x128xf32>
    %481 = arith.truncf %480 : vector<64x128xf32> to vector<64x128xbf16>
    %c0_154 = arith.constant 0 : index
    %c0_155 = arith.constant 0 : index
    %482 = vector.load %arg25[%c0_154, %c0_155] : memref<128x128xbf16, #tpu.memory_space<vmem>>, vector<128x128xbf16>
    %cst_156 = arith.constant dense<0.000000e+00> : vector<64x128xf32>
    %483 = tpu.matmul %481, %482, %cst_156 {dimension_numbers = #tpu.dot_dimension_numbers<[1], [0], [0], [1], [0, 0, 1, 1], [], []>} : vector<64x128xbf16>, vector<128x128xbf16>, vector<64x128xf32> -> vector<64x128xf32>
    %484 = arith.negf %477 : vector<64x128xf32>
    %485 = math.exp %484 : vector<64x128xf32>
    %cst_157 = arith.constant 1.000000e+00 : f32
    %486 = vector.broadcast %cst_157 : f32 to vector<64x128xf32>
    %487 = arith.addf %486, %485 : vector<64x128xf32>
    %488 = arith.divf %486, %487 : vector<64x128xf32>
    %489 = arith.mulf %488, %483 : vector<64x128xf32>
    %490 = vector.shape_cast %489 : vector<64x128xf32> to vector<8x8x128xf32>
    %491 = arith.addf %419, %490 : vector<8x8x128xf32>
    %c0_158 = arith.constant 0 : index
    %c0_159 = arith.constant 0 : index
    %c0_160 = arith.constant 0 : index
    %492 = vector.load %arg26[%c0_158, %c0_159, %c0_160] : memref<8x8x128xf32, #tpu.memory_space<vmem>>, vector<8x8x128xf32>
    tpu.vector_store %arg26[%c0_158, %c0_159, %c0_160], %491 {strides = array<i32>} : memref<8x8x128xf32, #tpu.memory_space<vmem>>, vector<8x8x128xf32>,
    %c0_161 = arith.constant 0 : index
    %c0_162 = arith.constant 0 : index
    %c0_163 = arith.constant 0 : index
    %493 = vector.load %arg33[%c0_161, %c0_162, %c0_163] : memref<1x8x128xf32, #tpu.memory_space<vmem>>, vector<1x8x128xf32>
    %c0_164 = arith.constant 0 : index
    %c0_165 = arith.constant 0 : index
    %c0_166 = arith.constant 0 : index
    %494 = vector.load %arg27[%c0_164, %c0_165, %c0_166] : memref<1x8x128xf32, #tpu.memory_space<vmem>>, vector<1x8x128xf32>
    tpu.vector_store %arg27[%c0_164, %c0_165, %c0_166], %493 {strides = array<i32>} : memref<1x8x128xf32, #tpu.memory_space<vmem>>, vector<1x8x128xf32>,
    %c0_167 = arith.constant 0 : index
    %c0_168 = arith.constant 0 : index
    %c0_169 = arith.constant 0 : index
    %495 = vector.load %arg32[%c0_167, %c0_168, %c0_169] : memref<3x8x128xf32, #tpu.memory_space<vmem>>, vector<3x8x128xf32>
    %496 = vector.shape_cast %7 : vector<1x128xf32> to vector<1x1x128xf32>
    %497 = vector.broadcast %496 : vector<1x1x128xf32> to vector<3x8x128xf32>
    %498 = arith.mulf %495, %497 : vector<3x8x128xf32>
    %c0_170 = arith.constant 0 : index
    %c0_171 = arith.constant 0 : index
    %c0_172 = arith.constant 0 : index
    %499 = vector.load %arg28[%c0_170, %c0_171, %c0_172] : memref<3x8x128xf32, #tpu.memory_space<vmem>>, vector<3x8x128xf32>
    tpu.vector_store %arg28[%c0_170, %c0_171, %c0_172], %498 {strides = array<i32>} : memref<3x8x128xf32, #tpu.memory_space<vmem>>, vector<3x8x128xf32>,
    %c0_173 = arith.constant 0 : index
    %c0_174 = arith.constant 0 : index
    %c0_175 = arith.constant 0 : index
    %500 = vector.load %arg34[%c0_173, %c0_174, %c0_175] : memref<1x8x128xf32, #tpu.memory_space<vmem>>, vector<1x8x128xf32>
    %c0_176 = arith.constant 0 : index
    %c0_177 = arith.constant 0 : index
    %c0_178 = arith.constant 0 : index
    %501 = vector.load %arg29[%c0_176, %c0_177, %c0_178] : memref<1x8x128xf32, #tpu.memory_space<vmem>>, vector<1x8x128xf32>
    tpu.vector_store %arg29[%c0_176, %c0_177, %c0_178], %500 {strides = array<i32>} : memref<1x8x128xf32, #tpu.memory_space<vmem>>, vector<1x8x128xf32>,
    return
  }
  func.func @transform_0(%arg0: i32, %arg1: i32) -> (i32, i32, i32) {
    %c0_i32 = arith.constant 0 : i32
    %c0_i32_0 = arith.constant 0 : i32
    return %arg1, %arg0, %c0_i32 : i32, i32, i32
  }
  func.func @transform_1(%arg0: i32, %arg1: i32) -> (i32, i32, i32) {
    %c0_i32 = arith.constant 0 : i32
    %c0_i32_0 = arith.constant 0 : i32
    %c0_i32_1 = arith.constant 0 : i32
    return %c0_i32, %arg0, %c0_i32_0 : i32, i32, i32
  }
  func.func @transform_2(%arg0: i32, %arg1: i32) -> (i32, i32, i32) {
    %c0_i32 = arith.constant 0 : i32
    %c0_i32_0 = arith.constant 0 : i32
    %c0_i32_1 = arith.constant 0 : i32
    return %c0_i32, %arg0, %c0_i32_0 : i32, i32, i32
  }
  func.func @transform_3(%arg0: i32, %arg1: i32) -> (i32, i32, i32) {
    %c0_i32 = arith.constant 0 : i32
    %c0_i32_0 = arith.constant 0 : i32
    %c0_i32_1 = arith.constant 0 : i32
    return %c0_i32, %arg0, %c0_i32_0 : i32, i32, i32
  }
  func.func @transform_4(%arg0: i32, %arg1: i32) -> (i32, i32) {
    %c0_i32 = arith.constant 0 : i32
    %c0_i32_0 = arith.constant 0 : i32
    %c0_i32_1 = arith.constant 0 : i32
    return %c0_i32, %c0_i32_0 : i32, i32
  }
  func.func @transform_5(%arg0: i32, %arg1: i32) -> (i32, i32) {
    %c0_i32 = arith.constant 0 : i32
    %c0_i32_0 = arith.constant 0 : i32
    %c0_i32_1 = arith.constant 0 : i32
    return %c0_i32, %c0_i32_0 : i32, i32
  }
  func.func @transform_6(%arg0: i32, %arg1: i32) -> (i32, i32) {
    %c0_i32 = arith.constant 0 : i32
    %c0_i32_0 = arith.constant 0 : i32
    %c0_i32_1 = arith.constant 0 : i32
    return %c0_i32, %c0_i32_0 : i32, i32
  }
  func.func @transform_7(%arg0: i32, %arg1: i32) -> (i32, i32) {
    %c0_i32 = arith.constant 0 : i32
    %c0_i32_0 = arith.constant 0 : i32
    %c0_i32_1 = arith.constant 0 : i32
    return %c0_i32, %c0_i32_0 : i32, i32
  }
  func.func @transform_8(%arg0: i32, %arg1: i32) -> (i32, i32) {
    %c0_i32 = arith.constant 0 : i32
    %c0_i32_0 = arith.constant 0 : i32
    %c0_i32_1 = arith.constant 0 : i32
    return %c0_i32, %c0_i32_0 : i32, i32
  }
  func.func @transform_9(%arg0: i32, %arg1: i32) -> (i32, i32) {
    %c0_i32 = arith.constant 0 : i32
    %c0_i32_0 = arith.constant 0 : i32
    %c0_i32_1 = arith.constant 0 : i32
    return %c0_i32, %c0_i32_0 : i32, i32
  }
  func.func @transform_10(%arg0: i32, %arg1: i32) -> (i32, i32) {
    %c0_i32 = arith.constant 0 : i32
    %c0_i32_0 = arith.constant 0 : i32
    %c0_i32_1 = arith.constant 0 : i32
    return %c0_i32, %c0_i32_0 : i32, i32
  }
  func.func @transform_11(%arg0: i32, %arg1: i32) -> (i32, i32) {
    %c0_i32 = arith.constant 0 : i32
    %c0_i32_0 = arith.constant 0 : i32
    %c0_i32_1 = arith.constant 0 : i32
    return %c0_i32, %c0_i32_0 : i32, i32
  }
  func.func @transform_12(%arg0: i32, %arg1: i32) -> (i32, i32) {
    %c0_i32 = arith.constant 0 : i32
    %c0_i32_0 = arith.constant 0 : i32
    %c0_i32_1 = arith.constant 0 : i32
    return %c0_i32, %c0_i32_0 : i32, i32
  }
  func.func @transform_13(%arg0: i32, %arg1: i32) -> (i32, i32) {
    %c0_i32 = arith.constant 0 : i32
    %c0_i32_0 = arith.constant 0 : i32
    %c0_i32_1 = arith.constant 0 : i32
    return %c0_i32, %c0_i32_0 : i32, i32
  }
  func.func @transform_14(%arg0: i32, %arg1: i32) -> (i32, i32) {
    %c0_i32 = arith.constant 0 : i32
    %c0_i32_0 = arith.constant 0 : i32
    %c0_i32_1 = arith.constant 0 : i32
    return %c0_i32, %c0_i32_0 : i32, i32
  }
  func.func @transform_15(%arg0: i32, %arg1: i32) -> (i32, i32) {
    %c0_i32 = arith.constant 0 : i32
    %c0_i32_0 = arith.constant 0 : i32
    %c0_i32_1 = arith.constant 0 : i32
    return %c0_i32, %c0_i32_0 : i32, i32
  }
  func.func @transform_16(%arg0: i32, %arg1: i32) -> (i32, i32) {
    %c0_i32 = arith.constant 0 : i32
    %c0_i32_0 = arith.constant 0 : i32
    %c0_i32_1 = arith.constant 0 : i32
    return %c0_i32, %c0_i32_0 : i32, i32
  }
  func.func @transform_17(%arg0: i32, %arg1: i32) -> (i32, i32) {
    %c0_i32 = arith.constant 0 : i32
    %c0_i32_0 = arith.constant 0 : i32
    %c0_i32_1 = arith.constant 0 : i32
    return %c0_i32, %c0_i32_0 : i32, i32
  }
  func.func @transform_18(%arg0: i32, %arg1: i32) -> (i32, i32) {
    %c0_i32 = arith.constant 0 : i32
    %c0_i32_0 = arith.constant 0 : i32
    %c0_i32_1 = arith.constant 0 : i32
    return %c0_i32, %c0_i32_0 : i32, i32
  }
  func.func @transform_19(%arg0: i32, %arg1: i32) -> (i32, i32) {
    %c0_i32 = arith.constant 0 : i32
    %c0_i32_0 = arith.constant 0 : i32
    %c0_i32_1 = arith.constant 0 : i32
    return %c0_i32, %c0_i32_0 : i32, i32
  }
  func.func @transform_20(%arg0: i32, %arg1: i32) -> (i32, i32) {
    %c0_i32 = arith.constant 0 : i32
    %c0_i32_0 = arith.constant 0 : i32
    %c0_i32_1 = arith.constant 0 : i32
    return %c0_i32, %c0_i32_0 : i32, i32
  }
  func.func @transform_21(%arg0: i32, %arg1: i32) -> (i32, i32) {
    %c0_i32 = arith.constant 0 : i32
    %c0_i32_0 = arith.constant 0 : i32
    %c0_i32_1 = arith.constant 0 : i32
    return %c0_i32, %c0_i32_0 : i32, i32
  }
  func.func @transform_22(%arg0: i32, %arg1: i32) -> (i32, i32) {
    %c0_i32 = arith.constant 0 : i32
    %c0_i32_0 = arith.constant 0 : i32
    %c0_i32_1 = arith.constant 0 : i32
    return %c0_i32, %c0_i32_0 : i32, i32
  }
  func.func @transform_23(%arg0: i32, %arg1: i32) -> (i32, i32) {
    %c0_i32 = arith.constant 0 : i32
    %c0_i32_0 = arith.constant 0 : i32
    %c0_i32_1 = arith.constant 0 : i32
    return %c0_i32, %c0_i32_0 : i32, i32
  }
  func.func @transform_24(%arg0: i32, %arg1: i32) -> (i32, i32, i32) {
    %c0_i32 = arith.constant 0 : i32
    %c0_i32_0 = arith.constant 0 : i32
    return %arg1, %arg0, %c0_i32 : i32, i32, i32
  }
  func.func @transform_25(%arg0: i32, %arg1: i32) -> (i32, i32, i32) {
    %c0_i32 = arith.constant 0 : i32
    %c0_i32_0 = arith.constant 0 : i32
    %c0_i32_1 = arith.constant 0 : i32
    return %c0_i32, %arg0, %c0_i32_0 : i32, i32, i32
  }
  func.func @transform_26(%arg0: i32, %arg1: i32) -> (i32, i32, i32) {
    %c0_i32 = arith.constant 0 : i32
    %c0_i32_0 = arith.constant 0 : i32
    %c0_i32_1 = arith.constant 0 : i32
    return %c0_i32, %arg0, %c0_i32_0 : i32, i32, i32
  }
  func.func @transform_27(%arg0: i32, %arg1: i32) -> (i32, i32, i32) {
    %c0_i32 = arith.constant 0 : i32
    %c0_i32_0 = arith.constant 0 : i32
    %c0_i32_1 = arith.constant 0 : i32
    return %c0_i32, %arg0, %c0_i32_0 : i32, i32, i32
  }
}

module attributes {stable_mosaic.version = 11 : i64} {
  func.func @block_kernel(%arg0: i32, %arg1: i32, %arg2: memref<8x8x128xf32, #tpu.memory_space<vmem>>, %arg3: memref<1x8x128xf32, #tpu.memory_space<vmem>>, %arg4: memref<3x8x128xf32, #tpu.memory_space<vmem>>, %arg5: memref<1x8x128xf32, #tpu.memory_space<vmem>>, %arg6: memref<1x128xf32, #tpu.memory_space<vmem>>, %arg7: memref<1x128xf32, #tpu.memory_space<vmem>>, %arg8: memref<1x128xf32, #tpu.memory_space<vmem>>, %arg9: memref<1x128xf32, #tpu.memory_space<vmem>>, %arg10: memref<1x128xf32, #tpu.memory_space<vmem>>, %arg11: memref<1x128xf32, #tpu.memory_space<vmem>>, %arg12: memref<1x128xf32, #tpu.memory_space<vmem>>, %arg13: memref<1x128xf32, #tpu.memory_space<vmem>>, %arg14: memref<1x128xf32, #tpu.memory_space<vmem>>, %arg15: memref<1x128xf32, #tpu.memory_space<vmem>>, %arg16: memref<1x128xf32, #tpu.memory_space<vmem>>, %arg17: memref<128x128xbf16, #tpu.memory_space<vmem>>, %arg18: memref<128x128xbf16, #tpu.memory_space<vmem>>, %arg19: memref<128x128xbf16, #tpu.memory_space<vmem>>, %arg20: memref<128x128xbf16, #tpu.memory_space<vmem>>, %arg21: memref<1x128xf32, #tpu.memory_space<vmem>>, %arg22: memref<1x128xf32, #tpu.memory_space<vmem>>, %arg23: memref<128x128xbf16, #tpu.memory_space<vmem>>, %arg24: memref<128x128xbf16, #tpu.memory_space<vmem>>, %arg25: memref<128x128xbf16, #tpu.memory_space<vmem>>, %arg26: memref<8x8x128xf32, #tpu.memory_space<vmem>>, %arg27: memref<1x8x128xf32, #tpu.memory_space<vmem>>, %arg28: memref<3x8x128xf32, #tpu.memory_space<vmem>>, %arg29: memref<1x8x128xf32, #tpu.memory_space<vmem>>, %arg30: memref<8x8x128xf32, #tpu.memory_space<vmem>>, %arg31: memref<8x8x128xf32, #tpu.memory_space<vmem>>, %arg32: memref<3x8x128xf32, #tpu.memory_space<vmem>>, %arg33: memref<1x8x128xf32, #tpu.memory_space<vmem>>, %arg34: memref<1x8x128xf32, #tpu.memory_space<vmem>>) attributes {dimension_semantics = [#tpu.dimension_semantics<parallel>, #tpu.dimension_semantics<arbitrary>], iteration_bounds = array<i64: 1, 1>, scalar_prefetch = 0 : i64, scratch_operands = 5 : i64, tpu.core_type = #tpu.core_type<tc>, window_params = [{transform_indices = @transform_0, window_bounds = array<i64: 8, 8, 128>}, {transform_indices = @transform_1, window_bounds = array<i64: 1, 8, 128>}, {transform_indices = @transform_2, window_bounds = array<i64: 3, 8, 128>}, {transform_indices = @transform_3, window_bounds = array<i64: 1, 8, 128>}, {pipeline_mode = #tpu.pipeline_mode<synchronous>, transform_indices = @transform_4, window_bounds = array<i64: 1, 128>}, {pipeline_mode = #tpu.pipeline_mode<synchronous>, transform_indices = @transform_5, window_bounds = array<i64: 1, 128>}, {pipeline_mode = #tpu.pipeline_mode<synchronous>, transform_indices = @transform_6, window_bounds = array<i64: 1, 128>}, {pipeline_mode = #tpu.pipeline_mode<synchronous>, transform_indices = @transform_7, window_bounds = array<i64: 1, 128>}, {pipeline_mode = #tpu.pipeline_mode<synchronous>, transform_indices = @transform_8, window_bounds = array<i64: 1, 128>}, {pipeline_mode = #tpu.pipeline_mode<synchronous>, transform_indices = @transform_9, window_bounds = array<i64: 1, 128>}, {pipeline_mode = #tpu.pipeline_mode<synchronous>, transform_indices = @transform_10, window_bounds = array<i64: 1, 128>}, {pipeline_mode = #tpu.pipeline_mode<synchronous>, transform_indices = @transform_11, window_bounds = array<i64: 1, 128>}, {pipeline_mode = #tpu.pipeline_mode<synchronous>, transform_indices = @transform_12, window_bounds = array<i64: 1, 128>}, {pipeline_mode = #tpu.pipeline_mode<synchronous>, transform_indices = @transform_13, window_bounds = array<i64: 1, 128>}, {pipeline_mode = #tpu.pipeline_mode<synchronous>, transform_indices = @transform_14, window_bounds = array<i64: 1, 128>}, {pipeline_mode = #tpu.pipeline_mode<synchronous>, transform_indices = @transform_15, window_bounds = array<i64: 128, 128>}, {pipeline_mode = #tpu.pipeline_mode<synchronous>, transform_indices = @transform_16, window_bounds = array<i64: 128, 128>}, {pipeline_mode = #tpu.pipeline_mode<synchronous>, transform_indices = @transform_17, window_bounds = array<i64: 128, 128>}, {pipeline_mode = #tpu.pipeline_mode<synchronous>, transform_indices = @transform_18, window_bounds = array<i64: 128, 128>}, {pipeline_mode = #tpu.pipeline_mode<synchronous>, transform_indices = @transform_19, window_bounds = array<i64: 1, 128>}, {pipeline_mode = #tpu.pipeline_mode<synchronous>, transform_indices = @transform_20, window_bounds = array<i64: 1, 128>}, {pipeline_mode = #tpu.pipeline_mode<synchronous>, transform_indices = @transform_21, window_bounds = array<i64: 128, 128>}, {pipeline_mode = #tpu.pipeline_mode<synchronous>, transform_indices = @transform_22, window_bounds = array<i64: 128, 128>}, {pipeline_mode = #tpu.pipeline_mode<synchronous>, transform_indices = @transform_23, window_bounds = array<i64: 128, 128>}, {transform_indices = @transform_24, window_bounds = array<i64: 8, 8, 128>}, {transform_indices = @transform_25, window_bounds = array<i64: 1, 8, 128>}, {transform_indices = @transform_26, window_bounds = array<i64: 3, 8, 128>}, {transform_indices = @transform_27, window_bounds = array<i64: 1, 8, 128>}]} {
    %c0_i32 = arith.constant 0 : i32
    %0 = arith.cmpi eq, %arg1, %c0_i32 : i32
    %1 = arith.extui %0 : i1 to i32
    %c0_i32_0 = arith.constant 0 : i32
    %2 = arith.cmpi ne, %1, %c0_i32_0 : i32
    scf.if %2 {
      %c0_179 = arith.constant 0 : index
      %c0_180 = arith.constant 0 : index
      %c0_181 = arith.constant 0 : index
      %502 = vector.load %arg4[%c0_179, %c0_180, %c0_181] : memref<3x8x128xf32, #tpu.memory_space<vmem>>, vector<3x8x128xf32>
      %c0_182 = arith.constant 0 : index
      %c0_183 = arith.constant 0 : index
      %c0_184 = arith.constant 0 : index
      %503 = vector.load %arg32[%c0_182, %c0_183, %c0_184] : memref<3x8x128xf32, #tpu.memory_space<vmem>>, vector<3x8x128xf32>
      tpu.vector_store %arg32[%c0_182, %c0_183, %c0_184], %502 {strides = array<i32>} : memref<3x8x128xf32, #tpu.memory_space<vmem>>, vector<3x8x128xf32>,
      %c0_185 = arith.constant 0 : index
      %c0_186 = arith.constant 0 : index
      %c0_187 = arith.constant 0 : index
      %504 = vector.load %arg3[%c0_185, %c0_186, %c0_187] : memref<1x8x128xf32, #tpu.memory_space<vmem>>, vector<1x8x128xf32>
      %c0_188 = arith.constant 0 : index
      %c0_189 = arith.constant 0 : index
      %c0_190 = arith.constant 0 : index
      %505 = vector.load %arg33[%c0_188, %c0_189, %c0_190] : memref<1x8x128xf32, #tpu.memory_space<vmem>>, vector<1x8x128xf32>
      tpu.vector_store %arg33[%c0_188, %c0_189, %c0_190], %504 {strides = array<i32>} : memref<1x8x128xf32, #tpu.memory_space<vmem>>, vector<1x8x128xf32>,
      %c0_191 = arith.constant 0 : index
      %c0_192 = arith.constant 0 : index
      %c0_193 = arith.constant 0 : index
      %506 = vector.load %arg5[%c0_191, %c0_192, %c0_193] : memref<1x8x128xf32, #tpu.memory_space<vmem>>, vector<1x8x128xf32>
      %c0_194 = arith.constant 0 : index
      %c0_195 = arith.constant 0 : index
      %c0_196 = arith.constant 0 : index
      %507 = vector.load %arg34[%c0_194, %c0_195, %c0_196] : memref<1x8x128xf32, #tpu.memory_space<vmem>>, vector<1x8x128xf32>
      tpu.vector_store %arg34[%c0_194, %c0_195, %c0_196], %506 {strides = array<i32>} : memref<1x8x128xf32, #tpu.memory_space<vmem>>, vector<1x8x128xf32>,
    } else {
    }
    %3 = tpu.iota {dimensions = array<i32: 1>} : vector<1x128xi32>
    %c32_i32 = arith.constant 32 : i32
    %4 = vector.broadcast %c32_i32 : i32 to vector<1x128xi32>
    %5 = arith.cmpi slt, %3, %4 : vector<1x128xi32>
    %6 = arith.extui %5 : vector<1x128xi1> to vector<1x128xi32>
    %7 = arith.sitofp %6 : vector<1x128xi32> to vector<1x128xf32>
    %8 = vector.shape_cast %7 : vector<1x128xf32> to vector<1x1x128xf32>
    %9 = vector.shape_cast %8 : vector<1x1x128xf32> to vector<1x1x128xf32>
    %10 = vector.broadcast %9 : vector<1x1x128xf32> to vector<8x8x128xf32>
    %c0 = arith.constant 0 : index
    %c0_1 = arith.constant 0 : index
    %c0_2 = arith.constant 0 : index
    %11 = vector.load %arg2[%c0, %c0_1, %c0_2] : memref<8x8x128xf32, #tpu.memory_space<vmem>>, vector<8x8x128xf32>
    %c0_3 = arith.constant 0 : index
    %c0_4 = arith.constant 0 : index
    %12 = vector.load %arg6[%c0_3, %c0_4] : memref<1x128xf32, #tpu.memory_space<vmem>>, vector<1x128xf32>
    %c0_5 = arith.constant 0 : index
    %c0_6 = arith.constant 0 : index
    %13 = vector.load %arg7[%c0_5, %c0_6] : memref<1x128xf32, #tpu.memory_space<vmem>>, vector<1x128xf32>
    %cst = arith.constant dense<0.000000e+00> : vector<8x8xf32>
    %14 = vector.multi_reduction <add>, %11, %cst [2] : vector<8x8x128xf32> to vector<8x8xf32>
    %15 = vector.shape_cast %14 : vector<8x8xf32> to vector<8x8x1xf32>
    %cst_7 = arith.constant 3.125000e-02 : f32
    %16 = vector.broadcast %cst_7 : f32 to vector<8x8x1xf32>
    %17 = arith.mulf %15, %16 : vector<8x8x1xf32>
    %18 = vector.broadcast %17 : vector<8x8x1xf32> to vector<8x8x128xf32>
    %19 = arith.subf %11, %18 : vector<8x8x128xf32>
    %20 = arith.mulf %19, %10 : vector<8x8x128xf32>
    %21 = arith.mulf %20, %20 : vector<8x8x128xf32>
    %cst_8 = arith.constant dense<0.000000e+00> : vector<8x8xf32>
    %22 = vector.multi_reduction <add>, %21, %cst_8 [2] : vector<8x8x128xf32> to vector<8x8xf32>
    %23 = vector.shape_cast %22 : vector<8x8xf32> to vector<8x8x1xf32>
    %cst_9 = arith.constant 3.125000e-02 : f32
    %24 = vector.broadcast %cst_9 : f32 to vector<8x8x1xf32>
    %25 = arith.mulf %23, %24 : vector<8x8x1xf32>
    %cst_10 = arith.constant 9.99999974E-6 : f32
    %26 = vector.broadcast %cst_10 : f32 to vector<8x8x1xf32>
    %27 = arith.addf %25, %26 : vector<8x8x1xf32>
    %28 = math.rsqrt %27 : vector<8x8x1xf32>
    %29 = vector.broadcast %28 : vector<8x8x1xf32> to vector<8x8x128xf32>
    %30 = arith.mulf %20, %29 : vector<8x8x128xf32>
    %31 = vector.shape_cast %12 : vector<1x128xf32> to vector<1x1x128xf32>
    %32 = vector.broadcast %31 : vector<1x1x128xf32> to vector<8x8x128xf32>
    %33 = arith.mulf %30, %32 : vector<8x8x128xf32>
    %34 = vector.shape_cast %13 : vector<1x128xf32> to vector<1x1x128xf32>
    %35 = vector.broadcast %34 : vector<1x1x128xf32> to vector<8x8x128xf32>
    %36 = arith.addf %33, %35 : vector<8x8x128xf32>
    %c0_11 = arith.constant 0 : index
    %c0_12 = arith.constant 0 : index
    %37 = vector.load %arg8[%c0_11, %c0_12] : memref<1x128xf32, #tpu.memory_space<vmem>>, vector<1x128xf32>
    %c0_13 = arith.constant 0 : index
    %c0_14 = arith.constant 0 : index
    %38 = vector.load %arg9[%c0_13, %c0_14] : memref<1x128xf32, #tpu.memory_space<vmem>>, vector<1x128xf32>
    %cst_15 = arith.constant dense<0.000000e+00> : vector<8x8xf32>
    %39 = vector.multi_reduction <add>, %36, %cst_15 [2] : vector<8x8x128xf32> to vector<8x8xf32>
    %40 = vector.shape_cast %39 : vector<8x8xf32> to vector<8x8x1xf32>
    %cst_16 = arith.constant 3.125000e-02 : f32
    %41 = vector.broadcast %cst_16 : f32 to vector<8x8x1xf32>
    %42 = arith.mulf %40, %41 : vector<8x8x1xf32>
    %43 = vector.broadcast %42 : vector<8x8x1xf32> to vector<8x8x128xf32>
    %44 = arith.subf %36, %43 : vector<8x8x128xf32>
    %45 = arith.mulf %44, %10 : vector<8x8x128xf32>
    %46 = arith.mulf %45, %45 : vector<8x8x128xf32>
    %cst_17 = arith.constant dense<0.000000e+00> : vector<8x8xf32>
    %47 = vector.multi_reduction <add>, %46, %cst_17 [2] : vector<8x8x128xf32> to vector<8x8xf32>
    %48 = vector.shape_cast %47 : vector<8x8xf32> to vector<8x8x1xf32>
    %cst_18 = arith.constant 3.125000e-02 : f32
    %49 = vector.broadcast %cst_18 : f32 to vector<8x8x1xf32>
    %50 = arith.mulf %48, %49 : vector<8x8x1xf32>
    %cst_19 = arith.constant 9.99999974E-6 : f32
    %51 = vector.broadcast %cst_19 : f32 to vector<8x8x1xf32>
    %52 = arith.addf %50, %51 : vector<8x8x1xf32>
    %53 = math.rsqrt %52 : vector<8x8x1xf32>
    %54 = vector.broadcast %53 : vector<8x8x1xf32> to vector<8x8x128xf32>
    %55 = arith.mulf %45, %54 : vector<8x8x128xf32>
    %56 = vector.shape_cast %37 : vector<1x128xf32> to vector<1x1x128xf32>
    %57 = vector.broadcast %56 : vector<1x1x128xf32> to vector<8x8x128xf32>
    %58 = arith.mulf %55, %57 : vector<8x8x128xf32>
    %59 = vector.shape_cast %38 : vector<1x128xf32> to vector<1x1x128xf32>
    %60 = vector.broadcast %59 : vector<1x1x128xf32> to vector<8x8x128xf32>
    %61 = arith.addf %58, %60 : vector<8x8x128xf32>
    %c0_20 = arith.constant 0 : index
    %c0_21 = arith.constant 0 : index
    %c0_22 = arith.constant 0 : index
    %62 = vector.load %arg33[%c0_20, %c0_21, %c0_22] : memref<1x8x128xf32, #tpu.memory_space<vmem>>, vector<1x8x128xf32>
    %63 = vector.extract_strided_slice %61 {offsets = [0, 0, 0], sizes = [7, 8, 128], strides = [1, 1, 1]} : vector<8x8x128xf32> to vector<7x8x128xf32>
    %64 = tpu.concatenate %62, %63 in 0 : vector<1x8x128xf32>, vector<7x8x128xf32> -> vector<8x8x128xf32>
    %65 = vector.extract_strided_slice %61 {offsets = [7, 0, 0], sizes = [1, 8, 128], strides = [1, 1, 1]} : vector<8x8x128xf32> to vector<1x8x128xf32>
    %c0_23 = arith.constant 0 : index
    %c0_24 = arith.constant 0 : index
    %c0_25 = arith.constant 0 : index
    %66 = vector.load %arg33[%c0_23, %c0_24, %c0_25] : memref<1x8x128xf32, #tpu.memory_space<vmem>>, vector<1x8x128xf32>
    tpu.vector_store %arg33[%c0_23, %c0_24, %c0_25], %65 {strides = array<i32>} : memref<1x8x128xf32, #tpu.memory_space<vmem>>, vector<1x8x128xf32>,
    %c0_26 = arith.constant 0 : index
    %c0_27 = arith.constant 0 : index
    %67 = vector.load %arg14[%c0_26, %c0_27] : memref<1x128xf32, #tpu.memory_space<vmem>>, vector<1x128xf32>
    %c0_28 = arith.constant 0 : index
    %c0_29 = arith.constant 0 : index
    %68 = vector.load %arg15[%c0_28, %c0_29] : memref<1x128xf32, #tpu.memory_space<vmem>>, vector<1x128xf32>
    %c0_30 = arith.constant 0 : index
    %c0_31 = arith.constant 0 : index
    %69 = vector.load %arg16[%c0_30, %c0_31] : memref<1x128xf32, #tpu.memory_space<vmem>>, vector<1x128xf32>
    %70 = vector.shape_cast %67 : vector<1x128xf32> to vector<1x1x128xf32>
    %71 = vector.broadcast %70 : vector<1x1x128xf32> to vector<8x8x128xf32>
    %72 = arith.mulf %61, %71 : vector<8x8x128xf32>
    %cst_32 = arith.constant 1.000000e+00 : f32
    %73 = vector.broadcast %cst_32 : f32 to vector<1x128xf32>
    %74 = arith.subf %73, %67 : vector<1x128xf32>
    %75 = vector.shape_cast %74 : vector<1x128xf32> to vector<1x1x128xf32>
    %76 = vector.broadcast %75 : vector<1x1x128xf32> to vector<8x8x128xf32>
    %77 = arith.mulf %64, %76 : vector<8x8x128xf32>
    %78 = arith.addf %72, %77 : vector<8x8x128xf32>
    %79 = vector.shape_cast %78 : vector<8x8x128xf32> to vector<64x128xf32>
    %80 = vector.shape_cast %68 : vector<1x128xf32> to vector<1x1x128xf32>
    %81 = vector.broadcast %80 : vector<1x1x128xf32> to vector<8x8x128xf32>
    %82 = arith.mulf %61, %81 : vector<8x8x128xf32>
    %cst_33 = arith.constant 1.000000e+00 : f32
    %83 = vector.broadcast %cst_33 : f32 to vector<1x128xf32>
    %84 = arith.subf %83, %68 : vector<1x128xf32>
    %85 = vector.shape_cast %84 : vector<1x128xf32> to vector<1x1x128xf32>
    %86 = vector.broadcast %85 : vector<1x1x128xf32> to vector<8x8x128xf32>
    %87 = arith.mulf %64, %86 : vector<8x8x128xf32>
    %88 = arith.addf %82, %87 : vector<8x8x128xf32>
    %89 = vector.shape_cast %88 : vector<8x8x128xf32> to vector<64x128xf32>
    %90 = vector.shape_cast %69 : vector<1x128xf32> to vector<1x1x128xf32>
    %91 = vector.broadcast %90 : vector<1x1x128xf32> to vector<8x8x128xf32>
    %92 = arith.mulf %61, %91 : vector<8x8x128xf32>
    %cst_34 = arith.constant 1.000000e+00 : f32
    %93 = vector.broadcast %cst_34 : f32 to vector<1x128xf32>
    %94 = arith.subf %93, %69 : vector<1x128xf32>
    %95 = vector.shape_cast %94 : vector<1x128xf32> to vector<1x1x128xf32>
    %96 = vector.broadcast %95 : vector<1x1x128xf32> to vector<8x8x128xf32>
    %97 = arith.mulf %64, %96 : vector<8x8x128xf32>
    %98 = arith.addf %92, %97 : vector<8x8x128xf32>
    %99 = vector.shape_cast %98 : vector<8x8x128xf32> to vector<64x128xf32>
    %100 = arith.truncf %79 : vector<64x128xf32> to vector<64x128xbf16>
    %c0_35 = arith.constant 0 : index
    %c0_36 = arith.constant 0 : index
    %101 = vector.load %arg17[%c0_35, %c0_36] : memref<128x128xbf16, #tpu.memory_space<vmem>>, vector<128x128xbf16>
    %cst_37 = arith.constant dense<0.000000e+00> : vector<64x128xf32>
    %102 = tpu.matmul %100, %101, %cst_37 {dimension_numbers = #tpu.dot_dimension_numbers<[1], [0], [0], [1], [0, 0, 1, 1], [], []>} : vector<64x128xbf16>, vector<128x128xbf16>, vector<64x128xf32> -> vector<64x128xf32>
    %103 = arith.truncf %89 : vector<64x128xf32> to vector<64x128xbf16>
    %c0_38 = arith.constant 0 : index
    %c0_39 = arith.constant 0 : index
    %104 = vector.load %arg18[%c0_38, %c0_39] : memref<128x128xbf16, #tpu.memory_space<vmem>>, vector<128x128xbf16>
    %cst_40 = arith.constant dense<0.000000e+00> : vector<64x128xf32>
    %105 = tpu.matmul %103, %104, %cst_40 {dimension_numbers = #tpu.dot_dimension_numbers<[1], [0], [0], [1], [0, 0, 1, 1], [], []>} : vector<64x128xbf16>, vector<128x128xbf16>, vector<64x128xf32> -> vector<64x128xf32>
    %106 = arith.truncf %99 : vector<64x128xf32> to vector<64x128xbf16>
    %c0_41 = arith.constant 0 : index
    %c0_42 = arith.constant 0 : index
    %107 = vector.load %arg19[%c0_41, %c0_42] : memref<128x128xbf16, #tpu.memory_space<vmem>>, vector<128x128xbf16>
    %cst_43 = arith.constant dense<0.000000e+00> : vector<64x128xf32>
    %108 = tpu.matmul %106, %107, %cst_43 {dimension_numbers = #tpu.dot_dimension_numbers<[1], [0], [0], [1], [0, 0, 1, 1], [], []>} : vector<64x128xbf16>, vector<128x128xbf16>, vector<64x128xf32> -> vector<64x128xf32>
    %109 = arith.negf %108 : vector<64x128xf32>
    %110 = math.exp %109 : vector<64x128xf32>
    %cst_44 = arith.constant 1.000000e+00 : f32
    %111 = vector.broadcast %cst_44 : f32 to vector<64x128xf32>
    %112 = arith.addf %111, %110 : vector<64x128xf32>
    %113 = arith.divf %111, %112 : vector<64x128xf32>
    %114 = vector.shape_cast %102 : vector<64x128xf32> to vector<8x8x128xf32>
    %c0_45 = arith.constant 0 : index
    %c0_46 = arith.constant 0 : index
    %c0_47 = arith.constant 0 : index
    %115 = vector.load %arg30[%c0_45, %c0_46, %c0_47] : memref<8x8x128xf32, #tpu.memory_space<vmem>>, vector<8x8x128xf32>
    tpu.vector_store %arg30[%c0_45, %c0_46, %c0_47], %114 {strides = array<i32>} : memref<8x8x128xf32, #tpu.memory_space<vmem>>, vector<8x8x128xf32>,
    %116 = vector.shape_cast %105 : vector<64x128xf32> to vector<8x8x128xf32>
    %c0_48 = arith.constant 0 : index
    %c0_49 = arith.constant 0 : index
    %c0_50 = arith.constant 0 : index
    %117 = vector.load %arg31[%c0_48, %c0_49, %c0_50] : memref<8x8x128xf32, #tpu.memory_space<vmem>>, vector<8x8x128xf32>
    tpu.vector_store %arg31[%c0_48, %c0_49, %c0_50], %116 {strides = array<i32>} : memref<8x8x128xf32, #tpu.memory_space<vmem>>, vector<8x8x128xf32>,
    %c0_51 = arith.constant 0 : index
    %c0_52 = arith.constant 0 : index
    %118 = vector.load %arg12[%c0_51, %c0_52] : memref<1x128xf32, #tpu.memory_space<vmem>>, vector<1x128xf32>
    %119 = math.exp %118 : vector<1x128xf32>
    %120 = vector.shape_cast %119 : vector<1x128xf32> to vector<1x128xf32>
    %121 = vector.broadcast %120 : vector<1x128xf32> to vector<8x128xf32>
    %c0_53 = arith.constant 0 : index
    %c0_54 = arith.constant 0 : index
    %122 = vector.load %arg13[%c0_53, %c0_54] : memref<1x128xf32, #tpu.memory_space<vmem>>, vector<1x128xf32>
    %123 = vector.shape_cast %122 : vector<1x128xf32> to vector<1x128xf32>
    %124 = vector.broadcast %123 : vector<1x128xf32> to vector<8x128xf32>
    %c0_55 = arith.constant 0 : index
    %c0_56 = arith.constant 0 : index
    %c0_57 = arith.constant 0 : index
    %125 = vector.load %arg32[%c0_55, %c0_56, %c0_57] : memref<3x8x128xf32, #tpu.memory_space<vmem>>, vector<1x8x128xf32>
    %126 = vector.shape_cast %125 : vector<1x8x128xf32> to vector<8x128xf32>
    %c1 = arith.constant 1 : index
    %c0_58 = arith.constant 0 : index
    %c0_59 = arith.constant 0 : index
    %127 = vector.load %arg32[%c1, %c0_58, %c0_59] : memref<3x8x128xf32, #tpu.memory_space<vmem>>, vector<1x8x128xf32>
    %128 = vector.shape_cast %127 : vector<1x8x128xf32> to vector<8x128xf32>
    %c2 = arith.constant 2 : index
    %c0_60 = arith.constant 0 : index
    %c0_61 = arith.constant 0 : index
    %129 = vector.load %arg32[%c2, %c0_60, %c0_61] : memref<3x8x128xf32, #tpu.memory_space<vmem>>, vector<1x8x128xf32>
    %130 = vector.shape_cast %129 : vector<1x8x128xf32> to vector<8x128xf32>
    %c0_i32_62 = arith.constant 0 : i32
    %131 = arith.index_cast %c0_i32_62 : i32 to index
    %c0_63 = arith.constant 0 : index
    %c0_64 = arith.constant 0 : index
    %132 = vector.load %arg30[%131, %c0_63, %c0_64] : memref<8x8x128xf32, #tpu.memory_space<vmem>>, vector<1x8x128xf32>
    %133 = vector.shape_cast %132 : vector<1x8x128xf32> to vector<8x128xf32>
    %134 = arith.index_cast %c0_i32_62 : i32 to index
    %c0_65 = arith.constant 0 : index
    %c0_66 = arith.constant 0 : index
    %135 = vector.load %arg31[%134, %c0_65, %c0_66] : memref<8x8x128xf32, #tpu.memory_space<vmem>>, vector<1x8x128xf32>
    %136 = vector.shape_cast %135 : vector<1x8x128xf32> to vector<8x128xf32>
    %137 = arith.addf %124, %133 : vector<8x128xf32>
    %138 = arith.maximumf %137, %130 : vector<8x128xf32>
    %139 = arith.subf %130, %138 : vector<8x128xf32>
    %140 = math.exp %139 : vector<8x128xf32>
    %141 = arith.subf %137, %138 : vector<8x128xf32>
    %142 = math.exp %141 : vector<8x128xf32>
    %143 = arith.mulf %140, %126 : vector<8x128xf32>
    %144 = arith.mulf %142, %136 : vector<8x128xf32>
    %145 = arith.addf %143, %144 : vector<8x128xf32>
    %146 = arith.mulf %140, %128 : vector<8x128xf32>
    %147 = arith.addf %146, %142 : vector<8x128xf32>
    %148 = tpu.reciprocal %147 {approx = true} : vector<8x128xf32> -> vector<8x128xf32>
    %149 = arith.mulf %145, %148 : vector<8x128xf32>
    %150 = arith.subf %130, %121 : vector<8x128xf32>
    %151 = arith.maximumf %150, %133 : vector<8x128xf32>
    %152 = arith.subf %150, %151 : vector<8x128xf32>
    %153 = math.exp %152 : vector<8x128xf32>
    %154 = arith.subf %133, %151 : vector<8x128xf32>
    %155 = math.exp %154 : vector<8x128xf32>
    %156 = arith.mulf %153, %126 : vector<8x128xf32>
    %157 = arith.mulf %155, %136 : vector<8x128xf32>
    %158 = arith.addf %156, %157 : vector<8x128xf32>
    %159 = arith.mulf %153, %128 : vector<8x128xf32>
    %160 = arith.addf %159, %155 : vector<8x128xf32>
    %161 = arith.index_cast %c0_i32_62 : i32 to index
    %c0_67 = arith.constant 0 : index
    %c0_68 = arith.constant 0 : index
    %162 = vector.load %arg30[%161, %c0_67, %c0_68] : memref<8x8x128xf32, #tpu.memory_space<vmem>>, vector<1x8x128xf32>
    %163 = vector.shape_cast %162 : vector<1x8x128xf32> to vector<8x128xf32>
    %164 = vector.shape_cast %149 : vector<8x128xf32> to vector<1x8x128xf32>
    tpu.vector_store %arg30[%161, %c0_67, %c0_68], %164 {strides = array<i32>} : memref<8x8x128xf32, #tpu.memory_space<vmem>>, vector<1x8x128xf32>,
    %c1_i32 = arith.constant 1 : i32
    %165 = arith.index_cast %c1_i32 : i32 to index
    %c0_69 = arith.constant 0 : index
    %c0_70 = arith.constant 0 : index
    %166 = vector.load %arg30[%165, %c0_69, %c0_70] : memref<8x8x128xf32, #tpu.memory_space<vmem>>, vector<1x8x128xf32>
    %167 = vector.shape_cast %166 : vector<1x8x128xf32> to vector<8x128xf32>
    %168 = arith.index_cast %c1_i32 : i32 to index
    %c0_71 = arith.constant 0 : index
    %c0_72 = arith.constant 0 : index
    %169 = vector.load %arg31[%168, %c0_71, %c0_72] : memref<8x8x128xf32, #tpu.memory_space<vmem>>, vector<1x8x128xf32>
    %170 = vector.shape_cast %169 : vector<1x8x128xf32> to vector<8x128xf32>
    %171 = arith.addf %124, %167 : vector<8x128xf32>
    %172 = arith.maximumf %171, %151 : vector<8x128xf32>
    %173 = arith.subf %151, %172 : vector<8x128xf32>
    %174 = math.exp %173 : vector<8x128xf32>
    %175 = arith.subf %171, %172 : vector<8x128xf32>
    %176 = math.exp %175 : vector<8x128xf32>
    %177 = arith.mulf %174, %158 : vector<8x128xf32>
    %178 = arith.mulf %176, %170 : vector<8x128xf32>
    %179 = arith.addf %177, %178 : vector<8x128xf32>
    %180 = arith.mulf %174, %160 : vector<8x128xf32>
    %181 = arith.addf %180, %176 : vector<8x128xf32>
    %182 = tpu.reciprocal %181 {approx = true} : vector<8x128xf32> -> vector<8x128xf32>
    %183 = arith.mulf %179, %182 : vector<8x128xf32>
    %184 = arith.subf %151, %121 : vector<8x128xf32>
    %185 = arith.maximumf %184, %167 : vector<8x128xf32>
    %186 = arith.subf %184, %185 : vector<8x128xf32>
    %187 = math.exp %186 : vector<8x128xf32>
    %188 = arith.subf %167, %185 : vector<8x128xf32>
    %189 = math.exp %188 : vector<8x128xf32>
    %190 = arith.mulf %187, %158 : vector<8x128xf32>
    %191 = arith.mulf %189, %170 : vector<8x128xf32>
    %192 = arith.addf %190, %191 : vector<8x128xf32>
    %193 = arith.mulf %187, %160 : vector<8x128xf32>
    %194 = arith.addf %193, %189 : vector<8x128xf32>
    %195 = arith.index_cast %c1_i32 : i32 to index
    %c0_73 = arith.constant 0 : index
    %c0_74 = arith.constant 0 : index
    %196 = vector.load %arg30[%195, %c0_73, %c0_74] : memref<8x8x128xf32, #tpu.memory_space<vmem>>, vector<1x8x128xf32>
    %197 = vector.shape_cast %196 : vector<1x8x128xf32> to vector<8x128xf32>
    %198 = vector.shape_cast %183 : vector<8x128xf32> to vector<1x8x128xf32>
    tpu.vector_store %arg30[%195, %c0_73, %c0_74], %198 {strides = array<i32>} : memref<8x8x128xf32, #tpu.memory_space<vmem>>, vector<1x8x128xf32>,
    %c2_i32 = arith.constant 2 : i32
    %199 = arith.index_cast %c2_i32 : i32 to index
    %c0_75 = arith.constant 0 : index
    %c0_76 = arith.constant 0 : index
    %200 = vector.load %arg30[%199, %c0_75, %c0_76] : memref<8x8x128xf32, #tpu.memory_space<vmem>>, vector<1x8x128xf32>
    %201 = vector.shape_cast %200 : vector<1x8x128xf32> to vector<8x128xf32>
    %202 = arith.index_cast %c2_i32 : i32 to index
    %c0_77 = arith.constant 0 : index
    %c0_78 = arith.constant 0 : index
    %203 = vector.load %arg31[%202, %c0_77, %c0_78] : memref<8x8x128xf32, #tpu.memory_space<vmem>>, vector<1x8x128xf32>
    %204 = vector.shape_cast %203 : vector<1x8x128xf32> to vector<8x128xf32>
    %205 = arith.addf %124, %201 : vector<8x128xf32>
    %206 = arith.maximumf %205, %185 : vector<8x128xf32>
    %207 = arith.subf %185, %206 : vector<8x128xf32>
    %208 = math.exp %207 : vector<8x128xf32>
    %209 = arith.subf %205, %206 : vector<8x128xf32>
    %210 = math.exp %209 : vector<8x128xf32>
    %211 = arith.mulf %208, %192 : vector<8x128xf32>
    %212 = arith.mulf %210, %204 : vector<8x128xf32>
    %213 = arith.addf %211, %212 : vector<8x128xf32>
    %214 = arith.mulf %208, %194 : vector<8x128xf32>
    %215 = arith.addf %214, %210 : vector<8x128xf32>
    %216 = tpu.reciprocal %215 {approx = true} : vector<8x128xf32> -> vector<8x128xf32>
    %217 = arith.mulf %213, %216 : vector<8x128xf32>
    %218 = arith.subf %185, %121 : vector<8x128xf32>
    %219 = arith.maximumf %218, %201 : vector<8x128xf32>
    %220 = arith.subf %218, %219 : vector<8x128xf32>
    %221 = math.exp %220 : vector<8x128xf32>
    %222 = arith.subf %201, %219 : vector<8x128xf32>
    %223 = math.exp %222 : vector<8x128xf32>
    %224 = arith.mulf %221, %192 : vector<8x128xf32>
    %225 = arith.mulf %223, %204 : vector<8x128xf32>
    %226 = arith.addf %224, %225 : vector<8x128xf32>
    %227 = arith.mulf %221, %194 : vector<8x128xf32>
    %228 = arith.addf %227, %223 : vector<8x128xf32>
    %229 = arith.index_cast %c2_i32 : i32 to index
    %c0_79 = arith.constant 0 : index
    %c0_80 = arith.constant 0 : index
    %230 = vector.load %arg30[%229, %c0_79, %c0_80] : memref<8x8x128xf32, #tpu.memory_space<vmem>>, vector<1x8x128xf32>
    %231 = vector.shape_cast %230 : vector<1x8x128xf32> to vector<8x128xf32>
    %232 = vector.shape_cast %217 : vector<8x128xf32> to vector<1x8x128xf32>
    tpu.vector_store %arg30[%229, %c0_79, %c0_80], %232 {strides = array<i32>} : memref<8x8x128xf32, #tpu.memory_space<vmem>>, vector<1x8x128xf32>,
    %c3_i32 = arith.constant 3 : i32
    %233 = arith.index_cast %c3_i32 : i32 to index
    %c0_81 = arith.constant 0 : index
    %c0_82 = arith.constant 0 : index
    %234 = vector.load %arg30[%233, %c0_81, %c0_82] : memref<8x8x128xf32, #tpu.memory_space<vmem>>, vector<1x8x128xf32>
    %235 = vector.shape_cast %234 : vector<1x8x128xf32> to vector<8x128xf32>
    %236 = arith.index_cast %c3_i32 : i32 to index
    %c0_83 = arith.constant 0 : index
    %c0_84 = arith.constant 0 : index
    %237 = vector.load %arg31[%236, %c0_83, %c0_84] : memref<8x8x128xf32, #tpu.memory_space<vmem>>, vector<1x8x128xf32>
    %238 = vector.shape_cast %237 : vector<1x8x128xf32> to vector<8x128xf32>
    %239 = arith.addf %124, %235 : vector<8x128xf32>
    %240 = arith.maximumf %239, %219 : vector<8x128xf32>
    %241 = arith.subf %219, %240 : vector<8x128xf32>
    %242 = math.exp %241 : vector<8x128xf32>
    %243 = arith.subf %239, %240 : vector<8x128xf32>
    %244 = math.exp %243 : vector<8x128xf32>
    %245 = arith.mulf %242, %226 : vector<8x128xf32>
    %246 = arith.mulf %244, %238 : vector<8x128xf32>
    %247 = arith.addf %245, %246 : vector<8x128xf32>
    %248 = arith.mulf %242, %228 : vector<8x128xf32>
    %249 = arith.addf %248, %244 : vector<8x128xf32>
    %250 = tpu.reciprocal %249 {approx = true} : vector<8x128xf32> -> vector<8x128xf32>
    %251 = arith.mulf %247, %250 : vector<8x128xf32>
    %252 = arith.subf %219, %121 : vector<8x128xf32>
    %253 = arith.maximumf %252, %235 : vector<8x128xf32>
    %254 = arith.subf %252, %253 : vector<8x128xf32>
    %255 = math.exp %254 : vector<8x128xf32>
    %256 = arith.subf %235, %253 : vector<8x128xf32>
    %257 = math.exp %256 : vector<8x128xf32>
    %258 = arith.mulf %255, %226 : vector<8x128xf32>
    %259 = arith.mulf %257, %238 : vector<8x128xf32>
    %260 = arith.addf %258, %259 : vector<8x128xf32>
    %261 = arith.mulf %255, %228 : vector<8x128xf32>
    %262 = arith.addf %261, %257 : vector<8x128xf32>
    %263 = arith.index_cast %c3_i32 : i32 to index
    %c0_85 = arith.constant 0 : index
    %c0_86 = arith.constant 0 : index
    %264 = vector.load %arg30[%263, %c0_85, %c0_86] : memref<8x8x128xf32, #tpu.memory_space<vmem>>, vector<1x8x128xf32>
    %265 = vector.shape_cast %264 : vector<1x8x128xf32> to vector<8x128xf32>
    %266 = vector.shape_cast %251 : vector<8x128xf32> to vector<1x8x128xf32>
    tpu.vector_store %arg30[%263, %c0_85, %c0_86], %266 {strides = array<i32>} : memref<8x8x128xf32, #tpu.memory_space<vmem>>, vector<1x8x128xf32>,
    %c4_i32 = arith.constant 4 : i32
    %267 = arith.index_cast %c4_i32 : i32 to index
    %c0_87 = arith.constant 0 : index
    %c0_88 = arith.constant 0 : index
    %268 = vector.load %arg30[%267, %c0_87, %c0_88] : memref<8x8x128xf32, #tpu.memory_space<vmem>>, vector<1x8x128xf32>
    %269 = vector.shape_cast %268 : vector<1x8x128xf32> to vector<8x128xf32>
    %270 = arith.index_cast %c4_i32 : i32 to index
    %c0_89 = arith.constant 0 : index
    %c0_90 = arith.constant 0 : index
    %271 = vector.load %arg31[%270, %c0_89, %c0_90] : memref<8x8x128xf32, #tpu.memory_space<vmem>>, vector<1x8x128xf32>
    %272 = vector.shape_cast %271 : vector<1x8x128xf32> to vector<8x128xf32>
    %273 = arith.addf %124, %269 : vector<8x128xf32>
    %274 = arith.maximumf %273, %253 : vector<8x128xf32>
    %275 = arith.subf %253, %274 : vector<8x128xf32>
    %276 = math.exp %275 : vector<8x128xf32>
    %277 = arith.subf %273, %274 : vector<8x128xf32>
    %278 = math.exp %277 : vector<8x128xf32>
    %279 = arith.mulf %276, %260 : vector<8x128xf32>
    %280 = arith.mulf %278, %272 : vector<8x128xf32>
    %281 = arith.addf %279, %280 : vector<8x128xf32>
    %282 = arith.mulf %276, %262 : vector<8x128xf32>
    %283 = arith.addf %282, %278 : vector<8x128xf32>
    %284 = tpu.reciprocal %283 {approx = true} : vector<8x128xf32> -> vector<8x128xf32>
    %285 = arith.mulf %281, %284 : vector<8x128xf32>
    %286 = arith.subf %253, %121 : vector<8x128xf32>
    %287 = arith.maximumf %286, %269 : vector<8x128xf32>
    %288 = arith.subf %286, %287 : vector<8x128xf32>
    %289 = math.exp %288 : vector<8x128xf32>
    %290 = arith.subf %269, %287 : vector<8x128xf32>
    %291 = math.exp %290 : vector<8x128xf32>
    %292 = arith.mulf %289, %260 : vector<8x128xf32>
    %293 = arith.mulf %291, %272 : vector<8x128xf32>
    %294 = arith.addf %292, %293 : vector<8x128xf32>
    %295 = arith.mulf %289, %262 : vector<8x128xf32>
    %296 = arith.addf %295, %291 : vector<8x128xf32>
    %297 = arith.index_cast %c4_i32 : i32 to index
    %c0_91 = arith.constant 0 : index
    %c0_92 = arith.constant 0 : index
    %298 = vector.load %arg30[%297, %c0_91, %c0_92] : memref<8x8x128xf32, #tpu.memory_space<vmem>>, vector<1x8x128xf32>
    %299 = vector.shape_cast %298 : vector<1x8x128xf32> to vector<8x128xf32>
    %300 = vector.shape_cast %285 : vector<8x128xf32> to vector<1x8x128xf32>
    tpu.vector_store %arg30[%297, %c0_91, %c0_92], %300 {strides = array<i32>} : memref<8x8x128xf32, #tpu.memory_space<vmem>>, vector<1x8x128xf32>,
    %c5_i32 = arith.constant 5 : i32
    %301 = arith.index_cast %c5_i32 : i32 to index
    %c0_93 = arith.constant 0 : index
    %c0_94 = arith.constant 0 : index
    %302 = vector.load %arg30[%301, %c0_93, %c0_94] : memref<8x8x128xf32, #tpu.memory_space<vmem>>, vector<1x8x128xf32>
    %303 = vector.shape_cast %302 : vector<1x8x128xf32> to vector<8x128xf32>
    %304 = arith.index_cast %c5_i32 : i32 to index
    %c0_95 = arith.constant 0 : index
    %c0_96 = arith.constant 0 : index
    %305 = vector.load %arg31[%304, %c0_95, %c0_96] : memref<8x8x128xf32, #tpu.memory_space<vmem>>, vector<1x8x128xf32>
    %306 = vector.shape_cast %305 : vector<1x8x128xf32> to vector<8x128xf32>
    %307 = arith.addf %124, %303 : vector<8x128xf32>
    %308 = arith.maximumf %307, %287 : vector<8x128xf32>
    %309 = arith.subf %287, %308 : vector<8x128xf32>
    %310 = math.exp %309 : vector<8x128xf32>
    %311 = arith.subf %307, %308 : vector<8x128xf32>
    %312 = math.exp %311 : vector<8x128xf32>
    %313 = arith.mulf %310, %294 : vector<8x128xf32>
    %314 = arith.mulf %312, %306 : vector<8x128xf32>
    %315 = arith.addf %313, %314 : vector<8x128xf32>
    %316 = arith.mulf %310, %296 : vector<8x128xf32>
    %317 = arith.addf %316, %312 : vector<8x128xf32>
    %318 = tpu.reciprocal %317 {approx = true} : vector<8x128xf32> -> vector<8x128xf32>
    %319 = arith.mulf %315, %318 : vector<8x128xf32>
    %320 = arith.subf %287, %121 : vector<8x128xf32>
    %321 = arith.maximumf %320, %303 : vector<8x128xf32>
    %322 = arith.subf %320, %321 : vector<8x128xf32>
    %323 = math.exp %322 : vector<8x128xf32>
    %324 = arith.subf %303, %321 : vector<8x128xf32>
    %325 = math.exp %324 : vector<8x128xf32>
    %326 = arith.mulf %323, %294 : vector<8x128xf32>
    %327 = arith.mulf %325, %306 : vector<8x128xf32>
    %328 = arith.addf %326, %327 : vector<8x128xf32>
    %329 = arith.mulf %323, %296 : vector<8x128xf32>
    %330 = arith.addf %329, %325 : vector<8x128xf32>
    %331 = arith.index_cast %c5_i32 : i32 to index
    %c0_97 = arith.constant 0 : index
    %c0_98 = arith.constant 0 : index
    %332 = vector.load %arg30[%331, %c0_97, %c0_98] : memref<8x8x128xf32, #tpu.memory_space<vmem>>, vector<1x8x128xf32>
    %333 = vector.shape_cast %332 : vector<1x8x128xf32> to vector<8x128xf32>
    %334 = vector.shape_cast %319 : vector<8x128xf32> to vector<1x8x128xf32>
    tpu.vector_store %arg30[%331, %c0_97, %c0_98], %334 {strides = array<i32>} : memref<8x8x128xf32, #tpu.memory_space<vmem>>, vector<1x8x128xf32>,
    %c6_i32 = arith.constant 6 : i32
    %335 = arith.index_cast %c6_i32 : i32 to index
    %c0_99 = arith.constant 0 : index
    %c0_100 = arith.constant 0 : index
    %336 = vector.load %arg30[%335, %c0_99, %c0_100] : memref<8x8x128xf32, #tpu.memory_space<vmem>>, vector<1x8x128xf32>
    %337 = vector.shape_cast %336 : vector<1x8x128xf32> to vector<8x128xf32>
    %338 = arith.index_cast %c6_i32 : i32 to index
    %c0_101 = arith.constant 0 : index
    %c0_102 = arith.constant 0 : index
    %339 = vector.load %arg31[%338, %c0_101, %c0_102] : memref<8x8x128xf32, #tpu.memory_space<vmem>>, vector<1x8x128xf32>
    %340 = vector.shape_cast %339 : vector<1x8x128xf32> to vector<8x128xf32>
    %341 = arith.addf %124, %337 : vector<8x128xf32>
    %342 = arith.maximumf %341, %321 : vector<8x128xf32>
    %343 = arith.subf %321, %342 : vector<8x128xf32>
    %344 = math.exp %343 : vector<8x128xf32>
    %345 = arith.subf %341, %342 : vector<8x128xf32>
    %346 = math.exp %345 : vector<8x128xf32>
    %347 = arith.mulf %344, %328 : vector<8x128xf32>
    %348 = arith.mulf %346, %340 : vector<8x128xf32>
    %349 = arith.addf %347, %348 : vector<8x128xf32>
    %350 = arith.mulf %344, %330 : vector<8x128xf32>
    %351 = arith.addf %350, %346 : vector<8x128xf32>
    %352 = tpu.reciprocal %351 {approx = true} : vector<8x128xf32> -> vector<8x128xf32>
    %353 = arith.mulf %349, %352 : vector<8x128xf32>
    %354 = arith.subf %321, %121 : vector<8x128xf32>
    %355 = arith.maximumf %354, %337 : vector<8x128xf32>
    %356 = arith.subf %354, %355 : vector<8x128xf32>
    %357 = math.exp %356 : vector<8x128xf32>
    %358 = arith.subf %337, %355 : vector<8x128xf32>
    %359 = math.exp %358 : vector<8x128xf32>
    %360 = arith.mulf %357, %328 : vector<8x128xf32>
    %361 = arith.mulf %359, %340 : vector<8x128xf32>
    %362 = arith.addf %360, %361 : vector<8x128xf32>
    %363 = arith.mulf %357, %330 : vector<8x128xf32>
    %364 = arith.addf %363, %359 : vector<8x128xf32>
    %365 = arith.index_cast %c6_i32 : i32 to index
    %c0_103 = arith.constant 0 : index
    %c0_104 = arith.constant 0 : index
    %366 = vector.load %arg30[%365, %c0_103, %c0_104] : memref<8x8x128xf32, #tpu.memory_space<vmem>>, vector<1x8x128xf32>
    %367 = vector.shape_cast %366 : vector<1x8x128xf32> to vector<8x128xf32>
    %368 = vector.shape_cast %353 : vector<8x128xf32> to vector<1x8x128xf32>
    tpu.vector_store %arg30[%365, %c0_103, %c0_104], %368 {strides = array<i32>} : memref<8x8x128xf32, #tpu.memory_space<vmem>>, vector<1x8x128xf32>,
    %c7_i32 = arith.constant 7 : i32
    %369 = arith.index_cast %c7_i32 : i32 to index
    %c0_105 = arith.constant 0 : index
    %c0_106 = arith.constant 0 : index
    %370 = vector.load %arg30[%369, %c0_105, %c0_106] : memref<8x8x128xf32, #tpu.memory_space<vmem>>, vector<1x8x128xf32>
    %371 = vector.shape_cast %370 : vector<1x8x128xf32> to vector<8x128xf32>
    %372 = arith.index_cast %c7_i32 : i32 to index
    %c0_107 = arith.constant 0 : index
    %c0_108 = arith.constant 0 : index
    %373 = vector.load %arg31[%372, %c0_107, %c0_108] : memref<8x8x128xf32, #tpu.memory_space<vmem>>, vector<1x8x128xf32>
    %374 = vector.shape_cast %373 : vector<1x8x128xf32> to vector<8x128xf32>
    %375 = arith.addf %124, %371 : vector<8x128xf32>
    %376 = arith.maximumf %375, %355 : vector<8x128xf32>
    %377 = arith.subf %355, %376 : vector<8x128xf32>
    %378 = math.exp %377 : vector<8x128xf32>
    %379 = arith.subf %375, %376 : vector<8x128xf32>
    %380 = math.exp %379 : vector<8x128xf32>
    %381 = arith.mulf %378, %362 : vector<8x128xf32>
    %382 = arith.mulf %380, %374 : vector<8x128xf32>
    %383 = arith.addf %381, %382 : vector<8x128xf32>
    %384 = arith.mulf %378, %364 : vector<8x128xf32>
    %385 = arith.addf %384, %380 : vector<8x128xf32>
    %386 = tpu.reciprocal %385 {approx = true} : vector<8x128xf32> -> vector<8x128xf32>
    %387 = arith.mulf %383, %386 : vector<8x128xf32>
    %388 = arith.subf %355, %121 : vector<8x128xf32>
    %389 = arith.maximumf %388, %371 : vector<8x128xf32>
    %390 = arith.subf %388, %389 : vector<8x128xf32>
    %391 = math.exp %390 : vector<8x128xf32>
    %392 = arith.subf %371, %389 : vector<8x128xf32>
    %393 = math.exp %392 : vector<8x128xf32>
    %394 = arith.mulf %391, %362 : vector<8x128xf32>
    %395 = arith.mulf %393, %374 : vector<8x128xf32>
    %396 = arith.addf %394, %395 : vector<8x128xf32>
    %397 = arith.mulf %391, %364 : vector<8x128xf32>
    %398 = arith.addf %397, %393 : vector<8x128xf32>
    %399 = arith.index_cast %c7_i32 : i32 to index
    %c0_109 = arith.constant 0 : index
    %c0_110 = arith.constant 0 : index
    %400 = vector.load %arg30[%399, %c0_109, %c0_110] : memref<8x8x128xf32, #tpu.memory_space<vmem>>, vector<1x8x128xf32>
    %401 = vector.shape_cast %400 : vector<1x8x128xf32> to vector<8x128xf32>
    %402 = vector.shape_cast %387 : vector<8x128xf32> to vector<1x8x128xf32>
    tpu.vector_store %arg30[%399, %c0_109, %c0_110], %402 {strides = array<i32>} : memref<8x8x128xf32, #tpu.memory_space<vmem>>, vector<1x8x128xf32>,
    %c8_i32 = arith.constant 8 : i32
    %c0_111 = arith.constant 0 : index
    %c0_112 = arith.constant 0 : index
    %c0_113 = arith.constant 0 : index
    %403 = vector.load %arg32[%c0_111, %c0_112, %c0_113] : memref<3x8x128xf32, #tpu.memory_space<vmem>>, vector<1x8x128xf32>
    %404 = vector.shape_cast %403 : vector<1x8x128xf32> to vector<8x128xf32>
    %405 = vector.shape_cast %396 : vector<8x128xf32> to vector<1x8x128xf32>
    tpu.vector_store %arg32[%c0_111, %c0_112, %c0_113], %405 {strides = array<i32>} : memref<3x8x128xf32, #tpu.memory_space<vmem>>, vector<1x8x128xf32>,
    %c1_114 = arith.constant 1 : index
    %c0_115 = arith.constant 0 : index
    %c0_116 = arith.constant 0 : index
    %406 = vector.load %arg32[%c1_114, %c0_115, %c0_116] : memref<3x8x128xf32, #tpu.memory_space<vmem>>, vector<1x8x128xf32>
    %407 = vector.shape_cast %406 : vector<1x8x128xf32> to vector<8x128xf32>
    %408 = vector.shape_cast %398 : vector<8x128xf32> to vector<1x8x128xf32>
    tpu.vector_store %arg32[%c1_114, %c0_115, %c0_116], %408 {strides = array<i32>} : memref<3x8x128xf32, #tpu.memory_space<vmem>>, vector<1x8x128xf32>,
    %c2_117 = arith.constant 2 : index
    %c0_118 = arith.constant 0 : index
    %c0_119 = arith.constant 0 : index
    %409 = vector.load %arg32[%c2_117, %c0_118, %c0_119] : memref<3x8x128xf32, #tpu.memory_space<vmem>>, vector<1x8x128xf32>
    %410 = vector.shape_cast %409 : vector<1x8x128xf32> to vector<8x128xf32>
    %411 = vector.shape_cast %389 : vector<8x128xf32> to vector<1x8x128xf32>
    tpu.vector_store %arg32[%c2_117, %c0_118, %c0_119], %411 {strides = array<i32>} : memref<3x8x128xf32, #tpu.memory_space<vmem>>, vector<1x8x128xf32>,
    %c0_120 = arith.constant 0 : index
    %c0_121 = arith.constant 0 : index
    %c0_122 = arith.constant 0 : index
    %412 = vector.load %arg30[%c0_120, %c0_121, %c0_122] : memref<8x8x128xf32, #tpu.memory_space<vmem>>, vector<8x8x128xf32>
    %413 = vector.shape_cast %412 : vector<8x8x128xf32> to vector<64x128xf32>
    %414 = arith.mulf %413, %113 : vector<64x128xf32>
    %415 = arith.truncf %414 : vector<64x128xf32> to vector<64x128xbf16>
    %c0_123 = arith.constant 0 : index
    %c0_124 = arith.constant 0 : index
    %416 = vector.load %arg20[%c0_123, %c0_124] : memref<128x128xbf16, #tpu.memory_space<vmem>>, vector<128x128xbf16>
    %cst_125 = arith.constant dense<0.000000e+00> : vector<64x128xf32>
    %417 = tpu.matmul %415, %416, %cst_125 {dimension_numbers = #tpu.dot_dimension_numbers<[1], [0], [0], [1], [0, 0, 1, 1], [], []>} : vector<64x128xbf16>, vector<128x128xbf16>, vector<64x128xf32> -> vector<64x128xf32>
    %418 = vector.shape_cast %417 : vector<64x128xf32> to vector<8x8x128xf32>
    %419 = arith.addf %36, %418 : vector<8x8x128xf32>
    %c0_126 = arith.constant 0 : index
    %c0_127 = arith.constant 0 : index
    %420 = vector.load %arg10[%c0_126, %c0_127] : memref<1x128xf32, #tpu.memory_space<vmem>>, vector<1x128xf32>
    %c0_128 = arith.constant 0 : index
    %c0_129 = arith.constant 0 : index
    %421 = vector.load %arg11[%c0_128, %c0_129] : memref<1x128xf32, #tpu.memory_space<vmem>>, vector<1x128xf32>
    %cst_130 = arith.constant dense<0.000000e+00> : vector<8x8xf32>
    %422 = vector.multi_reduction <add>, %419, %cst_130 [2] : vector<8x8x128xf32> to vector<8x8xf32>
    %423 = vector.shape_cast %422 : vector<8x8xf32> to vector<8x8x1xf32>
    %cst_131 = arith.constant 3.125000e-02 : f32
    %424 = vector.broadcast %cst_131 : f32 to vector<8x8x1xf32>
    %425 = arith.mulf %423, %424 : vector<8x8x1xf32>
    %426 = vector.broadcast %425 : vector<8x8x1xf32> to vector<8x8x128xf32>
    %427 = arith.subf %419, %426 : vector<8x8x128xf32>
    %428 = arith.mulf %427, %10 : vector<8x8x128xf32>
    %429 = arith.mulf %428, %428 : vector<8x8x128xf32>
    %cst_132 = arith.constant dense<0.000000e+00> : vector<8x8xf32>
    %430 = vector.multi_reduction <add>, %429, %cst_132 [2] : vector<8x8x128xf32> to vector<8x8xf32>
    %431 = vector.shape_cast %430 : vector<8x8xf32> to vector<8x8x1xf32>
    %cst_133 = arith.constant 3.125000e-02 : f32
    %432 = vector.broadcast %cst_133 : f32 to vector<8x8x1xf32>
    %433 = arith.mulf %431, %432 : vector<8x8x1xf32>
    %cst_134 = arith.constant 9.99999974E-6 : f32
    %434 = vector.broadcast %cst_134 : f32 to vector<8x8x1xf32>
    %435 = arith.addf %433, %434 : vector<8x8x1xf32>
    %436 = math.rsqrt %435 : vector<8x8x1xf32>
    %437 = vector.broadcast %436 : vector<8x8x1xf32> to vector<8x8x128xf32>
    %438 = arith.mulf %428, %437 : vector<8x8x128xf32>
    %439 = vector.shape_cast %420 : vector<1x128xf32> to vector<1x1x128xf32>
    %440 = vector.broadcast %439 : vector<1x1x128xf32> to vector<8x8x128xf32>
    %441 = arith.mulf %438, %440 : vector<8x8x128xf32>
    %442 = vector.shape_cast %421 : vector<1x128xf32> to vector<1x1x128xf32>
    %443 = vector.broadcast %442 : vector<1x1x128xf32> to vector<8x8x128xf32>
    %444 = arith.addf %441, %443 : vector<8x8x128xf32>
    %c0_135 = arith.constant 0 : index
    %c0_136 = arith.constant 0 : index
    %c0_137 = arith.constant 0 : index
    %445 = vector.load %arg34[%c0_135, %c0_136, %c0_137] : memref<1x8x128xf32, #tpu.memory_space<vmem>>, vector<1x8x128xf32>
    %446 = vector.extract_strided_slice %444 {offsets = [0, 0, 0], sizes = [7, 8, 128], strides = [1, 1, 1]} : vector<8x8x128xf32> to vector<7x8x128xf32>
    %447 = tpu.concatenate %445, %446 in 0 : vector<1x8x128xf32>, vector<7x8x128xf32> -> vector<8x8x128xf32>
    %448 = vector.extract_strided_slice %444 {offsets = [7, 0, 0], sizes = [1, 8, 128], strides = [1, 1, 1]} : vector<8x8x128xf32> to vector<1x8x128xf32>
    %c0_138 = arith.constant 0 : index
    %c0_139 = arith.constant 0 : index
    %c0_140 = arith.constant 0 : index
    %449 = vector.load %arg34[%c0_138, %c0_139, %c0_140] : memref<1x8x128xf32, #tpu.memory_space<vmem>>, vector<1x8x128xf32>
    tpu.vector_store %arg34[%c0_138, %c0_139, %c0_140], %448 {strides = array<i32>} : memref<1x8x128xf32, #tpu.memory_space<vmem>>, vector<1x8x128xf32>,
    %c0_141 = arith.constant 0 : index
    %c0_142 = arith.constant 0 : index
    %450 = vector.load %arg21[%c0_141, %c0_142] : memref<1x128xf32, #tpu.memory_space<vmem>>, vector<1x128xf32>
    %c0_143 = arith.constant 0 : index
    %c0_144 = arith.constant 0 : index
    %451 = vector.load %arg22[%c0_143, %c0_144] : memref<1x128xf32, #tpu.memory_space<vmem>>, vector<1x128xf32>
    %452 = vector.shape_cast %450 : vector<1x128xf32> to vector<1x1x128xf32>
    %453 = vector.broadcast %452 : vector<1x1x128xf32> to vector<8x8x128xf32>
    %454 = arith.mulf %444, %453 : vector<8x8x128xf32>
    %cst_145 = arith.constant 1.000000e+00 : f32
    %455 = vector.broadcast %cst_145 : f32 to vector<1x128xf32>
    %456 = arith.subf %455, %450 : vector<1x128xf32>
    %457 = vector.shape_cast %456 : vector<1x128xf32> to vector<1x1x128xf32>
    %458 = vector.broadcast %457 : vector<1x1x128xf32> to vector<8x8x128xf32>
    %459 = arith.mulf %447, %458 : vector<8x8x128xf32>
    %460 = arith.addf %454, %459 : vector<8x8x128xf32>
    %461 = vector.shape_cast %460 : vector<8x8x128xf32> to vector<64x128xf32>
    %462 = vector.shape_cast %451 : vector<1x128xf32> to vector<1x1x128xf32>
    %463 = vector.broadcast %462 : vector<1x1x128xf32> to vector<8x8x128xf32>
    %464 = arith.mulf %444, %463 : vector<8x8x128xf32>
    %cst_146 = arith.constant 1.000000e+00 : f32
    %465 = vector.broadcast %cst_146 : f32 to vector<1x128xf32>
    %466 = arith.subf %465, %451 : vector<1x128xf32>
    %467 = vector.shape_cast %466 : vector<1x128xf32> to vector<1x1x128xf32>
    %468 = vector.broadcast %467 : vector<1x1x128xf32> to vector<8x8x128xf32>
    %469 = arith.mulf %447, %468 : vector<8x8x128xf32>
    %470 = arith.addf %464, %469 : vector<8x8x128xf32>
    %471 = vector.shape_cast %470 : vector<8x8x128xf32> to vector<64x128xf32>
    %472 = arith.truncf %461 : vector<64x128xf32> to vector<64x128xbf16>
    %c0_147 = arith.constant 0 : index
    %c0_148 = arith.constant 0 : index
    %473 = vector.load %arg23[%c0_147, %c0_148] : memref<128x128xbf16, #tpu.memory_space<vmem>>, vector<128x128xbf16>
    %cst_149 = arith.constant dense<0.000000e+00> : vector<64x128xf32>
    %474 = tpu.matmul %472, %473, %cst_149 {dimension_numbers = #tpu.dot_dimension_numbers<[1], [0], [0], [1], [0, 0, 1, 1], [], []>} : vector<64x128xbf16>, vector<128x128xbf16>, vector<64x128xf32> -> vector<64x128xf32>
    %475 = arith.truncf %471 : vector<64x128xf32> to vector<64x128xbf16>
    %c0_150 = arith.constant 0 : index
    %c0_151 = arith.constant 0 : index
    %476 = vector.load %arg24[%c0_150, %c0_151] : memref<128x128xbf16, #tpu.memory_space<vmem>>, vector<128x128xbf16>
    %cst_152 = arith.constant dense<0.000000e+00> : vector<64x128xf32>
    %477 = tpu.matmul %475, %476, %cst_152 {dimension_numbers = #tpu.dot_dimension_numbers<[1], [0], [0], [1], [0, 0, 1, 1], [], []>} : vector<64x128xbf16>, vector<128x128xbf16>, vector<64x128xf32> -> vector<64x128xf32>
    %cst_153 = arith.constant 0.000000e+00 : f32
    %478 = vector.broadcast %cst_153 : f32 to vector<64x128xf32>
    %479 = arith.maximumf %474, %478 : vector<64x128xf32>
    %480 = arith.mulf %479, %479 : vector<64x128xf32>
    %481 = arith.truncf %480 : vector<64x128xf32> to vector<64x128xbf16>
    %c0_154 = arith.constant 0 : index
    %c0_155 = arith.constant 0 : index
    %482 = vector.load %arg25[%c0_154, %c0_155] : memref<128x128xbf16, #tpu.memory_space<vmem>>, vector<128x128xbf16>
    %cst_156 = arith.constant dense<0.000000e+00> : vector<64x128xf32>
    %483 = tpu.matmul %481, %482, %cst_156 {dimension_numbers = #tpu.dot_dimension_numbers<[1], [0], [0], [1], [0, 0, 1, 1], [], []>} : vector<64x128xbf16>, vector<128x128xbf16>, vector<64x128xf32> -> vector<64x128xf32>
    %484 = arith.negf %477 : vector<64x128xf32>
    %485 = math.exp %484 : vector<64x128xf32>
    %cst_157 = arith.constant 1.000000e+00 : f32
    %486 = vector.broadcast %cst_157 : f32 to vector<64x128xf32>
    %487 = arith.addf %486, %485 : vector<64x128xf32>
    %488 = arith.divf %486, %487 : vector<64x128xf32>
    %489 = arith.mulf %488, %483 : vector<64x128xf32>
    %490 = vector.shape_cast %489 : vector<64x128xf32> to vector<8x8x128xf32>
    %491 = arith.addf %419, %490 : vector<8x8x128xf32>
    %c0_158 = arith.constant 0 : index
    %c0_159 = arith.constant 0 : index
    %c0_160 = arith.constant 0 : index
    %492 = vector.load %arg26[%c0_158, %c0_159, %c0_160] : memref<8x8x128xf32, #tpu.memory_space<vmem>>, vector<8x8x128xf32>
    tpu.vector_store %arg26[%c0_158, %c0_159, %c0_160], %491 {strides = array<i32>} : memref<8x8x128xf32, #tpu.memory_space<vmem>>, vector<8x8x128xf32>,
    %c0_161 = arith.constant 0 : index
    %c0_162 = arith.constant 0 : index
    %c0_163 = arith.constant 0 : index
    %493 = vector.load %arg33[%c0_161, %c0_162, %c0_163] : memref<1x8x128xf32, #tpu.memory_space<vmem>>, vector<1x8x128xf32>
    %c0_164 = arith.constant 0 : index
    %c0_165 = arith.constant 0 : index
    %c0_166 = arith.constant 0 : index
    %494 = vector.load %arg27[%c0_164, %c0_165, %c0_166] : memref<1x8x128xf32, #tpu.memory_space<vmem>>, vector<1x8x128xf32>
    tpu.vector_store %arg27[%c0_164, %c0_165, %c0_166], %493 {strides = array<i32>} : memref<1x8x128xf32, #tpu.memory_space<vmem>>, vector<1x8x128xf32>,
    %c0_167 = arith.constant 0 : index
    %c0_168 = arith.constant 0 : index
    %c0_169 = arith.constant 0 : index
    %495 = vector.load %arg32[%c0_167, %c0_168, %c0_169] : memref<3x8x128xf32, #tpu.memory_space<vmem>>, vector<3x8x128xf32>
    %496 = vector.shape_cast %7 : vector<1x128xf32> to vector<1x1x128xf32>
    %497 = vector.broadcast %496 : vector<1x1x128xf32> to vector<3x8x128xf32>
    %498 = arith.mulf %495, %497 : vector<3x8x128xf32>
    %c0_170 = arith.constant 0 : index
    %c0_171 = arith.constant 0 : index
    %c0_172 = arith.constant 0 : index
    %499 = vector.load %arg28[%c0_170, %c0_171, %c0_172] : memref<3x8x128xf32, #tpu.memory_space<vmem>>, vector<3x8x128xf32>
    tpu.vector_store %arg28[%c0_170, %c0_171, %c0_172], %498 {strides = array<i32>} : memref<3x8x128xf32, #tpu.memory_space<vmem>>, vector<3x8x128xf32>,
    %c0_173 = arith.constant 0 : index
    %c0_174 = arith.constant 0 : index
    %c0_175 = arith.constant 0 : index
    %500 = vector.load %arg34[%c0_173, %c0_174, %c0_175] : memref<1x8x128xf32, #tpu.memory_space<vmem>>, vector<1x8x128xf32>
    %c0_176 = arith.constant 0 : index
    %c0_177 = arith.constant 0 : index
    %c0_178 = arith.constant 0 : index
    %501 = vector.load %arg29[%c0_176, %c0_177, %c0_178] : memref<1x8x128xf32, #tpu.memory_space<vmem>>, vector<1x8x128xf32>
    tpu.vector_store %arg29[%c0_176, %c0_177, %c0_178], %500 {strides = array<i32>} : memref<1x8x128xf32, #tpu.memory_space<vmem>>, vector<1x8x128xf32>,
    return
  }
  func.func @transform_0(%arg0: i32, %arg1: i32) -> (i32, i32, i32) {
    %c0_i32 = arith.constant 0 : i32
    %c0_i32_0 = arith.constant 0 : i32
    return %arg1, %arg0, %c0_i32 : i32, i32, i32
  }
  func.func @transform_1(%arg0: i32, %arg1: i32) -> (i32, i32, i32) {
    %c0_i32 = arith.constant 0 : i32
    %c0_i32_0 = arith.constant 0 : i32
    %c0_i32_1 = arith.constant 0 : i32
    return %c0_i32, %arg0, %c0_i32_0 : i32, i32, i32
  }
  func.func @transform_2(%arg0: i32, %arg1: i32) -> (i32, i32, i32) {
    %c0_i32 = arith.constant 0 : i32
    %c0_i32_0 = arith.constant 0 : i32
    %c0_i32_1 = arith.constant 0 : i32
    return %c0_i32, %arg0, %c0_i32_0 : i32, i32, i32
  }
  func.func @transform_3(%arg0: i32, %arg1: i32) -> (i32, i32, i32) {
    %c0_i32 = arith.constant 0 : i32
    %c0_i32_0 = arith.constant 0 : i32
    %c0_i32_1 = arith.constant 0 : i32
    return %c0_i32, %arg0, %c0_i32_0 : i32, i32, i32
  }
  func.func @transform_4(%arg0: i32, %arg1: i32) -> (i32, i32) {
    %c0_i32 = arith.constant 0 : i32
    %c0_i32_0 = arith.constant 0 : i32
    %c0_i32_1 = arith.constant 0 : i32
    return %c0_i32, %c0_i32_0 : i32, i32
  }
  func.func @transform_5(%arg0: i32, %arg1: i32) -> (i32, i32) {
    %c0_i32 = arith.constant 0 : i32
    %c0_i32_0 = arith.constant 0 : i32
    %c0_i32_1 = arith.constant 0 : i32
    return %c0_i32, %c0_i32_0 : i32, i32
  }
  func.func @transform_6(%arg0: i32, %arg1: i32) -> (i32, i32) {
    %c0_i32 = arith.constant 0 : i32
    %c0_i32_0 = arith.constant 0 : i32
    %c0_i32_1 = arith.constant 0 : i32
    return %c0_i32, %c0_i32_0 : i32, i32
  }
  func.func @transform_7(%arg0: i32, %arg1: i32) -> (i32, i32) {
    %c0_i32 = arith.constant 0 : i32
    %c0_i32_0 = arith.constant 0 : i32
    %c0_i32_1 = arith.constant 0 : i32
    return %c0_i32, %c0_i32_0 : i32, i32
  }
  func.func @transform_8(%arg0: i32, %arg1: i32) -> (i32, i32) {
    %c0_i32 = arith.constant 0 : i32
    %c0_i32_0 = arith.constant 0 : i32
    %c0_i32_1 = arith.constant 0 : i32
    return %c0_i32, %c0_i32_0 : i32, i32
  }
  func.func @transform_9(%arg0: i32, %arg1: i32) -> (i32, i32) {
    %c0_i32 = arith.constant 0 : i32
    %c0_i32_0 = arith.constant 0 : i32
    %c0_i32_1 = arith.constant 0 : i32
    return %c0_i32, %c0_i32_0 : i32, i32
  }
  func.func @transform_10(%arg0: i32, %arg1: i32) -> (i32, i32) {
    %c0_i32 = arith.constant 0 : i32
    %c0_i32_0 = arith.constant 0 : i32
    %c0_i32_1 = arith.constant 0 : i32
    return %c0_i32, %c0_i32_0 : i32, i32
  }
  func.func @transform_11(%arg0: i32, %arg1: i32) -> (i32, i32) {
    %c0_i32 = arith.constant 0 : i32
    %c0_i32_0 = arith.constant 0 : i32
    %c0_i32_1 = arith.constant 0 : i32
    return %c0_i32, %c0_i32_0 : i32, i32
  }
  func.func @transform_12(%arg0: i32, %arg1: i32) -> (i32, i32) {
    %c0_i32 = arith.constant 0 : i32
    %c0_i32_0 = arith.constant 0 : i32
    %c0_i32_1 = arith.constant 0 : i32
    return %c0_i32, %c0_i32_0 : i32, i32
  }
  func.func @transform_13(%arg0: i32, %arg1: i32) -> (i32, i32) {
    %c0_i32 = arith.constant 0 : i32
    %c0_i32_0 = arith.constant 0 : i32
    %c0_i32_1 = arith.constant 0 : i32
    return %c0_i32, %c0_i32_0 : i32, i32
  }
  func.func @transform_14(%arg0: i32, %arg1: i32) -> (i32, i32) {
    %c0_i32 = arith.constant 0 : i32
    %c0_i32_0 = arith.constant 0 : i32
    %c0_i32_1 = arith.constant 0 : i32
    return %c0_i32, %c0_i32_0 : i32, i32
  }
  func.func @transform_15(%arg0: i32, %arg1: i32) -> (i32, i32) {
    %c0_i32 = arith.constant 0 : i32
    %c0_i32_0 = arith.constant 0 : i32
    %c0_i32_1 = arith.constant 0 : i32
    return %c0_i32, %c0_i32_0 : i32, i32
  }
  func.func @transform_16(%arg0: i32, %arg1: i32) -> (i32, i32) {
    %c0_i32 = arith.constant 0 : i32
    %c0_i32_0 = arith.constant 0 : i32
    %c0_i32_1 = arith.constant 0 : i32
    return %c0_i32, %c0_i32_0 : i32, i32
  }
  func.func @transform_17(%arg0: i32, %arg1: i32) -> (i32, i32) {
    %c0_i32 = arith.constant 0 : i32
    %c0_i32_0 = arith.constant 0 : i32
    %c0_i32_1 = arith.constant 0 : i32
    return %c0_i32, %c0_i32_0 : i32, i32
  }
  func.func @transform_18(%arg0: i32, %arg1: i32) -> (i32, i32) {
    %c0_i32 = arith.constant 0 : i32
    %c0_i32_0 = arith.constant 0 : i32
    %c0_i32_1 = arith.constant 0 : i32
    return %c0_i32, %c0_i32_0 : i32, i32
  }
  func.func @transform_19(%arg0: i32, %arg1: i32) -> (i32, i32) {
    %c0_i32 = arith.constant 0 : i32
    %c0_i32_0 = arith.constant 0 : i32
    %c0_i32_1 = arith.constant 0 : i32
    return %c0_i32, %c0_i32_0 : i32, i32
  }
  func.func @transform_20(%arg0: i32, %arg1: i32) -> (i32, i32) {
    %c0_i32 = arith.constant 0 : i32
    %c0_i32_0 = arith.constant 0 : i32
    %c0_i32_1 = arith.constant 0 : i32
    return %c0_i32, %c0_i32_0 : i32, i32
  }
  func.func @transform_21(%arg0: i32, %arg1: i32) -> (i32, i32) {
    %c0_i32 = arith.constant 0 : i32
    %c0_i32_0 = arith.constant 0 : i32
    %c0_i32_1 = arith.constant 0 : i32
    return %c0_i32, %c0_i32_0 : i32, i32
  }
  func.func @transform_22(%arg0: i32, %arg1: i32) -> (i32, i32) {
    %c0_i32 = arith.constant 0 : i32
    %c0_i32_0 = arith.constant 0 : i32
    %c0_i32_1 = arith.constant 0 : i32
    return %c0_i32, %c0_i32_0 : i32, i32
  }
  func.func @transform_23(%arg0: i32, %arg1: i32) -> (i32, i32) {
    %c0_i32 = arith.constant 0 : i32
    %c0_i32_0 = arith.constant 0 : i32
    %c0_i32_1 = arith.constant 0 : i32
    return %c0_i32, %c0_i32_0 : i32, i32
  }
  func.func @transform_24(%arg0: i32, %arg1: i32) -> (i32, i32, i32) {
    %c0_i32 = arith.constant 0 : i32
    %c0_i32_0 = arith.constant 0 : i32
    return %arg1, %arg0, %c0_i32 : i32, i32, i32
  }
  func.func @transform_25(%arg0: i32, %arg1: i32) -> (i32, i32, i32) {
    %c0_i32 = arith.constant 0 : i32
    %c0_i32_0 = arith.constant 0 : i32
    %c0_i32_1 = arith.constant 0 : i32
    return %c0_i32, %arg0, %c0_i32_0 : i32, i32, i32
  }
  func.func @transform_26(%arg0: i32, %arg1: i32) -> (i32, i32, i32) {
    %c0_i32 = arith.constant 0 : i32
    %c0_i32_0 = arith.constant 0 : i32
    %c0_i32_1 = arith.constant 0 : i32
    return %c0_i32, %arg0, %c0_i32_0 : i32, i32, i32
  }
  func.func @transform_27(%arg0: i32, %arg1: i32) -> (i32, i32, i32) {
    %c0_i32 = arith.constant 0 : i32
    %c0_i32_0 = arith.constant 0 : i32
    %c0_i32_1 = arith.constant 0 : i32
    return %c0_i32, %arg0, %c0_i32_0 : i32, i32, i32
  }
}

</mosaic_0001>

<llo_original>
// kernel: tpu_custom_call.1
$region0: #{tpu_custom_call.1}
  #allocation0 [shape = 'u32[]', space=smem, size = 0x4, offset = 0x4, fixed_abs, tag = 'smem constant byte address 0x4 - core index']
  #allocation1 [shape = 'u32[144,128]{1,0:T(1,128)}', space=vmem, size = 0x12000, scoped, tag = 'internal scratch']
  #allocation2 [shape = 'f32[8,8,128]{2,1,0:T(8,128)}', space=vmem, size = 0x8000, scoped, tag = 'scratch operand']
  #allocation3 [shape = 'f32[8,8,128]{2,1,0:T(8,128)}', space=vmem, size = 0x8000, scoped, tag = 'scratch operand']
  #allocation4 [shape = 'f32[3,8,128]{2,1,0:T(8,128)}', space=vmem, size = 0x3000, scoped, tag = 'scratch operand']
  #allocation5 [shape = 'f32[1,8,128]{2,1,0:T(8,128)}', space=vmem, size = 0x1000, scoped, tag = 'scratch operand']
  #allocation6 [shape = 'f32[1,8,128]{2,1,0:T(8,128)}', space=vmem, size = 0x1000, scoped, tag = 'scratch operand']
  %s0 = inlined_call_operand.hbm [shape: f32[8,8,128], index: 0, kind: input, shape index: {}]
  %s1 = inlined_call_operand.hbm [shape: f32[1,8,128], index: 1, kind: input, shape index: {}]
  %s2 = inlined_call_operand.hbm [shape: f32[3,8,128], index: 2, kind: input, shape index: {}]
  %s3 = inlined_call_operand.hbm [shape: f32[1,8,128], index: 3, kind: input, shape index: {}]
  %s4 = inlined_call_operand.vmem [shape: f32[1,128], index: 4, kind: input, shape index: {}]
  %s5 = inlined_call_operand.vmem [shape: f32[1,128], index: 5, kind: input, shape index: {}]
  %s6 = inlined_call_operand.vmem [shape: f32[1,128], index: 6, kind: input, shape index: {}]
  %s7 = inlined_call_operand.vmem [shape: f32[1,128], index: 7, kind: input, shape index: {}]
  %s8 = inlined_call_operand.vmem [shape: f32[1,128], index: 8, kind: input, shape index: {}]
  %s9 = inlined_call_operand.vmem [shape: f32[1,128], index: 9, kind: input, shape index: {}]
  %s10 = inlined_call_operand.vmem [shape: f32[1,128], index: 10, kind: input, shape index: {}]
  %s11 = inlined_call_operand.vmem [shape: f32[1,128], index: 11, kind: input, shape index: {}]
  %s12 = inlined_call_operand.vmem [shape: f32[1,128], index: 12, kind: input, shape index: {}]
  %s13 = inlined_call_operand.vmem [shape: f32[1,128], index: 13, kind: input, shape index: {}]
  %s14 = inlined_call_operand.vmem [shape: f32[1,128], index: 14, kind: input, shape index: {}]
  %s15 = inlined_call_operand.hbm [shape: bf16[128,128], index: 15, kind: input, shape index: {}]
  %s16 = inlined_call_operand.hbm [shape: bf16[128,128], index: 16, kind: input, shape index: {}]
  %s17 = inlined_call_operand.hbm [shape: bf16[128,128], index: 17, kind: input, shape index: {}]
  %s18 = inlined_call_operand.hbm [shape: bf16[128,128], index: 18, kind: input, shape index: {}]
  %s19 = inlined_call_operand.vmem [shape: f32[1,128], index: 19, kind: input, shape index: {}]
  %s20 = inlined_call_operand.vmem [shape: f32[1,128], index: 20, kind: input, shape index: {}]
  %s21 = inlined_call_operand.hbm [shape: bf16[128,128], index: 21, kind: input, shape index: {}]
  %s22 = inlined_call_operand.hbm [shape: bf16[128,128], index: 22, kind: input, shape index: {}]
  %s23 = inlined_call_operand.hbm [shape: bf16[128,128], index: 23, kind: input, shape index: {}]
  %s24 = inlined_call_operand.hbm [shape: f32[8,8,128], index: 24, kind: output, shape index: {0}]
  %s25 = inlined_call_operand.hbm [shape: f32[1,8,128], index: 25, kind: output, shape index: {1}]
  %s26 = inlined_call_operand.hbm [shape: f32[3,8,128], index: 26, kind: output, shape index: {2}]
  %s27 = inlined_call_operand.hbm [shape: f32[1,8,128], index: 27, kind: output, shape index: {3}]
  %28 = xla_tuple %s24, %s25, %s26, %s27
  %s29 = sld [smem:[#allocation0]]
  $region178: #{tpu_custom_call.1} parent=0
    _
  %s31 = ssub.s32 1, %s29
  %s32 = scalar_select 0, %s31, %s29
  $region1: #{tpu_custom_call.1} parent=0
    #allocation7 [shape = 'u8[32768]{0}', space=vmem, size = 0x8000, scoped, tag = 'input window, operand 0, single buffered']
    #allocation8 [shape = 's32[1]{0}', space=sflag, size = 0x4, scoped, tag = 'scoped memory for tpu_custom_call.1']
    #allocation9 [shape = 's32[1]{0}', space=sflag, size = 0x4, scoped, tag = 'scoped memory for tpu_custom_call.1']
    #allocation10 [shape = 'u8[4096]{0}', space=vmem, size = 0x1000, scoped, tag = 'input window, operand 1, single buffered']
    #allocation11 [shape = 's32[1]{0}', space=sflag, size = 0x4, scoped, tag = 'scoped memory for tpu_custom_call.1']
    #allocation12 [shape = 'u8[12288]{0}', space=vmem, size = 0x3000, scoped, tag = 'input window, operand 2, single buffered']
    #allocation13 [shape = 'u8[4096]{0}', space=vmem, size = 0x1000, scoped, tag = 'input window, operand 3, single buffered']
    #allocation14 [shape = 's32[1]{0}', space=sflag, size = 0x4, scoped, tag = 'scoped memory for tpu_custom_call.1']
    #allocation15 [shape = 'u8[32768]{0}', space=vmem, size = 0x8000, scoped, tag = 'input window, operand 15, single buffered']
    #allocation16 [shape = 'u8[32768]{0}', space=vmem, size = 0x8000, scoped, tag = 'input window, operand 16, single buffered']
    #allocation17 [shape = 's32[1]{0}', space=sflag, size = 0x4, scoped, tag = 'scoped memory for tpu_custom_call.1']
    #allocation18 [shape = 'u8[32768]{0}', space=vmem, size = 0x8000, scoped, tag = 'input window, operand 17, single buffered']
    #allocation19 [shape = 'u8[32768]{0}', space=vmem, size = 0x8000, scoped, tag = 'input window, operand 18, single buffered']
    #allocation20 [shape = 's32[1]{0}', space=sflag, size = 0x4, scoped, tag = 'scoped memory for tpu_custom_call.1']
    #allocation21 [shape = 'u8[32768]{0}', space=vmem, size = 0x8000, scoped, tag = 'input window, operand 21, single buffered']
    #allocation22 [shape = 'u8[32768]{0}', space=vmem, size = 0x8000, scoped, tag = 'input window, operand 22, single buffered']
    #allocation23 [shape = 's32[1]{0}', space=sflag, size = 0x4, scoped, tag = 'scoped memory for tpu_custom_call.1']
    #allocation24 [shape = 'u8[32768]{0}', space=vmem, size = 0x8000, scoped, tag = 'input window, operand 23, single buffered']
    #allocation25 [shape = 'u8[32768]{0}', space=vmem, size = 0x8000, scoped, tag = 'output window, operand 0, single buffered']
    #allocation26 [shape = 'u8[4096]{0}', space=vmem, size = 0x1000, scoped, tag = 'output window, operand 1, single buffered']
    #allocation27 [shape = 's32[1]{0}', space=sflag, size = 0x4, scoped, tag = 'scoped memory for tpu_custom_call.1']
    #allocation28 [shape = 'u8[12288]{0}', space=vmem, size = 0x3000, scoped, tag = 'output window, operand 2, single buffered']
    #allocation29 [shape = 'u8[4096]{0}', space=vmem, size = 0x1000, scoped, tag = 'output window, operand 3, single buffered']
    #allocation30 [shape = 's32[1]{0}', space=sflag, size = 0x4, scoped, tag = 'scoped memory for tpu_custom_call.1']
    %33 = vsyncpa [#allocation8], 0
    %34 = vsyncpa [#allocation11], 0
    %35 = vsyncpa [#allocation14], 0
    %36 = vsyncpa [#allocation17], 0
    %37 = vsyncpa [#allocation20], 0
    %38 = vsyncpa [#allocation23], 0
    %39 = vsyncpa [#allocation9], 0
    %40 = vsyncpa [#allocation27], 0
    %41 = vsyncpa [#allocation30], 0
    // Predicated region
    $region2: #{tpu_custom_call.1} parent=1 // pred_check
      _
    $region3: #{tpu_custom_call.1} parent=1 // pred_check_branch
      %43 = sbr.rel (0) target = $region5
    $region4: #{tpu_custom_call.1} parent=1 // pred_region
      %s45 = ssub.s32 1024, 1024
      %46 = vsyncadd [#allocation8], %s45
      %s47 = sshll.u32 [#allocation7], 4
      %s48 = int_to_ptr.vmem [resolvable:$true] %s47
      %53 = dma.hbm_to_vmem [thread:$0]  %s0, 1024, %s48, [#allocation8], 128, 128, 8
    $region5: #{tpu_custom_call.1} parent=1 // pred_fallthru
      _
    // Predicated region
    $region6: #{tpu_custom_call.1} parent=1 // pred_check
      _
    $region7: #{tpu_custom_call.1} parent=1 // pred_check_branch
      %55 = sbr.rel (0) target = $region9
    $region8: #{tpu_custom_call.1} parent=1 // pred_region
      %s57 = ssub.s32 128, 128
      %58 = vsyncadd [#allocation11], %s57
      %s60 = sshll.u32 [#allocation10], 4
      %s61 = int_to_ptr.vmem [resolvable:$true] %s60
      %63 = dma.hbm_to_vmem [thread:$0]  %s1, 128, %s61, [#allocation11]
    $region9: #{tpu_custom_call.1} parent=1 // pred_fallthru
      _
    // Predicated region
    $region10: #{tpu_custom_call.1} parent=1 // pred_check
      _
    $region11: #{tpu_custom_call.1} parent=1 // pred_check_branch
      %65 = sbr.rel (0) target = $region13
    $region12: #{tpu_custom_call.1} parent=1 // pred_region
      %s67 = ssub.s32 384, 384
      %68 = vsyncadd [#allocation11], %s67
      %s69 = sshll.u32 [#allocation12], 4
      %s70 = int_to_ptr.vmem [resolvable:$true] %s69
      %75 = dma.hbm_to_vmem [thread:$0]  %s2, 384, %s70, [#allocation11], 128, 128, 8
    $region13: #{tpu_custom_call.1} parent=1 // pred_fallthru
      _
    // Predicated region
    $region14: #{tpu_custom_call.1} parent=1 // pred_check
      _
    $region15: #{tpu_custom_call.1} parent=1 // pred_check_branch
      %77 = sbr.rel (0) target = $region17
    $region16: #{tpu_custom_call.1} parent=1 // pred_region
      %s79 = ssub.s32 128, 128
      %80 = vsyncadd [#allocation14], %s79
      %s82 = sshll.u32 [#allocation13], 4
      %s83 = int_to_ptr.vmem [resolvable:$true] %s82
      %85 = dma.hbm_to_vmem [thread:$0]  %s3, 128, %s83, [#allocation14]
    $region17: #{tpu_custom_call.1} parent=1 // pred_fallthru
      _
    // Predicated region
    $region18: #{tpu_custom_call.1} parent=1 // pred_check
      _
    $region19: #{tpu_custom_call.1} parent=1 // pred_check_branch
      %87 = sbr.rel (0) target = $region21
    $region20: #{tpu_custom_call.1} parent=1 // pred_region
      _
    $region21: #{tpu_custom_call.1} parent=1 // pred_fallthru
      _
    // Predicated region
    $region22: #{tpu_custom_call.1} parent=1 // pred_check
      _
    $region23: #{tpu_custom_call.1} parent=1 // pred_check_branch
      %89 = sbr.rel (0) target = $region25
    $region24: #{tpu_custom_call.1} parent=1 // pred_region
      _
    $region25: #{tpu_custom_call.1} parent=1 // pred_fallthru
      _
    // Predicated region
    $region26: #{tpu_custom_call.1} parent=1 // pred_check
      _
    $region27: #{tpu_custom_call.1} parent=1 // pred_check_branch
      %91 = sbr.rel (0) target = $region29
    $region28: #{tpu_custom_call.1} parent=1 // pred_region
      _
    $region29: #{tpu_custom_call.1} parent=1 // pred_fallthru
      _
    // Predicated region
    $region30: #{tpu_custom_call.1} parent=1 // pred_check
      _
    $region31: #{tpu_custom_call.1} parent=1 // pred_check_branch
      %93 = sbr.rel (0) target = $region33
    $region32: #{tpu_custom_call.1} parent=1 // pred_region
      _
    $region33: #{tpu_custom_call.1} parent=1 // pred_fallthru
      _
    // Predicated region
    $region34: #{tpu_custom_call.1} parent=1 // pred_check
      _
    $region35: #{tpu_custom_call.1} parent=1 // pred_check_branch
      %95 = sbr.rel (0) target = $region37
    $region36: #{tpu_custom_call.1} parent=1 // pred_region
      _
    $region37: #{tpu_custom_call.1} parent=1 // pred_fallthru
      _
    // Predicated region
    $region38: #{tpu_custom_call.1} parent=1 // pred_check
      _
    $region39: #{tpu_custom_call.1} parent=1 // pred_check_branch
      %97 = sbr.rel (0) target = $region41
    $region40: #{tpu_custom_call.1} parent=1 // pred_region
      _
    $region41: #{tpu_custom_call.1} parent=1 // pred_fallthru
      _
    // Predicated region
    $region42: #{tpu_custom_call.1} parent=1 // pred_check
      _
    $region43: #{tpu_custom_call.1} parent=1 // pred_check_branch
      %99 = sbr.rel (0) target = $region45
    $region44: #{tpu_custom_call.1} parent=1 // pred_region
      _
    $region45: #{tpu_custom_call.1} parent=1 // pred_fallthru
      _
    // Predicated region
    $region46: #{tpu_custom_call.1} parent=1 // pred_check
      _
    $region47: #{tpu_custom_call.1} parent=1 // pred_check_branch
      %101 = sbr.rel (0) target = $region49
    $region48: #{tpu_custom_call.1} parent=1 // pred_region
      _
    $region49: #{tpu_custom_call.1} parent=1 // pred_fallthru
      _
    // Predicated region
    $region50: #{tpu_custom_call.1} parent=1 // pred_check
      _
    $region51: #{tpu_custom_call.1} parent=1 // pred_check_branch
      %103 = sbr.rel (0) target = $region53
    $region52: #{tpu_custom_call.1} parent=1 // pred_region
      _
    $region53: #{tpu_custom_call.1} parent=1 // pred_fallthru
      _
    // Predicated region
    $region54: #{tpu_custom_call.1} parent=1 // pred_check
      _
    $region55: #{tpu_custom_call.1} parent=1 // pred_check_branch
      %105 = sbr.rel (0) target = $region57
    $region56: #{tpu_custom_call.1} parent=1 // pred_region
      _
    $region57: #{tpu_custom_call.1} parent=1 // pred_fallthru
      _
    // Predicated region
    $region58: #{tpu_custom_call.1} parent=1 // pred_check
      _
    $region59: #{tpu_custom_call.1} parent=1 // pred_check_branch
      %107 = sbr.rel (0) target = $region61
    $region60: #{tpu_custom_call.1} parent=1 // pred_region
      _
    $region61: #{tpu_custom_call.1} parent=1 // pred_fallthru
      _
    // Predicated region
    $region62: #{tpu_custom_call.1} parent=1 // pred_check
      _
    $region63: #{tpu_custom_call.1} parent=1 // pred_check_branch
      %109 = sbr.rel (0) target = $region65
    $region64: #{tpu_custom_call.1} parent=1 // pred_region
      %s111 = ssub.s32 1024, 1024
      %112 = vsyncadd [#allocation14], %s111
      %s113 = sshll.u32 [#allocation15], 4
      %s114 = int_to_ptr.vmem [resolvable:$true] %s113
      %119 = dma.hbm_to_vmem [thread:$0]  %s15, 1024, %s114, [#allocation14], 64, 64, 4
    $region65: #{tpu_custom_call.1} parent=1 // pred_fallthru
      _
    // Predicated region
    $region66: #{tpu_custom_call.1} parent=1 // pred_check
      _
    $region67: #{tpu_custom_call.1} parent=1 // pred_check_branch
      %121 = sbr.rel (0) target = $region69
    $region68: #{tpu_custom_call.1} parent=1 // pred_region
      %s123 = ssub.s32 1024, 1024
      %124 = vsyncadd [#allocation17], %s123
      %s125 = sshll.u32 [#allocation16], 4
      %s126 = int_to_ptr.vmem [resolvable:$true] %s125
      %131 = dma.hbm_to_vmem [thread:$0]  %s16, 1024, %s126, [#allocation17], 64, 64, 4
    $region69: #{tpu_custom_call.1} parent=1 // pred_fallthru
      _
    // Predicated region
    $region70: #{tpu_custom_call.1} parent=1 // pred_check
      _
    $region71: #{tpu_custom_call.1} parent=1 // pred_check_branch
      %133 = sbr.rel (0) target = $region73
    $region72: #{tpu_custom_call.1} parent=1 // pred_region
      %s135 = ssub.s32 1024, 1024
      %136 = vsyncadd [#allocation17], %s135
      %s137 = sshll.u32 [#allocation18], 4
      %s138 = int_to_ptr.vmem [resolvable:$true] %s137
      %143 = dma.hbm_to_vmem [thread:$0]  %s17, 1024, %s138, [#allocation17], 64, 64, 4
    $region73: #{tpu_custom_call.1} parent=1 // pred_fallthru
      _
    // Predicated region
    $region74: #{tpu_custom_call.1} parent=1 // pred_check
      _
    $region75: #{tpu_custom_call.1} parent=1 // pred_check_branch
      %145 = sbr.rel (0) target = $region77
    $region76: #{tpu_custom_call.1} parent=1 // pred_region
      %s147 = ssub.s32 1024, 1024
      %148 = vsyncadd [#allocation20], %s147
      %s149 = sshll.u32 [#allocation19], 4
      %s150 = int_to_ptr.vmem [resolvable:$true] %s149
      %155 = dma.hbm_to_vmem [thread:$0]  %s18, 1024, %s150, [#allocation20], 64, 64, 4
    $region77: #{tpu_custom_call.1} parent=1 // pred_fallthru
      _
    // Predicated region
    $region78: #{tpu_custom_call.1} parent=1 // pred_check
      _
    $region79: #{tpu_custom_call.1} parent=1 // pred_check_branch
      %157 = sbr.rel (0) target = $region81
    $region80: #{tpu_custom_call.1} parent=1 // pred_region
      _
    $region81: #{tpu_custom_call.1} parent=1 // pred_fallthru
      _
    // Predicated region
    $region82: #{tpu_custom_call.1} parent=1 // pred_check
      _
    $region83: #{tpu_custom_call.1} parent=1 // pred_check_branch
      %159 = sbr.rel (0) target = $region85
    $region84: #{tpu_custom_call.1} parent=1 // pred_region
      _
    $region85: #{tpu_custom_call.1} parent=1 // pred_fallthru
      _
    // Predicated region
    $region86: #{tpu_custom_call.1} parent=1 // pred_check
      _
    $region87: #{tpu_custom_call.1} parent=1 // pred_check_branch
      %161 = sbr.rel (0) target = $region89
    $region88: #{tpu_custom_call.1} parent=1 // pred_region
      %s163 = ssub.s32 1024, 1024
      %164 = vsyncadd [#allocation20], %s163
      %s165 = sshll.u32 [#allocation21], 4
      %s166 = int_to_ptr.vmem [resolvable:$true] %s165
      %171 = dma.hbm_to_vmem [thread:$0]  %s21, 1024, %s166, [#allocation20], 64, 64, 4
    $region89: #{tpu_custom_call.1} parent=1 // pred_fallthru
      _
    // Predicated region
    $region90: #{tpu_custom_call.1} parent=1 // pred_check
      _
    $region91: #{tpu_custom_call.1} parent=1 // pred_check_branch
      %173 = sbr.rel (0) target = $region93
    $region92: #{tpu_custom_call.1} parent=1 // pred_region
      %s175 = ssub.s32 1024, 1024
      %176 = vsyncadd [#allocation23], %s175
      %s177 = sshll.u32 [#allocation22], 4
      %s178 = int_to_ptr.vmem [resolvable:$true] %s177
      %183 = dma.hbm_to_vmem [thread:$0]  %s22, 1024, %s178, [#allocation23], 64, 64, 4
    $region93: #{tpu_custom_call.1} parent=1 // pred_fallthru
      _
    // Predicated region
    $region94: #{tpu_custom_call.1} parent=1 // pred_check
      _
    $region95: #{tpu_custom_call.1} parent=1 // pred_check_branch
      %185 = sbr.rel (0) target = $region97
    $region96: #{tpu_custom_call.1} parent=1 // pred_region
      %s187 = ssub.s32 1024, 1024
      %188 = vsyncadd [#allocation23], %s187
      %s189 = sshll.u32 [#allocation24], 4
      %s190 = int_to_ptr.vmem [resolvable:$true] %s189
      %195 = dma.hbm_to_vmem [thread:$0]  %s23, 1024, %s190, [#allocation23], 64, 64, 4
    $region97: #{tpu_custom_call.1} parent=1 // pred_fallthru
      _
    // Predicated region
    $region98: #{tpu_custom_call.1} parent=1 // pred_check
      _
    $region99: #{tpu_custom_call.1} parent=1 // pred_check_branch
      %197 = sbr.rel (0) target = $region101
    $region100: #{tpu_custom_call.1} parent=1 // pred_region
      %198 = dma.done [#allocation8], 1024
    $region101: #{tpu_custom_call.1} parent=1 // pred_fallthru
      _
    // Predicated region
    $region102: #{tpu_custom_call.1} parent=1 // pred_check
      _
    $region103: #{tpu_custom_call.1} parent=1 // pred_check_branch
      %200 = sbr.rel (0) target = $region105
    $region104: #{tpu_custom_call.1} parent=1 // pred_region
      %201 = dma.done [#allocation11], 128
    $region105: #{tpu_custom_call.1} parent=1 // pred_fallthru
      _
    // Predicated region
    $region106: #{tpu_custom_call.1} parent=1 // pred_check
      _
    $region107: #{tpu_custom_call.1} parent=1 // pred_check_branch
      %203 = sbr.rel (0) target = $region109
    $region108: #{tpu_custom_call.1} parent=1 // pred_region
      %204 = dma.done [#allocation11], 384
    $region109: #{tpu_custom_call.1} parent=1 // pred_fallthru
      _
    // Predicated region
    $region110: #{tpu_custom_call.1} parent=1 // pred_check
      _
    $region111: #{tpu_custom_call.1} parent=1 // pred_check_branch
      %206 = sbr.rel (0) target = $region113
    $region112: #{tpu_custom_call.1} parent=1 // pred_region
      %207 = dma.done [#allocation14], 128
    $region113: #{tpu_custom_call.1} parent=1 // pred_fallthru
      _
    // Predicated region
    $region114: #{tpu_custom_call.1} parent=1 // pred_check
      _
    $region115: #{tpu_custom_call.1} parent=1 // pred_check_branch
      %209 = sbr.rel (0) target = $region117
    $region116: #{tpu_custom_call.1} parent=1 // pred_region
      %210 = dma.done [#allocation14], 1024
    $region117: #{tpu_custom_call.1} parent=1 // pred_fallthru
      _
    // Predicated region
    $region118: #{tpu_custom_call.1} parent=1 // pred_check
      _
    $region119: #{tpu_custom_call.1} parent=1 // pred_check_branch
      %212 = sbr.rel (0) target = $region121
    $region120: #{tpu_custom_call.1} parent=1 // pred_region
      %213 = dma.done [#allocation17], 1024
    $region121: #{tpu_custom_call.1} parent=1 // pred_fallthru
      _
    // Predicated region
    $region122: #{tpu_custom_call.1} parent=1 // pred_check
      _
    $region123: #{tpu_custom_call.1} parent=1 // pred_check_branch
      %215 = sbr.rel (0) target = $region125
    $region124: #{tpu_custom_call.1} parent=1 // pred_region
      %216 = dma.done [#allocation17], 1024
    $region125: #{tpu_custom_call.1} parent=1 // pred_fallthru
      _
    // Predicated region
    $region126: #{tpu_custom_call.1} parent=1 // pred_check
      _
    $region127: #{tpu_custom_call.1} parent=1 // pred_check_branch
      %218 = sbr.rel (0) target = $region129
    $region128: #{tpu_custom_call.1} parent=1 // pred_region
      %219 = dma.done [#allocation20], 1024
    $region129: #{tpu_custom_call.1} parent=1 // pred_fallthru
      _
    // Predicated region
    $region130: #{tpu_custom_call.1} parent=1 // pred_check
      _
    $region131: #{tpu_custom_call.1} parent=1 // pred_check_branch
      %221 = sbr.rel (0) target = $region133
    $region132: #{tpu_custom_call.1} parent=1 // pred_region
      %222 = dma.done [#allocation20], 1024
    $region133: #{tpu_custom_call.1} parent=1 // pred_fallthru
      _
    // Predicated region
    $region134: #{tpu_custom_call.1} parent=1 // pred_check
      _
    $region135: #{tpu_custom_call.1} parent=1 // pred_check_branch
      %224 = sbr.rel (0) target = $region137
    $region136: #{tpu_custom_call.1} parent=1 // pred_region
      %225 = dma.done [#allocation23], 1024
    $region137: #{tpu_custom_call.1} parent=1 // pred_fallthru
      _
    // Predicated region
    $region138: #{tpu_custom_call.1} parent=1 // pred_check
      _
    $region139: #{tpu_custom_call.1} parent=1 // pred_check_branch
      %227 = sbr.rel (0) target = $region141
    $region140: #{tpu_custom_call.1} parent=1 // pred_region
      %228 = dma.done [#allocation23], 1024
    $region141: #{tpu_custom_call.1} parent=1 // pred_fallthru
      _
    %p230 = scmp.eq.s32.totalorder 0, 0
    // Predicated region
    $region142: #{tpu_custom_call.1} parent=1 // pred_check
      %p231 = pneg %p230
    $region143: #{tpu_custom_call.1} parent=1 // pred_check_branch
      %233 = sbr.rel (%p231) target = $region145
    $region144: #{tpu_custom_call.1} parent=1 // pred_region
      %v234 = vld [vmem:[#allocation12] sm:$0xff]
      %v235 = vld [vmem:[#allocation12 + $0x8] sm:$0xff]
      %v236 = vld [vmem:[#allocation12 + $0x10] sm:$0xff]
      %237 = vst [vmem:[#allocation4] sm:$0xff] %v234
      %238 = vst [vmem:[#allocation4 + $0x8] sm:$0xff] %v235
      %239 = vst [vmem:[#allocation4 + $0x10] sm:$0xff] %v236
      %v240 = vld [vmem:[#allocation10] sm:$0xff]
      %241 = vst [vmem:[#allocation5] sm:$0xff] %v240
      %v242 = vld [vmem:[#allocation13] sm:$0xff]
      %243 = vst [vmem:[#allocation6] sm:$0xff] %v242
    $region145: #{tpu_custom_call.1} parent=1 // pred_fallthru
      _
    %v244 = vlaneseq
    %v245 = vand.u32 %v244, 127
    %vm246 = vcmp.lt.s32.totalorder %v245, 32
    %v247 = vsel %vm246, 1, 0
    %v248 = vcvt.s32.f32 %v247
    %v249 = vld [vmem:[#allocation7] sm:$0xff]
    %v250 = vld [vmem:[#allocation7 + $0x8] sm:$0xff]
    %v251 = vld [vmem:[#allocation7 + $0x10] sm:$0xff]
    %v252 = vld [vmem:[#allocation7 + $0x18] sm:$0xff]
    %v253 = vld [vmem:[#allocation7 + $0x20] sm:$0xff]
    %v254 = vld [vmem:[#allocation7 + $0x28] sm:$0xff]
    %v255 = vld [vmem:[#allocation7 + $0x30] sm:$0xff]
    %v256 = vld [vmem:[#allocation7 + $0x38] sm:$0xff]
    %v257 = vld [vmem:[%s4] sm:$0x1]
    %v258 = vld [vmem:[%s5] sm:$0x1]
    %259 = vadd.xlane.f32.xlu0 %v249
    %v260 = vpop.xlane.xlu0 %259
    %261 = vadd.xlane.f32.xlu0 %v250
    %v262 = vpop.xlane.xlu0 %261
    %263 = vadd.xlane.f32.xlu0 %v251
    %v264 = vpop.xlane.xlu0 %263
    %265 = vadd.xlane.f32.xlu0 %v252
    %v266 = vpop.xlane.xlu0 %265
    %267 = vadd.xlane.f32.xlu0 %v253
    %v268 = vpop.xlane.xlu0 %267
    %269 = vadd.xlane.f32.xlu0 %v254
    %v270 = vpop.xlane.xlu0 %269
    %271 = vadd.xlane.f32.xlu0 %v255
    %v272 = vpop.xlane.xlu0 %271
    %273 = vadd.xlane.f32.xlu0 %v256
    %v274 = vpop.xlane.xlu0 %273
    %v275 = vmul.f32 %v260, 0.03125
    %v276 = vmul.f32 %v262, 0.03125
    %v277 = vmul.f32 %v264, 0.03125
    %v278 = vmul.f32 %v266, 0.03125
    %v279 = vmul.f32 %v268, 0.03125
    %v280 = vmul.f32 %v270, 0.03125
    %v281 = vmul.f32 %v272, 0.03125
    %v282 = vmul.f32 %v274, 0.03125
    %v283 = vsub.f32 %v249, %v275
    %v284 = vsub.f32 %v250, %v276
    %v285 = vsub.f32 %v251, %v277
    %v286 = vsub.f32 %v252, %v278
    %v287 = vsub.f32 %v253, %v279
    %v288 = vsub.f32 %v254, %v280
    %v289 = vsub.f32 %v255, %v281
    %v290 = vsub.f32 %v256, %v282
    %v291 = vmul.f32 %v283, %v248
    %v292 = vmul.f32 %v284, %v248
    %v293 = vmul.f32 %v285, %v248
    %v294 = vmul.f32 %v286, %v248
    %v295 = vmul.f32 %v287, %v248
    %v296 = vmul.f32 %v288, %v248
    %v297 = vmul.f32 %v289, %v248
    %v298 = vmul.f32 %v290, %v248
    %v299 = vmul.f32 %v291, %v291
    %v300 = vmul.f32 %v292, %v292
    %v301 = vmul.f32 %v293, %v293
    %v302 = vmul.f32 %v294, %v294
    %v303 = vmul.f32 %v295, %v295
    %v304 = vmul.f32 %v296, %v296
    %v305 = vmul.f32 %v297, %v297
    %v306 = vmul.f32 %v298, %v298
    %307 = vadd.xlane.f32.xlu0 %v299
    %v308 = vpop.xlane.xlu0 %307
    %309 = vadd.xlane.f32.xlu0 %v300
    %v310 = vpop.xlane.xlu0 %309
    %311 = vadd.xlane.f32.xlu0 %v301
    %v312 = vpop.xlane.xlu0 %311
    %313 = vadd.xlane.f32.xlu0 %v302
    %v314 = vpop.xlane.xlu0 %313
    %315 = vadd.xlane.f32.xlu0 %v303
    %v316 = vpop.xlane.xlu0 %315
    %317 = vadd.xlane.f32.xlu0 %v304
    %v318 = vpop.xlane.xlu0 %317
    %319 = vadd.xlane.f32.xlu0 %v305
    %v320 = vpop.xlane.xlu0 %319
    %321 = vadd.xlane.f32.xlu0 %v306
    %v322 = vpop.xlane.xlu0 %321
    %v323 = vmul.f32 %v308, 0.03125
    %v324 = vmul.f32 %v310, 0.03125
    %v325 = vmul.f32 %v312, 0.03125
    %v326 = vmul.f32 %v314, 0.03125
    %v327 = vmul.f32 %v316, 0.03125
    %v328 = vmul.f32 %v318, 0.03125
    %v329 = vmul.f32 %v320, 0.03125
    %v330 = vmul.f32 %v322, 0.03125
    %v331 = vadd.f32 %v323, 1e-05
    %v332 = vadd.f32 %v324, 1e-05
    %v333 = vadd.f32 %v325, 1e-05
    %v334 = vadd.f32 %v326, 1e-05
    %v335 = vadd.f32 %v327, 1e-05
    %v336 = vadd.f32 %v328, 1e-05
    %v337 = vadd.f32 %v329, 1e-05
    %v338 = vadd.f32 %v330, 1e-05
    %v339 = vrsqrt.pop %v331
    %v340 = vrsqrt.pop %v332
    %v341 = vrsqrt.pop %v333
    %v342 = vrsqrt.pop %v334
    %v343 = vrsqrt.pop %v335
    %v344 = vrsqrt.pop %v336
    %v345 = vrsqrt.pop %v337
    %v346 = vrsqrt.pop %v338
    %v347 = vmul.f32 %v291, %v339
    %v348 = vmul.f32 %v292, %v340
    %v349 = vmul.f32 %v293, %v341
    %v350 = vmul.f32 %v294, %v342
    %v351 = vmul.f32 %v295, %v343
    %v352 = vmul.f32 %v296, %v344
    %v353 = vmul.f32 %v297, %v345
    %v354 = vmul.f32 %v298, %v346
    %v356 = vlaneseq
    %v357 = vshrl.u32 %v356, 7
    %v358 = vsub.s32 0, %v357
    %v359 = vrot.slane %v257, %v358
    %v361 = vmul.f32 %v347, %v359
    %v362 = vmul.f32 %v348, %v359
    %v363 = vmul.f32 %v349, %v359
    %v364 = vmul.f32 %v350, %v359
    %v365 = vmul.f32 %v351, %v359
    %v366 = vmul.f32 %v352, %v359
    %v367 = vmul.f32 %v353, %v359
    %v368 = vmul.f32 %v354, %v359
    %v370 = vlaneseq
    %v371 = vshrl.u32 %v370, 7
    %v372 = vsub.s32 0, %v371
    %v373 = vrot.slane %v258, %v372
    %v375 = vadd.f32 %v361, %v373
    %v376 = vadd.f32 %v362, %v373
    %v377 = vadd.f32 %v363, %v373
    %v378 = vadd.f32 %v364, %v373
    %v379 = vadd.f32 %v365, %v373
    %v380 = vadd.f32 %v366, %v373
    %v381 = vadd.f32 %v367, %v373
    %v382 = vadd.f32 %v368, %v373
    %v383 = vld [vmem:[%s6] sm:$0x1]
    %v384 = vld [vmem:[%s7] sm:$0x1]
    %385 = vadd.xlane.f32.xlu0 %v375
    %v386 = vpop.xlane.xlu0 %385
    %387 = vadd.xlane.f32.xlu0 %v376
    %v388 = vpop.xlane.xlu0 %387
    %389 = vadd.xlane.f32.xlu0 %v377
    %v390 = vpop.xlane.xlu0 %389
    %391 = vadd.xlane.f32.xlu0 %v378
    %v392 = vpop.xlane.xlu0 %391
    %393 = vadd.xlane.f32.xlu0 %v379
    %v394 = vpop.xlane.xlu0 %393
    %395 = vadd.xlane.f32.xlu0 %v380
    %v396 = vpop.xlane.xlu0 %395
    %397 = vadd.xlane.f32.xlu0 %v381
    %v398 = vpop.xlane.xlu0 %397
    %399 = vadd.xlane.f32.xlu0 %v382
    %v400 = vpop.xlane.xlu0 %399
    %v401 = vmul.f32 %v386, 0.03125
    %v402 = vmul.f32 %v388, 0.03125
    %v403 = vmul.f32 %v390, 0.03125
    %v404 = vmul.f32 %v392, 0.03125
    %v405 = vmul.f32 %v394, 0.03125
    %v406 = vmul.f32 %v396, 0.03125
    %v407 = vmul.f32 %v398, 0.03125
    %v408 = vmul.f32 %v400, 0.03125
    %v409 = vsub.f32 %v375, %v401
    %v410 = vsub.f32 %v376, %v402
    %v411 = vsub.f32 %v377, %v403
    %v412 = vsub.f32 %v378, %v404
    %v413 = vsub.f32 %v379, %v405
    %v414 = vsub.f32 %v380, %v406
    %v415 = vsub.f32 %v381, %v407
    %v416 = vsub.f32 %v382, %v408
    %v417 = vmul.f32 %v409, %v248
    %v418 = vmul.f32 %v410, %v248
    %v419 = vmul.f32 %v411, %v248
    %v420 = vmul.f32 %v412, %v248
    %v421 = vmul.f32 %v413, %v248
    %v422 = vmul.f32 %v414, %v248
    %v423 = vmul.f32 %v415, %v248
    %v424 = vmul.f32 %v416, %v248
    %v425 = vmul.f32 %v417, %v417
    %v426 = vmul.f32 %v418, %v418
    %v427 = vmul.f32 %v419, %v419
    %v428 = vmul.f32 %v420, %v420
    %v429 = vmul.f32 %v421, %v421
    %v430 = vmul.f32 %v422, %v422
    %v431 = vmul.f32 %v423, %v423
    %v432 = vmul.f32 %v424, %v424
    %433 = vadd.xlane.f32.xlu0 %v425
    %v434 = vpop.xlane.xlu0 %433
    %435 = vadd.xlane.f32.xlu0 %v426
    %v436 = vpop.xlane.xlu0 %435
    %437 = vadd.xlane.f32.xlu0 %v427
    %v438 = vpop.xlane.xlu0 %437
    %439 = vadd.xlane.f32.xlu0 %v428
    %v440 = vpop.xlane.xlu0 %439
    %441 = vadd.xlane.f32.xlu0 %v429
    %v442 = vpop.xlane.xlu0 %441
    %443 = vadd.xlane.f32.xlu0 %v430
    %v444 = vpop.xlane.xlu0 %443
    %445 = vadd.xlane.f32.xlu0 %v431
    %v446 = vpop.xlane.xlu0 %445
    %447 = vadd.xlane.f32.xlu0 %v432
    %v448 = vpop.xlane.xlu0 %447
    %v449 = vmul.f32 %v434, 0.03125
    %v450 = vmul.f32 %v436, 0.03125
    %v451 = vmul.f32 %v438, 0.03125
    %v452 = vmul.f32 %v440, 0.03125
    %v453 = vmul.f32 %v442, 0.03125
    %v454 = vmul.f32 %v444, 0.03125
    %v455 = vmul.f32 %v446, 0.03125
    %v456 = vmul.f32 %v448, 0.03125
    %v457 = vadd.f32 %v449, 1e-05
    %v458 = vadd.f32 %v450, 1e-05
    %v459 = vadd.f32 %v451, 1e-05
    %v460 = vadd.f32 %v452, 1e-05
    %v461 = vadd.f32 %v453, 1e-05
    %v462 = vadd.f32 %v454, 1e-05
    %v463 = vadd.f32 %v455, 1e-05
    %v464 = vadd.f32 %v456, 1e-05
    %v465 = vrsqrt.pop %v457
    %v466 = vrsqrt.pop %v458
    %v467 = vrsqrt.pop %v459
    %v468 = vrsqrt.pop %v460
    %v469 = vrsqrt.pop %v461
    %v470 = vrsqrt.pop %v462
    %v471 = vrsqrt.pop %v463
    %v472 = vrsqrt.pop %v464
    %v473 = vmul.f32 %v417, %v465
    %v474 = vmul.f32 %v418, %v466
    %v475 = vmul.f32 %v419, %v467
    %v476 = vmul.f32 %v420, %v468
    %v477 = vmul.f32 %v421, %v469
    %v478 = vmul.f32 %v422, %v470
    %v479 = vmul.f32 %v423, %v471
    %v480 = vmul.f32 %v424, %v472
    %v482 = vlaneseq
    %v483 = vshrl.u32 %v482, 7
    %v484 = vsub.s32 0, %v483
    %v485 = vrot.slane %v383, %v484
    %v487 = vmul.f32 %v473, %v485
    %v488 = vmul.f32 %v474, %v485
    %v489 = vmul.f32 %v475, %v485
    %v490 = vmul.f32 %v476, %v485
    %v491 = vmul.f32 %v477, %v485
    %v492 = vmul.f32 %v478, %v485
    %v493 = vmul.f32 %v479, %v485
    %v494 = vmul.f32 %v480, %v485
    %v496 = vlaneseq
    %v497 = vshrl.u32 %v496, 7
    %v498 = vsub.s32 0, %v497
    %v499 = vrot.slane %v384, %v498
    %v501 = vadd.f32 %v487, %v499
    %v502 = vadd.f32 %v488, %v499
    %v503 = vadd.f32 %v489, %v499
    %v504 = vadd.f32 %v490, %v499
    %v505 = vadd.f32 %v491, %v499
    %v506 = vadd.f32 %v492, %v499
    %v507 = vadd.f32 %v493, %v499
    %v508 = vadd.f32 %v494, %v499
    %v509 = vld [vmem:[#allocation5] sm:$0xff]
    %510 = vst [vmem:[#allocation5] sm:$0xff] %v508
    %v511 = vld [vmem:[%s12] sm:$0x1]
    %v512 = vld [vmem:[%s13] sm:$0x1]
    %v513 = vld [vmem:[%s14] sm:$0x1]
    %v515 = vlaneseq
    %v516 = vshrl.u32 %v515, 7
    %v517 = vsub.s32 0, %v516
    %v518 = vrot.slane %v511, %v517
    %v520 = vmul.f32 %v501, %v518
    %v521 = vmul.f32 %v502, %v518
    %v522 = vmul.f32 %v503, %v518
    %v523 = vmul.f32 %v504, %v518
    %v524 = vmul.f32 %v505, %v518
    %v525 = vmul.f32 %v506, %v518
    %v526 = vmul.f32 %v507, %v518
    %v527 = vmul.f32 %v508, %v518
    %v528 = vsub.f32 1.0, %v511
    %v530 = vlaneseq
    %v531 = vshrl.u32 %v530, 7
    %v532 = vsub.s32 0, %v531
    %v533 = vrot.slane %v528, %v532
    %v535 = vmul.f32 %v509, %v533
    %v536 = vmul.f32 %v501, %v533
    %v537 = vmul.f32 %v502, %v533
    %v538 = vmul.f32 %v503, %v533
    %v539 = vmul.f32 %v504, %v533
    %v540 = vmul.f32 %v505, %v533
    %v541 = vmul.f32 %v506, %v533
    %v542 = vmul.f32 %v507, %v533
    %v543 = vadd.f32 %v520, %v535
    %v544 = vadd.f32 %v521, %v536
    %v545 = vadd.f32 %v522, %v537
    %v546 = vadd.f32 %v523, %v538
    %v547 = vadd.f32 %v524, %v539
    %v548 = vadd.f32 %v525, %v540
    %v549 = vadd.f32 %v526, %v541
    %v550 = vadd.f32 %v527, %v542
    %v552 = vlaneseq
    %v553 = vshrl.u32 %v552, 7
    %v554 = vsub.s32 0, %v553
    %v555 = vrot.slane %v512, %v554
    %v557 = vmul.f32 %v501, %v555
    %v558 = vmul.f32 %v502, %v555
    %v559 = vmul.f32 %v503, %v555
    %v560 = vmul.f32 %v504, %v555
    %v561 = vmul.f32 %v505, %v555
    %v562 = vmul.f32 %v506, %v555
    %v563 = vmul.f32 %v507, %v555
    %v564 = vmul.f32 %v508, %v555
    %v565 = vsub.f32 1.0, %v512
    %v567 = vlaneseq
    %v568 = vshrl.u32 %v567, 7
    %v569 = vsub.s32 0, %v568
    %v570 = vrot.slane %v565, %v569
    %v572 = vmul.f32 %v509, %v570
    %v573 = vmul.f32 %v501, %v570
    %v574 = vmul.f32 %v502, %v570
    %v575 = vmul.f32 %v503, %v570
    %v576 = vmul.f32 %v504, %v570
    %v577 = vmul.f32 %v505, %v570
    %v578 = vmul.f32 %v506, %v570
    %v579 = vmul.f32 %v507, %v570
    %v580 = vadd.f32 %v557, %v572
    %v581 = vadd.f32 %v558, %v573
    %v582 = vadd.f32 %v559, %v574
    %v583 = vadd.f32 %v560, %v575
    %v584 = vadd.f32 %v561, %v576
    %v585 = vadd.f32 %v562, %v577
    %v586 = vadd.f32 %v563, %v578
    %v587 = vadd.f32 %v564, %v579
    %v589 = vlaneseq
    %v590 = vshrl.u32 %v589, 7
    %v591 = vsub.s32 0, %v590
    %v592 = vrot.slane %v513, %v591
    %v594 = vmul.f32 %v501, %v592
    %v595 = vmul.f32 %v502, %v592
    %v596 = vmul.f32 %v503, %v592
    %v597 = vmul.f32 %v504, %v592
    %v598 = vmul.f32 %v505, %v592
    %v599 = vmul.f32 %v506, %v592
    %v600 = vmul.f32 %v507, %v592
    %v601 = vmul.f32 %v508, %v592
    %v602 = vsub.f32 1.0, %v513
    %v604 = vlaneseq
    %v605 = vshrl.u32 %v604, 7
    %v606 = vsub.s32 0, %v605
    %v607 = vrot.slane %v602, %v606
    %v609 = vmul.f32 %v509, %v607
    %v610 = vmul.f32 %v501, %v607
    %v611 = vmul.f32 %v502, %v607
    %v612 = vmul.f32 %v503, %v607
    %v613 = vmul.f32 %v504, %v607
    %v614 = vmul.f32 %v505, %v607
    %v615 = vmul.f32 %v506, %v607
    %v616 = vmul.f32 %v507, %v607
    %v617 = vadd.f32 %v594, %v609
    %v618 = vadd.f32 %v595, %v610
    %v619 = vadd.f32 %v596, %v611
    %v620 = vadd.f32 %v597, %v612
    %v621 = vadd.f32 %v598, %v613
    %v622 = vadd.f32 %v599, %v614
    %v623 = vadd.f32 %v600, %v615
    %v624 = vadd.f32 %v601, %v616
    %v625 = vpack.c.bf16 %v544, %v543
    %v626 = vpack.c.bf16 %v546, %v545
    %v627 = vpack.c.bf16 %v548, %v547
    %v628 = vpack.c.bf16 %v550, %v549
    %v629 = vld [vmem:[#allocation15] sm:$0xf]
    %v630 = vld [vmem:[#allocation15 + $0x4] sm:$0xf]
    %v631 = vld [vmem:[#allocation15 + $0x8] sm:$0xf]
    %v632 = vld [vmem:[#allocation15 + $0xc] sm:$0xf]
    %v633 = vld [vmem:[#allocation15 + $0x10] sm:$0xf]
    %v634 = vld [vmem:[#allocation15 + $0x14] sm:$0xf]
    %v635 = vld [vmem:[#allocation15 + $0x18] sm:$0xf]
    %v636 = vld [vmem:[#allocation15 + $0x1c] sm:$0xf]
    %v637 = vld [vmem:[#allocation15 + $0x20] sm:$0xf]
    %v638 = vld [vmem:[#allocation15 + $0x24] sm:$0xf]
    %v639 = vld [vmem:[#allocation15 + $0x28] sm:$0xf]
    %v640 = vld [vmem:[#allocation15 + $0x2c] sm:$0xf]
    %v641 = vld [vmem:[#allocation15 + $0x30] sm:$0xf]
    %v642 = vld [vmem:[#allocation15 + $0x34] sm:$0xf]
    %v643 = vld [vmem:[#allocation15 + $0x38] sm:$0xf]
    %v644 = vld [vmem:[#allocation15 + $0x3c] sm:$0xf]
    %v661 = vunpack.c.l.b16 %v629
    %v662 = vunpack.c.l.b16 %v630
    %v663 = vunpack.c.l.b16 %v631
    %v664 = vunpack.c.l.b16 %v632
    %v665 = vunpack.c.l.b16 %v633
    %v666 = vunpack.c.l.b16 %v634
    %v667 = vunpack.c.l.b16 %v635
    %v668 = vunpack.c.l.b16 %v636
    %v669 = vunpack.c.l.b16 %v637
    %v670 = vunpack.c.l.b16 %v638
    %v671 = vunpack.c.l.b16 %v639
    %v672 = vunpack.c.l.b16 %v640
    %v673 = vunpack.c.l.b16 %v641
    %v674 = vunpack.c.l.b16 %v642
    %v675 = vunpack.c.l.b16 %v643
    %v676 = vunpack.c.l.b16 %v644
    %v677 = vpack.c.b16 %v662, %v661
    %v678 = vpack.c.b16 %v664, %v663
    %v679 = vpack.c.b16 %v666, %v665
    %v680 = vpack.c.b16 %v668, %v667
    %v681 = vpack.c.b16 %v670, %v669
    %v682 = vpack.c.b16 %v672, %v671
    %v683 = vpack.c.b16 %v674, %v673
    %v684 = vpack.c.b16 %v676, %v675
    %693 = vmatprep.subr.bf16.mxu0 0
    %694 = vmatpush1.bf16.msra.mxu0 %v684
    %695 = vmatprep.subr.bf16.mxu0 0
    %696 = vmatpush1.bf16.msra.mxu0 %v683
    %697 = vmatprep.subr.bf16.mxu0 0
    %698 = vmatpush1.bf16.msra.mxu0 %v682
    %699 = vmatprep.subr.bf16.mxu0 0
    %700 = vmatpush1.bf16.msra.mxu0 %v681
    %701 = vmatprep.subr.bf16.mxu0 0
    %702 = vmatpush1.bf16.msra.mxu0 %v680
    %703 = vmatprep.subr.bf16.mxu0 0
    %704 = vmatpush1.bf16.msra.mxu0 %v679
    %705 = vmatprep.subr.bf16.mxu0 0
    %706 = vmatpush1.bf16.msra.mxu0 %v678
    %707 = vmatprep.subr.bf16.mxu0 0
    %708 = vmatpush1.bf16.msra.mxu0 %v677
    %709 = vmatprep.subr.bf16.mxu0 0
    %710 = vmatpush2.bf16.msra.mxu0 0
    %711 = vmatprep.subr.bf16.mxu0 0
    %712 = vmatpush2.bf16.msra.mxu0 0
    %713 = vmatprep.subr.bf16.mxu0 0
    %714 = vmatpush2.bf16.msra.mxu0 0
    %715 = vmatprep.subr.bf16.mxu0 0
    %716 = vmatpush2.bf16.msra.mxu0 0
    %717 = vmatprep.subr.bf16.mxu0 0
    %718 = vmatpush2.bf16.msra.mxu0 0
    %719 = vmatprep.subr.bf16.mxu0 0
    %720 = vmatpush2.bf16.msra.mxu0 0
    %721 = vmatprep.subr.bf16.mxu0 0
    %722 = vmatpush2.bf16.msra.mxu0 0
    %723 = vmatprep.subr.bf16.mxu0 0
    %724 = vmatpush2.bf16.msra.mxu0 0
    %725 = vmatprep.mubr.bf16.mxu0 0
    %726 = vmatmul.mubr.bf16.gmra.mxu0 %v625
    %v727 = vpop.f32.mrf.mxu0
    %v728 = vadd.f32 0.0, %v727
    %v729 = vpop.f32.mrf.mxu0
    %v730 = vpop.f32.mrf.mxu0
    %v731 = vadd.f32 0.0, %v730
    %v732 = vpop.f32.mrf.mxu0
    %733 = vmatprep.mubr.bf16.mxu0 0
    %734 = vmatmul.mubr.bf16.gmra.mxu0 %v626
    %v735 = vpop.f32.mrf.mxu0
    %v736 = vadd.f32 0.0, %v735
    %v737 = vpop.f32.mrf.mxu0
    %v738 = vpop.f32.mrf.mxu0
    %v739 = vadd.f32 0.0, %v738
    %v740 = vpop.f32.mrf.mxu0
    %741 = vmatprep.mubr.bf16.mxu0 0
    %742 = vmatmul.mubr.bf16.gmra.mxu0 %v627
    %v743 = vpop.f32.mrf.mxu0
    %v744 = vadd.f32 0.0, %v743
    %v745 = vpop.f32.mrf.mxu0
    %v746 = vpop.f32.mrf.mxu0
    %v747 = vadd.f32 0.0, %v746
    %v748 = vpop.f32.mrf.mxu0
    %749 = vmatprep.mubr.bf16.mxu0 0
    %750 = vmatmul.mubr.bf16.gmra.mxu0 %v628
    %v751 = vpop.f32.mrf.mxu0
    %v752 = vadd.f32 0.0, %v751
    %v753 = vpop.f32.mrf.mxu0
    %v754 = vpop.f32.mrf.mxu0
    %v755 = vadd.f32 0.0, %v754
    %v756 = vpop.f32.mrf.mxu0
    %757 = vdwg.mxu0
    %v758 = vpack.c.bf16 %v581, %v580
    %v759 = vpack.c.bf16 %v583, %v582
    %v760 = vpack.c.bf16 %v585, %v584
    %v761 = vpack.c.bf16 %v587, %v586
    %v762 = vld [vmem:[#allocation16] sm:$0xf]
    %v763 = vld [vmem:[#allocation16 + $0x4] sm:$0xf]
    %v764 = vld [vmem:[#allocation16 + $0x8] sm:$0xf]
    %v765 = vld [vmem:[#allocation16 + $0xc] sm:$0xf]
    %v766 = vld [vmem:[#allocation16 + $0x10] sm:$0xf]
    %v767 = vld [vmem:[#allocation16 + $0x14] sm:$0xf]
    %v768 = vld [vmem:[#allocation16 + $0x18] sm:$0xf]
    %v769 = vld [vmem:[#allocation16 + $0x1c] sm:$0xf]
    %v770 = vld [vmem:[#allocation16 + $0x20] sm:$0xf]
    %v771 = vld [vmem:[#allocation16 + $0x24] sm:$0xf]
    %v772 = vld [vmem:[#allocation16 + $0x28] sm:$0xf]
    %v773 = vld [vmem:[#allocation16 + $0x2c] sm:$0xf]
    %v774 = vld [vmem:[#allocation16 + $0x30] sm:$0xf]
    %v775 = vld [vmem:[#allocation16 + $0x34] sm:$0xf]
    %v776 = vld [vmem:[#allocation16 + $0x38] sm:$0xf]
    %v777 = vld [vmem:[#allocation16 + $0x3c] sm:$0xf]
    %v794 = vunpack.c.l.b16 %v762
    %v795 = vunpack.c.l.b16 %v763
    %v796 = vunpack.c.l.b16 %v764
    %v797 = vunpack.c.l.b16 %v765
    %v798 = vunpack.c.l.b16 %v766
    %v799 = vunpack.c.l.b16 %v767
    %v800 = vunpack.c.l.b16 %v768
    %v801 = vunpack.c.l.b16 %v769
    %v802 = vunpack.c.l.b16 %v770
    %v803 = vunpack.c.l.b16 %v771
    %v804 = vunpack.c.l.b16 %v772
    %v805 = vunpack.c.l.b16 %v773
    %v806 = vunpack.c.l.b16 %v774
    %v807 = vunpack.c.l.b16 %v775
    %v808 = vunpack.c.l.b16 %v776
    %v809 = vunpack.c.l.b16 %v777
    %v810 = vpack.c.b16 %v795, %v794
    %v811 = vpack.c.b16 %v797, %v796
    %v812 = vpack.c.b16 %v799, %v798
    %v813 = vpack.c.b16 %v801, %v800
    %v814 = vpack.c.b16 %v803, %v802
    %v815 = vpack.c.b16 %v805, %v804
    %v816 = vpack.c.b16 %v807, %v806
    %v817 = vpack.c.b16 %v809, %v808
    %826 = vmatprep.subr.bf16.mxu0 0
    %827 = vmatpush1.bf16.msra.mxu0 %v817
    %828 = vmatprep.subr.bf16.mxu0 0
    %829 = vmatpush1.bf16.msra.mxu0 %v816
    %830 = vmatprep.subr.bf16.mxu0 0
    %831 = vmatpush1.bf16.msra.mxu0 %v815
    %832 = vmatprep.subr.bf16.mxu0 0
    %833 = vmatpush1.bf16.msra.mxu0 %v814
    %834 = vmatprep.subr.bf16.mxu0 0
    %835 = vmatpush1.bf16.msra.mxu0 %v813
    %836 = vmatprep.subr.bf16.mxu0 0
    %837 = vmatpush1.bf16.msra.mxu0 %v812
    %838 = vmatprep.subr.bf16.mxu0 0
    %839 = vmatpush1.bf16.msra.mxu0 %v811
    %840 = vmatprep.subr.bf16.mxu0 0
    %841 = vmatpush1.bf16.msra.mxu0 %v810
    %842 = vmatprep.subr.bf16.mxu0 0
    %843 = vmatpush2.bf16.msra.mxu0 0
    %844 = vmatprep.subr.bf16.mxu0 0
    %845 = vmatpush2.bf16.msra.mxu0 0
    %846 = vmatprep.subr.bf16.mxu0 0
    %847 = vmatpush2.bf16.msra.mxu0 0
    %848 = vmatprep.subr.bf16.mxu0 0
    %849 = vmatpush2.bf16.msra.mxu0 0
    %850 = vmatprep.subr.bf16.mxu0 0
    %851 = vmatpush2.bf16.msra.mxu0 0
    %852 = vmatprep.subr.bf16.mxu0 0
    %853 = vmatpush2.bf16.msra.mxu0 0
    %854 = vmatprep.subr.bf16.mxu0 0
    %855 = vmatpush2.bf16.msra.mxu0 0
    %856 = vmatprep.subr.bf16.mxu0 0
    %857 = vmatpush2.bf16.msra.mxu0 0
    %858 = vmatprep.mubr.bf16.mxu0 0
    %859 = vmatmul.mubr.bf16.gmra.mxu0 %v758
    %v860 = vpop.f32.mrf.mxu0
    %v861 = vadd.f32 0.0, %v860
    %v862 = vpop.f32.mrf.mxu0
    %v863 = vpop.f32.mrf.mxu0
    %v864 = vadd.f32 0.0, %v863
    %v865 = vpop.f32.mrf.mxu0
    %866 = vmatprep.mubr.bf16.mxu0 0
    %867 = vmatmul.mubr.bf16.gmra.mxu0 %v759
    %v868 = vpop.f32.mrf.mxu0
    %v869 = vadd.f32 0.0, %v868
    %v870 = vpop.f32.mrf.mxu0
    %v871 = vpop.f32.mrf.mxu0
    %v872 = vadd.f32 0.0, %v871
    %v873 = vpop.f32.mrf.mxu0
    %874 = vmatprep.mubr.bf16.mxu0 0
    %875 = vmatmul.mubr.bf16.gmra.mxu0 %v760
    %v876 = vpop.f32.mrf.mxu0
    %v877 = vadd.f32 0.0, %v876
    %v878 = vpop.f32.mrf.mxu0
    %v879 = vpop.f32.mrf.mxu0
    %v880 = vadd.f32 0.0, %v879
    %v881 = vpop.f32.mrf.mxu0
    %882 = vmatprep.mubr.bf16.mxu0 0
    %883 = vmatmul.mubr.bf16.gmra.mxu0 %v761
    %v884 = vpop.f32.mrf.mxu0
    %v885 = vadd.f32 0.0, %v884
    %v886 = vpop.f32.mrf.mxu0
    %v887 = vpop.f32.mrf.mxu0
    %v888 = vadd.f32 0.0, %v887
    %v889 = vpop.f32.mrf.mxu0
    %890 = vdwg.mxu0
    %v891 = vpack.c.bf16 %v618, %v617
    %v892 = vpack.c.bf16 %v620, %v619
    %v893 = vpack.c.bf16 %v622, %v621
    %v894 = vpack.c.bf16 %v624, %v623
    %v895 = vld [vmem:[#allocation18] sm:$0xf]
    %v896 = vld [vmem:[#allocation18 + $0x4] sm:$0xf]
    %v897 = vld [vmem:[#allocation18 + $0x8] sm:$0xf]
    %v898 = vld [vmem:[#allocation18 + $0xc] sm:$0xf]
    %v899 = vld [vmem:[#allocation18 + $0x10] sm:$0xf]
    %v900 = vld [vmem:[#allocation18 + $0x14] sm:$0xf]
    %v901 = vld [vmem:[#allocation18 + $0x18] sm:$0xf]
    %v902 = vld [vmem:[#allocation18 + $0x1c] sm:$0xf]
    %v903 = vld [vmem:[#allocation18 + $0x20] sm:$0xf]
    %v904 = vld [vmem:[#allocation18 + $0x24] sm:$0xf]
    %v905 = vld [vmem:[#allocation18 + $0x28] sm:$0xf]
    %v906 = vld [vmem:[#allocation18 + $0x2c] sm:$0xf]
    %v907 = vld [vmem:[#allocation18 + $0x30] sm:$0xf]
    %v908 = vld [vmem:[#allocation18 + $0x34] sm:$0xf]
    %v909 = vld [vmem:[#allocation18 + $0x38] sm:$0xf]
    %v910 = vld [vmem:[#allocation18 + $0x3c] sm:$0xf]
    %v927 = vunpack.c.l.b16 %v895
    %v928 = vunpack.c.l.b16 %v896
    %v929 = vunpack.c.l.b16 %v897
    %v930 = vunpack.c.l.b16 %v898
    %v931 = vunpack.c.l.b16 %v899
    %v932 = vunpack.c.l.b16 %v900
    %v933 = vunpack.c.l.b16 %v901
    %v934 = vunpack.c.l.b16 %v902
    %v935 = vunpack.c.l.b16 %v903
    %v936 = vunpack.c.l.b16 %v904
    %v937 = vunpack.c.l.b16 %v905
    %v938 = vunpack.c.l.b16 %v906
    %v939 = vunpack.c.l.b16 %v907
    %v940 = vunpack.c.l.b16 %v908
    %v941 = vunpack.c.l.b16 %v909
    %v942 = vunpack.c.l.b16 %v910
    %v943 = vpack.c.b16 %v928, %v927
    %v944 = vpack.c.b16 %v930, %v929
    %v945 = vpack.c.b16 %v932, %v931
    %v946 = vpack.c.b16 %v934, %v933
    %v947 = vpack.c.b16 %v936, %v935
    %v948 = vpack.c.b16 %v938, %v937
    %v949 = vpack.c.b16 %v940, %v939
    %v950 = vpack.c.b16 %v942, %v941
    %959 = vmatprep.subr.bf16.mxu0 0
    %960 = vmatpush1.bf16.msra.mxu0 %v950
    %961 = vmatprep.subr.bf16.mxu0 0
    %962 = vmatpush1.bf16.msra.mxu0 %v949
    %963 = vmatprep.subr.bf16.mxu0 0
    %964 = vmatpush1.bf16.msra.mxu0 %v948
    %965 = vmatprep.subr.bf16.mxu0 0
    %966 = vmatpush1.bf16.msra.mxu0 %v947
    %967 = vmatprep.subr.bf16.mxu0 0
    %968 = vmatpush1.bf16.msra.mxu0 %v946
    %969 = vmatprep.subr.bf16.mxu0 0
    %970 = vmatpush1.bf16.msra.mxu0 %v945
    %971 = vmatprep.subr.bf16.mxu0 0
    %972 = vmatpush1.bf16.msra.mxu0 %v944
    %973 = vmatprep.subr.bf16.mxu0 0
    %974 = vmatpush1.bf16.msra.mxu0 %v943
    %975 = vmatprep.subr.bf16.mxu0 0
    %976 = vmatpush2.bf16.msra.mxu0 0
    %977 = vmatprep.subr.bf16.mxu0 0
    %978 = vmatpush2.bf16.msra.mxu0 0
    %979 = vmatprep.subr.bf16.mxu0 0
    %980 = vmatpush2.bf16.msra.mxu0 0
    %981 = vmatprep.subr.bf16.mxu0 0
    %982 = vmatpush2.bf16.msra.mxu0 0
    %983 = vmatprep.subr.bf16.mxu0 0
    %984 = vmatpush2.bf16.msra.mxu0 0
    %985 = vmatprep.subr.bf16.mxu0 0
    %986 = vmatpush2.bf16.msra.mxu0 0
    %987 = vmatprep.subr.bf16.mxu0 0
    %988 = vmatpush2.bf16.msra.mxu0 0
    %989 = vmatprep.subr.bf16.mxu0 0
    %990 = vmatpush2.bf16.msra.mxu0 0
    %991 = vmatprep.mubr.bf16.mxu0 0
    %992 = vmatmul.mubr.bf16.gmra.mxu0 %v891
    %v993 = vpop.f32.mrf.mxu0
    %v994 = vadd.f32 0.0, %v993
    %v995 = vpop.f32.mrf.mxu0
    %v996 = vpop.f32.mrf.mxu0
    %v997 = vadd.f32 0.0, %v996
    %v998 = vpop.f32.mrf.mxu0
    %999 = vmatprep.mubr.bf16.mxu0 0
    %1000 = vmatmul.mubr.bf16.gmra.mxu0 %v892
    %v1001 = vpop.f32.mrf.mxu0
    %v1002 = vadd.f32 0.0, %v1001
    %v1003 = vpop.f32.mrf.mxu0
    %v1004 = vpop.f32.mrf.mxu0
    %v1005 = vadd.f32 0.0, %v1004
    %v1006 = vpop.f32.mrf.mxu0
    %1007 = vmatprep.mubr.bf16.mxu0 0
    %1008 = vmatmul.mubr.bf16.gmra.mxu0 %v893
    %v1009 = vpop.f32.mrf.mxu0
    %v1010 = vadd.f32 0.0, %v1009
    %v1011 = vpop.f32.mrf.mxu0
    %v1012 = vpop.f32.mrf.mxu0
    %v1013 = vadd.f32 0.0, %v1012
    %v1014 = vpop.f32.mrf.mxu0
    %1015 = vmatprep.mubr.bf16.mxu0 0
    %1016 = vmatmul.mubr.bf16.gmra.mxu0 %v894
    %v1017 = vpop.f32.mrf.mxu0
    %v1018 = vadd.f32 0.0, %v1017
    %v1019 = vpop.f32.mrf.mxu0
    %v1020 = vpop.f32.mrf.mxu0
    %v1021 = vadd.f32 0.0, %v1020
    %v1022 = vpop.f32.mrf.mxu0
    %1023 = vdwg.mxu0
    %v1024 = vxor.u32 %v994, 2147483648
    %v1025 = vxor.u32 %v997, 2147483648
    %v1026 = vxor.u32 %v1002, 2147483648
    %v1027 = vxor.u32 %v1005, 2147483648
    %v1028 = vxor.u32 %v1010, 2147483648
    %v1029 = vxor.u32 %v1013, 2147483648
    %v1030 = vxor.u32 %v1018, 2147483648
    %v1031 = vxor.u32 %v1021, 2147483648
    %v1032 = vmul.f32 %v1024, 1.442695
    %v1033 = vpow.pop %v1032
    %v1034 = vmul.f32 %v1025, 1.442695
    %v1035 = vpow.pop %v1034
    %v1036 = vmul.f32 %v1026, 1.442695
    %v1037 = vpow.pop %v1036
    %v1038 = vmul.f32 %v1027, 1.442695
    %v1039 = vpow.pop %v1038
    %v1040 = vmul.f32 %v1028, 1.442695
    %v1041 = vpow.pop %v1040
    %v1042 = vmul.f32 %v1029, 1.442695
    %v1043 = vpow.pop %v1042
    %v1044 = vmul.f32 %v1030, 1.442695
    %v1045 = vpow.pop %v1044
    %v1046 = vmul.f32 %v1031, 1.442695
    %v1047 = vpow.pop %v1046
    %v1048 = vadd.f32 %v1033, 1.0
    %v1049 = vadd.f32 %v1035, 1.0
    %v1050 = vadd.f32 %v1037, 1.0
    %v1051 = vadd.f32 %v1039, 1.0
    %v1052 = vadd.f32 %v1041, 1.0
    %v1053 = vadd.f32 %v1043, 1.0
    %v1054 = vadd.f32 %v1045, 1.0
    %v1055 = vadd.f32 %v1047, 1.0
    %v1056 = vrcp.pop %v1048
    %v1057 = vmul.f32 1.0, %v1056
    %v1058 = vrcp.pop %v1049
    %v1059 = vmul.f32 1.0, %v1058
    %v1060 = vrcp.pop %v1050
    %v1061 = vmul.f32 1.0, %v1060
    %v1062 = vrcp.pop %v1051
    %v1063 = vmul.f32 1.0, %v1062
    %v1064 = vrcp.pop %v1052
    %v1065 = vmul.f32 1.0, %v1064
    %v1066 = vrcp.pop %v1053
    %v1067 = vmul.f32 1.0, %v1066
    %v1068 = vrcp.pop %v1054
    %v1069 = vmul.f32 1.0, %v1068
    %v1070 = vrcp.pop %v1055
    %v1071 = vmul.f32 1.0, %v1070
    %1072 = vst [vmem:[#allocation2] sm:$0xff] %v728
    %1073 = vst [vmem:[#allocation2 + $0x8] sm:$0xff] %v731
    %1074 = vst [vmem:[#allocation2 + $0x10] sm:$0xff] %v736
    %1075 = vst [vmem:[#allocation2 + $0x18] sm:$0xff] %v739
    %1076 = vst [vmem:[#allocation2 + $0x20] sm:$0xff] %v744
    %1077 = vst [vmem:[#allocation2 + $0x28] sm:$0xff] %v747
    %1078 = vst [vmem:[#allocation2 + $0x30] sm:$0xff] %v752
    %1079 = vst [vmem:[#allocation2 + $0x38] sm:$0xff] %v755
    %1080 = vst [vmem:[#allocation3] sm:$0xff] %v861
    %1081 = vst [vmem:[#allocation3 + $0x8] sm:$0xff] %v864
    %1082 = vst [vmem:[#allocation3 + $0x10] sm:$0xff] %v869
    %1083 = vst [vmem:[#allocation3 + $0x18] sm:$0xff] %v872
    %1084 = vst [vmem:[#allocation3 + $0x20] sm:$0xff] %v877
    %1085 = vst [vmem:[#allocation3 + $0x28] sm:$0xff] %v880
    %1086 = vst [vmem:[#allocation3 + $0x30] sm:$0xff] %v885
    %1087 = vst [vmem:[#allocation3 + $0x38] sm:$0xff] %v888
    %v1088 = vld [vmem:[%s10] sm:$0x1]
    %v1089 = vmul.f32 %v1088, 1.442695
    %v1090 = vpow.pop %v1089
    %v1092 = vlaneseq
    %v1093 = vshrl.u32 %v1092, 7
    %v1094 = vsub.s32 0, %v1093
    %v1095 = vrot.slane %v1090, %v1094
    %v1097 = vld [vmem:[%s11] sm:$0x1]
    %v1099 = vlaneseq
    %v1100 = vshrl.u32 %v1099, 7
    %v1101 = vsub.s32 0, %v1100
    %v1102 = vrot.slane %v1097, %v1101
    %v1104 = vld [vmem:[#allocation4] sm:$0xff]
    %s1105 = scalar_lea.vmem [#allocation4], 8
    %v1106 = vld [vmem:[%s1105] sm:$0xff]
    %s1107 = scalar_lea.vmem [#allocation4], 16
    %v1108 = vld [vmem:[%s1107] sm:$0xff]
    %v1109 = vld [vmem:[#allocation2] sm:$0xff]
    %v1110 = vld [vmem:[#allocation3] sm:$0xff]
    %v1111 = vadd.f32 %v1102, %v1109
    %v1112 = vmax.f32 %v1111, %v1108
    %v1113 = vsub.f32 %v1108, %v1112
    %v1114 = vmul.f32 %v1113, 1.442695
    %v1115 = vpow.pop %v1114
    %v1116 = vsub.f32 %v1111, %v1112
    %v1117 = vmul.f32 %v1116, 1.442695
    %v1118 = vpow.pop %v1117
    %v1119 = vmul.f32 %v1115, %v1104
    %v1120 = vmul.f32 %v1118, %v1110
    %v1121 = vadd.f32 %v1119, %v1120
    %v1122 = vmul.f32 %v1115, %v1106
    %v1123 = vadd.f32 %v1122, %v1118
    %v1124 = vrcp.pop %v1123
    %v1125 = vmul.f32 %v1121, %v1124
    %v1126 = vsub.f32 %v1108, %v1095
    %v1127 = vmax.f32 %v1126, %v1109
    %v1128 = vsub.f32 %v1126, %v1127
    %v1129 = vmul.f32 %v1128, 1.442695
    %v1130 = vpow.pop %v1129
    %v1131 = vsub.f32 %v1109, %v1127
    %v1132 = vmul.f32 %v1131, 1.442695
    %v1133 = vpow.pop %v1132
    %v1134 = vmul.f32 %v1130, %v1104
    %v1135 = vmul.f32 %v1133, %v1110
    %v1136 = vadd.f32 %v1134, %v1135
    %v1137 = vmul.f32 %v1130, %v1106
    %v1138 = vadd.f32 %v1137, %v1133
    %1139 = vst [vmem:[#allocation2] sm:$0xff] %v1125
    %s1140 = scalar_lea.vmem [#allocation2], 8
    %v1141 = vld [vmem:[%s1140] sm:$0xff]
    %s1142 = scalar_lea.vmem [#allocation3], 8
    %v1143 = vld [vmem:[%s1142] sm:$0xff]
    %v1144 = vadd.f32 %v1102, %v1141
    %v1145 = vmax.f32 %v1144, %v1127
    %v1146 = vsub.f32 %v1127, %v1145
    %v1147 = vmul.f32 %v1146, 1.442695
    %v1148 = vpow.pop %v1147
    %v1149 = vsub.f32 %v1144, %v1145
    %v1150 = vmul.f32 %v1149, 1.442695
    %v1151 = vpow.pop %v1150
    %v1152 = vmul.f32 %v1148, %v1136
    %v1153 = vmul.f32 %v1151, %v1143
    %v1154 = vadd.f32 %v1152, %v1153
    %v1155 = vmul.f32 %v1148, %v1138
    %v1156 = vadd.f32 %v1155, %v1151
    %v1157 = vrcp.pop %v1156
    %v1158 = vmul.f32 %v1154, %v1157
    %v1159 = vsub.f32 %v1127, %v1095
    %v1160 = vmax.f32 %v1159, %v1141
    %v1161 = vsub.f32 %v1159, %v1160
    %v1162 = vmul.f32 %v1161, 1.442695
    %v1163 = vpow.pop %v1162
    %v1164 = vsub.f32 %v1141, %v1160
    %v1165 = vmul.f32 %v1164, 1.442695
    %v1166 = vpow.pop %v1165
    %v1167 = vmul.f32 %v1163, %v1136
    %v1168 = vmul.f32 %v1166, %v1143
    %v1169 = vadd.f32 %v1167, %v1168
    %v1170 = vmul.f32 %v1163, %v1138
    %v1171 = vadd.f32 %v1170, %v1166
    %1172 = vst [vmem:[%s1140] sm:$0xff] %v1158
    %s1173 = scalar_lea.vmem [#allocation2], 16
    %v1174 = vld [vmem:[%s1173] sm:$0xff]
    %s1175 = scalar_lea.vmem [#allocation3], 16
    %v1176 = vld [vmem:[%s1175] sm:$0xff]
    %v1177 = vadd.f32 %v1102, %v1174
    %v1178 = vmax.f32 %v1177, %v1160
    %v1179 = vsub.f32 %v1160, %v1178
    %v1180 = vmul.f32 %v1179, 1.442695
    %v1181 = vpow.pop %v1180
    %v1182 = vsub.f32 %v1177, %v1178
    %v1183 = vmul.f32 %v1182, 1.442695
    %v1184 = vpow.pop %v1183
    %v1185 = vmul.f32 %v1181, %v1169
    %v1186 = vmul.f32 %v1184, %v1176
    %v1187 = vadd.f32 %v1185, %v1186
    %v1188 = vmul.f32 %v1181, %v1171
    %v1189 = vadd.f32 %v1188, %v1184
    %v1190 = vrcp.pop %v1189
    %v1191 = vmul.f32 %v1187, %v1190
    %v1192 = vsub.f32 %v1160, %v1095
    %v1193 = vmax.f32 %v1192, %v1174
    %v1194 = vsub.f32 %v1192, %v1193
    %v1195 = vmul.f32 %v1194, 1.442695
    %v1196 = vpow.pop %v1195
    %v1197 = vsub.f32 %v1174, %v1193
    %v1198 = vmul.f32 %v1197, 1.442695
    %v1199 = vpow.pop %v1198
    %v1200 = vmul.f32 %v1196, %v1169
    %v1201 = vmul.f32 %v1199, %v1176
    %v1202 = vadd.f32 %v1200, %v1201
    %v1203 = vmul.f32 %v1196, %v1171
    %v1204 = vadd.f32 %v1203, %v1199
    %1205 = vst [vmem:[%s1173] sm:$0xff] %v1191
    %s1206 = scalar_lea.vmem [#allocation2], 24
    %v1207 = vld [vmem:[%s1206] sm:$0xff]
    %s1208 = scalar_lea.vmem [#allocation3], 24
    %v1209 = vld [vmem:[%s1208] sm:$0xff]
    %v1210 = vadd.f32 %v1102, %v1207
    %v1211 = vmax.f32 %v1210, %v1193
    %v1212 = vsub.f32 %v1193, %v1211
    %v1213 = vmul.f32 %v1212, 1.442695
    %v1214 = vpow.pop %v1213
    %v1215 = vsub.f32 %v1210, %v1211
    %v1216 = vmul.f32 %v1215, 1.442695
    %v1217 = vpow.pop %v1216
    %v1218 = vmul.f32 %v1214, %v1202
    %v1219 = vmul.f32 %v1217, %v1209
    %v1220 = vadd.f32 %v1218, %v1219
    %v1221 = vmul.f32 %v1214, %v1204
    %v1222 = vadd.f32 %v1221, %v1217
    %v1223 = vrcp.pop %v1222
    %v1224 = vmul.f32 %v1220, %v1223
    %v1225 = vsub.f32 %v1193, %v1095
    %v1226 = vmax.f32 %v1225, %v1207
    %v1227 = vsub.f32 %v1225, %v1226
    %v1228 = vmul.f32 %v1227, 1.442695
    %v1229 = vpow.pop %v1228
    %v1230 = vsub.f32 %v1207, %v1226
    %v1231 = vmul.f32 %v1230, 1.442695
    %v1232 = vpow.pop %v1231
    %v1233 = vmul.f32 %v1229, %v1202
    %v1234 = vmul.f32 %v1232, %v1209
    %v1235 = vadd.f32 %v1233, %v1234
    %v1236 = vmul.f32 %v1229, %v1204
    %v1237 = vadd.f32 %v1236, %v1232
    %1238 = vst [vmem:[%s1206] sm:$0xff] %v1224
    %s1239 = scalar_lea.vmem [#allocation2], 32
    %v1240 = vld [vmem:[%s1239] sm:$0xff]
    %s1241 = scalar_lea.vmem [#allocation3], 32
    %v1242 = vld [vmem:[%s1241] sm:$0xff]
    %v1243 = vadd.f32 %v1102, %v1240
    %v1244 = vmax.f32 %v1243, %v1226
    %v1245 = vsub.f32 %v1226, %v1244
    %v1246 = vmul.f32 %v1245, 1.442695
    %v1247 = vpow.pop %v1246
    %v1248 = vsub.f32 %v1243, %v1244
    %v1249 = vmul.f32 %v1248, 1.442695
    %v1250 = vpow.pop %v1249
    %v1251 = vmul.f32 %v1247, %v1235
    %v1252 = vmul.f32 %v1250, %v1242
    %v1253 = vadd.f32 %v1251, %v1252
    %v1254 = vmul.f32 %v1247, %v1237
    %v1255 = vadd.f32 %v1254, %v1250
    %v1256 = vrcp.pop %v1255
    %v1257 = vmul.f32 %v1253, %v1256
    %v1258 = vsub.f32 %v1226, %v1095
    %v1259 = vmax.f32 %v1258, %v1240
    %v1260 = vsub.f32 %v1258, %v1259
    %v1261 = vmul.f32 %v1260, 1.442695
    %v1262 = vpow.pop %v1261
    %v1263 = vsub.f32 %v1240, %v1259
    %v1264 = vmul.f32 %v1263, 1.442695
    %v1265 = vpow.pop %v1264
    %v1266 = vmul.f32 %v1262, %v1235
    %v1267 = vmul.f32 %v1265, %v1242
    %v1268 = vadd.f32 %v1266, %v1267
    %v1269 = vmul.f32 %v1262, %v1237
    %v1270 = vadd.f32 %v1269, %v1265
    %1271 = vst [vmem:[%s1239] sm:$0xff] %v1257
    %s1272 = scalar_lea.vmem [#allocation2], 40
    %v1273 = vld [vmem:[%s1272] sm:$0xff]
    %s1274 = scalar_lea.vmem [#allocation3], 40
    %v1275 = vld [vmem:[%s1274] sm:$0xff]
    %v1276 = vadd.f32 %v1102, %v1273
    %v1277 = vmax.f32 %v1276, %v1259
    %v1278 = vsub.f32 %v1259, %v1277
    %v1279 = vmul.f32 %v1278, 1.442695
    %v1280 = vpow.pop %v1279
    %v1281 = vsub.f32 %v1276, %v1277
    %v1282 = vmul.f32 %v1281, 1.442695
    %v1283 = vpow.pop %v1282
    %v1284 = vmul.f32 %v1280, %v1268
    %v1285 = vmul.f32 %v1283, %v1275
    %v1286 = vadd.f32 %v1284, %v1285
    %v1287 = vmul.f32 %v1280, %v1270
    %v1288 = vadd.f32 %v1287, %v1283
    %v1289 = vrcp.pop %v1288
    %v1290 = vmul.f32 %v1286, %v1289
    %v1291 = vsub.f32 %v1259, %v1095
    %v1292 = vmax.f32 %v1291, %v1273
    %v1293 = vsub.f32 %v1291, %v1292
    %v1294 = vmul.f32 %v1293, 1.442695
    %v1295 = vpow.pop %v1294
    %v1296 = vsub.f32 %v1273, %v1292
    %v1297 = vmul.f32 %v1296, 1.442695
    %v1298 = vpow.pop %v1297
    %v1299 = vmul.f32 %v1295, %v1268
    %v1300 = vmul.f32 %v1298, %v1275
    %v1301 = vadd.f32 %v1299, %v1300
    %v1302 = vmul.f32 %v1295, %v1270
    %v1303 = vadd.f32 %v1302, %v1298
    %1304 = vst [vmem:[%s1272] sm:$0xff] %v1290
    %s1305 = scalar_lea.vmem [#allocation2], 48
    %v1306 = vld [vmem:[%s1305] sm:$0xff]
    %s1307 = scalar_lea.vmem [#allocation3], 48
    %v1308 = vld [vmem:[%s1307] sm:$0xff]
    %v1309 = vadd.f32 %v1102, %v1306
    %v1310 = vmax.f32 %v1309, %v1292
    %v1311 = vsub.f32 %v1292, %v1310
    %v1312 = vmul.f32 %v1311, 1.442695
    %v1313 = vpow.pop %v1312
    %v1314 = vsub.f32 %v1309, %v1310
    %v1315 = vmul.f32 %v1314, 1.442695
    %v1316 = vpow.pop %v1315
    %v1317 = vmul.f32 %v1313, %v1301
    %v1318 = vmul.f32 %v1316, %v1308
    %v1319 = vadd.f32 %v1317, %v1318
    %v1320 = vmul.f32 %v1313, %v1303
    %v1321 = vadd.f32 %v1320, %v1316
    %v1322 = vrcp.pop %v1321
    %v1323 = vmul.f32 %v1319, %v1322
    %v1324 = vsub.f32 %v1292, %v1095
    %v1325 = vmax.f32 %v1324, %v1306
    %v1326 = vsub.f32 %v1324, %v1325
    %v1327 = vmul.f32 %v1326, 1.442695
    %v1328 = vpow.pop %v1327
    %v1329 = vsub.f32 %v1306, %v1325
    %v1330 = vmul.f32 %v1329, 1.442695
    %v1331 = vpow.pop %v1330
    %v1332 = vmul.f32 %v1328, %v1301
    %v1333 = vmul.f32 %v1331, %v1308
    %v1334 = vadd.f32 %v1332, %v1333
    %v1335 = vmul.f32 %v1328, %v1303
    %v1336 = vadd.f32 %v1335, %v1331
    %1337 = vst [vmem:[%s1305] sm:$0xff] %v1323
    %s1338 = scalar_lea.vmem [#allocation2], 56
    %v1339 = vld [vmem:[%s1338] sm:$0xff]
    %s1340 = scalar_lea.vmem [#allocation3], 56
    %v1341 = vld [vmem:[%s1340] sm:$0xff]
    %v1342 = vadd.f32 %v1102, %v1339
    %v1343 = vmax.f32 %v1342, %v1325
    %v1344 = vsub.f32 %v1325, %v1343
    %v1345 = vmul.f32 %v1344, 1.442695
    %v1346 = vpow.pop %v1345
    %v1347 = vsub.f32 %v1342, %v1343
    %v1348 = vmul.f32 %v1347, 1.442695
    %v1349 = vpow.pop %v1348
    %v1350 = vmul.f32 %v1346, %v1334
    %v1351 = vmul.f32 %v1349, %v1341
    %v1352 = vadd.f32 %v1350, %v1351
    %v1353 = vmul.f32 %v1346, %v1336
    %v1354 = vadd.f32 %v1353, %v1349
    %v1355 = vrcp.pop %v1354
    %v1356 = vmul.f32 %v1352, %v1355
    %v1357 = vsub.f32 %v1325, %v1095
    %v1358 = vmax.f32 %v1357, %v1339
    %v1359 = vsub.f32 %v1357, %v1358
    %v1360 = vmul.f32 %v1359, 1.442695
    %v1361 = vpow.pop %v1360
    %v1362 = vsub.f32 %v1339, %v1358
    %v1363 = vmul.f32 %v1362, 1.442695
    %v1364 = vpow.pop %v1363
    %v1365 = vmul.f32 %v1361, %v1334
    %v1366 = vmul.f32 %v1364, %v1341
    %v1367 = vadd.f32 %v1365, %v1366
    %v1368 = vmul.f32 %v1361, %v1336
    %v1369 = vadd.f32 %v1368, %v1364
    %1370 = vst [vmem:[%s1338] sm:$0xff] %v1356
    %1371 = vst [vmem:[#allocation4] sm:$0xff] %v1367
    %1372 = vst [vmem:[%s1105] sm:$0xff] %v1369
    %1373 = vst [vmem:[%s1107] sm:$0xff] %v1358
    %v1374 = vld [vmem:[#allocation2] sm:$0xff]
    %v1375 = vld [vmem:[#allocation2 + $0x8] sm:$0xff]
    %v1376 = vld [vmem:[#allocation2 + $0x10] sm:$0xff]
    %v1377 = vld [vmem:[#allocation2 + $0x18] sm:$0xff]
    %v1378 = vld [vmem:[#allocation2 + $0x20] sm:$0xff]
    %v1379 = vld [vmem:[#allocation2 + $0x28] sm:$0xff]
    %v1380 = vld [vmem:[#allocation2 + $0x30] sm:$0xff]
    %v1381 = vld [vmem:[#allocation2 + $0x38] sm:$0xff]
    %v1382 = vmul.f32 %v1374, %v1057
    %v1383 = vmul.f32 %v1375, %v1059
    %v1384 = vmul.f32 %v1376, %v1061
    %v1385 = vmul.f32 %v1377, %v1063
    %v1386 = vmul.f32 %v1378, %v1065
    %v1387 = vmul.f32 %v1379, %v1067
    %v1388 = vmul.f32 %v1380, %v1069
    %v1389 = vmul.f32 %v1381, %v1071
    %v1390 = vpack.c.bf16 %v1383, %v1382
    %v1391 = vpack.c.bf16 %v1385, %v1384
    %v1392 = vpack.c.bf16 %v1387, %v1386
    %v1393 = vpack.c.bf16 %v1389, %v1388
    %v1394 = vld [vmem:[#allocation19] sm:$0xf]
    %v1395 = vld [vmem:[#allocation19 + $0x4] sm:$0xf]
    %v1396 = vld [vmem:[#allocation19 + $0x8] sm:$0xf]
    %v1397 = vld [vmem:[#allocation19 + $0xc] sm:$0xf]
    %v1398 = vld [vmem:[#allocation19 + $0x10] sm:$0xf]
    %v1399 = vld [vmem:[#allocation19 + $0x14] sm:$0xf]
    %v1400 = vld [vmem:[#allocation19 + $0x18] sm:$0xf]
    %v1401 = vld [vmem:[#allocation19 + $0x1c] sm:$0xf]
    %v1402 = vld [vmem:[#allocation19 + $0x20] sm:$0xf]
    %v1403 = vld [vmem:[#allocation19 + $0x24] sm:$0xf]
    %v1404 = vld [vmem:[#allocation19 + $0x28] sm:$0xf]
    %v1405 = vld [vmem:[#allocation19 + $0x2c] sm:$0xf]
    %v1406 = vld [vmem:[#allocation19 + $0x30] sm:$0xf]
    %v1407 = vld [vmem:[#allocation19 + $0x34] sm:$0xf]
    %v1408 = vld [vmem:[#allocation19 + $0x38] sm:$0xf]
    %v1409 = vld [vmem:[#allocation19 + $0x3c] sm:$0xf]
    %v1426 = vunpack.c.l.b16 %v1394
    %v1427 = vunpack.c.l.b16 %v1395
    %v1428 = vunpack.c.l.b16 %v1396
    %v1429 = vunpack.c.l.b16 %v1397
    %v1430 = vunpack.c.l.b16 %v1398
    %v1431 = vunpack.c.l.b16 %v1399
    %v1432 = vunpack.c.l.b16 %v1400
    %v1433 = vunpack.c.l.b16 %v1401
    %v1434 = vunpack.c.l.b16 %v1402
    %v1435 = vunpack.c.l.b16 %v1403
    %v1436 = vunpack.c.l.b16 %v1404
    %v1437 = vunpack.c.l.b16 %v1405
    %v1438 = vunpack.c.l.b16 %v1406
    %v1439 = vunpack.c.l.b16 %v1407
    %v1440 = vunpack.c.l.b16 %v1408
    %v1441 = vunpack.c.l.b16 %v1409
    %v1442 = vpack.c.b16 %v1427, %v1426
    %v1443 = vpack.c.b16 %v1429, %v1428
    %v1444 = vpack.c.b16 %v1431, %v1430
    %v1445 = vpack.c.b16 %v1433, %v1432
    %v1446 = vpack.c.b16 %v1435, %v1434
    %v1447 = vpack.c.b16 %v1437, %v1436
    %v1448 = vpack.c.b16 %v1439, %v1438
    %v1449 = vpack.c.b16 %v1441, %v1440
    %1458 = vmatprep.subr.bf16.mxu0 0
    %1459 = vmatpush1.bf16.msra.mxu0 %v1449
    %1460 = vmatprep.subr.bf16.mxu0 0
    %1461 = vmatpush1.bf16.msra.mxu0 %v1448
    %1462 = vmatprep.subr.bf16.mxu0 0
    %1463 = vmatpush1.bf16.msra.mxu0 %v1447
    %1464 = vmatprep.subr.bf16.mxu0 0
    %1465 = vmatpush1.bf16.msra.mxu0 %v1446
    %1466 = vmatprep.subr.bf16.mxu0 0
    %1467 = vmatpush1.bf16.msra.mxu0 %v1445
    %1468 = vmatprep.subr.bf16.mxu0 0
    %1469 = vmatpush1.bf16.msra.mxu0 %v1444
    %1470 = vmatprep.subr.bf16.mxu0 0
    %1471 = vmatpush1.bf16.msra.mxu0 %v1443
    %1472 = vmatprep.subr.bf16.mxu0 0
    %1473 = vmatpush1.bf16.msra.mxu0 %v1442
    %1474 = vmatprep.subr.bf16.mxu0 0
    %1475 = vmatpush2.bf16.msra.mxu0 0
    %1476 = vmatprep.subr.bf16.mxu0 0
    %1477 = vmatpush2.bf16.msra.mxu0 0
    %1478 = vmatprep.subr.bf16.mxu0 0
    %1479 = vmatpush2.bf16.msra.mxu0 0
    %1480 = vmatprep.subr.bf16.mxu0 0
    %1481 = vmatpush2.bf16.msra.mxu0 0
    %1482 = vmatprep.subr.bf16.mxu0 0
    %1483 = vmatpush2.bf16.msra.mxu0 0
    %1484 = vmatprep.subr.bf16.mxu0 0
    %1485 = vmatpush2.bf16.msra.mxu0 0
    %1486 = vmatprep.subr.bf16.mxu0 0
    %1487 = vmatpush2.bf16.msra.mxu0 0
    %1488 = vmatprep.subr.bf16.mxu0 0
    %1489 = vmatpush2.bf16.msra.mxu0 0
    %1490 = vmatprep.mubr.bf16.mxu0 0
    %1491 = vmatmul.mubr.bf16.gmra.mxu0 %v1390
    %v1492 = vpop.f32.mrf.mxu0
    %v1493 = vadd.f32 0.0, %v1492
    %v1494 = vpop.f32.mrf.mxu0
    %v1495 = vpop.f32.mrf.mxu0
    %v1496 = vadd.f32 0.0, %v1495
    %v1497 = vpop.f32.mrf.mxu0
    %1498 = vmatprep.mubr.bf16.mxu0 0
    %1499 = vmatmul.mubr.bf16.gmra.mxu0 %v1391
    %v1500 = vpop.f32.mrf.mxu0
    %v1501 = vadd.f32 0.0, %v1500
    %v1502 = vpop.f32.mrf.mxu0
    %v1503 = vpop.f32.mrf.mxu0
    %v1504 = vadd.f32 0.0, %v1503
    %v1505 = vpop.f32.mrf.mxu0
    %1506 = vmatprep.mubr.bf16.mxu0 0
    %1507 = vmatmul.mubr.bf16.gmra.mxu0 %v1392
    %v1508 = vpop.f32.mrf.mxu0
    %v1509 = vadd.f32 0.0, %v1508
    %v1510 = vpop.f32.mrf.mxu0
    %v1511 = vpop.f32.mrf.mxu0
    %v1512 = vadd.f32 0.0, %v1511
    %v1513 = vpop.f32.mrf.mxu0
    %1514 = vmatprep.mubr.bf16.mxu0 0
    %1515 = vmatmul.mubr.bf16.gmra.mxu0 %v1393
    %v1516 = vpop.f32.mrf.mxu0
    %v1517 = vadd.f32 0.0, %v1516
    %v1518 = vpop.f32.mrf.mxu0
    %v1519 = vpop.f32.mrf.mxu0
    %v1520 = vadd.f32 0.0, %v1519
    %v1521 = vpop.f32.mrf.mxu0
    %1522 = vdwg.mxu0
    %v1523 = vadd.f32 %v375, %v1493
    %v1524 = vadd.f32 %v376, %v1496
    %v1525 = vadd.f32 %v377, %v1501
    %v1526 = vadd.f32 %v378, %v1504
    %v1527 = vadd.f32 %v379, %v1509
    %v1528 = vadd.f32 %v380, %v1512
    %v1529 = vadd.f32 %v381, %v1517
    %v1530 = vadd.f32 %v382, %v1520
    %v1531 = vld [vmem:[%s8] sm:$0x1]
    %v1532 = vld [vmem:[%s9] sm:$0x1]
    %1533 = vadd.xlane.f32.xlu0 %v1523
    %v1534 = vpop.xlane.xlu0 %1533
    %1535 = vadd.xlane.f32.xlu0 %v1524
    %v1536 = vpop.xlane.xlu0 %1535
    %1537 = vadd.xlane.f32.xlu0 %v1525
    %v1538 = vpop.xlane.xlu0 %1537
    %1539 = vadd.xlane.f32.xlu0 %v1526
    %v1540 = vpop.xlane.xlu0 %1539
    %1541 = vadd.xlane.f32.xlu0 %v1527
    %v1542 = vpop.xlane.xlu0 %1541
    %1543 = vadd.xlane.f32.xlu0 %v1528
    %v1544 = vpop.xlane.xlu0 %1543
    %1545 = vadd.xlane.f32.xlu0 %v1529
    %v1546 = vpop.xlane.xlu0 %1545
    %1547 = vadd.xlane.f32.xlu0 %v1530
    %v1548 = vpop.xlane.xlu0 %1547
    %v1549 = vmul.f32 %v1534, 0.03125
    %v1550 = vmul.f32 %v1536, 0.03125
    %v1551 = vmul.f32 %v1538, 0.03125
    %v1552 = vmul.f32 %v1540, 0.03125
    %v1553 = vmul.f32 %v1542, 0.03125
    %v1554 = vmul.f32 %v1544, 0.03125
    %v1555 = vmul.f32 %v1546, 0.03125
    %v1556 = vmul.f32 %v1548, 0.03125
    %v1557 = vsub.f32 %v1523, %v1549
    %v1558 = vsub.f32 %v1524, %v1550
    %v1559 = vsub.f32 %v1525, %v1551
    %v1560 = vsub.f32 %v1526, %v1552
    %v1561 = vsub.f32 %v1527, %v1553
    %v1562 = vsub.f32 %v1528, %v1554
    %v1563 = vsub.f32 %v1529, %v1555
    %v1564 = vsub.f32 %v1530, %v1556
    %v1565 = vmul.f32 %v1557, %v248
    %v1566 = vmul.f32 %v1558, %v248
    %v1567 = vmul.f32 %v1559, %v248
    %v1568 = vmul.f32 %v1560, %v248
    %v1569 = vmul.f32 %v1561, %v248
    %v1570 = vmul.f32 %v1562, %v248
    %v1571 = vmul.f32 %v1563, %v248
    %v1572 = vmul.f32 %v1564, %v248
    %v1573 = vmul.f32 %v1565, %v1565
    %v1574 = vmul.f32 %v1566, %v1566
    %v1575 = vmul.f32 %v1567, %v1567
    %v1576 = vmul.f32 %v1568, %v1568
    %v1577 = vmul.f32 %v1569, %v1569
    %v1578 = vmul.f32 %v1570, %v1570
    %v1579 = vmul.f32 %v1571, %v1571
    %v1580 = vmul.f32 %v1572, %v1572
    %1581 = vadd.xlane.f32.xlu0 %v1573
    %v1582 = vpop.xlane.xlu0 %1581
    %1583 = vadd.xlane.f32.xlu0 %v1574
    %v1584 = vpop.xlane.xlu0 %1583
    %1585 = vadd.xlane.f32.xlu0 %v1575
    %v1586 = vpop.xlane.xlu0 %1585
    %1587 = vadd.xlane.f32.xlu0 %v1576
    %v1588 = vpop.xlane.xlu0 %1587
    %1589 = vadd.xlane.f32.xlu0 %v1577
    %v1590 = vpop.xlane.xlu0 %1589
    %1591 = vadd.xlane.f32.xlu0 %v1578
    %v1592 = vpop.xlane.xlu0 %1591
    %1593 = vadd.xlane.f32.xlu0 %v1579
    %v1594 = vpop.xlane.xlu0 %1593
    %1595 = vadd.xlane.f32.xlu0 %v1580
    %v1596 = vpop.xlane.xlu0 %1595
    %v1597 = vmul.f32 %v1582, 0.03125
    %v1598 = vmul.f32 %v1584, 0.03125
    %v1599 = vmul.f32 %v1586, 0.03125
    %v1600 = vmul.f32 %v1588, 0.03125
    %v1601 = vmul.f32 %v1590, 0.03125
    %v1602 = vmul.f32 %v1592, 0.03125
    %v1603 = vmul.f32 %v1594, 0.03125
    %v1604 = vmul.f32 %v1596, 0.03125
    %v1605 = vadd.f32 %v1597, 1e-05
    %v1606 = vadd.f32 %v1598, 1e-05
    %v1607 = vadd.f32 %v1599, 1e-05
    %v1608 = vadd.f32 %v1600, 1e-05
    %v1609 = vadd.f32 %v1601, 1e-05
    %v1610 = vadd.f32 %v1602, 1e-05
    %v1611 = vadd.f32 %v1603, 1e-05
    %v1612 = vadd.f32 %v1604, 1e-05
    %v1613 = vrsqrt.pop %v1605
    %v1614 = vrsqrt.pop %v1606
    %v1615 = vrsqrt.pop %v1607
    %v1616 = vrsqrt.pop %v1608
    %v1617 = vrsqrt.pop %v1609
    %v1618 = vrsqrt.pop %v1610
    %v1619 = vrsqrt.pop %v1611
    %v1620 = vrsqrt.pop %v1612
    %v1621 = vmul.f32 %v1565, %v1613
    %v1622 = vmul.f32 %v1566, %v1614
    %v1623 = vmul.f32 %v1567, %v1615
    %v1624 = vmul.f32 %v1568, %v1616
    %v1625 = vmul.f32 %v1569, %v1617
    %v1626 = vmul.f32 %v1570, %v1618
    %v1627 = vmul.f32 %v1571, %v1619
    %v1628 = vmul.f32 %v1572, %v1620
    %v1630 = vlaneseq
    %v1631 = vshrl.u32 %v1630, 7
    %v1632 = vsub.s32 0, %v1631
    %v1633 = vrot.slane %v1531, %v1632
    %v1635 = vmul.f32 %v1621, %v1633
    %v1636 = vmul.f32 %v1622, %v1633
    %v1637 = vmul.f32 %v1623, %v1633
    %v1638 = vmul.f32 %v1624, %v1633
    %v1639 = vmul.f32 %v1625, %v1633
    %v1640 = vmul.f32 %v1626, %v1633
    %v1641 = vmul.f32 %v1627, %v1633
    %v1642 = vmul.f32 %v1628, %v1633
    %v1644 = vlaneseq
    %v1645 = vshrl.u32 %v1644, 7
    %v1646 = vsub.s32 0, %v1645
    %v1647 = vrot.slane %v1532, %v1646
    %v1649 = vadd.f32 %v1635, %v1647
    %v1650 = vadd.f32 %v1636, %v1647
    %v1651 = vadd.f32 %v1637, %v1647
    %v1652 = vadd.f32 %v1638, %v1647
    %v1653 = vadd.f32 %v1639, %v1647
    %v1654 = vadd.f32 %v1640, %v1647
    %v1655 = vadd.f32 %v1641, %v1647
    %v1656 = vadd.f32 %v1642, %v1647
    %v1657 = vld [vmem:[#allocation6] sm:$0xff]
    %1658 = vst [vmem:[#allocation6] sm:$0xff] %v1656
    %v1659 = vld [vmem:[%s19] sm:$0x1]
    %v1660 = vld [vmem:[%s20] sm:$0x1]
    %v1662 = vlaneseq
    %v1663 = vshrl.u32 %v1662, 7
    %v1664 = vsub.s32 0, %v1663
    %v1665 = vrot.slane %v1659, %v1664
    %v1667 = vmul.f32 %v1649, %v1665
    %v1668 = vmul.f32 %v1650, %v1665
    %v1669 = vmul.f32 %v1651, %v1665
    %v1670 = vmul.f32 %v1652, %v1665
    %v1671 = vmul.f32 %v1653, %v1665
    %v1672 = vmul.f32 %v1654, %v1665
    %v1673 = vmul.f32 %v1655, %v1665
    %v1674 = vmul.f32 %v1656, %v1665
    %v1675 = vsub.f32 1.0, %v1659
    %v1677 = vlaneseq
    %v1678 = vshrl.u32 %v1677, 7
    %v1679 = vsub.s32 0, %v1678
    %v1680 = vrot.slane %v1675, %v1679
    %v1682 = vmul.f32 %v1657, %v1680
    %v1683 = vmul.f32 %v1649, %v1680
    %v1684 = vmul.f32 %v1650, %v1680
    %v1685 = vmul.f32 %v1651, %v1680
    %v1686 = vmul.f32 %v1652, %v1680
    %v1687 = vmul.f32 %v1653, %v1680
    %v1688 = vmul.f32 %v1654, %v1680
    %v1689 = vmul.f32 %v1655, %v1680
    %v1690 = vadd.f32 %v1667, %v1682
    %v1691 = vadd.f32 %v1668, %v1683
    %v1692 = vadd.f32 %v1669, %v1684
    %v1693 = vadd.f32 %v1670, %v1685
    %v1694 = vadd.f32 %v1671, %v1686
    %v1695 = vadd.f32 %v1672, %v1687
    %v1696 = vadd.f32 %v1673, %v1688
    %v1697 = vadd.f32 %v1674, %v1689
    %v1699 = vlaneseq
    %v1700 = vshrl.u32 %v1699, 7
    %v1701 = vsub.s32 0, %v1700
    %v1702 = vrot.slane %v1660, %v1701
    %v1704 = vmul.f32 %v1649, %v1702
    %v1705 = vmul.f32 %v1650, %v1702
    %v1706 = vmul.f32 %v1651, %v1702
    %v1707 = vmul.f32 %v1652, %v1702
    %v1708 = vmul.f32 %v1653, %v1702
    %v1709 = vmul.f32 %v1654, %v1702
    %v1710 = vmul.f32 %v1655, %v1702
    %v1711 = vmul.f32 %v1656, %v1702
    %v1712 = vsub.f32 1.0, %v1660
    %v1714 = vlaneseq
    %v1715 = vshrl.u32 %v1714, 7
    %v1716 = vsub.s32 0, %v1715
    %v1717 = vrot.slane %v1712, %v1716
    %v1719 = vmul.f32 %v1657, %v1717
    %v1720 = vmul.f32 %v1649, %v1717
    %v1721 = vmul.f32 %v1650, %v1717
    %v1722 = vmul.f32 %v1651, %v1717
    %v1723 = vmul.f32 %v1652, %v1717
    %v1724 = vmul.f32 %v1653, %v1717
    %v1725 = vmul.f32 %v1654, %v1717
    %v1726 = vmul.f32 %v1655, %v1717
    %v1727 = vadd.f32 %v1704, %v1719
    %v1728 = vadd.f32 %v1705, %v1720
    %v1729 = vadd.f32 %v1706, %v1721
    %v1730 = vadd.f32 %v1707, %v1722
    %v1731 = vadd.f32 %v1708, %v1723
    %v1732 = vadd.f32 %v1709, %v1724
    %v1733 = vadd.f32 %v1710, %v1725
    %v1734 = vadd.f32 %v1711, %v1726
    %v1735 = vpack.c.bf16 %v1691, %v1690
    %v1736 = vpack.c.bf16 %v1693, %v1692
    %v1737 = vpack.c.bf16 %v1695, %v1694
    %v1738 = vpack.c.bf16 %v1697, %v1696
    %v1739 = vld [vmem:[#allocation21] sm:$0xf]
    %v1740 = vld [vmem:[#allocation21 + $0x4] sm:$0xf]
    %v1741 = vld [vmem:[#allocation21 + $0x8] sm:$0xf]
    %v1742 = vld [vmem:[#allocation21 + $0xc] sm:$0xf]
    %v1743 = vld [vmem:[#allocation21 + $0x10] sm:$0xf]
    %v1744 = vld [vmem:[#allocation21 + $0x14] sm:$0xf]
    %v1745 = vld [vmem:[#allocation21 + $0x18] sm:$0xf]
    %v1746 = vld [vmem:[#allocation21 + $0x1c] sm:$0xf]
    %v1747 = vld [vmem:[#allocation21 + $0x20] sm:$0xf]
    %v1748 = vld [vmem:[#allocation21 + $0x24] sm:$0xf]
    %v1749 = vld [vmem:[#allocation21 + $0x28] sm:$0xf]
    %v1750 = vld [vmem:[#allocation21 + $0x2c] sm:$0xf]
    %v1751 = vld [vmem:[#allocation21 + $0x30] sm:$0xf]
    %v1752 = vld [vmem:[#allocation21 + $0x34] sm:$0xf]
    %v1753 = vld [vmem:[#allocation21 + $0x38] sm:$0xf]
    %v1754 = vld [vmem:[#allocation21 + $0x3c] sm:$0xf]
    %v1771 = vunpack.c.l.b16 %v1739
    %v1772 = vunpack.c.l.b16 %v1740
    %v1773 = vunpack.c.l.b16 %v1741
    %v1774 = vunpack.c.l.b16 %v1742
    %v1775 = vunpack.c.l.b16 %v1743
    %v1776 = vunpack.c.l.b16 %v1744
    %v1777 = vunpack.c.l.b16 %v1745
    %v1778 = vunpack.c.l.b16 %v1746
    %v1779 = vunpack.c.l.b16 %v1747
    %v1780 = vunpack.c.l.b16 %v1748
    %v1781 = vunpack.c.l.b16 %v1749
    %v1782 = vunpack.c.l.b16 %v1750
    %v1783 = vunpack.c.l.b16 %v1751
    %v1784 = vunpack.c.l.b16 %v1752
    %v1785 = vunpack.c.l.b16 %v1753
    %v1786 = vunpack.c.l.b16 %v1754
    %v1787 = vpack.c.b16 %v1772, %v1771
    %v1788 = vpack.c.b16 %v1774, %v1773
    %v1789 = vpack.c.b16 %v1776, %v1775
    %v1790 = vpack.c.b16 %v1778, %v1777
    %v1791 = vpack.c.b16 %v1780, %v1779
    %v1792 = vpack.c.b16 %v1782, %v1781
    %v1793 = vpack.c.b16 %v1784, %v1783
    %v1794 = vpack.c.b16 %v1786, %v1785
    %1803 = vmatprep.subr.bf16.mxu0 0
    %1804 = vmatpush1.bf16.msra.mxu0 %v1794
    %1805 = vmatprep.subr.bf16.mxu0 0
    %1806 = vmatpush1.bf16.msra.mxu0 %v1793
    %1807 = vmatprep.subr.bf16.mxu0 0
    %1808 = vmatpush1.bf16.msra.mxu0 %v1792
    %1809 = vmatprep.subr.bf16.mxu0 0
    %1810 = vmatpush1.bf16.msra.mxu0 %v1791
    %1811 = vmatprep.subr.bf16.mxu0 0
    %1812 = vmatpush1.bf16.msra.mxu0 %v1790
    %1813 = vmatprep.subr.bf16.mxu0 0
    %1814 = vmatpush1.bf16.msra.mxu0 %v1789
    %1815 = vmatprep.subr.bf16.mxu0 0
    %1816 = vmatpush1.bf16.msra.mxu0 %v1788
    %1817 = vmatprep.subr.bf16.mxu0 0
    %1818 = vmatpush1.bf16.msra.mxu0 %v1787
    %1819 = vmatprep.subr.bf16.mxu0 0
    %1820 = vmatpush2.bf16.msra.mxu0 0
    %1821 = vmatprep.subr.bf16.mxu0 0
    %1822 = vmatpush2.bf16.msra.mxu0 0
    %1823 = vmatprep.subr.bf16.mxu0 0
    %1824 = vmatpush2.bf16.msra.mxu0 0
    %1825 = vmatprep.subr.bf16.mxu0 0
    %1826 = vmatpush2.bf16.msra.mxu0 0
    %1827 = vmatprep.subr.bf16.mxu0 0
    %1828 = vmatpush2.bf16.msra.mxu0 0
    %1829 = vmatprep.subr.bf16.mxu0 0
    %1830 = vmatpush2.bf16.msra.mxu0 0
    %1831 = vmatprep.subr.bf16.mxu0 0
    %1832 = vmatpush2.bf16.msra.mxu0 0
    %1833 = vmatprep.subr.bf16.mxu0 0
    %1834 = vmatpush2.bf16.msra.mxu0 0
    %1835 = vmatprep.mubr.bf16.mxu0 0
    %1836 = vmatmul.mubr.bf16.gmra.mxu0 %v1735
    %v1837 = vpop.f32.mrf.mxu0
    %v1838 = vadd.f32 0.0, %v1837
    %v1839 = vpop.f32.mrf.mxu0
    %v1840 = vpop.f32.mrf.mxu0
    %v1841 = vadd.f32 0.0, %v1840
    %v1842 = vpop.f32.mrf.mxu0
    %1843 = vmatprep.mubr.bf16.mxu0 0
    %1844 = vmatmul.mubr.bf16.gmra.mxu0 %v1736
    %v1845 = vpop.f32.mrf.mxu0
    %v1846 = vadd.f32 0.0, %v1845
    %v1847 = vpop.f32.mrf.mxu0
    %v1848 = vpop.f32.mrf.mxu0
    %v1849 = vadd.f32 0.0, %v1848
    %v1850 = vpop.f32.mrf.mxu0
    %1851 = vmatprep.mubr.bf16.mxu0 0
    %1852 = vmatmul.mubr.bf16.gmra.mxu0 %v1737
    %v1853 = vpop.f32.mrf.mxu0
    %v1854 = vadd.f32 0.0, %v1853
    %v1855 = vpop.f32.mrf.mxu0
    %v1856 = vpop.f32.mrf.mxu0
    %v1857 = vadd.f32 0.0, %v1856
    %v1858 = vpop.f32.mrf.mxu0
    %1859 = vmatprep.mubr.bf16.mxu0 0
    %1860 = vmatmul.mubr.bf16.gmra.mxu0 %v1738
    %v1861 = vpop.f32.mrf.mxu0
    %v1862 = vadd.f32 0.0, %v1861
    %v1863 = vpop.f32.mrf.mxu0
    %v1864 = vpop.f32.mrf.mxu0
    %v1865 = vadd.f32 0.0, %v1864
    %v1866 = vpop.f32.mrf.mxu0
    %1867 = vdwg.mxu0
    %v1868 = vpack.c.bf16 %v1728, %v1727
    %v1869 = vpack.c.bf16 %v1730, %v1729
    %v1870 = vpack.c.bf16 %v1732, %v1731
    %v1871 = vpack.c.bf16 %v1734, %v1733
    %v1872 = vld [vmem:[#allocation22] sm:$0xf]
    %v1873 = vld [vmem:[#allocation22 + $0x4] sm:$0xf]
    %v1874 = vld [vmem:[#allocation22 + $0x8] sm:$0xf]
    %v1875 = vld [vmem:[#allocation22 + $0xc] sm:$0xf]
    %v1876 = vld [vmem:[#allocation22 + $0x10] sm:$0xf]
    %v1877 = vld [vmem:[#allocation22 + $0x14] sm:$0xf]
    %v1878 = vld [vmem:[#allocation22 + $0x18] sm:$0xf]
    %v1879 = vld [vmem:[#allocation22 + $0x1c] sm:$0xf]
    %v1880 = vld [vmem:[#allocation22 + $0x20] sm:$0xf]
    %v1881 = vld [vmem:[#allocation22 + $0x24] sm:$0xf]
    %v1882 = vld [vmem:[#allocation22 + $0x28] sm:$0xf]
    %v1883 = vld [vmem:[#allocation22 + $0x2c] sm:$0xf]
    %v1884 = vld [vmem:[#allocation22 + $0x30] sm:$0xf]
    %v1885 = vld [vmem:[#allocation22 + $0x34] sm:$0xf]
    %v1886 = vld [vmem:[#allocation22 + $0x38] sm:$0xf]
    %v1887 = vld [vmem:[#allocation22 + $0x3c] sm:$0xf]
    %v1904 = vunpack.c.l.b16 %v1872
    %v1905 = vunpack.c.l.b16 %v1873
    %v1906 = vunpack.c.l.b16 %v1874
    %v1907 = vunpack.c.l.b16 %v1875
    %v1908 = vunpack.c.l.b16 %v1876
    %v1909 = vunpack.c.l.b16 %v1877
    %v1910 = vunpack.c.l.b16 %v1878
    %v1911 = vunpack.c.l.b16 %v1879
    %v1912 = vunpack.c.l.b16 %v1880
    %v1913 = vunpack.c.l.b16 %v1881
    %v1914 = vunpack.c.l.b16 %v1882
    %v1915 = vunpack.c.l.b16 %v1883
    %v1916 = vunpack.c.l.b16 %v1884
    %v1917 = vunpack.c.l.b16 %v1885
    %v1918 = vunpack.c.l.b16 %v1886
    %v1919 = vunpack.c.l.b16 %v1887
    %v1920 = vpack.c.b16 %v1905, %v1904
    %v1921 = vpack.c.b16 %v1907, %v1906
    %v1922 = vpack.c.b16 %v1909, %v1908
    %v1923 = vpack.c.b16 %v1911, %v1910
    %v1924 = vpack.c.b16 %v1913, %v1912
    %v1925 = vpack.c.b16 %v1915, %v1914
    %v1926 = vpack.c.b16 %v1917, %v1916
    %v1927 = vpack.c.b16 %v1919, %v1918
    %1936 = vmatprep.subr.bf16.mxu0 0
    %1937 = vmatpush1.bf16.msra.mxu0 %v1927
    %1938 = vmatprep.subr.bf16.mxu0 0
    %1939 = vmatpush1.bf16.msra.mxu0 %v1926
    %1940 = vmatprep.subr.bf16.mxu0 0
    %1941 = vmatpush1.bf16.msra.mxu0 %v1925
    %1942 = vmatprep.subr.bf16.mxu0 0
    %1943 = vmatpush1.bf16.msra.mxu0 %v1924
    %1944 = vmatprep.subr.bf16.mxu0 0
    %1945 = vmatpush1.bf16.msra.mxu0 %v1923
    %1946 = vmatprep.subr.bf16.mxu0 0
    %1947 = vmatpush1.bf16.msra.mxu0 %v1922
    %1948 = vmatprep.subr.bf16.mxu0 0
    %1949 = vmatpush1.bf16.msra.mxu0 %v1921
    %1950 = vmatprep.subr.bf16.mxu0 0
    %1951 = vmatpush1.bf16.msra.mxu0 %v1920
    %1952 = vmatprep.subr.bf16.mxu0 0
    %1953 = vmatpush2.bf16.msra.mxu0 0
    %1954 = vmatprep.subr.bf16.mxu0 0
    %1955 = vmatpush2.bf16.msra.mxu0 0
    %1956 = vmatprep.subr.bf16.mxu0 0
    %1957 = vmatpush2.bf16.msra.mxu0 0
    %1958 = vmatprep.subr.bf16.mxu0 0
    %1959 = vmatpush2.bf16.msra.mxu0 0
    %1960 = vmatprep.subr.bf16.mxu0 0
    %1961 = vmatpush2.bf16.msra.mxu0 0
    %1962 = vmatprep.subr.bf16.mxu0 0
    %1963 = vmatpush2.bf16.msra.mxu0 0
    %1964 = vmatprep.subr.bf16.mxu0 0
    %1965 = vmatpush2.bf16.msra.mxu0 0
    %1966 = vmatprep.subr.bf16.mxu0 0
    %1967 = vmatpush2.bf16.msra.mxu0 0
    %1968 = vmatprep.mubr.bf16.mxu0 0
    %1969 = vmatmul.mubr.bf16.gmra.mxu0 %v1868
    %v1970 = vpop.f32.mrf.mxu0
    %v1971 = vadd.f32 0.0, %v1970
    %v1972 = vpop.f32.mrf.mxu0
    %v1973 = vpop.f32.mrf.mxu0
    %v1974 = vadd.f32 0.0, %v1973
    %v1975 = vpop.f32.mrf.mxu0
    %1976 = vmatprep.mubr.bf16.mxu0 0
    %1977 = vmatmul.mubr.bf16.gmra.mxu0 %v1869
    %v1978 = vpop.f32.mrf.mxu0
    %v1979 = vadd.f32 0.0, %v1978
    %v1980 = vpop.f32.mrf.mxu0
    %v1981 = vpop.f32.mrf.mxu0
    %v1982 = vadd.f32 0.0, %v1981
    %v1983 = vpop.f32.mrf.mxu0
    %1984 = vmatprep.mubr.bf16.mxu0 0
    %1985 = vmatmul.mubr.bf16.gmra.mxu0 %v1870
    %v1986 = vpop.f32.mrf.mxu0
    %v1987 = vadd.f32 0.0, %v1986
    %v1988 = vpop.f32.mrf.mxu0
    %v1989 = vpop.f32.mrf.mxu0
    %v1990 = vadd.f32 0.0, %v1989
    %v1991 = vpop.f32.mrf.mxu0
    %1992 = vmatprep.mubr.bf16.mxu0 0
    %1993 = vmatmul.mubr.bf16.gmra.mxu0 %v1871
    %v1994 = vpop.f32.mrf.mxu0
    %v1995 = vadd.f32 0.0, %v1994
    %v1996 = vpop.f32.mrf.mxu0
    %v1997 = vpop.f32.mrf.mxu0
    %v1998 = vadd.f32 0.0, %v1997
    %v1999 = vpop.f32.mrf.mxu0
    %2000 = vdwg.mxu0
    %v2001 = vmax.f32 %v1838, 0.0
    %v2002 = vmax.f32 %v1841, 0.0
    %v2003 = vmax.f32 %v1846, 0.0
    %v2004 = vmax.f32 %v1849, 0.0
    %v2005 = vmax.f32 %v1854, 0.0
    %v2006 = vmax.f32 %v1857, 0.0
    %v2007 = vmax.f32 %v1862, 0.0
    %v2008 = vmax.f32 %v1865, 0.0
    %v2009 = vmul.f32 %v2001, %v2001
    %v2010 = vmul.f32 %v2002, %v2002
    %v2011 = vmul.f32 %v2003, %v2003
    %v2012 = vmul.f32 %v2004, %v2004
    %v2013 = vmul.f32 %v2005, %v2005
    %v2014 = vmul.f32 %v2006, %v2006
    %v2015 = vmul.f32 %v2007, %v2007
    %v2016 = vmul.f32 %v2008, %v2008
    %v2017 = vpack.c.bf16 %v2010, %v2009
    %v2018 = vpack.c.bf16 %v2012, %v2011
    %v2019 = vpack.c.bf16 %v2014, %v2013
    %v2020 = vpack.c.bf16 %v2016, %v2015
    %v2021 = vld [vmem:[#allocation24] sm:$0xf]
    %v2022 = vld [vmem:[#allocation24 + $0x4] sm:$0xf]
    %v2023 = vld [vmem:[#allocation24 + $0x8] sm:$0xf]
    %v2024 = vld [vmem:[#allocation24 + $0xc] sm:$0xf]
    %v2025 = vld [vmem:[#allocation24 + $0x10] sm:$0xf]
    %v2026 = vld [vmem:[#allocation24 + $0x14] sm:$0xf]
    %v2027 = vld [vmem:[#allocation24 + $0x18] sm:$0xf]
    %v2028 = vld [vmem:[#allocation24 + $0x1c] sm:$0xf]
    %v2029 = vld [vmem:[#allocation24 + $0x20] sm:$0xf]
    %v2030 = vld [vmem:[#allocation24 + $0x24] sm:$0xf]
    %v2031 = vld [vmem:[#allocation24 + $0x28] sm:$0xf]
    %v2032 = vld [vmem:[#allocation24 + $0x2c] sm:$0xf]
    %v2033 = vld [vmem:[#allocation24 + $0x30] sm:$0xf]
    %v2034 = vld [vmem:[#allocation24 + $0x34] sm:$0xf]
    %v2035 = vld [vmem:[#allocation24 + $0x38] sm:$0xf]
    %v2036 = vld [vmem:[#allocation24 + $0x3c] sm:$0xf]
    %v2053 = vunpack.c.l.b16 %v2021
    %v2054 = vunpack.c.l.b16 %v2022
    %v2055 = vunpack.c.l.b16 %v2023
    %v2056 = vunpack.c.l.b16 %v2024
    %v2057 = vunpack.c.l.b16 %v2025
    %v2058 = vunpack.c.l.b16 %v2026
    %v2059 = vunpack.c.l.b16 %v2027
    %v2060 = vunpack.c.l.b16 %v2028
    %v2061 = vunpack.c.l.b16 %v2029
    %v2062 = vunpack.c.l.b16 %v2030
    %v2063 = vunpack.c.l.b16 %v2031
    %v2064 = vunpack.c.l.b16 %v2032
    %v2065 = vunpack.c.l.b16 %v2033
    %v2066 = vunpack.c.l.b16 %v2034
    %v2067 = vunpack.c.l.b16 %v2035
    %v2068 = vunpack.c.l.b16 %v2036
    %v2069 = vpack.c.b16 %v2054, %v2053
    %v2070 = vpack.c.b16 %v2056, %v2055
    %v2071 = vpack.c.b16 %v2058, %v2057
    %v2072 = vpack.c.b16 %v2060, %v2059
    %v2073 = vpack.c.b16 %v2062, %v2061
    %v2074 = vpack.c.b16 %v2064, %v2063
    %v2075 = vpack.c.b16 %v2066, %v2065
    %v2076 = vpack.c.b16 %v2068, %v2067
    %2085 = vmatprep.subr.bf16.mxu0 0
    %2086 = vmatpush1.bf16.msra.mxu0 %v2076
    %2087 = vmatprep.subr.bf16.mxu0 0
    %2088 = vmatpush1.bf16.msra.mxu0 %v2075
    %2089 = vmatprep.subr.bf16.mxu0 0
    %2090 = vmatpush1.bf16.msra.mxu0 %v2074
    %2091 = vmatprep.subr.bf16.mxu0 0
    %2092 = vmatpush1.bf16.msra.mxu0 %v2073
    %2093 = vmatprep.subr.bf16.mxu0 0
    %2094 = vmatpush1.bf16.msra.mxu0 %v2072
    %2095 = vmatprep.subr.bf16.mxu0 0
    %2096 = vmatpush1.bf16.msra.mxu0 %v2071
    %2097 = vmatprep.subr.bf16.mxu0 0
    %2098 = vmatpush1.bf16.msra.mxu0 %v2070
    %2099 = vmatprep.subr.bf16.mxu0 0
    %2100 = vmatpush1.bf16.msra.mxu0 %v2069
    %2101 = vmatprep.subr.bf16.mxu0 0
    %2102 = vmatpush2.bf16.msra.mxu0 0
    %2103 = vmatprep.subr.bf16.mxu0 0
    %2104 = vmatpush2.bf16.msra.mxu0 0
    %2105 = vmatprep.subr.bf16.mxu0 0
    %2106 = vmatpush2.bf16.msra.mxu0 0
    %2107 = vmatprep.subr.bf16.mxu0 0
    %2108 = vmatpush2.bf16.msra.mxu0 0
    %2109 = vmatprep.subr.bf16.mxu0 0
    %2110 = vmatpush2.bf16.msra.mxu0 0
    %2111 = vmatprep.subr.bf16.mxu0 0
    %2112 = vmatpush2.bf16.msra.mxu0 0
    %2113 = vmatprep.subr.bf16.mxu0 0
    %2114 = vmatpush2.bf16.msra.mxu0 0
    %2115 = vmatprep.subr.bf16.mxu0 0
    %2116 = vmatpush2.bf16.msra.mxu0 0
    %2117 = vmatprep.mubr.bf16.mxu0 0
    %2118 = vmatmul.mubr.bf16.gmra.mxu0 %v2017
    %v2119 = vpop.f32.mrf.mxu0
    %v2120 = vadd.f32 0.0, %v2119
    %v2121 = vpop.f32.mrf.mxu0
    %v2122 = vpop.f32.mrf.mxu0
    %v2123 = vadd.f32 0.0, %v2122
    %v2124 = vpop.f32.mrf.mxu0
    %2125 = vmatprep.mubr.bf16.mxu0 0
    %2126 = vmatmul.mubr.bf16.gmra.mxu0 %v2018
    %v2127 = vpop.f32.mrf.mxu0
    %v2128 = vadd.f32 0.0, %v2127
    %v2129 = vpop.f32.mrf.mxu0
    %v2130 = vpop.f32.mrf.mxu0
    %v2131 = vadd.f32 0.0, %v2130
    %v2132 = vpop.f32.mrf.mxu0
    %2133 = vmatprep.mubr.bf16.mxu0 0
    %2134 = vmatmul.mubr.bf16.gmra.mxu0 %v2019
    %v2135 = vpop.f32.mrf.mxu0
    %v2136 = vadd.f32 0.0, %v2135
    %v2137 = vpop.f32.mrf.mxu0
    %v2138 = vpop.f32.mrf.mxu0
    %v2139 = vadd.f32 0.0, %v2138
    %v2140 = vpop.f32.mrf.mxu0
    %2141 = vmatprep.mubr.bf16.mxu0 0
    %2142 = vmatmul.mubr.bf16.gmra.mxu0 %v2020
    %v2143 = vpop.f32.mrf.mxu0
    %v2144 = vadd.f32 0.0, %v2143
    %v2145 = vpop.f32.mrf.mxu0
    %v2146 = vpop.f32.mrf.mxu0
    %v2147 = vadd.f32 0.0, %v2146
    %v2148 = vpop.f32.mrf.mxu0
    %2149 = vdwg.mxu0
    %v2150 = vxor.u32 %v1971, 2147483648
    %v2151 = vxor.u32 %v1974, 2147483648
    %v2152 = vxor.u32 %v1979, 2147483648
    %v2153 = vxor.u32 %v1982, 2147483648
    %v2154 = vxor.u32 %v1987, 2147483648
    %v2155 = vxor.u32 %v1990, 2147483648
    %v2156 = vxor.u32 %v1995, 2147483648
    %v2157 = vxor.u32 %v1998, 2147483648
    %v2158 = vmul.f32 %v2150, 1.442695
    %v2159 = vpow.pop %v2158
    %v2160 = vmul.f32 %v2151, 1.442695
    %v2161 = vpow.pop %v2160
    %v2162 = vmul.f32 %v2152, 1.442695
    %v2163 = vpow.pop %v2162
    %v2164 = vmul.f32 %v2153, 1.442695
    %v2165 = vpow.pop %v2164
    %v2166 = vmul.f32 %v2154, 1.442695
    %v2167 = vpow.pop %v2166
    %v2168 = vmul.f32 %v2155, 1.442695
    %v2169 = vpow.pop %v2168
    %v2170 = vmul.f32 %v2156, 1.442695
    %v2171 = vpow.pop %v2170
    %v2172 = vmul.f32 %v2157, 1.442695
    %v2173 = vpow.pop %v2172
    %v2174 = vadd.f32 %v2159, 1.0
    %v2175 = vadd.f32 %v2161, 1.0
    %v2176 = vadd.f32 %v2163, 1.0
    %v2177 = vadd.f32 %v2165, 1.0
    %v2178 = vadd.f32 %v2167, 1.0
    %v2179 = vadd.f32 %v2169, 1.0
    %v2180 = vadd.f32 %v2171, 1.0
    %v2181 = vadd.f32 %v2173, 1.0
    %v2182 = vrcp.pop %v2174
    %v2183 = vmul.f32 1.0, %v2182
    %v2184 = vrcp.pop %v2175
    %v2185 = vmul.f32 1.0, %v2184
    %v2186 = vrcp.pop %v2176
    %v2187 = vmul.f32 1.0, %v2186
    %v2188 = vrcp.pop %v2177
    %v2189 = vmul.f32 1.0, %v2188
    %v2190 = vrcp.pop %v2178
    %v2191 = vmul.f32 1.0, %v2190
    %v2192 = vrcp.pop %v2179
    %v2193 = vmul.f32 1.0, %v2192
    %v2194 = vrcp.pop %v2180
    %v2195 = vmul.f32 1.0, %v2194
    %v2196 = vrcp.pop %v2181
    %v2197 = vmul.f32 1.0, %v2196
    %v2198 = vmul.f32 %v2183, %v2120
    %v2199 = vmul.f32 %v2185, %v2123
    %v2200 = vmul.f32 %v2187, %v2128
    %v2201 = vmul.f32 %v2189, %v2131
    %v2202 = vmul.f32 %v2191, %v2136
    %v2203 = vmul.f32 %v2193, %v2139
    %v2204 = vmul.f32 %v2195, %v2144
    %v2205 = vmul.f32 %v2197, %v2147
    %v2206 = vadd.f32 %v1523, %v2198
    %v2207 = vadd.f32 %v1524, %v2199
    %v2208 = vadd.f32 %v1525, %v2200
    %v2209 = vadd.f32 %v1526, %v2201
    %v2210 = vadd.f32 %v1527, %v2202
    %v2211 = vadd.f32 %v1528, %v2203
    %v2212 = vadd.f32 %v1529, %v2204
    %v2213 = vadd.f32 %v1530, %v2205
    %2214 = vst [vmem:[#allocation25] sm:$0xff] %v2206
    %2215 = vst [vmem:[#allocation25 + $0x8] sm:$0xff] %v2207
    %2216 = vst [vmem:[#allocation25 + $0x10] sm:$0xff] %v2208
    %2217 = vst [vmem:[#allocation25 + $0x18] sm:$0xff] %v2209
    %2218 = vst [vmem:[#allocation25 + $0x20] sm:$0xff] %v2210
    %2219 = vst [vmem:[#allocation25 + $0x28] sm:$0xff] %v2211
    %2220 = vst [vmem:[#allocation25 + $0x30] sm:$0xff] %v2212
    %2221 = vst [vmem:[#allocation25 + $0x38] sm:$0xff] %v2213
    %v2222 = vld [vmem:[#allocation5] sm:$0xff]
    %2223 = vst [vmem:[#allocation26] sm:$0xff] %v2222
    %v2224 = vld [vmem:[#allocation4] sm:$0xff]
    %v2225 = vld [vmem:[#allocation4 + $0x8] sm:$0xff]
    %v2226 = vld [vmem:[#allocation4 + $0x10] sm:$0xff]
    %v2227 = vmul.f32 %v2224, %v248
    %v2228 = vmul.f32 %v2225, %v248
    %v2229 = vmul.f32 %v2226, %v248
    %2230 = vst [vmem:[#allocation28] sm:$0xff] %v2227
    %2231 = vst [vmem:[#allocation28 + $0x8] sm:$0xff] %v2228
    %2232 = vst [vmem:[#allocation28 + $0x10] sm:$0xff] %v2229
    %v2233 = vld [vmem:[#allocation6] sm:$0xff]
    %2234 = vst [vmem:[#allocation29] sm:$0xff] %v2233
    // Predicated region
    $region146: #{tpu_custom_call.1} parent=1 // pred_check
      _
    $region147: #{tpu_custom_call.1} parent=1 // pred_check_branch
      %2236 = sbr.rel (0) target = $region149
    $region148: #{tpu_custom_call.1} parent=1 // pred_region
      %s2238 = ssub.s32 1024, 1024
      %2239 = vsyncadd [#allocation9], %s2238
      %s2240 = sshll.u32 [#allocation25], 4
      %s2241 = int_to_ptr.vmem [resolvable:$true] %s2240
      %2246 = dma.vmem_to_hbm [thread:$0]  %s2241, 1024, %s24, [#allocation9], 128, 128, 8
    $region149: #{tpu_custom_call.1} parent=1 // pred_fallthru
      _
    // Predicated region
    $region150: #{tpu_custom_call.1} parent=1 // pred_check
      _
    $region151: #{tpu_custom_call.1} parent=1 // pred_check_branch
      %2248 = sbr.rel (0) target = $region153
    $region152: #{tpu_custom_call.1} parent=1 // pred_region
      %s2250 = ssub.s32 128, 128
      %2251 = vsyncadd [#allocation27], %s2250
      %s2253 = sshll.u32 [#allocation26], 4
      %s2254 = int_to_ptr.vmem [resolvable:$true] %s2253
      %2256 = dma.vmem_to_hbm [thread:$0]  %s2254, 128, %s25, [#allocation27]
    $region153: #{tpu_custom_call.1} parent=1 // pred_fallthru
      _
    // Predicated region
    $region154: #{tpu_custom_call.1} parent=1 // pred_check
      _
    $region155: #{tpu_custom_call.1} parent=1 // pred_check_branch
      %2258 = sbr.rel (0) target = $region157
    $region156: #{tpu_custom_call.1} parent=1 // pred_region
      %s2260 = ssub.s32 384, 384
      %2261 = vsyncadd [#allocation27], %s2260
      %s2262 = sshll.u32 [#allocation28], 4
      %s2263 = int_to_ptr.vmem [resolvable:$true] %s2262
      %2268 = dma.vmem_to_hbm [thread:$0]  %s2263, 384, %s26, [#allocation27], 128, 128, 8
    $region157: #{tpu_custom_call.1} parent=1 // pred_fallthru
      _
    // Predicated region
    $region158: #{tpu_custom_call.1} parent=1 // pred_check
      _
    $region159: #{tpu_custom_call.1} parent=1 // pred_check_branch
      %2270 = sbr.rel (0) target = $region161
    $region160: #{tpu_custom_call.1} parent=1 // pred_region
      %s2272 = ssub.s32 128, 128
      %2273 = vsyncadd [#allocation30], %s2272
      %s2275 = sshll.u32 [#allocation29], 4
      %s2276 = int_to_ptr.vmem [resolvable:$true] %s2275
      %2278 = dma.vmem_to_hbm [thread:$0]  %s2276, 128, %s27, [#allocation30]
    $region161: #{tpu_custom_call.1} parent=1 // pred_fallthru
      _
    // Predicated region
    $region162: #{tpu_custom_call.1} parent=1 // pred_check
      _
    $region163: #{tpu_custom_call.1} parent=1 // pred_check_branch
      %2280 = sbr.rel (0) target = $region165
    $region164: #{tpu_custom_call.1} parent=1 // pred_region
      %2281 = dma.done [#allocation9], 1024
    $region165: #{tpu_custom_call.1} parent=1 // pred_fallthru
      _
    // Predicated region
    $region166: #{tpu_custom_call.1} parent=1 // pred_check
      _
    $region167: #{tpu_custom_call.1} parent=1 // pred_check_branch
      %2283 = sbr.rel (0) target = $region169
    $region168: #{tpu_custom_call.1} parent=1 // pred_region
      %2284 = dma.done [#allocation27], 128
    $region169: #{tpu_custom_call.1} parent=1 // pred_fallthru
      _
    // Predicated region
    $region170: #{tpu_custom_call.1} parent=1 // pred_check
      _
    $region171: #{tpu_custom_call.1} parent=1 // pred_check_branch
      %2286 = sbr.rel (0) target = $region173
    $region172: #{tpu_custom_call.1} parent=1 // pred_region
      %2287 = dma.done [#allocation27], 384
    $region173: #{tpu_custom_call.1} parent=1 // pred_fallthru
      _
    // Predicated region
    $region174: #{tpu_custom_call.1} parent=1 // pred_check
      _
    $region175: #{tpu_custom_call.1} parent=1 // pred_check_branch
      %2289 = sbr.rel (0) target = $region177
    $region176: #{tpu_custom_call.1} parent=1 // pred_region
      %2290 = dma.done [#allocation30], 128
    $region177: #{tpu_custom_call.1} parent=1 // pred_fallthru
      _
    %2291 = vsyncpa [#allocation8], 1
    %2292 = vsyncpa [#allocation11], 1
    %2293 = vsyncpa [#allocation14], 1
    %2294 = vsyncpa [#allocation17], 1
    %2295 = vsyncpa [#allocation20], 1
    %2296 = vsyncpa [#allocation23], 1
    %2297 = vsyncpa [#allocation9], 1
    %2298 = vsyncpa [#allocation27], 1
    %2299 = vsyncpa [#allocation30], 1

// kernel: tpu_custom_call.1
$region0: #{tpu_custom_call.1}
  #allocation0 [shape = 'u32[]', space=smem, size = 0x4, offset = 0x4, fixed_abs, tag = 'smem constant byte address 0x4 - core index']
  #allocation1 [shape = 'u32[144,128]{1,0:T(1,128)}', space=vmem, size = 0x12000, scoped, tag = 'internal scratch']
  #allocation2 [shape = 'f32[8,8,128]{2,1,0:T(8,128)}', space=vmem, size = 0x8000, scoped, tag = 'scratch operand']
  #allocation3 [shape = 'f32[8,8,128]{2,1,0:T(8,128)}', space=vmem, size = 0x8000, scoped, tag = 'scratch operand']
  #allocation4 [shape = 'f32[3,8,128]{2,1,0:T(8,128)}', space=vmem, size = 0x3000, scoped, tag = 'scratch operand']
  #allocation5 [shape = 'f32[1,8,128]{2,1,0:T(8,128)}', space=vmem, size = 0x1000, scoped, tag = 'scratch operand']
  #allocation6 [shape = 'f32[1,8,128]{2,1,0:T(8,128)}', space=vmem, size = 0x1000, scoped, tag = 'scratch operand']
  %s0 = inlined_call_operand.hbm [shape: f32[8,8,128], index: 0, kind: input, shape index: {}]
  %s1 = inlined_call_operand.hbm [shape: f32[1,8,128], index: 1, kind: input, shape index: {}]
  %s2 = inlined_call_operand.hbm [shape: f32[3,8,128], index: 2, kind: input, shape index: {}]
  %s3 = inlined_call_operand.hbm [shape: f32[1,8,128], index: 3, kind: input, shape index: {}]
  %s4 = inlined_call_operand.vmem [shape: f32[1,128], index: 4, kind: input, shape index: {}]
  %s5 = inlined_call_operand.vmem [shape: f32[1,128], index: 5, kind: input, shape index: {}]
  %s6 = inlined_call_operand.vmem [shape: f32[1,128], index: 6, kind: input, shape index: {}]
  %s7 = inlined_call_operand.vmem [shape: f32[1,128], index: 7, kind: input, shape index: {}]
  %s8 = inlined_call_operand.vmem [shape: f32[1,128], index: 8, kind: input, shape index: {}]
  %s9 = inlined_call_operand.vmem [shape: f32[1,128], index: 9, kind: input, shape index: {}]
  %s10 = inlined_call_operand.vmem [shape: f32[1,128], index: 10, kind: input, shape index: {}]
  %s11 = inlined_call_operand.vmem [shape: f32[1,128], index: 11, kind: input, shape index: {}]
  %s12 = inlined_call_operand.vmem [shape: f32[1,128], index: 12, kind: input, shape index: {}]
  %s13 = inlined_call_operand.vmem [shape: f32[1,128], index: 13, kind: input, shape index: {}]
  %s14 = inlined_call_operand.vmem [shape: f32[1,128], index: 14, kind: input, shape index: {}]
  %s15 = inlined_call_operand.hbm [shape: bf16[128,128], index: 15, kind: input, shape index: {}]
  %s16 = inlined_call_operand.hbm [shape: bf16[128,128], index: 16, kind: input, shape index: {}]
  %s17 = inlined_call_operand.hbm [shape: bf16[128,128], index: 17, kind: input, shape index: {}]
  %s18 = inlined_call_operand.hbm [shape: bf16[128,128], index: 18, kind: input, shape index: {}]
  %s19 = inlined_call_operand.vmem [shape: f32[1,128], index: 19, kind: input, shape index: {}]
  %s20 = inlined_call_operand.vmem [shape: f32[1,128], index: 20, kind: input, shape index: {}]
  %s21 = inlined_call_operand.hbm [shape: bf16[128,128], index: 21, kind: input, shape index: {}]
  %s22 = inlined_call_operand.hbm [shape: bf16[128,128], index: 22, kind: input, shape index: {}]
  %s23 = inlined_call_operand.hbm [shape: bf16[128,128], index: 23, kind: input, shape index: {}]
  %s24 = inlined_call_operand.hbm [shape: f32[8,8,128], index: 24, kind: output, shape index: {0}]
  %s25 = inlined_call_operand.hbm [shape: f32[1,8,128], index: 25, kind: output, shape index: {1}]
  %s26 = inlined_call_operand.hbm [shape: f32[3,8,128], index: 26, kind: output, shape index: {2}]
  %s27 = inlined_call_operand.hbm [shape: f32[1,8,128], index: 27, kind: output, shape index: {3}]
  %28 = xla_tuple %s24, %s25, %s26, %s27
  %s29 = sld [smem:[#allocation0]]
  $region178: #{tpu_custom_call.1} parent=0
    _
  %s31 = ssub.s32 1, %s29
  %s32 = scalar_select 0, %s31, %s29
  $region1: #{tpu_custom_call.1} parent=0
    #allocation7 [shape = 'u8[32768]{0}', space=vmem, size = 0x8000, scoped, tag = 'input window, operand 0, single buffered']
    #allocation8 [shape = 's32[1]{0}', space=sflag, size = 0x4, scoped, tag = 'scoped memory for tpu_custom_call.1']
    #allocation9 [shape = 's32[1]{0}', space=sflag, size = 0x4, scoped, tag = 'scoped memory for tpu_custom_call.1']
    #allocation10 [shape = 'u8[4096]{0}', space=vmem, size = 0x1000, scoped, tag = 'input window, operand 1, single buffered']
    #allocation11 [shape = 's32[1]{0}', space=sflag, size = 0x4, scoped, tag = 'scoped memory for tpu_custom_call.1']
    #allocation12 [shape = 'u8[12288]{0}', space=vmem, size = 0x3000, scoped, tag = 'input window, operand 2, single buffered']
    #allocation13 [shape = 'u8[4096]{0}', space=vmem, size = 0x1000, scoped, tag = 'input window, operand 3, single buffered']
    #allocation14 [shape = 's32[1]{0}', space=sflag, size = 0x4, scoped, tag = 'scoped memory for tpu_custom_call.1']
    #allocation15 [shape = 'u8[32768]{0}', space=vmem, size = 0x8000, scoped, tag = 'input window, operand 15, single buffered']
    #allocation16 [shape = 'u8[32768]{0}', space=vmem, size = 0x8000, scoped, tag = 'input window, operand 16, single buffered']
    #allocation17 [shape = 's32[1]{0}', space=sflag, size = 0x4, scoped, tag = 'scoped memory for tpu_custom_call.1']
    #allocation18 [shape = 'u8[32768]{0}', space=vmem, size = 0x8000, scoped, tag = 'input window, operand 17, single buffered']
    #allocation19 [shape = 'u8[32768]{0}', space=vmem, size = 0x8000, scoped, tag = 'input window, operand 18, single buffered']
    #allocation20 [shape = 's32[1]{0}', space=sflag, size = 0x4, scoped, tag = 'scoped memory for tpu_custom_call.1']
    #allocation21 [shape = 'u8[32768]{0}', space=vmem, size = 0x8000, scoped, tag = 'input window, operand 21, single buffered']
    #allocation22 [shape = 'u8[32768]{0}', space=vmem, size = 0x8000, scoped, tag = 'input window, operand 22, single buffered']
    #allocation23 [shape = 's32[1]{0}', space=sflag, size = 0x4, scoped, tag = 'scoped memory for tpu_custom_call.1']
    #allocation24 [shape = 'u8[32768]{0}', space=vmem, size = 0x8000, scoped, tag = 'input window, operand 23, single buffered']
    #allocation25 [shape = 'u8[32768]{0}', space=vmem, size = 0x8000, scoped, tag = 'output window, operand 0, single buffered']
    #allocation26 [shape = 'u8[4096]{0}', space=vmem, size = 0x1000, scoped, tag = 'output window, operand 1, single buffered']
    #allocation27 [shape = 's32[1]{0}', space=sflag, size = 0x4, scoped, tag = 'scoped memory for tpu_custom_call.1']
    #allocation28 [shape = 'u8[12288]{0}', space=vmem, size = 0x3000, scoped, tag = 'output window, operand 2, single buffered']
    #allocation29 [shape = 'u8[4096]{0}', space=vmem, size = 0x1000, scoped, tag = 'output window, operand 3, single buffered']
    #allocation30 [shape = 's32[1]{0}', space=sflag, size = 0x4, scoped, tag = 'scoped memory for tpu_custom_call.1']
    %33 = vsyncpa [#allocation8], 0
    %34 = vsyncpa [#allocation11], 0
    %35 = vsyncpa [#allocation14], 0
    %36 = vsyncpa [#allocation17], 0
    %37 = vsyncpa [#allocation20], 0
    %38 = vsyncpa [#allocation23], 0
    %39 = vsyncpa [#allocation9], 0
    %40 = vsyncpa [#allocation27], 0
    %41 = vsyncpa [#allocation30], 0
    // Predicated region
    $region2: #{tpu_custom_call.1} parent=1 // pred_check
      _
    $region3: #{tpu_custom_call.1} parent=1 // pred_check_branch
      %43 = sbr.rel (0) target = $region5
    $region4: #{tpu_custom_call.1} parent=1 // pred_region
      %s45 = ssub.s32 1024, 1024
      %46 = vsyncadd [#allocation8], %s45
      %s47 = sshll.u32 [#allocation7], 4
      %s48 = int_to_ptr.vmem [resolvable:$true] %s47
      %53 = dma.hbm_to_vmem [thread:$0]  %s0, 1024, %s48, [#allocation8], 128, 128, 8
    $region5: #{tpu_custom_call.1} parent=1 // pred_fallthru
      _
    // Predicated region
    $region6: #{tpu_custom_call.1} parent=1 // pred_check
      _
    $region7: #{tpu_custom_call.1} parent=1 // pred_check_branch
      %55 = sbr.rel (0) target = $region9
    $region8: #{tpu_custom_call.1} parent=1 // pred_region
      %s57 = ssub.s32 128, 128
      %58 = vsyncadd [#allocation11], %s57
      %s60 = sshll.u32 [#allocation10], 4
      %s61 = int_to_ptr.vmem [resolvable:$true] %s60
      %63 = dma.hbm_to_vmem [thread:$0]  %s1, 128, %s61, [#allocation11]
    $region9: #{tpu_custom_call.1} parent=1 // pred_fallthru
      _
    // Predicated region
    $region10: #{tpu_custom_call.1} parent=1 // pred_check
      _
    $region11: #{tpu_custom_call.1} parent=1 // pred_check_branch
      %65 = sbr.rel (0) target = $region13
    $region12: #{tpu_custom_call.1} parent=1 // pred_region
      %s67 = ssub.s32 384, 384
      %68 = vsyncadd [#allocation11], %s67
      %s69 = sshll.u32 [#allocation12], 4
      %s70 = int_to_ptr.vmem [resolvable:$true] %s69
      %75 = dma.hbm_to_vmem [thread:$0]  %s2, 384, %s70, [#allocation11], 128, 128, 8
    $region13: #{tpu_custom_call.1} parent=1 // pred_fallthru
      _
    // Predicated region
    $region14: #{tpu_custom_call.1} parent=1 // pred_check
      _
    $region15: #{tpu_custom_call.1} parent=1 // pred_check_branch
      %77 = sbr.rel (0) target = $region17
    $region16: #{tpu_custom_call.1} parent=1 // pred_region
      %s79 = ssub.s32 128, 128
      %80 = vsyncadd [#allocation14], %s79
      %s82 = sshll.u32 [#allocation13], 4
      %s83 = int_to_ptr.vmem [resolvable:$true] %s82
      %85 = dma.hbm_to_vmem [thread:$0]  %s3, 128, %s83, [#allocation14]
    $region17: #{tpu_custom_call.1} parent=1 // pred_fallthru
      _
    // Predicated region
    $region18: #{tpu_custom_call.1} parent=1 // pred_check
      _
    $region19: #{tpu_custom_call.1} parent=1 // pred_check_branch
      %87 = sbr.rel (0) target = $region21
    $region20: #{tpu_custom_call.1} parent=1 // pred_region
      _
    $region21: #{tpu_custom_call.1} parent=1 // pred_fallthru
      _
    // Predicated region
    $region22: #{tpu_custom_call.1} parent=1 // pred_check
      _
    $region23: #{tpu_custom_call.1} parent=1 // pred_check_branch
      %89 = sbr.rel (0) target = $region25
    $region24: #{tpu_custom_call.1} parent=1 // pred_region
      _
    $region25: #{tpu_custom_call.1} parent=1 // pred_fallthru
      _
    // Predicated region
    $region26: #{tpu_custom_call.1} parent=1 // pred_check
      _
    $region27: #{tpu_custom_call.1} parent=1 // pred_check_branch
      %91 = sbr.rel (0) target = $region29
    $region28: #{tpu_custom_call.1} parent=1 // pred_region
      _
    $region29: #{tpu_custom_call.1} parent=1 // pred_fallthru
      _
    // Predicated region
    $region30: #{tpu_custom_call.1} parent=1 // pred_check
      _
    $region31: #{tpu_custom_call.1} parent=1 // pred_check_branch
      %93 = sbr.rel (0) target = $region33
    $region32: #{tpu_custom_call.1} parent=1 // pred_region
      _
    $region33: #{tpu_custom_call.1} parent=1 // pred_fallthru
      _
    // Predicated region
    $region34: #{tpu_custom_call.1} parent=1 // pred_check
      _
    $region35: #{tpu_custom_call.1} parent=1 // pred_check_branch
      %95 = sbr.rel (0) target = $region37
    $region36: #{tpu_custom_call.1} parent=1 // pred_region
      _
    $region37: #{tpu_custom_call.1} parent=1 // pred_fallthru
      _
    // Predicated region
    $region38: #{tpu_custom_call.1} parent=1 // pred_check
      _
    $region39: #{tpu_custom_call.1} parent=1 // pred_check_branch
      %97 = sbr.rel (0) target = $region41
    $region40: #{tpu_custom_call.1} parent=1 // pred_region
      _
    $region41: #{tpu_custom_call.1} parent=1 // pred_fallthru
      _
    // Predicated region
    $region42: #{tpu_custom_call.1} parent=1 // pred_check
      _
    $region43: #{tpu_custom_call.1} parent=1 // pred_check_branch
      %99 = sbr.rel (0) target = $region45
    $region44: #{tpu_custom_call.1} parent=1 // pred_region
      _
    $region45: #{tpu_custom_call.1} parent=1 // pred_fallthru
      _
    // Predicated region
    $region46: #{tpu_custom_call.1} parent=1 // pred_check
      _
    $region47: #{tpu_custom_call.1} parent=1 // pred_check_branch
      %101 = sbr.rel (0) target = $region49
    $region48: #{tpu_custom_call.1} parent=1 // pred_region
      _
    $region49: #{tpu_custom_call.1} parent=1 // pred_fallthru
      _
    // Predicated region
    $region50: #{tpu_custom_call.1} parent=1 // pred_check
      _
    $region51: #{tpu_custom_call.1} parent=1 // pred_check_branch
      %103 = sbr.rel (0) target = $region53
    $region52: #{tpu_custom_call.1} parent=1 // pred_region
      _
    $region53: #{tpu_custom_call.1} parent=1 // pred_fallthru
      _
    // Predicated region
    $region54: #{tpu_custom_call.1} parent=1 // pred_check
      _
    $region55: #{tpu_custom_call.1} parent=1 // pred_check_branch
      %105 = sbr.rel (0) target = $region57
    $region56: #{tpu_custom_call.1} parent=1 // pred_region
      _
    $region57: #{tpu_custom_call.1} parent=1 // pred_fallthru
      _
    // Predicated region
    $region58: #{tpu_custom_call.1} parent=1 // pred_check
      _
    $region59: #{tpu_custom_call.1} parent=1 // pred_check_branch
      %107 = sbr.rel (0) target = $region61
    $region60: #{tpu_custom_call.1} parent=1 // pred_region
      _
    $region61: #{tpu_custom_call.1} parent=1 // pred_fallthru
      _
    // Predicated region
    $region62: #{tpu_custom_call.1} parent=1 // pred_check
      _
    $region63: #{tpu_custom_call.1} parent=1 // pred_check_branch
      %109 = sbr.rel (0) target = $region65
    $region64: #{tpu_custom_call.1} parent=1 // pred_region
      %s111 = ssub.s32 1024, 1024
      %112 = vsyncadd [#allocation14], %s111
      %s113 = sshll.u32 [#allocation15], 4
      %s114 = int_to_ptr.vmem [resolvable:$true] %s113
      %119 = dma.hbm_to_vmem [thread:$0]  %s15, 1024, %s114, [#allocation14], 64, 64, 4
    $region65: #{tpu_custom_call.1} parent=1 // pred_fallthru
      _
    // Predicated region
    $region66: #{tpu_custom_call.1} parent=1 // pred_check
      _
    $region67: #{tpu_custom_call.1} parent=1 // pred_check_branch
      %121 = sbr.rel (0) target = $region69
    $region68: #{tpu_custom_call.1} parent=1 // pred_region
      %s123 = ssub.s32 1024, 1024
      %124 = vsyncadd [#allocation17], %s123
      %s125 = sshll.u32 [#allocation16], 4
      %s126 = int_to_ptr.vmem [resolvable:$true] %s125
      %131 = dma.hbm_to_vmem [thread:$0]  %s16, 1024, %s126, [#allocation17], 64, 64, 4
    $region69: #{tpu_custom_call.1} parent=1 // pred_fallthru
      _
    // Predicated region
    $region70: #{tpu_custom_call.1} parent=1 // pred_check
      _
    $region71: #{tpu_custom_call.1} parent=1 // pred_check_branch
      %133 = sbr.rel (0) target = $region73
    $region72: #{tpu_custom_call.1} parent=1 // pred_region
      %s135 = ssub.s32 1024, 1024
      %136 = vsyncadd [#allocation17], %s135
      %s137 = sshll.u32 [#allocation18], 4
      %s138 = int_to_ptr.vmem [resolvable:$true] %s137
      %143 = dma.hbm_to_vmem [thread:$0]  %s17, 1024, %s138, [#allocation17], 64, 64, 4
    $region73: #{tpu_custom_call.1} parent=1 // pred_fallthru
      _
    // Predicated region
    $region74: #{tpu_custom_call.1} parent=1 // pred_check
      _
    $region75: #{tpu_custom_call.1} parent=1 // pred_check_branch
      %145 = sbr.rel (0) target = $region77
    $region76: #{tpu_custom_call.1} parent=1 // pred_region
      %s147 = ssub.s32 1024, 1024
      %148 = vsyncadd [#allocation20], %s147
      %s149 = sshll.u32 [#allocation19], 4
      %s150 = int_to_ptr.vmem [resolvable:$true] %s149
      %155 = dma.hbm_to_vmem [thread:$0]  %s18, 1024, %s150, [#allocation20], 64, 64, 4
    $region77: #{tpu_custom_call.1} parent=1 // pred_fallthru
      _
    // Predicated region
    $region78: #{tpu_custom_call.1} parent=1 // pred_check
      _
    $region79: #{tpu_custom_call.1} parent=1 // pred_check_branch
      %157 = sbr.rel (0) target = $region81
    $region80: #{tpu_custom_call.1} parent=1 // pred_region
      _
    $region81: #{tpu_custom_call.1} parent=1 // pred_fallthru
      _
    // Predicated region
    $region82: #{tpu_custom_call.1} parent=1 // pred_check
      _
    $region83: #{tpu_custom_call.1} parent=1 // pred_check_branch
      %159 = sbr.rel (0) target = $region85
    $region84: #{tpu_custom_call.1} parent=1 // pred_region
      _
    $region85: #{tpu_custom_call.1} parent=1 // pred_fallthru
      _
    // Predicated region
    $region86: #{tpu_custom_call.1} parent=1 // pred_check
      _
    $region87: #{tpu_custom_call.1} parent=1 // pred_check_branch
      %161 = sbr.rel (0) target = $region89
    $region88: #{tpu_custom_call.1} parent=1 // pred_region
      %s163 = ssub.s32 1024, 1024
      %164 = vsyncadd [#allocation20], %s163
      %s165 = sshll.u32 [#allocation21], 4
      %s166 = int_to_ptr.vmem [resolvable:$true] %s165
      %171 = dma.hbm_to_vmem [thread:$0]  %s21, 1024, %s166, [#allocation20], 64, 64, 4
    $region89: #{tpu_custom_call.1} parent=1 // pred_fallthru
      _
    // Predicated region
    $region90: #{tpu_custom_call.1} parent=1 // pred_check
      _
    $region91: #{tpu_custom_call.1} parent=1 // pred_check_branch
      %173 = sbr.rel (0) target = $region93
    $region92: #{tpu_custom_call.1} parent=1 // pred_region
      %s175 = ssub.s32 1024, 1024
      %176 = vsyncadd [#allocation23], %s175
      %s177 = sshll.u32 [#allocation22], 4
      %s178 = int_to_ptr.vmem [resolvable:$true] %s177
      %183 = dma.hbm_to_vmem [thread:$0]  %s22, 1024, %s178, [#allocation23], 64, 64, 4
    $region93: #{tpu_custom_call.1} parent=1 // pred_fallthru
      _
    // Predicated region
    $region94: #{tpu_custom_call.1} parent=1 // pred_check
      _
    $region95: #{tpu_custom_call.1} parent=1 // pred_check_branch
      %185 = sbr.rel (0) target = $region97
    $region96: #{tpu_custom_call.1} parent=1 // pred_region
      %s187 = ssub.s32 1024, 1024
      %188 = vsyncadd [#allocation23], %s187
      %s189 = sshll.u32 [#allocation24], 4
      %s190 = int_to_ptr.vmem [resolvable:$true] %s189
      %195 = dma.hbm_to_vmem [thread:$0]  %s23, 1024, %s190, [#allocation23], 64, 64, 4
    $region97: #{tpu_custom_call.1} parent=1 // pred_fallthru
      _
    // Predicated region
    $region98: #{tpu_custom_call.1} parent=1 // pred_check
      _
    $region99: #{tpu_custom_call.1} parent=1 // pred_check_branch
      %197 = sbr.rel (0) target = $region101
    $region100: #{tpu_custom_call.1} parent=1 // pred_region
      %198 = dma.done [#allocation8], 1024
    $region101: #{tpu_custom_call.1} parent=1 // pred_fallthru
      _
    // Predicated region
    $region102: #{tpu_custom_call.1} parent=1 // pred_check
      _
    $region103: #{tpu_custom_call.1} parent=1 // pred_check_branch
      %200 = sbr.rel (0) target = $region105
    $region104: #{tpu_custom_call.1} parent=1 // pred_region
      %201 = dma.done [#allocation11], 128
    $region105: #{tpu_custom_call.1} parent=1 // pred_fallthru
      _
    // Predicated region
    $region106: #{tpu_custom_call.1} parent=1 // pred_check
      _
    $region107: #{tpu_custom_call.1} parent=1 // pred_check_branch
      %203 = sbr.rel (0) target = $region109
    $region108: #{tpu_custom_call.1} parent=1 // pred_region
      %204 = dma.done [#allocation11], 384
    $region109: #{tpu_custom_call.1} parent=1 // pred_fallthru
      _
    // Predicated region
    $region110: #{tpu_custom_call.1} parent=1 // pred_check
      _
    $region111: #{tpu_custom_call.1} parent=1 // pred_check_branch
      %206 = sbr.rel (0) target = $region113
    $region112: #{tpu_custom_call.1} parent=1 // pred_region
      %207 = dma.done [#allocation14], 128
    $region113: #{tpu_custom_call.1} parent=1 // pred_fallthru
      _
    // Predicated region
    $region114: #{tpu_custom_call.1} parent=1 // pred_check
      _
    $region115: #{tpu_custom_call.1} parent=1 // pred_check_branch
      %209 = sbr.rel (0) target = $region117
    $region116: #{tpu_custom_call.1} parent=1 // pred_region
      %210 = dma.done [#allocation14], 1024
    $region117: #{tpu_custom_call.1} parent=1 // pred_fallthru
      _
    // Predicated region
    $region118: #{tpu_custom_call.1} parent=1 // pred_check
      _
    $region119: #{tpu_custom_call.1} parent=1 // pred_check_branch
      %212 = sbr.rel (0) target = $region121
    $region120: #{tpu_custom_call.1} parent=1 // pred_region
      %213 = dma.done [#allocation17], 1024
    $region121: #{tpu_custom_call.1} parent=1 // pred_fallthru
      _
    // Predicated region
    $region122: #{tpu_custom_call.1} parent=1 // pred_check
      _
    $region123: #{tpu_custom_call.1} parent=1 // pred_check_branch
      %215 = sbr.rel (0) target = $region125
    $region124: #{tpu_custom_call.1} parent=1 // pred_region
      %216 = dma.done [#allocation17], 1024
    $region125: #{tpu_custom_call.1} parent=1 // pred_fallthru
      _
    // Predicated region
    $region126: #{tpu_custom_call.1} parent=1 // pred_check
      _
    $region127: #{tpu_custom_call.1} parent=1 // pred_check_branch
      %218 = sbr.rel (0) target = $region129
    $region128: #{tpu_custom_call.1} parent=1 // pred_region
      %219 = dma.done [#allocation20], 1024
    $region129: #{tpu_custom_call.1} parent=1 // pred_fallthru
      _
    // Predicated region
    $region130: #{tpu_custom_call.1} parent=1 // pred_check
      _
    $region131: #{tpu_custom_call.1} parent=1 // pred_check_branch
      %221 = sbr.rel (0) target = $region133
    $region132: #{tpu_custom_call.1} parent=1 // pred_region
      %222 = dma.done [#allocation20], 1024
    $region133: #{tpu_custom_call.1} parent=1 // pred_fallthru
      _
    // Predicated region
    $region134: #{tpu_custom_call.1} parent=1 // pred_check
      _
    $region135: #{tpu_custom_call.1} parent=1 // pred_check_branch
      %224 = sbr.rel (0) target = $region137
    $region136: #{tpu_custom_call.1} parent=1 // pred_region
      %225 = dma.done [#allocation23], 1024
    $region137: #{tpu_custom_call.1} parent=1 // pred_fallthru
      _
    // Predicated region
    $region138: #{tpu_custom_call.1} parent=1 // pred_check
      _
    $region139: #{tpu_custom_call.1} parent=1 // pred_check_branch
      %227 = sbr.rel (0) target = $region141
    $region140: #{tpu_custom_call.1} parent=1 // pred_region
      %228 = dma.done [#allocation23], 1024
    $region141: #{tpu_custom_call.1} parent=1 // pred_fallthru
      _
    %p230 = scmp.eq.s32.totalorder 0, 0
    // Predicated region
    $region142: #{tpu_custom_call.1} parent=1 // pred_check
      %p231 = pneg %p230
    $region143: #{tpu_custom_call.1} parent=1 // pred_check_branch
      %233 = sbr.rel (%p231) target = $region145
    $region144: #{tpu_custom_call.1} parent=1 // pred_region
      %v234 = vld [vmem:[#allocation12] sm:$0xff]
      %v235 = vld [vmem:[#allocation12 + $0x8] sm:$0xff]
      %v236 = vld [vmem:[#allocation12 + $0x10] sm:$0xff]
      %237 = vst [vmem:[#allocation4] sm:$0xff] %v234
      %238 = vst [vmem:[#allocation4 + $0x8] sm:$0xff] %v235
      %239 = vst [vmem:[#allocation4 + $0x10] sm:$0xff] %v236
      %v240 = vld [vmem:[#allocation10] sm:$0xff]
      %241 = vst [vmem:[#allocation5] sm:$0xff] %v240
      %v242 = vld [vmem:[#allocation13] sm:$0xff]
      %243 = vst [vmem:[#allocation6] sm:$0xff] %v242
    $region145: #{tpu_custom_call.1} parent=1 // pred_fallthru
      _
    %v244 = vlaneseq
    %v245 = vand.u32 %v244, 127
    %vm246 = vcmp.lt.s32.totalorder %v245, 32
    %v247 = vsel %vm246, 1, 0
    %v248 = vcvt.s32.f32 %v247
    %v249 = vld [vmem:[#allocation7] sm:$0xff]
    %v250 = vld [vmem:[#allocation7 + $0x8] sm:$0xff]
    %v251 = vld [vmem:[#allocation7 + $0x10] sm:$0xff]
    %v252 = vld [vmem:[#allocation7 + $0x18] sm:$0xff]
    %v253 = vld [vmem:[#allocation7 + $0x20] sm:$0xff]
    %v254 = vld [vmem:[#allocation7 + $0x28] sm:$0xff]
    %v255 = vld [vmem:[#allocation7 + $0x30] sm:$0xff]
    %v256 = vld [vmem:[#allocation7 + $0x38] sm:$0xff]
    %v257 = vld [vmem:[%s4] sm:$0x1]
    %v258 = vld [vmem:[%s5] sm:$0x1]
    %259 = vadd.xlane.f32.xlu0 %v249
    %v260 = vpop.xlane.xlu0 %259
    %261 = vadd.xlane.f32.xlu0 %v250
    %v262 = vpop.xlane.xlu0 %261
    %263 = vadd.xlane.f32.xlu0 %v251
    %v264 = vpop.xlane.xlu0 %263
    %265 = vadd.xlane.f32.xlu0 %v252
    %v266 = vpop.xlane.xlu0 %265
    %267 = vadd.xlane.f32.xlu0 %v253
    %v268 = vpop.xlane.xlu0 %267
    %269 = vadd.xlane.f32.xlu0 %v254
    %v270 = vpop.xlane.xlu0 %269
    %271 = vadd.xlane.f32.xlu0 %v255
    %v272 = vpop.xlane.xlu0 %271
    %273 = vadd.xlane.f32.xlu0 %v256
    %v274 = vpop.xlane.xlu0 %273
    %v275 = vmul.f32 %v260, 0.03125
    %v276 = vmul.f32 %v262, 0.03125
    %v277 = vmul.f32 %v264, 0.03125
    %v278 = vmul.f32 %v266, 0.03125
    %v279 = vmul.f32 %v268, 0.03125
    %v280 = vmul.f32 %v270, 0.03125
    %v281 = vmul.f32 %v272, 0.03125
    %v282 = vmul.f32 %v274, 0.03125
    %v283 = vsub.f32 %v249, %v275
    %v284 = vsub.f32 %v250, %v276
    %v285 = vsub.f32 %v251, %v277
    %v286 = vsub.f32 %v252, %v278
    %v287 = vsub.f32 %v253, %v279
    %v288 = vsub.f32 %v254, %v280
    %v289 = vsub.f32 %v255, %v281
    %v290 = vsub.f32 %v256, %v282
    %v291 = vmul.f32 %v283, %v248
    %v292 = vmul.f32 %v284, %v248
    %v293 = vmul.f32 %v285, %v248
    %v294 = vmul.f32 %v286, %v248
    %v295 = vmul.f32 %v287, %v248
    %v296 = vmul.f32 %v288, %v248
    %v297 = vmul.f32 %v289, %v248
    %v298 = vmul.f32 %v290, %v248
    %v299 = vmul.f32 %v291, %v291
    %v300 = vmul.f32 %v292, %v292
    %v301 = vmul.f32 %v293, %v293
    %v302 = vmul.f32 %v294, %v294
    %v303 = vmul.f32 %v295, %v295
    %v304 = vmul.f32 %v296, %v296
    %v305 = vmul.f32 %v297, %v297
    %v306 = vmul.f32 %v298, %v298
    %307 = vadd.xlane.f32.xlu0 %v299
    %v308 = vpop.xlane.xlu0 %307
    %309 = vadd.xlane.f32.xlu0 %v300
    %v310 = vpop.xlane.xlu0 %309
    %311 = vadd.xlane.f32.xlu0 %v301
    %v312 = vpop.xlane.xlu0 %311
    %313 = vadd.xlane.f32.xlu0 %v302
    %v314 = vpop.xlane.xlu0 %313
    %315 = vadd.xlane.f32.xlu0 %v303
    %v316 = vpop.xlane.xlu0 %315
    %317 = vadd.xlane.f32.xlu0 %v304
    %v318 = vpop.xlane.xlu0 %317
    %319 = vadd.xlane.f32.xlu0 %v305
    %v320 = vpop.xlane.xlu0 %319
    %321 = vadd.xlane.f32.xlu0 %v306
    %v322 = vpop.xlane.xlu0 %321
    %v323 = vmul.f32 %v308, 0.03125
    %v324 = vmul.f32 %v310, 0.03125
    %v325 = vmul.f32 %v312, 0.03125
    %v326 = vmul.f32 %v314, 0.03125
    %v327 = vmul.f32 %v316, 0.03125
    %v328 = vmul.f32 %v318, 0.03125
    %v329 = vmul.f32 %v320, 0.03125
    %v330 = vmul.f32 %v322, 0.03125
    %v331 = vadd.f32 %v323, 1e-05
    %v332 = vadd.f32 %v324, 1e-05
    %v333 = vadd.f32 %v325, 1e-05
    %v334 = vadd.f32 %v326, 1e-05
    %v335 = vadd.f32 %v327, 1e-05
    %v336 = vadd.f32 %v328, 1e-05
    %v337 = vadd.f32 %v329, 1e-05
    %v338 = vadd.f32 %v330, 1e-05
    %v339 = vrsqrt.pop %v331
    %v340 = vrsqrt.pop %v332
    %v341 = vrsqrt.pop %v333
    %v342 = vrsqrt.pop %v334
    %v343 = vrsqrt.pop %v335
    %v344 = vrsqrt.pop %v336
    %v345 = vrsqrt.pop %v337
    %v346 = vrsqrt.pop %v338
    %v347 = vmul.f32 %v291, %v339
    %v348 = vmul.f32 %v292, %v340
    %v349 = vmul.f32 %v293, %v341
    %v350 = vmul.f32 %v294, %v342
    %v351 = vmul.f32 %v295, %v343
    %v352 = vmul.f32 %v296, %v344
    %v353 = vmul.f32 %v297, %v345
    %v354 = vmul.f32 %v298, %v346
    %v356 = vlaneseq
    %v357 = vshrl.u32 %v356, 7
    %v358 = vsub.s32 0, %v357
    %v359 = vrot.slane %v257, %v358
    %v361 = vmul.f32 %v347, %v359
    %v362 = vmul.f32 %v348, %v359
    %v363 = vmul.f32 %v349, %v359
    %v364 = vmul.f32 %v350, %v359
    %v365 = vmul.f32 %v351, %v359
    %v366 = vmul.f32 %v352, %v359
    %v367 = vmul.f32 %v353, %v359
    %v368 = vmul.f32 %v354, %v359
    %v370 = vlaneseq
    %v371 = vshrl.u32 %v370, 7
    %v372 = vsub.s32 0, %v371
    %v373 = vrot.slane %v258, %v372
    %v375 = vadd.f32 %v361, %v373
    %v376 = vadd.f32 %v362, %v373
    %v377 = vadd.f32 %v363, %v373
    %v378 = vadd.f32 %v364, %v373
    %v379 = vadd.f32 %v365, %v373
    %v380 = vadd.f32 %v366, %v373
    %v381 = vadd.f32 %v367, %v373
    %v382 = vadd.f32 %v368, %v373
    %v383 = vld [vmem:[%s6] sm:$0x1]
    %v384 = vld [vmem:[%s7] sm:$0x1]
    %385 = vadd.xlane.f32.xlu0 %v375
    %v386 = vpop.xlane.xlu0 %385
    %387 = vadd.xlane.f32.xlu0 %v376
    %v388 = vpop.xlane.xlu0 %387
    %389 = vadd.xlane.f32.xlu0 %v377
    %v390 = vpop.xlane.xlu0 %389
    %391 = vadd.xlane.f32.xlu0 %v378
    %v392 = vpop.xlane.xlu0 %391
    %393 = vadd.xlane.f32.xlu0 %v379
    %v394 = vpop.xlane.xlu0 %393
    %395 = vadd.xlane.f32.xlu0 %v380
    %v396 = vpop.xlane.xlu0 %395
    %397 = vadd.xlane.f32.xlu0 %v381
    %v398 = vpop.xlane.xlu0 %397
    %399 = vadd.xlane.f32.xlu0 %v382
    %v400 = vpop.xlane.xlu0 %399
    %v401 = vmul.f32 %v386, 0.03125
    %v402 = vmul.f32 %v388, 0.03125
    %v403 = vmul.f32 %v390, 0.03125
    %v404 = vmul.f32 %v392, 0.03125
    %v405 = vmul.f32 %v394, 0.03125
    %v406 = vmul.f32 %v396, 0.03125
    %v407 = vmul.f32 %v398, 0.03125
    %v408 = vmul.f32 %v400, 0.03125
    %v409 = vsub.f32 %v375, %v401
    %v410 = vsub.f32 %v376, %v402
    %v411 = vsub.f32 %v377, %v403
    %v412 = vsub.f32 %v378, %v404
    %v413 = vsub.f32 %v379, %v405
    %v414 = vsub.f32 %v380, %v406
    %v415 = vsub.f32 %v381, %v407
    %v416 = vsub.f32 %v382, %v408
    %v417 = vmul.f32 %v409, %v248
    %v418 = vmul.f32 %v410, %v248
    %v419 = vmul.f32 %v411, %v248
    %v420 = vmul.f32 %v412, %v248
    %v421 = vmul.f32 %v413, %v248
    %v422 = vmul.f32 %v414, %v248
    %v423 = vmul.f32 %v415, %v248
    %v424 = vmul.f32 %v416, %v248
    %v425 = vmul.f32 %v417, %v417
    %v426 = vmul.f32 %v418, %v418
    %v427 = vmul.f32 %v419, %v419
    %v428 = vmul.f32 %v420, %v420
    %v429 = vmul.f32 %v421, %v421
    %v430 = vmul.f32 %v422, %v422
    %v431 = vmul.f32 %v423, %v423
    %v432 = vmul.f32 %v424, %v424
    %433 = vadd.xlane.f32.xlu0 %v425
    %v434 = vpop.xlane.xlu0 %433
    %435 = vadd.xlane.f32.xlu0 %v426
    %v436 = vpop.xlane.xlu0 %435
    %437 = vadd.xlane.f32.xlu0 %v427
    %v438 = vpop.xlane.xlu0 %437
    %439 = vadd.xlane.f32.xlu0 %v428
    %v440 = vpop.xlane.xlu0 %439
    %441 = vadd.xlane.f32.xlu0 %v429
    %v442 = vpop.xlane.xlu0 %441
    %443 = vadd.xlane.f32.xlu0 %v430
    %v444 = vpop.xlane.xlu0 %443
    %445 = vadd.xlane.f32.xlu0 %v431
    %v446 = vpop.xlane.xlu0 %445
    %447 = vadd.xlane.f32.xlu0 %v432
    %v448 = vpop.xlane.xlu0 %447
    %v449 = vmul.f32 %v434, 0.03125
    %v450 = vmul.f32 %v436, 0.03125
    %v451 = vmul.f32 %v438, 0.03125
    %v452 = vmul.f32 %v440, 0.03125
    %v453 = vmul.f32 %v442, 0.03125
    %v454 = vmul.f32 %v444, 0.03125
    %v455 = vmul.f32 %v446, 0.03125
    %v456 = vmul.f32 %v448, 0.03125
    %v457 = vadd.f32 %v449, 1e-05
    %v458 = vadd.f32 %v450, 1e-05
    %v459 = vadd.f32 %v451, 1e-05
    %v460 = vadd.f32 %v452, 1e-05
    %v461 = vadd.f32 %v453, 1e-05
    %v462 = vadd.f32 %v454, 1e-05
    %v463 = vadd.f32 %v455, 1e-05
    %v464 = vadd.f32 %v456, 1e-05
    %v465 = vrsqrt.pop %v457
    %v466 = vrsqrt.pop %v458
    %v467 = vrsqrt.pop %v459
    %v468 = vrsqrt.pop %v460
    %v469 = vrsqrt.pop %v461
    %v470 = vrsqrt.pop %v462
    %v471 = vrsqrt.pop %v463
    %v472 = vrsqrt.pop %v464
    %v473 = vmul.f32 %v417, %v465
    %v474 = vmul.f32 %v418, %v466
    %v475 = vmul.f32 %v419, %v467
    %v476 = vmul.f32 %v420, %v468
    %v477 = vmul.f32 %v421, %v469
    %v478 = vmul.f32 %v422, %v470
    %v479 = vmul.f32 %v423, %v471
    %v480 = vmul.f32 %v424, %v472
    %v482 = vlaneseq
    %v483 = vshrl.u32 %v482, 7
    %v484 = vsub.s32 0, %v483
    %v485 = vrot.slane %v383, %v484
    %v487 = vmul.f32 %v473, %v485
    %v488 = vmul.f32 %v474, %v485
    %v489 = vmul.f32 %v475, %v485
    %v490 = vmul.f32 %v476, %v485
    %v491 = vmul.f32 %v477, %v485
    %v492 = vmul.f32 %v478, %v485
    %v493 = vmul.f32 %v479, %v485
    %v494 = vmul.f32 %v480, %v485
    %v496 = vlaneseq
    %v497 = vshrl.u32 %v496, 7
    %v498 = vsub.s32 0, %v497
    %v499 = vrot.slane %v384, %v498
    %v501 = vadd.f32 %v487, %v499
    %v502 = vadd.f32 %v488, %v499
    %v503 = vadd.f32 %v489, %v499
    %v504 = vadd.f32 %v490, %v499
    %v505 = vadd.f32 %v491, %v499
    %v506 = vadd.f32 %v492, %v499
    %v507 = vadd.f32 %v493, %v499
    %v508 = vadd.f32 %v494, %v499
    %v509 = vld [vmem:[#allocation5] sm:$0xff]
    %510 = vst [vmem:[#allocation5] sm:$0xff] %v508
    %v511 = vld [vmem:[%s12] sm:$0x1]
    %v512 = vld [vmem:[%s13] sm:$0x1]
    %v513 = vld [vmem:[%s14] sm:$0x1]
    %v515 = vlaneseq
    %v516 = vshrl.u32 %v515, 7
    %v517 = vsub.s32 0, %v516
    %v518 = vrot.slane %v511, %v517
    %v520 = vmul.f32 %v501, %v518
    %v521 = vmul.f32 %v502, %v518
    %v522 = vmul.f32 %v503, %v518
    %v523 = vmul.f32 %v504, %v518
    %v524 = vmul.f32 %v505, %v518
    %v525 = vmul.f32 %v506, %v518
    %v526 = vmul.f32 %v507, %v518
    %v527 = vmul.f32 %v508, %v518
    %v528 = vsub.f32 1.0, %v511
    %v530 = vlaneseq
    %v531 = vshrl.u32 %v530, 7
    %v532 = vsub.s32 0, %v531
    %v533 = vrot.slane %v528, %v532
    %v535 = vmul.f32 %v509, %v533
    %v536 = vmul.f32 %v501, %v533
    %v537 = vmul.f32 %v502, %v533
    %v538 = vmul.f32 %v503, %v533
    %v539 = vmul.f32 %v504, %v533
    %v540 = vmul.f32 %v505, %v533
    %v541 = vmul.f32 %v506, %v533
    %v542 = vmul.f32 %v507, %v533
    %v543 = vadd.f32 %v520, %v535
    %v544 = vadd.f32 %v521, %v536
    %v545 = vadd.f32 %v522, %v537
    %v546 = vadd.f32 %v523, %v538
    %v547 = vadd.f32 %v524, %v539
    %v548 = vadd.f32 %v525, %v540
    %v549 = vadd.f32 %v526, %v541
    %v550 = vadd.f32 %v527, %v542
    %v552 = vlaneseq
    %v553 = vshrl.u32 %v552, 7
    %v554 = vsub.s32 0, %v553
    %v555 = vrot.slane %v512, %v554
    %v557 = vmul.f32 %v501, %v555
    %v558 = vmul.f32 %v502, %v555
    %v559 = vmul.f32 %v503, %v555
    %v560 = vmul.f32 %v504, %v555
    %v561 = vmul.f32 %v505, %v555
    %v562 = vmul.f32 %v506, %v555
    %v563 = vmul.f32 %v507, %v555
    %v564 = vmul.f32 %v508, %v555
    %v565 = vsub.f32 1.0, %v512
    %v567 = vlaneseq
    %v568 = vshrl.u32 %v567, 7
    %v569 = vsub.s32 0, %v568
    %v570 = vrot.slane %v565, %v569
    %v572 = vmul.f32 %v509, %v570
    %v573 = vmul.f32 %v501, %v570
    %v574 = vmul.f32 %v502, %v570
    %v575 = vmul.f32 %v503, %v570
    %v576 = vmul.f32 %v504, %v570
    %v577 = vmul.f32 %v505, %v570
    %v578 = vmul.f32 %v506, %v570
    %v579 = vmul.f32 %v507, %v570
    %v580 = vadd.f32 %v557, %v572
    %v581 = vadd.f32 %v558, %v573
    %v582 = vadd.f32 %v559, %v574
    %v583 = vadd.f32 %v560, %v575
    %v584 = vadd.f32 %v561, %v576
    %v585 = vadd.f32 %v562, %v577
    %v586 = vadd.f32 %v563, %v578
    %v587 = vadd.f32 %v564, %v579
    %v589 = vlaneseq
    %v590 = vshrl.u32 %v589, 7
    %v591 = vsub.s32 0, %v590
    %v592 = vrot.slane %v513, %v591
    %v594 = vmul.f32 %v501, %v592
    %v595 = vmul.f32 %v502, %v592
    %v596 = vmul.f32 %v503, %v592
    %v597 = vmul.f32 %v504, %v592
    %v598 = vmul.f32 %v505, %v592
    %v599 = vmul.f32 %v506, %v592
    %v600 = vmul.f32 %v507, %v592
    %v601 = vmul.f32 %v508, %v592
    %v602 = vsub.f32 1.0, %v513
    %v604 = vlaneseq
    %v605 = vshrl.u32 %v604, 7
    %v606 = vsub.s32 0, %v605
    %v607 = vrot.slane %v602, %v606
    %v609 = vmul.f32 %v509, %v607
    %v610 = vmul.f32 %v501, %v607
    %v611 = vmul.f32 %v502, %v607
    %v612 = vmul.f32 %v503, %v607
    %v613 = vmul.f32 %v504, %v607
    %v614 = vmul.f32 %v505, %v607
    %v615 = vmul.f32 %v506, %v607
    %v616 = vmul.f32 %v507, %v607
    %v617 = vadd.f32 %v594, %v609
    %v618 = vadd.f32 %v595, %v610
    %v619 = vadd.f32 %v596, %v611
    %v620 = vadd.f32 %v597, %v612
    %v621 = vadd.f32 %v598, %v613
    %v622 = vadd.f32 %v599, %v614
    %v623 = vadd.f32 %v600, %v615
    %v624 = vadd.f32 %v601, %v616
    %v625 = vpack.c.bf16 %v544, %v543
    %v626 = vpack.c.bf16 %v546, %v545
    %v627 = vpack.c.bf16 %v548, %v547
    %v628 = vpack.c.bf16 %v550, %v549
    %v629 = vld [vmem:[#allocation15] sm:$0xf]
    %v630 = vld [vmem:[#allocation15 + $0x4] sm:$0xf]
    %v631 = vld [vmem:[#allocation15 + $0x8] sm:$0xf]
    %v632 = vld [vmem:[#allocation15 + $0xc] sm:$0xf]
    %v633 = vld [vmem:[#allocation15 + $0x10] sm:$0xf]
    %v634 = vld [vmem:[#allocation15 + $0x14] sm:$0xf]
    %v635 = vld [vmem:[#allocation15 + $0x18] sm:$0xf]
    %v636 = vld [vmem:[#allocation15 + $0x1c] sm:$0xf]
    %v637 = vld [vmem:[#allocation15 + $0x20] sm:$0xf]
    %v638 = vld [vmem:[#allocation15 + $0x24] sm:$0xf]
    %v639 = vld [vmem:[#allocation15 + $0x28] sm:$0xf]
    %v640 = vld [vmem:[#allocation15 + $0x2c] sm:$0xf]
    %v641 = vld [vmem:[#allocation15 + $0x30] sm:$0xf]
    %v642 = vld [vmem:[#allocation15 + $0x34] sm:$0xf]
    %v643 = vld [vmem:[#allocation15 + $0x38] sm:$0xf]
    %v644 = vld [vmem:[#allocation15 + $0x3c] sm:$0xf]
    %v661 = vunpack.c.l.b16 %v629
    %v662 = vunpack.c.l.b16 %v630
    %v663 = vunpack.c.l.b16 %v631
    %v664 = vunpack.c.l.b16 %v632
    %v665 = vunpack.c.l.b16 %v633
    %v666 = vunpack.c.l.b16 %v634
    %v667 = vunpack.c.l.b16 %v635
    %v668 = vunpack.c.l.b16 %v636
    %v669 = vunpack.c.l.b16 %v637
    %v670 = vunpack.c.l.b16 %v638
    %v671 = vunpack.c.l.b16 %v639
    %v672 = vunpack.c.l.b16 %v640
    %v673 = vunpack.c.l.b16 %v641
    %v674 = vunpack.c.l.b16 %v642
    %v675 = vunpack.c.l.b16 %v643
    %v676 = vunpack.c.l.b16 %v644
    %v677 = vpack.c.b16 %v662, %v661
    %v678 = vpack.c.b16 %v664, %v663
    %v679 = vpack.c.b16 %v666, %v665
    %v680 = vpack.c.b16 %v668, %v667
    %v681 = vpack.c.b16 %v670, %v669
    %v682 = vpack.c.b16 %v672, %v671
    %v683 = vpack.c.b16 %v674, %v673
    %v684 = vpack.c.b16 %v676, %v675
    %693 = vmatprep.subr.bf16.mxu0 0
    %694 = vmatpush1.bf16.msra.mxu0 %v684
    %695 = vmatprep.subr.bf16.mxu0 0
    %696 = vmatpush1.bf16.msra.mxu0 %v683
    %697 = vmatprep.subr.bf16.mxu0 0
    %698 = vmatpush1.bf16.msra.mxu0 %v682
    %699 = vmatprep.subr.bf16.mxu0 0
    %700 = vmatpush1.bf16.msra.mxu0 %v681
    %701 = vmatprep.subr.bf16.mxu0 0
    %702 = vmatpush1.bf16.msra.mxu0 %v680
    %703 = vmatprep.subr.bf16.mxu0 0
    %704 = vmatpush1.bf16.msra.mxu0 %v679
    %705 = vmatprep.subr.bf16.mxu0 0
    %706 = vmatpush1.bf16.msra.mxu0 %v678
    %707 = vmatprep.subr.bf16.mxu0 0
    %708 = vmatpush1.bf16.msra.mxu0 %v677
    %709 = vmatprep.subr.bf16.mxu0 0
    %710 = vmatpush2.bf16.msra.mxu0 0
    %711 = vmatprep.subr.bf16.mxu0 0
    %712 = vmatpush2.bf16.msra.mxu0 0
    %713 = vmatprep.subr.bf16.mxu0 0
    %714 = vmatpush2.bf16.msra.mxu0 0
    %715 = vmatprep.subr.bf16.mxu0 0
    %716 = vmatpush2.bf16.msra.mxu0 0
    %717 = vmatprep.subr.bf16.mxu0 0
    %718 = vmatpush2.bf16.msra.mxu0 0
    %719 = vmatprep.subr.bf16.mxu0 0
    %720 = vmatpush2.bf16.msra.mxu0 0
    %721 = vmatprep.subr.bf16.mxu0 0
    %722 = vmatpush2.bf16.msra.mxu0 0
    %723 = vmatprep.subr.bf16.mxu0 0
    %724 = vmatpush2.bf16.msra.mxu0 0
    %725 = vmatprep.mubr.bf16.mxu0 0
    %726 = vmatmul.mubr.bf16.gmra.mxu0 %v625
    %v727 = vpop.f32.mrf.mxu0
    %v728 = vadd.f32 0.0, %v727
    %v729 = vpop.f32.mrf.mxu0
    %v730 = vpop.f32.mrf.mxu0
    %v731 = vadd.f32 0.0, %v730
    %v732 = vpop.f32.mrf.mxu0
    %733 = vmatprep.mubr.bf16.mxu0 0
    %734 = vmatmul.mubr.bf16.gmra.mxu0 %v626
    %v735 = vpop.f32.mrf.mxu0
    %v736 = vadd.f32 0.0, %v735
    %v737 = vpop.f32.mrf.mxu0
    %v738 = vpop.f32.mrf.mxu0
    %v739 = vadd.f32 0.0, %v738
    %v740 = vpop.f32.mrf.mxu0
    %741 = vmatprep.mubr.bf16.mxu0 0
    %742 = vmatmul.mubr.bf16.gmra.mxu0 %v627
    %v743 = vpop.f32.mrf.mxu0
    %v744 = vadd.f32 0.0, %v743
    %v745 = vpop.f32.mrf.mxu0
    %v746 = vpop.f32.mrf.mxu0
    %v747 = vadd.f32 0.0, %v746
    %v748 = vpop.f32.mrf.mxu0
    %749 = vmatprep.mubr.bf16.mxu0 0
    %750 = vmatmul.mubr.bf16.gmra.mxu0 %v628
    %v751 = vpop.f32.mrf.mxu0
    %v752 = vadd.f32 0.0, %v751
    %v753 = vpop.f32.mrf.mxu0
    %v754 = vpop.f32.mrf.mxu0
    %v755 = vadd.f32 0.0, %v754
    %v756 = vpop.f32.mrf.mxu0
    %757 = vdwg.mxu0
    %v758 = vpack.c.bf16 %v581, %v580
    %v759 = vpack.c.bf16 %v583, %v582
    %v760 = vpack.c.bf16 %v585, %v584
    %v761 = vpack.c.bf16 %v587, %v586
    %v762 = vld [vmem:[#allocation16] sm:$0xf]
    %v763 = vld [vmem:[#allocation16 + $0x4] sm:$0xf]
    %v764 = vld [vmem:[#allocation16 + $0x8] sm:$0xf]
    %v765 = vld [vmem:[#allocation16 + $0xc] sm:$0xf]
    %v766 = vld [vmem:[#allocation16 + $0x10] sm:$0xf]
    %v767 = vld [vmem:[#allocation16 + $0x14] sm:$0xf]
    %v768 = vld [vmem:[#allocation16 + $0x18] sm:$0xf]
    %v769 = vld [vmem:[#allocation16 + $0x1c] sm:$0xf]
    %v770 = vld [vmem:[#allocation16 + $0x20] sm:$0xf]
    %v771 = vld [vmem:[#allocation16 + $0x24] sm:$0xf]
    %v772 = vld [vmem:[#allocation16 + $0x28] sm:$0xf]
    %v773 = vld [vmem:[#allocation16 + $0x2c] sm:$0xf]
    %v774 = vld [vmem:[#allocation16 + $0x30] sm:$0xf]
    %v775 = vld [vmem:[#allocation16 + $0x34] sm:$0xf]
    %v776 = vld [vmem:[#allocation16 + $0x38] sm:$0xf]
    %v777 = vld [vmem:[#allocation16 + $0x3c] sm:$0xf]
    %v794 = vunpack.c.l.b16 %v762
    %v795 = vunpack.c.l.b16 %v763
    %v796 = vunpack.c.l.b16 %v764
    %v797 = vunpack.c.l.b16 %v765
    %v798 = vunpack.c.l.b16 %v766
    %v799 = vunpack.c.l.b16 %v767
    %v800 = vunpack.c.l.b16 %v768
    %v801 = vunpack.c.l.b16 %v769
    %v802 = vunpack.c.l.b16 %v770
    %v803 = vunpack.c.l.b16 %v771
    %v804 = vunpack.c.l.b16 %v772
    %v805 = vunpack.c.l.b16 %v773
    %v806 = vunpack.c.l.b16 %v774
    %v807 = vunpack.c.l.b16 %v775
    %v808 = vunpack.c.l.b16 %v776
    %v809 = vunpack.c.l.b16 %v777
    %v810 = vpack.c.b16 %v795, %v794
    %v811 = vpack.c.b16 %v797, %v796
    %v812 = vpack.c.b16 %v799, %v798
    %v813 = vpack.c.b16 %v801, %v800
    %v814 = vpack.c.b16 %v803, %v802
    %v815 = vpack.c.b16 %v805, %v804
    %v816 = vpack.c.b16 %v807, %v806
    %v817 = vpack.c.b16 %v809, %v808
    %826 = vmatprep.subr.bf16.mxu0 0
    %827 = vmatpush1.bf16.msra.mxu0 %v817
    %828 = vmatprep.subr.bf16.mxu0 0
    %829 = vmatpush1.bf16.msra.mxu0 %v816
    %830 = vmatprep.subr.bf16.mxu0 0
    %831 = vmatpush1.bf16.msra.mxu0 %v815
    %832 = vmatprep.subr.bf16.mxu0 0
    %833 = vmatpush1.bf16.msra.mxu0 %v814
    %834 = vmatprep.subr.bf16.mxu0 0
    %835 = vmatpush1.bf16.msra.mxu0 %v813
    %836 = vmatprep.subr.bf16.mxu0 0
    %837 = vmatpush1.bf16.msra.mxu0 %v812
    %838 = vmatprep.subr.bf16.mxu0 0
    %839 = vmatpush1.bf16.msra.mxu0 %v811
    %840 = vmatprep.subr.bf16.mxu0 0
    %841 = vmatpush1.bf16.msra.mxu0 %v810
    %842 = vmatprep.subr.bf16.mxu0 0
    %843 = vmatpush2.bf16.msra.mxu0 0
    %844 = vmatprep.subr.bf16.mxu0 0
    %845 = vmatpush2.bf16.msra.mxu0 0
    %846 = vmatprep.subr.bf16.mxu0 0
    %847 = vmatpush2.bf16.msra.mxu0 0
    %848 = vmatprep.subr.bf16.mxu0 0
    %849 = vmatpush2.bf16.msra.mxu0 0
    %850 = vmatprep.subr.bf16.mxu0 0
    %851 = vmatpush2.bf16.msra.mxu0 0
    %852 = vmatprep.subr.bf16.mxu0 0
    %853 = vmatpush2.bf16.msra.mxu0 0
    %854 = vmatprep.subr.bf16.mxu0 0
    %855 = vmatpush2.bf16.msra.mxu0 0
    %856 = vmatprep.subr.bf16.mxu0 0
    %857 = vmatpush2.bf16.msra.mxu0 0
    %858 = vmatprep.mubr.bf16.mxu0 0
    %859 = vmatmul.mubr.bf16.gmra.mxu0 %v758
    %v860 = vpop.f32.mrf.mxu0
    %v861 = vadd.f32 0.0, %v860
    %v862 = vpop.f32.mrf.mxu0
    %v863 = vpop.f32.mrf.mxu0
    %v864 = vadd.f32 0.0, %v863
    %v865 = vpop.f32.mrf.mxu0
    %866 = vmatprep.mubr.bf16.mxu0 0
    %867 = vmatmul.mubr.bf16.gmra.mxu0 %v759
    %v868 = vpop.f32.mrf.mxu0
    %v869 = vadd.f32 0.0, %v868
    %v870 = vpop.f32.mrf.mxu0
    %v871 = vpop.f32.mrf.mxu0
    %v872 = vadd.f32 0.0, %v871
    %v873 = vpop.f32.mrf.mxu0
    %874 = vmatprep.mubr.bf16.mxu0 0
    %875 = vmatmul.mubr.bf16.gmra.mxu0 %v760
    %v876 = vpop.f32.mrf.mxu0
    %v877 = vadd.f32 0.0, %v876
    %v878 = vpop.f32.mrf.mxu0
    %v879 = vpop.f32.mrf.mxu0
    %v880 = vadd.f32 0.0, %v879
    %v881 = vpop.f32.mrf.mxu0
    %882 = vmatprep.mubr.bf16.mxu0 0
    %883 = vmatmul.mubr.bf16.gmra.mxu0 %v761
    %v884 = vpop.f32.mrf.mxu0
    %v885 = vadd.f32 0.0, %v884
    %v886 = vpop.f32.mrf.mxu0
    %v887 = vpop.f32.mrf.mxu0
    %v888 = vadd.f32 0.0, %v887
    %v889 = vpop.f32.mrf.mxu0
    %890 = vdwg.mxu0
    %v891 = vpack.c.bf16 %v618, %v617
    %v892 = vpack.c.bf16 %v620, %v619
    %v893 = vpack.c.bf16 %v622, %v621
    %v894 = vpack.c.bf16 %v624, %v623
    %v895 = vld [vmem:[#allocation18] sm:$0xf]
    %v896 = vld [vmem:[#allocation18 + $0x4] sm:$0xf]
    %v897 = vld [vmem:[#allocation18 + $0x8] sm:$0xf]
    %v898 = vld [vmem:[#allocation18 + $0xc] sm:$0xf]
    %v899 = vld [vmem:[#allocation18 + $0x10] sm:$0xf]
    %v900 = vld [vmem:[#allocation18 + $0x14] sm:$0xf]
    %v901 = vld [vmem:[#allocation18 + $0x18] sm:$0xf]
    %v902 = vld [vmem:[#allocation18 + $0x1c] sm:$0xf]
    %v903 = vld [vmem:[#allocation18 + $0x20] sm:$0xf]
    %v904 = vld [vmem:[#allocation18 + $0x24] sm:$0xf]
    %v905 = vld [vmem:[#allocation18 + $0x28] sm:$0xf]
    %v906 = vld [vmem:[#allocation18 + $0x2c] sm:$0xf]
    %v907 = vld [vmem:[#allocation18 + $0x30] sm:$0xf]
    %v908 = vld [vmem:[#allocation18 + $0x34] sm:$0xf]
    %v909 = vld [vmem:[#allocation18 + $0x38] sm:$0xf]
    %v910 = vld [vmem:[#allocation18 + $0x3c] sm:$0xf]
    %v927 = vunpack.c.l.b16 %v895
    %v928 = vunpack.c.l.b16 %v896
    %v929 = vunpack.c.l.b16 %v897
    %v930 = vunpack.c.l.b16 %v898
    %v931 = vunpack.c.l.b16 %v899
    %v932 = vunpack.c.l.b16 %v900
    %v933 = vunpack.c.l.b16 %v901
    %v934 = vunpack.c.l.b16 %v902
    %v935 = vunpack.c.l.b16 %v903
    %v936 = vunpack.c.l.b16 %v904
    %v937 = vunpack.c.l.b16 %v905
    %v938 = vunpack.c.l.b16 %v906
    %v939 = vunpack.c.l.b16 %v907
    %v940 = vunpack.c.l.b16 %v908
    %v941 = vunpack.c.l.b16 %v909
    %v942 = vunpack.c.l.b16 %v910
    %v943 = vpack.c.b16 %v928, %v927
    %v944 = vpack.c.b16 %v930, %v929
    %v945 = vpack.c.b16 %v932, %v931
    %v946 = vpack.c.b16 %v934, %v933
    %v947 = vpack.c.b16 %v936, %v935
    %v948 = vpack.c.b16 %v938, %v937
    %v949 = vpack.c.b16 %v940, %v939
    %v950 = vpack.c.b16 %v942, %v941
    %959 = vmatprep.subr.bf16.mxu0 0
    %960 = vmatpush1.bf16.msra.mxu0 %v950
    %961 = vmatprep.subr.bf16.mxu0 0
    %962 = vmatpush1.bf16.msra.mxu0 %v949
    %963 = vmatprep.subr.bf16.mxu0 0
    %964 = vmatpush1.bf16.msra.mxu0 %v948
    %965 = vmatprep.subr.bf16.mxu0 0
    %966 = vmatpush1.bf16.msra.mxu0 %v947
    %967 = vmatprep.subr.bf16.mxu0 0
    %968 = vmatpush1.bf16.msra.mxu0 %v946
    %969 = vmatprep.subr.bf16.mxu0 0
    %970 = vmatpush1.bf16.msra.mxu0 %v945
    %971 = vmatprep.subr.bf16.mxu0 0
    %972 = vmatpush1.bf16.msra.mxu0 %v944
    %973 = vmatprep.subr.bf16.mxu0 0
    %974 = vmatpush1.bf16.msra.mxu0 %v943
    %975 = vmatprep.subr.bf16.mxu0 0
    %976 = vmatpush2.bf16.msra.mxu0 0
    %977 = vmatprep.subr.bf16.mxu0 0
    %978 = vmatpush2.bf16.msra.mxu0 0
    %979 = vmatprep.subr.bf16.mxu0 0
    %980 = vmatpush2.bf16.msra.mxu0 0
    %981 = vmatprep.subr.bf16.mxu0 0
    %982 = vmatpush2.bf16.msra.mxu0 0
    %983 = vmatprep.subr.bf16.mxu0 0
    %984 = vmatpush2.bf16.msra.mxu0 0
    %985 = vmatprep.subr.bf16.mxu0 0
    %986 = vmatpush2.bf16.msra.mxu0 0
    %987 = vmatprep.subr.bf16.mxu0 0
    %988 = vmatpush2.bf16.msra.mxu0 0
    %989 = vmatprep.subr.bf16.mxu0 0
    %990 = vmatpush2.bf16.msra.mxu0 0
    %991 = vmatprep.mubr.bf16.mxu0 0
    %992 = vmatmul.mubr.bf16.gmra.mxu0 %v891
    %v993 = vpop.f32.mrf.mxu0
    %v994 = vadd.f32 0.0, %v993
    %v995 = vpop.f32.mrf.mxu0
    %v996 = vpop.f32.mrf.mxu0
    %v997 = vadd.f32 0.0, %v996
    %v998 = vpop.f32.mrf.mxu0
    %999 = vmatprep.mubr.bf16.mxu0 0
    %1000 = vmatmul.mubr.bf16.gmra.mxu0 %v892
    %v1001 = vpop.f32.mrf.mxu0
    %v1002 = vadd.f32 0.0, %v1001
    %v1003 = vpop.f32.mrf.mxu0
    %v1004 = vpop.f32.mrf.mxu0
    %v1005 = vadd.f32 0.0, %v1004
    %v1006 = vpop.f32.mrf.mxu0
    %1007 = vmatprep.mubr.bf16.mxu0 0
    %1008 = vmatmul.mubr.bf16.gmra.mxu0 %v893
    %v1009 = vpop.f32.mrf.mxu0
    %v1010 = vadd.f32 0.0, %v1009
    %v1011 = vpop.f32.mrf.mxu0
    %v1012 = vpop.f32.mrf.mxu0
    %v1013 = vadd.f32 0.0, %v1012
    %v1014 = vpop.f32.mrf.mxu0
    %1015 = vmatprep.mubr.bf16.mxu0 0
    %1016 = vmatmul.mubr.bf16.gmra.mxu0 %v894
    %v1017 = vpop.f32.mrf.mxu0
    %v1018 = vadd.f32 0.0, %v1017
    %v1019 = vpop.f32.mrf.mxu0
    %v1020 = vpop.f32.mrf.mxu0
    %v1021 = vadd.f32 0.0, %v1020
    %v1022 = vpop.f32.mrf.mxu0
    %1023 = vdwg.mxu0
    %v1024 = vxor.u32 %v994, 2147483648
    %v1025 = vxor.u32 %v997, 2147483648
    %v1026 = vxor.u32 %v1002, 2147483648
    %v1027 = vxor.u32 %v1005, 2147483648
    %v1028 = vxor.u32 %v1010, 2147483648
    %v1029 = vxor.u32 %v1013, 2147483648
    %v1030 = vxor.u32 %v1018, 2147483648
    %v1031 = vxor.u32 %v1021, 2147483648
    %v1032 = vmul.f32 %v1024, 1.442695
    %v1033 = vpow.pop %v1032
    %v1034 = vmul.f32 %v1025, 1.442695
    %v1035 = vpow.pop %v1034
    %v1036 = vmul.f32 %v1026, 1.442695
    %v1037 = vpow.pop %v1036
    %v1038 = vmul.f32 %v1027, 1.442695
    %v1039 = vpow.pop %v1038
    %v1040 = vmul.f32 %v1028, 1.442695
    %v1041 = vpow.pop %v1040
    %v1042 = vmul.f32 %v1029, 1.442695
    %v1043 = vpow.pop %v1042
    %v1044 = vmul.f32 %v1030, 1.442695
    %v1045 = vpow.pop %v1044
    %v1046 = vmul.f32 %v1031, 1.442695
    %v1047 = vpow.pop %v1046
    %v1048 = vadd.f32 %v1033, 1.0
    %v1049 = vadd.f32 %v1035, 1.0
    %v1050 = vadd.f32 %v1037, 1.0
    %v1051 = vadd.f32 %v1039, 1.0
    %v1052 = vadd.f32 %v1041, 1.0
    %v1053 = vadd.f32 %v1043, 1.0
    %v1054 = vadd.f32 %v1045, 1.0
    %v1055 = vadd.f32 %v1047, 1.0
    %v1056 = vrcp.pop %v1048
    %v1057 = vmul.f32 1.0, %v1056
    %v1058 = vrcp.pop %v1049
    %v1059 = vmul.f32 1.0, %v1058
    %v1060 = vrcp.pop %v1050
    %v1061 = vmul.f32 1.0, %v1060
    %v1062 = vrcp.pop %v1051
    %v1063 = vmul.f32 1.0, %v1062
    %v1064 = vrcp.pop %v1052
    %v1065 = vmul.f32 1.0, %v1064
    %v1066 = vrcp.pop %v1053
    %v1067 = vmul.f32 1.0, %v1066
    %v1068 = vrcp.pop %v1054
    %v1069 = vmul.f32 1.0, %v1068
    %v1070 = vrcp.pop %v1055
    %v1071 = vmul.f32 1.0, %v1070
    %1072 = vst [vmem:[#allocation2] sm:$0xff] %v728
    %1073 = vst [vmem:[#allocation2 + $0x8] sm:$0xff] %v731
    %1074 = vst [vmem:[#allocation2 + $0x10] sm:$0xff] %v736
    %1075 = vst [vmem:[#allocation2 + $0x18] sm:$0xff] %v739
    %1076 = vst [vmem:[#allocation2 + $0x20] sm:$0xff] %v744
    %1077 = vst [vmem:[#allocation2 + $0x28] sm:$0xff] %v747
    %1078 = vst [vmem:[#allocation2 + $0x30] sm:$0xff] %v752
    %1079 = vst [vmem:[#allocation2 + $0x38] sm:$0xff] %v755
    %1080 = vst [vmem:[#allocation3] sm:$0xff] %v861
    %1081 = vst [vmem:[#allocation3 + $0x8] sm:$0xff] %v864
    %1082 = vst [vmem:[#allocation3 + $0x10] sm:$0xff] %v869
    %1083 = vst [vmem:[#allocation3 + $0x18] sm:$0xff] %v872
    %1084 = vst [vmem:[#allocation3 + $0x20] sm:$0xff] %v877
    %1085 = vst [vmem:[#allocation3 + $0x28] sm:$0xff] %v880
    %1086 = vst [vmem:[#allocation3 + $0x30] sm:$0xff] %v885
    %1087 = vst [vmem:[#allocation3 + $0x38] sm:$0xff] %v888
    %v1088 = vld [vmem:[%s10] sm:$0x1]
    %v1089 = vmul.f32 %v1088, 1.442695
    %v1090 = vpow.pop %v1089
    %v1092 = vlaneseq
    %v1093 = vshrl.u32 %v1092, 7
    %v1094 = vsub.s32 0, %v1093
    %v1095 = vrot.slane %v1090, %v1094
    %v1097 = vld [vmem:[%s11] sm:$0x1]
    %v1099 = vlaneseq
    %v1100 = vshrl.u32 %v1099, 7
    %v1101 = vsub.s32 0, %v1100
    %v1102 = vrot.slane %v1097, %v1101
    %v1104 = vld [vmem:[#allocation4] sm:$0xff]
    %s1105 = scalar_lea.vmem [#allocation4], 8
    %v1106 = vld [vmem:[%s1105] sm:$0xff]
    %s1107 = scalar_lea.vmem [#allocation4], 16
    %v1108 = vld [vmem:[%s1107] sm:$0xff]
    %v1109 = vld [vmem:[#allocation2] sm:$0xff]
    %v1110 = vld [vmem:[#allocation3] sm:$0xff]
    %v1111 = vadd.f32 %v1102, %v1109
    %v1112 = vmax.f32 %v1111, %v1108
    %v1113 = vsub.f32 %v1108, %v1112
    %v1114 = vmul.f32 %v1113, 1.442695
    %v1115 = vpow.pop %v1114
    %v1116 = vsub.f32 %v1111, %v1112
    %v1117 = vmul.f32 %v1116, 1.442695
    %v1118 = vpow.pop %v1117
    %v1119 = vmul.f32 %v1115, %v1104
    %v1120 = vmul.f32 %v1118, %v1110
    %v1121 = vadd.f32 %v1119, %v1120
    %v1122 = vmul.f32 %v1115, %v1106
    %v1123 = vadd.f32 %v1122, %v1118
    %v1124 = vrcp.pop %v1123
    %v1125 = vmul.f32 %v1121, %v1124
    %v1126 = vsub.f32 %v1108, %v1095
    %v1127 = vmax.f32 %v1126, %v1109
    %v1128 = vsub.f32 %v1126, %v1127
    %v1129 = vmul.f32 %v1128, 1.442695
    %v1130 = vpow.pop %v1129
    %v1131 = vsub.f32 %v1109, %v1127
    %v1132 = vmul.f32 %v1131, 1.442695
    %v1133 = vpow.pop %v1132
    %v1134 = vmul.f32 %v1130, %v1104
    %v1135 = vmul.f32 %v1133, %v1110
    %v1136 = vadd.f32 %v1134, %v1135
    %v1137 = vmul.f32 %v1130, %v1106
    %v1138 = vadd.f32 %v1137, %v1133
    %1139 = vst [vmem:[#allocation2] sm:$0xff] %v1125
    %s1140 = scalar_lea.vmem [#allocation2], 8
    %v1141 = vld [vmem:[%s1140] sm:$0xff]
    %s1142 = scalar_lea.vmem [#allocation3], 8
    %v1143 = vld [vmem:[%s1142] sm:$0xff]
    %v1144 = vadd.f32 %v1102, %v1141
    %v1145 = vmax.f32 %v1144, %v1127
    %v1146 = vsub.f32 %v1127, %v1145
    %v1147 = vmul.f32 %v1146, 1.442695
    %v1148 = vpow.pop %v1147
    %v1149 = vsub.f32 %v1144, %v1145
    %v1150 = vmul.f32 %v1149, 1.442695
    %v1151 = vpow.pop %v1150
    %v1152 = vmul.f32 %v1148, %v1136
    %v1153 = vmul.f32 %v1151, %v1143
    %v1154 = vadd.f32 %v1152, %v1153
    %v1155 = vmul.f32 %v1148, %v1138
    %v1156 = vadd.f32 %v1155, %v1151
    %v1157 = vrcp.pop %v1156
    %v1158 = vmul.f32 %v1154, %v1157
    %v1159 = vsub.f32 %v1127, %v1095
    %v1160 = vmax.f32 %v1159, %v1141
    %v1161 = vsub.f32 %v1159, %v1160
    %v1162 = vmul.f32 %v1161, 1.442695
    %v1163 = vpow.pop %v1162
    %v1164 = vsub.f32 %v1141, %v1160
    %v1165 = vmul.f32 %v1164, 1.442695
    %v1166 = vpow.pop %v1165
    %v1167 = vmul.f32 %v1163, %v1136
    %v1168 = vmul.f32 %v1166, %v1143
    %v1169 = vadd.f32 %v1167, %v1168
    %v1170 = vmul.f32 %v1163, %v1138
    %v1171 = vadd.f32 %v1170, %v1166
    %1172 = vst [vmem:[%s1140] sm:$0xff] %v1158
    %s1173 = scalar_lea.vmem [#allocation2], 16
    %v1174 = vld [vmem:[%s1173] sm:$0xff]
    %s1175 = scalar_lea.vmem [#allocation3], 16
    %v1176 = vld [vmem:[%s1175] sm:$0xff]
    %v1177 = vadd.f32 %v1102, %v1174
    %v1178 = vmax.f32 %v1177, %v1160
    %v1179 = vsub.f32 %v1160, %v1178
    %v1180 = vmul.f32 %v1179, 1.442695
    %v1181 = vpow.pop %v1180
    %v1182 = vsub.f32 %v1177, %v1178
    %v1183 = vmul.f32 %v1182, 1.442695
    %v1184 = vpow.pop %v1183
    %v1185 = vmul.f32 %v1181, %v1169
    %v1186 = vmul.f32 %v1184, %v1176
    %v1187 = vadd.f32 %v1185, %v1186
    %v1188 = vmul.f32 %v1181, %v1171
    %v1189 = vadd.f32 %v1188, %v1184
    %v1190 = vrcp.pop %v1189
    %v1191 = vmul.f32 %v1187, %v1190
    %v1192 = vsub.f32 %v1160, %v1095
    %v1193 = vmax.f32 %v1192, %v1174
    %v1194 = vsub.f32 %v1192, %v1193
    %v1195 = vmul.f32 %v1194, 1.442695
    %v1196 = vpow.pop %v1195
    %v1197 = vsub.f32 %v1174, %v1193
    %v1198 = vmul.f32 %v1197, 1.442695
    %v1199 = vpow.pop %v1198
    %v1200 = vmul.f32 %v1196, %v1169
    %v1201 = vmul.f32 %v1199, %v1176
    %v1202 = vadd.f32 %v1200, %v1201
    %v1203 = vmul.f32 %v1196, %v1171
    %v1204 = vadd.f32 %v1203, %v1199
    %1205 = vst [vmem:[%s1173] sm:$0xff] %v1191
    %s1206 = scalar_lea.vmem [#allocation2], 24
    %v1207 = vld [vmem:[%s1206] sm:$0xff]
    %s1208 = scalar_lea.vmem [#allocation3], 24
    %v1209 = vld [vmem:[%s1208] sm:$0xff]
    %v1210 = vadd.f32 %v1102, %v1207
    %v1211 = vmax.f32 %v1210, %v1193
    %v1212 = vsub.f32 %v1193, %v1211
    %v1213 = vmul.f32 %v1212, 1.442695
    %v1214 = vpow.pop %v1213
    %v1215 = vsub.f32 %v1210, %v1211
    %v1216 = vmul.f32 %v1215, 1.442695
    %v1217 = vpow.pop %v1216
    %v1218 = vmul.f32 %v1214, %v1202
    %v1219 = vmul.f32 %v1217, %v1209
    %v1220 = vadd.f32 %v1218, %v1219
    %v1221 = vmul.f32 %v1214, %v1204
    %v1222 = vadd.f32 %v1221, %v1217
    %v1223 = vrcp.pop %v1222
    %v1224 = vmul.f32 %v1220, %v1223
    %v1225 = vsub.f32 %v1193, %v1095
    %v1226 = vmax.f32 %v1225, %v1207
    %v1227 = vsub.f32 %v1225, %v1226
    %v1228 = vmul.f32 %v1227, 1.442695
    %v1229 = vpow.pop %v1228
    %v1230 = vsub.f32 %v1207, %v1226
    %v1231 = vmul.f32 %v1230, 1.442695
    %v1232 = vpow.pop %v1231
    %v1233 = vmul.f32 %v1229, %v1202
    %v1234 = vmul.f32 %v1232, %v1209
    %v1235 = vadd.f32 %v1233, %v1234
    %v1236 = vmul.f32 %v1229, %v1204
    %v1237 = vadd.f32 %v1236, %v1232
    %1238 = vst [vmem:[%s1206] sm:$0xff] %v1224
    %s1239 = scalar_lea.vmem [#allocation2], 32
    %v1240 = vld [vmem:[%s1239] sm:$0xff]
    %s1241 = scalar_lea.vmem [#allocation3], 32
    %v1242 = vld [vmem:[%s1241] sm:$0xff]
    %v1243 = vadd.f32 %v1102, %v1240
    %v1244 = vmax.f32 %v1243, %v1226
    %v1245 = vsub.f32 %v1226, %v1244
    %v1246 = vmul.f32 %v1245, 1.442695
    %v1247 = vpow.pop %v1246
    %v1248 = vsub.f32 %v1243, %v1244
    %v1249 = vmul.f32 %v1248, 1.442695
    %v1250 = vpow.pop %v1249
    %v1251 = vmul.f32 %v1247, %v1235
    %v1252 = vmul.f32 %v1250, %v1242
    %v1253 = vadd.f32 %v1251, %v1252
    %v1254 = vmul.f32 %v1247, %v1237
    %v1255 = vadd.f32 %v1254, %v1250
    %v1256 = vrcp.pop %v1255
    %v1257 = vmul.f32 %v1253, %v1256
    %v1258 = vsub.f32 %v1226, %v1095
    %v1259 = vmax.f32 %v1258, %v1240
    %v1260 = vsub.f32 %v1258, %v1259
    %v1261 = vmul.f32 %v1260, 1.442695
    %v1262 = vpow.pop %v1261
    %v1263 = vsub.f32 %v1240, %v1259
    %v1264 = vmul.f32 %v1263, 1.442695
    %v1265 = vpow.pop %v1264
    %v1266 = vmul.f32 %v1262, %v1235
    %v1267 = vmul.f32 %v1265, %v1242
    %v1268 = vadd.f32 %v1266, %v1267
    %v1269 = vmul.f32 %v1262, %v1237
    %v1270 = vadd.f32 %v1269, %v1265
    %1271 = vst [vmem:[%s1239] sm:$0xff] %v1257
    %s1272 = scalar_lea.vmem [#allocation2], 40
    %v1273 = vld [vmem:[%s1272] sm:$0xff]
    %s1274 = scalar_lea.vmem [#allocation3], 40
    %v1275 = vld [vmem:[%s1274] sm:$0xff]
    %v1276 = vadd.f32 %v1102, %v1273
    %v1277 = vmax.f32 %v1276, %v1259
    %v1278 = vsub.f32 %v1259, %v1277
    %v1279 = vmul.f32 %v1278, 1.442695
    %v1280 = vpow.pop %v1279
    %v1281 = vsub.f32 %v1276, %v1277
    %v1282 = vmul.f32 %v1281, 1.442695
    %v1283 = vpow.pop %v1282
    %v1284 = vmul.f32 %v1280, %v1268
    %v1285 = vmul.f32 %v1283, %v1275
    %v1286 = vadd.f32 %v1284, %v1285
    %v1287 = vmul.f32 %v1280, %v1270
    %v1288 = vadd.f32 %v1287, %v1283
    %v1289 = vrcp.pop %v1288
    %v1290 = vmul.f32 %v1286, %v1289
    %v1291 = vsub.f32 %v1259, %v1095
    %v1292 = vmax.f32 %v1291, %v1273
    %v1293 = vsub.f32 %v1291, %v1292
    %v1294 = vmul.f32 %v1293, 1.442695
    %v1295 = vpow.pop %v1294
    %v1296 = vsub.f32 %v1273, %v1292
    %v1297 = vmul.f32 %v1296, 1.442695
    %v1298 = vpow.pop %v1297
    %v1299 = vmul.f32 %v1295, %v1268
    %v1300 = vmul.f32 %v1298, %v1275
    %v1301 = vadd.f32 %v1299, %v1300
    %v1302 = vmul.f32 %v1295, %v1270
    %v1303 = vadd.f32 %v1302, %v1298
    %1304 = vst [vmem:[%s1272] sm:$0xff] %v1290
    %s1305 = scalar_lea.vmem [#allocation2], 48
    %v1306 = vld [vmem:[%s1305] sm:$0xff]
    %s1307 = scalar_lea.vmem [#allocation3], 48
    %v1308 = vld [vmem:[%s1307] sm:$0xff]
    %v1309 = vadd.f32 %v1102, %v1306
    %v1310 = vmax.f32 %v1309, %v1292
    %v1311 = vsub.f32 %v1292, %v1310
    %v1312 = vmul.f32 %v1311, 1.442695
    %v1313 = vpow.pop %v1312
    %v1314 = vsub.f32 %v1309, %v1310
    %v1315 = vmul.f32 %v1314, 1.442695
    %v1316 = vpow.pop %v1315
    %v1317 = vmul.f32 %v1313, %v1301
    %v1318 = vmul.f32 %v1316, %v1308
    %v1319 = vadd.f32 %v1317, %v1318
    %v1320 = vmul.f32 %v1313, %v1303
    %v1321 = vadd.f32 %v1320, %v1316
    %v1322 = vrcp.pop %v1321
    %v1323 = vmul.f32 %v1319, %v1322
    %v1324 = vsub.f32 %v1292, %v1095
    %v1325 = vmax.f32 %v1324, %v1306
    %v1326 = vsub.f32 %v1324, %v1325
    %v1327 = vmul.f32 %v1326, 1.442695
    %v1328 = vpow.pop %v1327
    %v1329 = vsub.f32 %v1306, %v1325
    %v1330 = vmul.f32 %v1329, 1.442695
    %v1331 = vpow.pop %v1330
    %v1332 = vmul.f32 %v1328, %v1301
    %v1333 = vmul.f32 %v1331, %v1308
    %v1334 = vadd.f32 %v1332, %v1333
    %v1335 = vmul.f32 %v1328, %v1303
    %v1336 = vadd.f32 %v1335, %v1331
    %1337 = vst [vmem:[%s1305] sm:$0xff] %v1323
    %s1338 = scalar_lea.vmem [#allocation2], 56
    %v1339 = vld [vmem:[%s1338] sm:$0xff]
    %s1340 = scalar_lea.vmem [#allocation3], 56
    %v1341 = vld [vmem:[%s1340] sm:$0xff]
    %v1342 = vadd.f32 %v1102, %v1339
    %v1343 = vmax.f32 %v1342, %v1325
    %v1344 = vsub.f32 %v1325, %v1343
    %v1345 = vmul.f32 %v1344, 1.442695
    %v1346 = vpow.pop %v1345
    %v1347 = vsub.f32 %v1342, %v1343
    %v1348 = vmul.f32 %v1347, 1.442695
    %v1349 = vpow.pop %v1348
    %v1350 = vmul.f32 %v1346, %v1334
    %v1351 = vmul.f32 %v1349, %v1341
    %v1352 = vadd.f32 %v1350, %v1351
    %v1353 = vmul.f32 %v1346, %v1336
    %v1354 = vadd.f32 %v1353, %v1349
    %v1355 = vrcp.pop %v1354
    %v1356 = vmul.f32 %v1352, %v1355
    %v1357 = vsub.f32 %v1325, %v1095
    %v1358 = vmax.f32 %v1357, %v1339
    %v1359 = vsub.f32 %v1357, %v1358
    %v1360 = vmul.f32 %v1359, 1.442695
    %v1361 = vpow.pop %v1360
    %v1362 = vsub.f32 %v1339, %v1358
    %v1363 = vmul.f32 %v1362, 1.442695
    %v1364 = vpow.pop %v1363
    %v1365 = vmul.f32 %v1361, %v1334
    %v1366 = vmul.f32 %v1364, %v1341
    %v1367 = vadd.f32 %v1365, %v1366
    %v1368 = vmul.f32 %v1361, %v1336
    %v1369 = vadd.f32 %v1368, %v1364
    %1370 = vst [vmem:[%s1338] sm:$0xff] %v1356
    %1371 = vst [vmem:[#allocation4] sm:$0xff] %v1367
    %1372 = vst [vmem:[%s1105] sm:$0xff] %v1369
    %1373 = vst [vmem:[%s1107] sm:$0xff] %v1358
    %v1374 = vld [vmem:[#allocation2] sm:$0xff]
    %v1375 = vld [vmem:[#allocation2 + $0x8] sm:$0xff]
    %v1376 = vld [vmem:[#allocation2 + $0x10] sm:$0xff]
    %v1377 = vld [vmem:[#allocation2 + $0x18] sm:$0xff]
    %v1378 = vld [vmem:[#allocation2 + $0x20] sm:$0xff]
    %v1379 = vld [vmem:[#allocation2 + $0x28] sm:$0xff]
    %v1380 = vld [vmem:[#allocation2 + $0x30] sm:$0xff]
    %v1381 = vld [vmem:[#allocation2 + $0x38] sm:$0xff]
    %v1382 = vmul.f32 %v1374, %v1057
    %v1383 = vmul.f32 %v1375, %v1059
    %v1384 = vmul.f32 %v1376, %v1061
    %v1385 = vmul.f32 %v1377, %v1063
    %v1386 = vmul.f32 %v1378, %v1065
    %v1387 = vmul.f32 %v1379, %v1067
    %v1388 = vmul.f32 %v1380, %v1069
    %v1389 = vmul.f32 %v1381, %v1071
    %v1390 = vpack.c.bf16 %v1383, %v1382
    %v1391 = vpack.c.bf16 %v1385, %v1384
    %v1392 = vpack.c.bf16 %v1387, %v1386
    %v1393 = vpack.c.bf16 %v1389, %v1388
    %v1394 = vld [vmem:[#allocation19] sm:$0xf]
    %v1395 = vld [vmem:[#allocation19 + $0x4] sm:$0xf]
    %v1396 = vld [vmem:[#allocation19 + $0x8] sm:$0xf]
    %v1397 = vld [vmem:[#allocation19 + $0xc] sm:$0xf]
    %v1398 = vld [vmem:[#allocation19 + $0x10] sm:$0xf]
    %v1399 = vld [vmem:[#allocation19 + $0x14] sm:$0xf]
    %v1400 = vld [vmem:[#allocation19 + $0x18] sm:$0xf]
    %v1401 = vld [vmem:[#allocation19 + $0x1c] sm:$0xf]
    %v1402 = vld [vmem:[#allocation19 + $0x20] sm:$0xf]
    %v1403 = vld [vmem:[#allocation19 + $0x24] sm:$0xf]
    %v1404 = vld [vmem:[#allocation19 + $0x28] sm:$0xf]
    %v1405 = vld [vmem:[#allocation19 + $0x2c] sm:$0xf]
    %v1406 = vld [vmem:[#allocation19 + $0x30] sm:$0xf]
    %v1407 = vld [vmem:[#allocation19 + $0x34] sm:$0xf]
    %v1408 = vld [vmem:[#allocation19 + $0x38] sm:$0xf]
    %v1409 = vld [vmem:[#allocation19 + $0x3c] sm:$0xf]
    %v1426 = vunpack.c.l.b16 %v1394
    %v1427 = vunpack.c.l.b16 %v1395
    %v1428 = vunpack.c.l.b16 %v1396
    %v1429 = vunpack.c.l.b16 %v1397
    %v1430 = vunpack.c.l.b16 %v1398
    %v1431 = vunpack.c.l.b16 %v1399
    %v1432 = vunpack.c.l.b16 %v1400
    %v1433 = vunpack.c.l.b16 %v1401
    %v1434 = vunpack.c.l.b16 %v1402
    %v1435 = vunpack.c.l.b16 %v1403
    %v1436 = vunpack.c.l.b16 %v1404
    %v1437 = vunpack.c.l.b16 %v1405
    %v1438 = vunpack.c.l.b16 %v1406
    %v1439 = vunpack.c.l.b16 %v1407
    %v1440 = vunpack.c.l.b16 %v1408
    %v1441 = vunpack.c.l.b16 %v1409
    %v1442 = vpack.c.b16 %v1427, %v1426
    %v1443 = vpack.c.b16 %v1429, %v1428
    %v1444 = vpack.c.b16 %v1431, %v1430
    %v1445 = vpack.c.b16 %v1433, %v1432
    %v1446 = vpack.c.b16 %v1435, %v1434
    %v1447 = vpack.c.b16 %v1437, %v1436
    %v1448 = vpack.c.b16 %v1439, %v1438
    %v1449 = vpack.c.b16 %v1441, %v1440
    %1458 = vmatprep.subr.bf16.mxu0 0
    %1459 = vmatpush1.bf16.msra.mxu0 %v1449
    %1460 = vmatprep.subr.bf16.mxu0 0
    %1461 = vmatpush1.bf16.msra.mxu0 %v1448
    %1462 = vmatprep.subr.bf16.mxu0 0
    %1463 = vmatpush1.bf16.msra.mxu0 %v1447
    %1464 = vmatprep.subr.bf16.mxu0 0
    %1465 = vmatpush1.bf16.msra.mxu0 %v1446
    %1466 = vmatprep.subr.bf16.mxu0 0
    %1467 = vmatpush1.bf16.msra.mxu0 %v1445
    %1468 = vmatprep.subr.bf16.mxu0 0
    %1469 = vmatpush1.bf16.msra.mxu0 %v1444
    %1470 = vmatprep.subr.bf16.mxu0 0
    %1471 = vmatpush1.bf16.msra.mxu0 %v1443
    %1472 = vmatprep.subr.bf16.mxu0 0
    %1473 = vmatpush1.bf16.msra.mxu0 %v1442
    %1474 = vmatprep.subr.bf16.mxu0 0
    %1475 = vmatpush2.bf16.msra.mxu0 0
    %1476 = vmatprep.subr.bf16.mxu0 0
    %1477 = vmatpush2.bf16.msra.mxu0 0
    %1478 = vmatprep.subr.bf16.mxu0 0
    %1479 = vmatpush2.bf16.msra.mxu0 0
    %1480 = vmatprep.subr.bf16.mxu0 0
    %1481 = vmatpush2.bf16.msra.mxu0 0
    %1482 = vmatprep.subr.bf16.mxu0 0
    %1483 = vmatpush2.bf16.msra.mxu0 0
    %1484 = vmatprep.subr.bf16.mxu0 0
    %1485 = vmatpush2.bf16.msra.mxu0 0
    %1486 = vmatprep.subr.bf16.mxu0 0
    %1487 = vmatpush2.bf16.msra.mxu0 0
    %1488 = vmatprep.subr.bf16.mxu0 0
    %1489 = vmatpush2.bf16.msra.mxu0 0
    %1490 = vmatprep.mubr.bf16.mxu0 0
    %1491 = vmatmul.mubr.bf16.gmra.mxu0 %v1390
    %v1492 = vpop.f32.mrf.mxu0
    %v1493 = vadd.f32 0.0, %v1492
    %v1494 = vpop.f32.mrf.mxu0
    %v1495 = vpop.f32.mrf.mxu0
    %v1496 = vadd.f32 0.0, %v1495
    %v1497 = vpop.f32.mrf.mxu0
    %1498 = vmatprep.mubr.bf16.mxu0 0
    %1499 = vmatmul.mubr.bf16.gmra.mxu0 %v1391
    %v1500 = vpop.f32.mrf.mxu0
    %v1501 = vadd.f32 0.0, %v1500
    %v1502 = vpop.f32.mrf.mxu0
    %v1503 = vpop.f32.mrf.mxu0
    %v1504 = vadd.f32 0.0, %v1503
    %v1505 = vpop.f32.mrf.mxu0
    %1506 = vmatprep.mubr.bf16.mxu0 0
    %1507 = vmatmul.mubr.bf16.gmra.mxu0 %v1392
    %v1508 = vpop.f32.mrf.mxu0
    %v1509 = vadd.f32 0.0, %v1508
    %v1510 = vpop.f32.mrf.mxu0
    %v1511 = vpop.f32.mrf.mxu0
    %v1512 = vadd.f32 0.0, %v1511
    %v1513 = vpop.f32.mrf.mxu0
    %1514 = vmatprep.mubr.bf16.mxu0 0
    %1515 = vmatmul.mubr.bf16.gmra.mxu0 %v1393
    %v1516 = vpop.f32.mrf.mxu0
    %v1517 = vadd.f32 0.0, %v1516
    %v1518 = vpop.f32.mrf.mxu0
    %v1519 = vpop.f32.mrf.mxu0
    %v1520 = vadd.f32 0.0, %v1519
    %v1521 = vpop.f32.mrf.mxu0
    %1522 = vdwg.mxu0
    %v1523 = vadd.f32 %v375, %v1493
    %v1524 = vadd.f32 %v376, %v1496
    %v1525 = vadd.f32 %v377, %v1501
    %v1526 = vadd.f32 %v378, %v1504
    %v1527 = vadd.f32 %v379, %v1509
    %v1528 = vadd.f32 %v380, %v1512
    %v1529 = vadd.f32 %v381, %v1517
    %v1530 = vadd.f32 %v382, %v1520
    %v1531 = vld [vmem:[%s8] sm:$0x1]
    %v1532 = vld [vmem:[%s9] sm:$0x1]
    %1533 = vadd.xlane.f32.xlu0 %v1523
    %v1534 = vpop.xlane.xlu0 %1533
    %1535 = vadd.xlane.f32.xlu0 %v1524
    %v1536 = vpop.xlane.xlu0 %1535
    %1537 = vadd.xlane.f32.xlu0 %v1525
    %v1538 = vpop.xlane.xlu0 %1537
    %1539 = vadd.xlane.f32.xlu0 %v1526
    %v1540 = vpop.xlane.xlu0 %1539
    %1541 = vadd.xlane.f32.xlu0 %v1527
    %v1542 = vpop.xlane.xlu0 %1541
    %1543 = vadd.xlane.f32.xlu0 %v1528
    %v1544 = vpop.xlane.xlu0 %1543
    %1545 = vadd.xlane.f32.xlu0 %v1529
    %v1546 = vpop.xlane.xlu0 %1545
    %1547 = vadd.xlane.f32.xlu0 %v1530
    %v1548 = vpop.xlane.xlu0 %1547
    %v1549 = vmul.f32 %v1534, 0.03125
    %v1550 = vmul.f32 %v1536, 0.03125
    %v1551 = vmul.f32 %v1538, 0.03125
    %v1552 = vmul.f32 %v1540, 0.03125
    %v1553 = vmul.f32 %v1542, 0.03125
    %v1554 = vmul.f32 %v1544, 0.03125
    %v1555 = vmul.f32 %v1546, 0.03125
    %v1556 = vmul.f32 %v1548, 0.03125
    %v1557 = vsub.f32 %v1523, %v1549
    %v1558 = vsub.f32 %v1524, %v1550
    %v1559 = vsub.f32 %v1525, %v1551
    %v1560 = vsub.f32 %v1526, %v1552
    %v1561 = vsub.f32 %v1527, %v1553
    %v1562 = vsub.f32 %v1528, %v1554
    %v1563 = vsub.f32 %v1529, %v1555
    %v1564 = vsub.f32 %v1530, %v1556
    %v1565 = vmul.f32 %v1557, %v248
    %v1566 = vmul.f32 %v1558, %v248
    %v1567 = vmul.f32 %v1559, %v248
    %v1568 = vmul.f32 %v1560, %v248
    %v1569 = vmul.f32 %v1561, %v248
    %v1570 = vmul.f32 %v1562, %v248
    %v1571 = vmul.f32 %v1563, %v248
    %v1572 = vmul.f32 %v1564, %v248
    %v1573 = vmul.f32 %v1565, %v1565
    %v1574 = vmul.f32 %v1566, %v1566
    %v1575 = vmul.f32 %v1567, %v1567
    %v1576 = vmul.f32 %v1568, %v1568
    %v1577 = vmul.f32 %v1569, %v1569
    %v1578 = vmul.f32 %v1570, %v1570
    %v1579 = vmul.f32 %v1571, %v1571
    %v1580 = vmul.f32 %v1572, %v1572
    %1581 = vadd.xlane.f32.xlu0 %v1573
    %v1582 = vpop.xlane.xlu0 %1581
    %1583 = vadd.xlane.f32.xlu0 %v1574
    %v1584 = vpop.xlane.xlu0 %1583
    %1585 = vadd.xlane.f32.xlu0 %v1575
    %v1586 = vpop.xlane.xlu0 %1585
    %1587 = vadd.xlane.f32.xlu0 %v1576
    %v1588 = vpop.xlane.xlu0 %1587
    %1589 = vadd.xlane.f32.xlu0 %v1577
    %v1590 = vpop.xlane.xlu0 %1589
    %1591 = vadd.xlane.f32.xlu0 %v1578
    %v1592 = vpop.xlane.xlu0 %1591
    %1593 = vadd.xlane.f32.xlu0 %v1579
    %v1594 = vpop.xlane.xlu0 %1593
    %1595 = vadd.xlane.f32.xlu0 %v1580
    %v1596 = vpop.xlane.xlu0 %1595
    %v1597 = vmul.f32 %v1582, 0.03125
    %v1598 = vmul.f32 %v1584, 0.03125
    %v1599 = vmul.f32 %v1586, 0.03125
    %v1600 = vmul.f32 %v1588, 0.03125
    %v1601 = vmul.f32 %v1590, 0.03125
    %v1602 = vmul.f32 %v1592, 0.03125
    %v1603 = vmul.f32 %v1594, 0.03125
    %v1604 = vmul.f32 %v1596, 0.03125
    %v1605 = vadd.f32 %v1597, 1e-05
    %v1606 = vadd.f32 %v1598, 1e-05
    %v1607 = vadd.f32 %v1599, 1e-05
    %v1608 = vadd.f32 %v1600, 1e-05
    %v1609 = vadd.f32 %v1601, 1e-05
    %v1610 = vadd.f32 %v1602, 1e-05
    %v1611 = vadd.f32 %v1603, 1e-05
    %v1612 = vadd.f32 %v1604, 1e-05
    %v1613 = vrsqrt.pop %v1605
    %v1614 = vrsqrt.pop %v1606
    %v1615 = vrsqrt.pop %v1607
    %v1616 = vrsqrt.pop %v1608
    %v1617 = vrsqrt.pop %v1609
    %v1618 = vrsqrt.pop %v1610
    %v1619 = vrsqrt.pop %v1611
    %v1620 = vrsqrt.pop %v1612
    %v1621 = vmul.f32 %v1565, %v1613
    %v1622 = vmul.f32 %v1566, %v1614
    %v1623 = vmul.f32 %v1567, %v1615
    %v1624 = vmul.f32 %v1568, %v1616
    %v1625 = vmul.f32 %v1569, %v1617
    %v1626 = vmul.f32 %v1570, %v1618
    %v1627 = vmul.f32 %v1571, %v1619
    %v1628 = vmul.f32 %v1572, %v1620
    %v1630 = vlaneseq
    %v1631 = vshrl.u32 %v1630, 7
    %v1632 = vsub.s32 0, %v1631
    %v1633 = vrot.slane %v1531, %v1632
    %v1635 = vmul.f32 %v1621, %v1633
    %v1636 = vmul.f32 %v1622, %v1633
    %v1637 = vmul.f32 %v1623, %v1633
    %v1638 = vmul.f32 %v1624, %v1633
    %v1639 = vmul.f32 %v1625, %v1633
    %v1640 = vmul.f32 %v1626, %v1633
    %v1641 = vmul.f32 %v1627, %v1633
    %v1642 = vmul.f32 %v1628, %v1633
    %v1644 = vlaneseq
    %v1645 = vshrl.u32 %v1644, 7
    %v1646 = vsub.s32 0, %v1645
    %v1647 = vrot.slane %v1532, %v1646
    %v1649 = vadd.f32 %v1635, %v1647
    %v1650 = vadd.f32 %v1636, %v1647
    %v1651 = vadd.f32 %v1637, %v1647
    %v1652 = vadd.f32 %v1638, %v1647
    %v1653 = vadd.f32 %v1639, %v1647
    %v1654 = vadd.f32 %v1640, %v1647
    %v1655 = vadd.f32 %v1641, %v1647
    %v1656 = vadd.f32 %v1642, %v1647
    %v1657 = vld [vmem:[#allocation6] sm:$0xff]
    %1658 = vst [vmem:[#allocation6] sm:$0xff] %v1656
    %v1659 = vld [vmem:[%s19] sm:$0x1]
    %v1660 = vld [vmem:[%s20] sm:$0x1]
    %v1662 = vlaneseq
    %v1663 = vshrl.u32 %v1662, 7
    %v1664 = vsub.s32 0, %v1663
    %v1665 = vrot.slane %v1659, %v1664
    %v1667 = vmul.f32 %v1649, %v1665
    %v1668 = vmul.f32 %v1650, %v1665
    %v1669 = vmul.f32 %v1651, %v1665
    %v1670 = vmul.f32 %v1652, %v1665
    %v1671 = vmul.f32 %v1653, %v1665
    %v1672 = vmul.f32 %v1654, %v1665
    %v1673 = vmul.f32 %v1655, %v1665
    %v1674 = vmul.f32 %v1656, %v1665
    %v1675 = vsub.f32 1.0, %v1659
    %v1677 = vlaneseq
    %v1678 = vshrl.u32 %v1677, 7
    %v1679 = vsub.s32 0, %v1678
    %v1680 = vrot.slane %v1675, %v1679
    %v1682 = vmul.f32 %v1657, %v1680
    %v1683 = vmul.f32 %v1649, %v1680
    %v1684 = vmul.f32 %v1650, %v1680
    %v1685 = vmul.f32 %v1651, %v1680
    %v1686 = vmul.f32 %v1652, %v1680
    %v1687 = vmul.f32 %v1653, %v1680
    %v1688 = vmul.f32 %v1654, %v1680
    %v1689 = vmul.f32 %v1655, %v1680
    %v1690 = vadd.f32 %v1667, %v1682
    %v1691 = vadd.f32 %v1668, %v1683
    %v1692 = vadd.f32 %v1669, %v1684
    %v1693 = vadd.f32 %v1670, %v1685
    %v1694 = vadd.f32 %v1671, %v1686
    %v1695 = vadd.f32 %v1672, %v1687
    %v1696 = vadd.f32 %v1673, %v1688
    %v1697 = vadd.f32 %v1674, %v1689
    %v1699 = vlaneseq
    %v1700 = vshrl.u32 %v1699, 7
    %v1701 = vsub.s32 0, %v1700
    %v1702 = vrot.slane %v1660, %v1701
    %v1704 = vmul.f32 %v1649, %v1702
    %v1705 = vmul.f32 %v1650, %v1702
    %v1706 = vmul.f32 %v1651, %v1702
    %v1707 = vmul.f32 %v1652, %v1702
    %v1708 = vmul.f32 %v1653, %v1702
    %v1709 = vmul.f32 %v1654, %v1702
    %v1710 = vmul.f32 %v1655, %v1702
    %v1711 = vmul.f32 %v1656, %v1702
    %v1712 = vsub.f32 1.0, %v1660
    %v1714 = vlaneseq
    %v1715 = vshrl.u32 %v1714, 7
    %v1716 = vsub.s32 0, %v1715
    %v1717 = vrot.slane %v1712, %v1716
    %v1719 = vmul.f32 %v1657, %v1717
    %v1720 = vmul.f32 %v1649, %v1717
    %v1721 = vmul.f32 %v1650, %v1717
    %v1722 = vmul.f32 %v1651, %v1717
    %v1723 = vmul.f32 %v1652, %v1717
    %v1724 = vmul.f32 %v1653, %v1717
    %v1725 = vmul.f32 %v1654, %v1717
    %v1726 = vmul.f32 %v1655, %v1717
    %v1727 = vadd.f32 %v1704, %v1719
    %v1728 = vadd.f32 %v1705, %v1720
    %v1729 = vadd.f32 %v1706, %v1721
    %v1730 = vadd.f32 %v1707, %v1722
    %v1731 = vadd.f32 %v1708, %v1723
    %v1732 = vadd.f32 %v1709, %v1724
    %v1733 = vadd.f32 %v1710, %v1725
    %v1734 = vadd.f32 %v1711, %v1726
    %v1735 = vpack.c.bf16 %v1691, %v1690
    %v1736 = vpack.c.bf16 %v1693, %v1692
    %v1737 = vpack.c.bf16 %v1695, %v1694
    %v1738 = vpack.c.bf16 %v1697, %v1696
    %v1739 = vld [vmem:[#allocation21] sm:$0xf]
    %v1740 = vld [vmem:[#allocation21 + $0x4] sm:$0xf]
    %v1741 = vld [vmem:[#allocation21 + $0x8] sm:$0xf]
    %v1742 = vld [vmem:[#allocation21 + $0xc] sm:$0xf]
    %v1743 = vld [vmem:[#allocation21 + $0x10] sm:$0xf]
    %v1744 = vld [vmem:[#allocation21 + $0x14] sm:$0xf]
    %v1745 = vld [vmem:[#allocation21 + $0x18] sm:$0xf]
    %v1746 = vld [vmem:[#allocation21 + $0x1c] sm:$0xf]
    %v1747 = vld [vmem:[#allocation21 + $0x20] sm:$0xf]
    %v1748 = vld [vmem:[#allocation21 + $0x24] sm:$0xf]
    %v1749 = vld [vmem:[#allocation21 + $0x28] sm:$0xf]
    %v1750 = vld [vmem:[#allocation21 + $0x2c] sm:$0xf]
    %v1751 = vld [vmem:[#allocation21 + $0x30] sm:$0xf]
    %v1752 = vld [vmem:[#allocation21 + $0x34] sm:$0xf]
    %v1753 = vld [vmem:[#allocation21 + $0x38] sm:$0xf]
    %v1754 = vld [vmem:[#allocation21 + $0x3c] sm:$0xf]
    %v1771 = vunpack.c.l.b16 %v1739
    %v1772 = vunpack.c.l.b16 %v1740
    %v1773 = vunpack.c.l.b16 %v1741
    %v1774 = vunpack.c.l.b16 %v1742
    %v1775 = vunpack.c.l.b16 %v1743
    %v1776 = vunpack.c.l.b16 %v1744
    %v1777 = vunpack.c.l.b16 %v1745
    %v1778 = vunpack.c.l.b16 %v1746
    %v1779 = vunpack.c.l.b16 %v1747
    %v1780 = vunpack.c.l.b16 %v1748
    %v1781 = vunpack.c.l.b16 %v1749
    %v1782 = vunpack.c.l.b16 %v1750
    %v1783 = vunpack.c.l.b16 %v1751
    %v1784 = vunpack.c.l.b16 %v1752
    %v1785 = vunpack.c.l.b16 %v1753
    %v1786 = vunpack.c.l.b16 %v1754
    %v1787 = vpack.c.b16 %v1772, %v1771
    %v1788 = vpack.c.b16 %v1774, %v1773
    %v1789 = vpack.c.b16 %v1776, %v1775
    %v1790 = vpack.c.b16 %v1778, %v1777
    %v1791 = vpack.c.b16 %v1780, %v1779
    %v1792 = vpack.c.b16 %v1782, %v1781
    %v1793 = vpack.c.b16 %v1784, %v1783
    %v1794 = vpack.c.b16 %v1786, %v1785
    %1803 = vmatprep.subr.bf16.mxu0 0
    %1804 = vmatpush1.bf16.msra.mxu0 %v1794
    %1805 = vmatprep.subr.bf16.mxu0 0
    %1806 = vmatpush1.bf16.msra.mxu0 %v1793
    %1807 = vmatprep.subr.bf16.mxu0 0
    %1808 = vmatpush1.bf16.msra.mxu0 %v1792
    %1809 = vmatprep.subr.bf16.mxu0 0
    %1810 = vmatpush1.bf16.msra.mxu0 %v1791
    %1811 = vmatprep.subr.bf16.mxu0 0
    %1812 = vmatpush1.bf16.msra.mxu0 %v1790
    %1813 = vmatprep.subr.bf16.mxu0 0
    %1814 = vmatpush1.bf16.msra.mxu0 %v1789
    %1815 = vmatprep.subr.bf16.mxu0 0
    %1816 = vmatpush1.bf16.msra.mxu0 %v1788
    %1817 = vmatprep.subr.bf16.mxu0 0
    %1818 = vmatpush1.bf16.msra.mxu0 %v1787
    %1819 = vmatprep.subr.bf16.mxu0 0
    %1820 = vmatpush2.bf16.msra.mxu0 0
    %1821 = vmatprep.subr.bf16.mxu0 0
    %1822 = vmatpush2.bf16.msra.mxu0 0
    %1823 = vmatprep.subr.bf16.mxu0 0
    %1824 = vmatpush2.bf16.msra.mxu0 0
    %1825 = vmatprep.subr.bf16.mxu0 0
    %1826 = vmatpush2.bf16.msra.mxu0 0
    %1827 = vmatprep.subr.bf16.mxu0 0
    %1828 = vmatpush2.bf16.msra.mxu0 0
    %1829 = vmatprep.subr.bf16.mxu0 0
    %1830 = vmatpush2.bf16.msra.mxu0 0
    %1831 = vmatprep.subr.bf16.mxu0 0
    %1832 = vmatpush2.bf16.msra.mxu0 0
    %1833 = vmatprep.subr.bf16.mxu0 0
    %1834 = vmatpush2.bf16.msra.mxu0 0
    %1835 = vmatprep.mubr.bf16.mxu0 0
    %1836 = vmatmul.mubr.bf16.gmra.mxu0 %v1735
    %v1837 = vpop.f32.mrf.mxu0
    %v1838 = vadd.f32 0.0, %v1837
    %v1839 = vpop.f32.mrf.mxu0
    %v1840 = vpop.f32.mrf.mxu0
    %v1841 = vadd.f32 0.0, %v1840
    %v1842 = vpop.f32.mrf.mxu0
    %1843 = vmatprep.mubr.bf16.mxu0 0
    %1844 = vmatmul.mubr.bf16.gmra.mxu0 %v1736
    %v1845 = vpop.f32.mrf.mxu0
    %v1846 = vadd.f32 0.0, %v1845
    %v1847 = vpop.f32.mrf.mxu0
    %v1848 = vpop.f32.mrf.mxu0
    %v1849 = vadd.f32 0.0, %v1848
    %v1850 = vpop.f32.mrf.mxu0
    %1851 = vmatprep.mubr.bf16.mxu0 0
    %1852 = vmatmul.mubr.bf16.gmra.mxu0 %v1737
    %v1853 = vpop.f32.mrf.mxu0
    %v1854 = vadd.f32 0.0, %v1853
    %v1855 = vpop.f32.mrf.mxu0
    %v1856 = vpop.f32.mrf.mxu0
    %v1857 = vadd.f32 0.0, %v1856
    %v1858 = vpop.f32.mrf.mxu0
    %1859 = vmatprep.mubr.bf16.mxu0 0
    %1860 = vmatmul.mubr.bf16.gmra.mxu0 %v1738
    %v1861 = vpop.f32.mrf.mxu0
    %v1862 = vadd.f32 0.0, %v1861
    %v1863 = vpop.f32.mrf.mxu0
    %v1864 = vpop.f32.mrf.mxu0
    %v1865 = vadd.f32 0.0, %v1864
    %v1866 = vpop.f32.mrf.mxu0
    %1867 = vdwg.mxu0
    %v1868 = vpack.c.bf16 %v1728, %v1727
    %v1869 = vpack.c.bf16 %v1730, %v1729
    %v1870 = vpack.c.bf16 %v1732, %v1731
    %v1871 = vpack.c.bf16 %v1734, %v1733
    %v1872 = vld [vmem:[#allocation22] sm:$0xf]
    %v1873 = vld [vmem:[#allocation22 + $0x4] sm:$0xf]
    %v1874 = vld [vmem:[#allocation22 + $0x8] sm:$0xf]
    %v1875 = vld [vmem:[#allocation22 + $0xc] sm:$0xf]
    %v1876 = vld [vmem:[#allocation22 + $0x10] sm:$0xf]
    %v1877 = vld [vmem:[#allocation22 + $0x14] sm:$0xf]
    %v1878 = vld [vmem:[#allocation22 + $0x18] sm:$0xf]
    %v1879 = vld [vmem:[#allocation22 + $0x1c] sm:$0xf]
    %v1880 = vld [vmem:[#allocation22 + $0x20] sm:$0xf]
    %v1881 = vld [vmem:[#allocation22 + $0x24] sm:$0xf]
    %v1882 = vld [vmem:[#allocation22 + $0x28] sm:$0xf]
    %v1883 = vld [vmem:[#allocation22 + $0x2c] sm:$0xf]
    %v1884 = vld [vmem:[#allocation22 + $0x30] sm:$0xf]
    %v1885 = vld [vmem:[#allocation22 + $0x34] sm:$0xf]
    %v1886 = vld [vmem:[#allocation22 + $0x38] sm:$0xf]
    %v1887 = vld [vmem:[#allocation22 + $0x3c] sm:$0xf]
    %v1904 = vunpack.c.l.b16 %v1872
    %v1905 = vunpack.c.l.b16 %v1873
    %v1906 = vunpack.c.l.b16 %v1874
    %v1907 = vunpack.c.l.b16 %v1875
    %v1908 = vunpack.c.l.b16 %v1876
    %v1909 = vunpack.c.l.b16 %v1877
    %v1910 = vunpack.c.l.b16 %v1878
    %v1911 = vunpack.c.l.b16 %v1879
    %v1912 = vunpack.c.l.b16 %v1880
    %v1913 = vunpack.c.l.b16 %v1881
    %v1914 = vunpack.c.l.b16 %v1882
    %v1915 = vunpack.c.l.b16 %v1883
    %v1916 = vunpack.c.l.b16 %v1884
    %v1917 = vunpack.c.l.b16 %v1885
    %v1918 = vunpack.c.l.b16 %v1886
    %v1919 = vunpack.c.l.b16 %v1887
    %v1920 = vpack.c.b16 %v1905, %v1904
    %v1921 = vpack.c.b16 %v1907, %v1906
    %v1922 = vpack.c.b16 %v1909, %v1908
    %v1923 = vpack.c.b16 %v1911, %v1910
    %v1924 = vpack.c.b16 %v1913, %v1912
    %v1925 = vpack.c.b16 %v1915, %v1914
    %v1926 = vpack.c.b16 %v1917, %v1916
    %v1927 = vpack.c.b16 %v1919, %v1918
    %1936 = vmatprep.subr.bf16.mxu0 0
    %1937 = vmatpush1.bf16.msra.mxu0 %v1927
    %1938 = vmatprep.subr.bf16.mxu0 0
    %1939 = vmatpush1.bf16.msra.mxu0 %v1926
    %1940 = vmatprep.subr.bf16.mxu0 0
    %1941 = vmatpush1.bf16.msra.mxu0 %v1925
    %1942 = vmatprep.subr.bf16.mxu0 0
    %1943 = vmatpush1.bf16.msra.mxu0 %v1924
    %1944 = vmatprep.subr.bf16.mxu0 0
    %1945 = vmatpush1.bf16.msra.mxu0 %v1923
    %1946 = vmatprep.subr.bf16.mxu0 0
    %1947 = vmatpush1.bf16.msra.mxu0 %v1922
    %1948 = vmatprep.subr.bf16.mxu0 0
    %1949 = vmatpush1.bf16.msra.mxu0 %v1921
    %1950 = vmatprep.subr.bf16.mxu0 0
    %1951 = vmatpush1.bf16.msra.mxu0 %v1920
    %1952 = vmatprep.subr.bf16.mxu0 0
    %1953 = vmatpush2.bf16.msra.mxu0 0
    %1954 = vmatprep.subr.bf16.mxu0 0
    %1955 = vmatpush2.bf16.msra.mxu0 0
    %1956 = vmatprep.subr.bf16.mxu0 0
    %1957 = vmatpush2.bf16.msra.mxu0 0
    %1958 = vmatprep.subr.bf16.mxu0 0
    %1959 = vmatpush2.bf16.msra.mxu0 0
    %1960 = vmatprep.subr.bf16.mxu0 0
    %1961 = vmatpush2.bf16.msra.mxu0 0
    %1962 = vmatprep.subr.bf16.mxu0 0
    %1963 = vmatpush2.bf16.msra.mxu0 0
    %1964 = vmatprep.subr.bf16.mxu0 0
    %1965 = vmatpush2.bf16.msra.mxu0 0
    %1966 = vmatprep.subr.bf16.mxu0 0
    %1967 = vmatpush2.bf16.msra.mxu0 0
    %1968 = vmatprep.mubr.bf16.mxu0 0
    %1969 = vmatmul.mubr.bf16.gmra.mxu0 %v1868
    %v1970 = vpop.f32.mrf.mxu0
    %v1971 = vadd.f32 0.0, %v1970
    %v1972 = vpop.f32.mrf.mxu0
    %v1973 = vpop.f32.mrf.mxu0
    %v1974 = vadd.f32 0.0, %v1973
    %v1975 = vpop.f32.mrf.mxu0
    %1976 = vmatprep.mubr.bf16.mxu0 0
    %1977 = vmatmul.mubr.bf16.gmra.mxu0 %v1869
    %v1978 = vpop.f32.mrf.mxu0
    %v1979 = vadd.f32 0.0, %v1978
    %v1980 = vpop.f32.mrf.mxu0
    %v1981 = vpop.f32.mrf.mxu0
    %v1982 = vadd.f32 0.0, %v1981
    %v1983 = vpop.f32.mrf.mxu0
    %1984 = vmatprep.mubr.bf16.mxu0 0
    %1985 = vmatmul.mubr.bf16.gmra.mxu0 %v1870
    %v1986 = vpop.f32.mrf.mxu0
    %v1987 = vadd.f32 0.0, %v1986
    %v1988 = vpop.f32.mrf.mxu0
    %v1989 = vpop.f32.mrf.mxu0
    %v1990 = vadd.f32 0.0, %v1989
    %v1991 = vpop.f32.mrf.mxu0
    %1992 = vmatprep.mubr.bf16.mxu0 0
    %1993 = vmatmul.mubr.bf16.gmra.mxu0 %v1871
    %v1994 = vpop.f32.mrf.mxu0
    %v1995 = vadd.f32 0.0, %v1994
    %v1996 = vpop.f32.mrf.mxu0
    %v1997 = vpop.f32.mrf.mxu0
    %v1998 = vadd.f32 0.0, %v1997
    %v1999 = vpop.f32.mrf.mxu0
    %2000 = vdwg.mxu0
    %v2001 = vmax.f32 %v1838, 0.0
    %v2002 = vmax.f32 %v1841, 0.0
    %v2003 = vmax.f32 %v1846, 0.0
    %v2004 = vmax.f32 %v1849, 0.0
    %v2005 = vmax.f32 %v1854, 0.0
    %v2006 = vmax.f32 %v1857, 0.0
    %v2007 = vmax.f32 %v1862, 0.0
    %v2008 = vmax.f32 %v1865, 0.0
    %v2009 = vmul.f32 %v2001, %v2001
    %v2010 = vmul.f32 %v2002, %v2002
    %v2011 = vmul.f32 %v2003, %v2003
    %v2012 = vmul.f32 %v2004, %v2004
    %v2013 = vmul.f32 %v2005, %v2005
    %v2014 = vmul.f32 %v2006, %v2006
    %v2015 = vmul.f32 %v2007, %v2007
    %v2016 = vmul.f32 %v2008, %v2008
    %v2017 = vpack.c.bf16 %v2010, %v2009
    %v2018 = vpack.c.bf16 %v2012, %v2011
    %v2019 = vpack.c.bf16 %v2014, %v2013
    %v2020 = vpack.c.bf16 %v2016, %v2015
    %v2021 = vld [vmem:[#allocation24] sm:$0xf]
    %v2022 = vld [vmem:[#allocation24 + $0x4] sm:$0xf]
    %v2023 = vld [vmem:[#allocation24 + $0x8] sm:$0xf]
    %v2024 = vld [vmem:[#allocation24 + $0xc] sm:$0xf]
    %v2025 = vld [vmem:[#allocation24 + $0x10] sm:$0xf]
    %v2026 = vld [vmem:[#allocation24 + $0x14] sm:$0xf]
    %v2027 = vld [vmem:[#allocation24 + $0x18] sm:$0xf]
    %v2028 = vld [vmem:[#allocation24 + $0x1c] sm:$0xf]
    %v2029 = vld [vmem:[#allocation24 + $0x20] sm:$0xf]
    %v2030 = vld [vmem:[#allocation24 + $0x24] sm:$0xf]
    %v2031 = vld [vmem:[#allocation24 + $0x28] sm:$0xf]
    %v2032 = vld [vmem:[#allocation24 + $0x2c] sm:$0xf]
    %v2033 = vld [vmem:[#allocation24 + $0x30] sm:$0xf]
    %v2034 = vld [vmem:[#allocation24 + $0x34] sm:$0xf]
    %v2035 = vld [vmem:[#allocation24 + $0x38] sm:$0xf]
    %v2036 = vld [vmem:[#allocation24 + $0x3c] sm:$0xf]
    %v2053 = vunpack.c.l.b16 %v2021
    %v2054 = vunpack.c.l.b16 %v2022
    %v2055 = vunpack.c.l.b16 %v2023
    %v2056 = vunpack.c.l.b16 %v2024
    %v2057 = vunpack.c.l.b16 %v2025
    %v2058 = vunpack.c.l.b16 %v2026
    %v2059 = vunpack.c.l.b16 %v2027
    %v2060 = vunpack.c.l.b16 %v2028
    %v2061 = vunpack.c.l.b16 %v2029
    %v2062 = vunpack.c.l.b16 %v2030
    %v2063 = vunpack.c.l.b16 %v2031
    %v2064 = vunpack.c.l.b16 %v2032
    %v2065 = vunpack.c.l.b16 %v2033
    %v2066 = vunpack.c.l.b16 %v2034
    %v2067 = vunpack.c.l.b16 %v2035
    %v2068 = vunpack.c.l.b16 %v2036
    %v2069 = vpack.c.b16 %v2054, %v2053
    %v2070 = vpack.c.b16 %v2056, %v2055
    %v2071 = vpack.c.b16 %v2058, %v2057
    %v2072 = vpack.c.b16 %v2060, %v2059
    %v2073 = vpack.c.b16 %v2062, %v2061
    %v2074 = vpack.c.b16 %v2064, %v2063
    %v2075 = vpack.c.b16 %v2066, %v2065
    %v2076 = vpack.c.b16 %v2068, %v2067
    %2085 = vmatprep.subr.bf16.mxu0 0
    %2086 = vmatpush1.bf16.msra.mxu0 %v2076
    %2087 = vmatprep.subr.bf16.mxu0 0
    %2088 = vmatpush1.bf16.msra.mxu0 %v2075
    %2089 = vmatprep.subr.bf16.mxu0 0
    %2090 = vmatpush1.bf16.msra.mxu0 %v2074
    %2091 = vmatprep.subr.bf16.mxu0 0
    %2092 = vmatpush1.bf16.msra.mxu0 %v2073
    %2093 = vmatprep.subr.bf16.mxu0 0
    %2094 = vmatpush1.bf16.msra.mxu0 %v2072
    %2095 = vmatprep.subr.bf16.mxu0 0
    %2096 = vmatpush1.bf16.msra.mxu0 %v2071
    %2097 = vmatprep.subr.bf16.mxu0 0
    %2098 = vmatpush1.bf16.msra.mxu0 %v2070
    %2099 = vmatprep.subr.bf16.mxu0 0
    %2100 = vmatpush1.bf16.msra.mxu0 %v2069
    %2101 = vmatprep.subr.bf16.mxu0 0
    %2102 = vmatpush2.bf16.msra.mxu0 0
    %2103 = vmatprep.subr.bf16.mxu0 0
    %2104 = vmatpush2.bf16.msra.mxu0 0
    %2105 = vmatprep.subr.bf16.mxu0 0
    %2106 = vmatpush2.bf16.msra.mxu0 0
    %2107 = vmatprep.subr.bf16.mxu0 0
    %2108 = vmatpush2.bf16.msra.mxu0 0
    %2109 = vmatprep.subr.bf16.mxu0 0
    %2110 = vmatpush2.bf16.msra.mxu0 0
    %2111 = vmatprep.subr.bf16.mxu0 0
    %2112 = vmatpush2.bf16.msra.mxu0 0
    %2113 = vmatprep.subr.bf16.mxu0 0
    %2114 = vmatpush2.bf16.msra.mxu0 0
    %2115 = vmatprep.subr.bf16.mxu0 0
    %2116 = vmatpush2.bf16.msra.mxu0 0
    %2117 = vmatprep.mubr.bf16.mxu0 0
    %2118 = vmatmul.mubr.bf16.gmra.mxu0 %v2017
    %v2119 = vpop.f32.mrf.mxu0
    %v2120 = vadd.f32 0.0, %v2119
    %v2121 = vpop.f32.mrf.mxu0
    %v2122 = vpop.f32.mrf.mxu0
    %v2123 = vadd.f32 0.0, %v2122
    %v2124 = vpop.f32.mrf.mxu0
    %2125 = vmatprep.mubr.bf16.mxu0 0
    %2126 = vmatmul.mubr.bf16.gmra.mxu0 %v2018
    %v2127 = vpop.f32.mrf.mxu0
    %v2128 = vadd.f32 0.0, %v2127
    %v2129 = vpop.f32.mrf.mxu0
    %v2130 = vpop.f32.mrf.mxu0
    %v2131 = vadd.f32 0.0, %v2130
    %v2132 = vpop.f32.mrf.mxu0
    %2133 = vmatprep.mubr.bf16.mxu0 0
    %2134 = vmatmul.mubr.bf16.gmra.mxu0 %v2019
    %v2135 = vpop.f32.mrf.mxu0
    %v2136 = vadd.f32 0.0, %v2135
    %v2137 = vpop.f32.mrf.mxu0
    %v2138 = vpop.f32.mrf.mxu0
    %v2139 = vadd.f32 0.0, %v2138
    %v2140 = vpop.f32.mrf.mxu0
    %2141 = vmatprep.mubr.bf16.mxu0 0
    %2142 = vmatmul.mubr.bf16.gmra.mxu0 %v2020
    %v2143 = vpop.f32.mrf.mxu0
    %v2144 = vadd.f32 0.0, %v2143
    %v2145 = vpop.f32.mrf.mxu0
    %v2146 = vpop.f32.mrf.mxu0
    %v2147 = vadd.f32 0.0, %v2146
    %v2148 = vpop.f32.mrf.mxu0
    %2149 = vdwg.mxu0
    %v2150 = vxor.u32 %v1971, 2147483648
    %v2151 = vxor.u32 %v1974, 2147483648
    %v2152 = vxor.u32 %v1979, 2147483648
    %v2153 = vxor.u32 %v1982, 2147483648
    %v2154 = vxor.u32 %v1987, 2147483648
    %v2155 = vxor.u32 %v1990, 2147483648
    %v2156 = vxor.u32 %v1995, 2147483648
    %v2157 = vxor.u32 %v1998, 2147483648
    %v2158 = vmul.f32 %v2150, 1.442695
    %v2159 = vpow.pop %v2158
    %v2160 = vmul.f32 %v2151, 1.442695
    %v2161 = vpow.pop %v2160
    %v2162 = vmul.f32 %v2152, 1.442695
    %v2163 = vpow.pop %v2162
    %v2164 = vmul.f32 %v2153, 1.442695
    %v2165 = vpow.pop %v2164
    %v2166 = vmul.f32 %v2154, 1.442695
    %v2167 = vpow.pop %v2166
    %v2168 = vmul.f32 %v2155, 1.442695
    %v2169 = vpow.pop %v2168
    %v2170 = vmul.f32 %v2156, 1.442695
    %v2171 = vpow.pop %v2170
    %v2172 = vmul.f32 %v2157, 1.442695
    %v2173 = vpow.pop %v2172
    %v2174 = vadd.f32 %v2159, 1.0
    %v2175 = vadd.f32 %v2161, 1.0
    %v2176 = vadd.f32 %v2163, 1.0
    %v2177 = vadd.f32 %v2165, 1.0
    %v2178 = vadd.f32 %v2167, 1.0
    %v2179 = vadd.f32 %v2169, 1.0
    %v2180 = vadd.f32 %v2171, 1.0
    %v2181 = vadd.f32 %v2173, 1.0
    %v2182 = vrcp.pop %v2174
    %v2183 = vmul.f32 1.0, %v2182
    %v2184 = vrcp.pop %v2175
    %v2185 = vmul.f32 1.0, %v2184
    %v2186 = vrcp.pop %v2176
    %v2187 = vmul.f32 1.0, %v2186
    %v2188 = vrcp.pop %v2177
    %v2189 = vmul.f32 1.0, %v2188
    %v2190 = vrcp.pop %v2178
    %v2191 = vmul.f32 1.0, %v2190
    %v2192 = vrcp.pop %v2179
    %v2193 = vmul.f32 1.0, %v2192
    %v2194 = vrcp.pop %v2180
    %v2195 = vmul.f32 1.0, %v2194
    %v2196 = vrcp.pop %v2181
    %v2197 = vmul.f32 1.0, %v2196
    %v2198 = vmul.f32 %v2183, %v2120
    %v2199 = vmul.f32 %v2185, %v2123
    %v2200 = vmul.f32 %v2187, %v2128
    %v2201 = vmul.f32 %v2189, %v2131
    %v2202 = vmul.f32 %v2191, %v2136
    %v2203 = vmul.f32 %v2193, %v2139
    %v2204 = vmul.f32 %v2195, %v2144
    %v2205 = vmul.f32 %v2197, %v2147
    %v2206 = vadd.f32 %v1523, %v2198
    %v2207 = vadd.f32 %v1524, %v2199
    %v2208 = vadd.f32 %v1525, %v2200
    %v2209 = vadd.f32 %v1526, %v2201
    %v2210 = vadd.f32 %v1527, %v2202
    %v2211 = vadd.f32 %v1528, %v2203
    %v2212 = vadd.f32 %v1529, %v2204
    %v2213 = vadd.f32 %v1530, %v2205
    %2214 = vst [vmem:[#allocation25] sm:$0xff] %v2206
    %2215 = vst [vmem:[#allocation25 + $0x8] sm:$0xff] %v2207
    %2216 = vst [vmem:[#allocation25 + $0x10] sm:$0xff] %v2208
    %2217 = vst [vmem:[#allocation25 + $0x18] sm:$0xff] %v2209
    %2218 = vst [vmem:[#allocation25 + $0x20] sm:$0xff] %v2210
    %2219 = vst [vmem:[#allocation25 + $0x28] sm:$0xff] %v2211
    %2220 = vst [vmem:[#allocation25 + $0x30] sm:$0xff] %v2212
    %2221 = vst [vmem:[#allocation25 + $0x38] sm:$0xff] %v2213
    %v2222 = vld [vmem:[#allocation5] sm:$0xff]
    %2223 = vst [vmem:[#allocation26] sm:$0xff] %v2222
    %v2224 = vld [vmem:[#allocation4] sm:$0xff]
    %v2225 = vld [vmem:[#allocation4 + $0x8] sm:$0xff]
    %v2226 = vld [vmem:[#allocation4 + $0x10] sm:$0xff]
    %v2227 = vmul.f32 %v2224, %v248
    %v2228 = vmul.f32 %v2225, %v248
    %v2229 = vmul.f32 %v2226, %v248
    %2230 = vst [vmem:[#allocation28] sm:$0xff] %v2227
    %2231 = vst [vmem:[#allocation28 + $0x8] sm:$0xff] %v2228
    %2232 = vst [vmem:[#allocation28 + $0x10] sm:$0xff] %v2229
    %v2233 = vld [vmem:[#allocation6] sm:$0xff]
    %2234 = vst [vmem:[#allocation29] sm:$0xff] %v2233
    // Predicated region
    $region146: #{tpu_custom_call.1} parent=1 // pred_check
      _
    $region147: #{tpu_custom_call.1} parent=1 // pred_check_branch
      %2236 = sbr.rel (0) target = $region149
    $region148: #{tpu_custom_call.1} parent=1 // pred_region
      %s2238 = ssub.s32 1024, 1024
      %2239 = vsyncadd [#allocation9], %s2238
      %s2240 = sshll.u32 [#allocation25], 4
      %s2241 = int_to_ptr.vmem [resolvable:$true] %s2240
      %2246 = dma.vmem_to_hbm [thread:$0]  %s2241, 1024, %s24, [#allocation9], 128, 128, 8
    $region149: #{tpu_custom_call.1} parent=1 // pred_fallthru
      _
    // Predicated region
    $region150: #{tpu_custom_call.1} parent=1 // pred_check
      _
    $region151: #{tpu_custom_call.1} parent=1 // pred_check_branch
      %2248 = sbr.rel (0) target = $region153
    $region152: #{tpu_custom_call.1} parent=1 // pred_region
      %s2250 = ssub.s32 128, 128
      %2251 = vsyncadd [#allocation27], %s2250
      %s2253 = sshll.u32 [#allocation26], 4
      %s2254 = int_to_ptr.vmem [resolvable:$true] %s2253
      %2256 = dma.vmem_to_hbm [thread:$0]  %s2254, 128, %s25, [#allocation27]
    $region153: #{tpu_custom_call.1} parent=1 // pred_fallthru
      _
    // Predicated region
    $region154: #{tpu_custom_call.1} parent=1 // pred_check
      _
    $region155: #{tpu_custom_call.1} parent=1 // pred_check_branch
      %2258 = sbr.rel (0) target = $region157
    $region156: #{tpu_custom_call.1} parent=1 // pred_region
      %s2260 = ssub.s32 384, 384
      %2261 = vsyncadd [#allocation27], %s2260
      %s2262 = sshll.u32 [#allocation28], 4
      %s2263 = int_to_ptr.vmem [resolvable:$true] %s2262
      %2268 = dma.vmem_to_hbm [thread:$0]  %s2263, 384, %s26, [#allocation27], 128, 128, 8
    $region157: #{tpu_custom_call.1} parent=1 // pred_fallthru
      _
    // Predicated region
    $region158: #{tpu_custom_call.1} parent=1 // pred_check
      _
    $region159: #{tpu_custom_call.1} parent=1 // pred_check_branch
      %2270 = sbr.rel (0) target = $region161
    $region160: #{tpu_custom_call.1} parent=1 // pred_region
      %s2272 = ssub.s32 128, 128
      %2273 = vsyncadd [#allocation30], %s2272
      %s2275 = sshll.u32 [#allocation29], 4
      %s2276 = int_to_ptr.vmem [resolvable:$true] %s2275
      %2278 = dma.vmem_to_hbm [thread:$0]  %s2276, 128, %s27, [#allocation30]
    $region161: #{tpu_custom_call.1} parent=1 // pred_fallthru
      _
    // Predicated region
    $region162: #{tpu_custom_call.1} parent=1 // pred_check
      _
    $region163: #{tpu_custom_call.1} parent=1 // pred_check_branch
      %2280 = sbr.rel (0) target = $region165
    $region164: #{tpu_custom_call.1} parent=1 // pred_region
      %2281 = dma.done [#allocation9], 1024
    $region165: #{tpu_custom_call.1} parent=1 // pred_fallthru
      _
    // Predicated region
    $region166: #{tpu_custom_call.1} parent=1 // pred_check
      _
    $region167: #{tpu_custom_call.1} parent=1 // pred_check_branch
      %2283 = sbr.rel (0) target = $region169
    $region168: #{tpu_custom_call.1} parent=1 // pred_region
      %2284 = dma.done [#allocation27], 128
    $region169: #{tpu_custom_call.1} parent=1 // pred_fallthru
      _
    // Predicated region
    $region170: #{tpu_custom_call.1} parent=1 // pred_check
      _
    $region171: #{tpu_custom_call.1} parent=1 // pred_check_branch
      %2286 = sbr.rel (0) target = $region173
    $region172: #{tpu_custom_call.1} parent=1 // pred_region
      %2287 = dma.done [#allocation27], 384
    $region173: #{tpu_custom_call.1} parent=1 // pred_fallthru
      _
    // Predicated region
    $region174: #{tpu_custom_call.1} parent=1 // pred_check
      _
    $region175: #{tpu_custom_call.1} parent=1 // pred_check_branch
      %2289 = sbr.rel (0) target = $region177
    $region176: #{tpu_custom_call.1} parent=1 // pred_region
      %2290 = dma.done [#allocation30], 128
    $region177: #{tpu_custom_call.1} parent=1 // pred_fallthru
      _
    %2291 = vsyncpa [#allocation8], 1
    %2292 = vsyncpa [#allocation11], 1
    %2293 = vsyncpa [#allocation14], 1
    %2294 = vsyncpa [#allocation17], 1
    %2295 = vsyncpa [#allocation20], 1
    %2296 = vsyncpa [#allocation23], 1
    %2297 = vsyncpa [#allocation9], 1
    %2298 = vsyncpa [#allocation27], 1
    %2299 = vsyncpa [#allocation30], 1

</llo_original>
